<compile_context>
chip_gen: v6e
topology: v6e:2x2x1
jax: 0.10.0
libtpu: 0.0.40
codegen_flags: <defaults>
</compile_context>

<pallas_src>
import math

import numpy as np

import jax
import jax.numpy as jnp
from jax import lax
from jax.experimental import pallas as pl
from jax.experimental.pallas import tpu as pltpu


GROWTH = 12
N_LAYERS = 3
NUM_CLASSES = 10

_COMPILER_PARAMS = pltpu.CompilerParams(vmem_limit_bytes=32 * 1024 * 1024)


def _vmem():
    return pl.BlockSpec(memory_space=pltpu.MemorySpace.VMEM)


def _round_up(n, m):
    return ((n + m - 1) // m) * m


def _out_size(n, k, s, p):
    return (n + 2 * p - k) // s + 1


# --------------------- trace-time geometry constants (numpy) --------------------- #

def _stem_patch_index(B, Hin, Win):
    """Gather indices for the fused Conv2d(7,s2,p3) + MaxPool2d(3,s2,p1) stem.

    Patch rows are ordered (pool_tap p, b, hp, wp) so the in-kernel maxpool is a
    plain jnp.maximum over 9 contiguous row slices.  Pool taps that fall outside
    the conv output are clamped to the (always valid) window centre, which leaves
    the max unchanged.  Indices address the spatially zero-padded (pad=3) input."""
    Hc, Wc = _out_size(Hin, 7, 2, 3), _out_size(Win, 7, 2, 3)
    Hp, Wp = _out_size(Hc, 3, 2, 1), _out_size(Wc, 3, 2, 1)
    Np = B * Hp * Wp
    b_idx = np.zeros((9 * Np,), np.int32)
    hi = np.zeros((9 * Np, 49), np.int32)
    wi = np.zeros((9 * Np, 49), np.int32)
    for p in range(9):
        dpi, dpj = p // 3 - 1, p % 3 - 1
        for b in range(B):
            for hp in range(Hp):
                for wp in range(Wp):
                    hc, wc = 2 * hp + dpi, 2 * wp + dpj
                    if not (0 <= hc < Hc):
                        hc = 2 * hp
                    if not (0 <= wc < Wc):
                        wc = 2 * wp
                    r = p * Np + b * Hp * Wp + hp * Wp + wp
                    b_idx[r] = b
                    for ti in range(7):
                        for tj in range(7):
                            hi[r, ti * 7 + tj] = 2 * hc + ti   # +3 pad folded in
                            wi[r, ti * 7 + tj] = 2 * wc + tj
    return b_idx, hi, wi, Np, Hp, Wp


def _conv3x3_gather_np(B, H, W):
    """[9*M, M] 0/1 one-hot gather (tap-stacked) for a 3x3 / stride-1 / pad-1 conv."""
    M = B * H * W
    G = np.zeros((9 * M, M), np.float32)
    for t in range(9):
        di, dj = t // 3 - 1, t % 3 - 1
        for b in range(B):
            for h in range(H):
                for w in range(W):
                    hs, ws = h + di, w + dj
                    if 0 <= hs < H and 0 <= ws < W:
                        G[t * M + b * H * W + h * W + w,
                          b * H * W + hs * W + ws] = 1.0
    return G


def _avgpool2_np(B, H, W):
    """[B*Ho*Wo, B*H*W] averaging matrix for AvgPool2d(2, stride=2) (0.25 entries)."""
    Ho, Wo = H // 2, W // 2
    A = np.zeros((B * Ho * Wo, B * H * W), np.float32)
    for b in range(B):
        for ho in range(Ho):
            for wo in range(Wo):
                for p in range(2):
                    for q in range(2):
                        A[b * Ho * Wo + ho * Wo + wo,
                          b * H * W + (2 * ho + p) * W + (2 * wo + q)] = 0.25
    return A


def _gap_np(B, HW):
    """[B, B*HW] per-image spatial mean (AdaptiveAvgPool2d((1, 1)))."""
    G = np.zeros((B, B * HW), np.float32)
    for b in range(B):
        G[b, b * HW:(b + 1) * HW] = 1.0 / HW
    return G


# ------------------------------- the fused kernel --------------------------------- #

def _densenet_kernel(patches_ref, w0_ref,
                     g1_ref, gam1_ref, bet1_ref, w1_ref,
                     tg1_ref, tb1_ref, a1_ref, tw1_ref,
                     g2_ref, gam2_ref, bet2_ref, w2_ref,
                     tg2_ref, tb2_ref, a2_ref, tw2_ref,
                     gam3_ref, bet3_ref, w3_ref,
                     gap_ref, fcw_ref, fcb_ref,
                     out_ref):
    f32, bf16 = jnp.float32, jnp.bfloat16

    def bn_relu(x, gamma, beta):
        # Training-mode BatchNorm2d (batch statistics, biased var) + ReLU, all f32 VPU.
        mean = jnp.mean(x, axis=0, keepdims=True)
        xc = x - mean
        var = jnp.mean(xc * xc, axis=0, keepdims=True)
        inv = lax.rsqrt(var + 1e-5)
        return jnp.maximum(xc * (inv * gamma) + beta, 0.0)

    def dense_block(buf, g_ref, gam_ref, bet_ref, w_ref):
        M, Cp = buf.shape
        n_layers = gam_ref.shape[0]
        center_only = (w_ref.shape[1] == Cp)     # block at 1x1 spatial -> centre tap
        for l in range(n_layers):
            xn = bn_relu(buf, gam_ref[l:l + 1, :], bet_ref[l:l + 1, :])
            xnb = xn.astype(bf16)
            wl = w_ref[l]
            if center_only:
                conv = jnp.dot(xnb, wl, preferred_element_type=f32)        # [M, 128]
            else:
                # bf16 one-hot gathers -> lane-concat patch slab -> single deep-K dot.
                slabs = [jnp.dot(g_ref[t * M:(t + 1) * M, :], xnb,
                                 preferred_element_type=f32).astype(bf16)
                         for t in range(9)]
                patches = jnp.concatenate(slabs, axis=1)                    # [M, 9*Cp]
                conv = jnp.dot(patches, wl, preferred_element_type=f32)     # [M, 128]
            # torch.cat == add into the 128-lane group that holds this layer's output.
            if conv.shape[1] == Cp:
                buf = buf + conv
            else:
                lo = Cp - conv.shape[1]
                buf = jnp.concatenate([buf[:, :lo], buf[:, lo:] + conv], axis=1)
        return buf

    def transition(buf, tg_ref, tb_ref, a_ref, tw_ref):
        xn = bn_relu(buf, tg_ref[...], tb_ref[...])
        y = jnp.dot(xn.astype(bf16), tw_ref[...], preferred_element_type=f32)   # 1x1 conv
        return jnp.dot(a_ref[...], y.astype(bf16), preferred_element_type=f32)  # 2x2 avgpool

    # ---- stem: one bf16 conv dot over duplicated patch rows + VPU maxpool ----
    conv_dup = jnp.dot(patches_ref[...].astype(bf16), w0_ref[...],
                       preferred_element_type=f32)                 # [9*M1, 128]
    m1 = conv_dup.shape[0] // 9
    buf = conv_dup[:m1, :]
    for p in range(1, 9):
        buf = jnp.maximum(buf, conv_dup[p * m1:(p + 1) * m1, :])

    # ---- block1 -> trans1 -> block2 -> trans2 -> block3 ----
    buf = dense_block(buf, g1_ref, gam1_ref, bet1_ref, w1_ref)
    buf = transition(buf, tg1_ref, tb1_ref, a1_ref, tw1_ref)

    cp2 = gam2_ref.shape[1]
    if cp2 > buf.shape[1]:
        buf = jnp.concatenate(
            [buf, jnp.zeros((buf.shape[0], cp2 - buf.shape[1]), f32)], axis=1)
    buf = dense_block(buf, g2_ref, gam2_ref, bet2_ref, w2_ref)
    buf = transition(buf, tg2_ref, tb2_ref, a2_ref, tw2_ref)

    buf = dense_block(buf, None, gam3_ref, bet3_ref, w3_ref)       # 1x1 spatial

    # ---- head: GAP + Linear (padded to 128 output lanes) ----
    feat = jnp.dot(gap_ref[...], buf.astype(bf16), preferred_element_type=f32)
    out_ref[...] = jnp.dot(feat.astype(bf16), fcw_ref[...],
                           preferred_element_type=f32) + fcb_ref[...]


# ---------------------------------- forward --------------------------------------- #

def simple_densenet_forward(x_nchw, params):
    B, Cin, Hin, Win = x_nchw.shape
    assert Cin == 3, "SimpleDenseNet stem is Conv2d(3, 64, 7, ...)"

    Hc, Wc = _out_size(Hin, 7, 2, 3), _out_size(Win, 7, 2, 3)
    Hp, Wp = _out_size(Hc, 3, 2, 1), _out_size(Wc, 3, 2, 1)       # block1 spatial
    H2, W2 = Hp // 2, Wp // 2                                      # block2 spatial
    H3, W3 = H2 // 2, W2 // 2                                      # block3 spatial
    # init_params stores block3 with centre-tap-only weights (valid iff 1x1 spatial).
    assert H3 == 1 and W3 == 1, "block3 weights assume a 1x1 final feature map"

    # --- stem im2col: static-index gather done by XLA in the wrapper ---
    # TODO(synk): the stride-2 patch gather stays in XLA (constant indices); doing it
    # in-kernel would need strided sublane slicing which has no clean Pallas mapping.
    b_idx, hi, wi, Np1, _, _ = _stem_patch_index(B, Hin, Win)
    x_nhwc = jnp.transpose(x_nchw, (0, 2, 3, 1))
    xpad = jnp.pad(x_nhwc, ((0, 0), (3, 3), (3, 3), (0, 0)))
    patches = xpad[b_idx[:, None], hi, wi, :].reshape(9 * Np1, 49 * Cin)
    k0p = params["w0"].shape[0]
    patches = jnp.pad(patches, ((0, 0), (0, k0p - 49 * Cin)))      # [9*M1, k0p] f32

    # --- geometry constants (bf16 one-hot / averaging matrices, built at trace time) ---
    G1 = jnp.asarray(_conv3x3_gather_np(B, Hp, Wp), jnp.bfloat16)
    A1 = jnp.asarray(_avgpool2_np(B, Hp, Wp), jnp.bfloat16)
    G2 = jnp.asarray(_conv3x3_gather_np(B, H2, W2), jnp.bfloat16)
    A2 = jnp.asarray(_avgpool2_np(B, H2, W2), jnp.bfloat16)
    GAP = jnp.asarray(_gap_np(B, H3 * W3), jnp.bfloat16)

    gam1, bet1, W1 = params["block1"]
    tg1, tb1, tw1 = params["trans1"]
    gam2, bet2, W2p = params["block2"]
    tg2, tb2, tw2 = params["trans2"]
    gam3, bet3, W3p = params["block3"]
    fc_w, fc_b = params["fc_w"], params["fc_b"]

    operands = (patches, params["w0"],
                G1, gam1, bet1, W1, tg1, tb1, A1, tw1,
                G2, gam2, bet2, W2p, tg2, tb2, A2, tw2,
                gam3, bet3, W3p, GAP, fc_w, fc_b)

    # --- honest cost estimate (only the real bf16 dots) ---
    M1, M2, M3 = B * Hp * Wp, B * H2 * W2, B * H3 * W3
    nl = gam1.shape[0]
    flops = 2 * patches.shape[0] * patches.shape[1] * 128
    flops += nl * (9 * 2 * M1 * M1 * gam1.shape[1] + 2 * M1 * W1.shape[1] * 128)
    flops += 2 * M1 * tw1.shape[0] * 128 + 2 * M2 * M1 * 128
    flops += nl * (9 * 2 * M2 * M2 * gam2.shape[1] + 2 * M2 * W2p.shape[1] * 128)
    flops += 2 * M2 * tw2.shape[0] * 128 + 2 * M3 * M2 * 128
    flops += nl * 2 * M3 * W3p.shape[1] * 128
    flops += 2 * B * M3 * 128 + 2 * B * fc_w.shape[0] * fc_w.shape[1]
    transcendentals = nl * (gam1.shape[1] + gam2.shape[1] + gam3.shape[1]) \
        + tg1.shape[1] + tg2.shape[1]
    bytes_accessed = sum(int(a.size) * a.dtype.itemsize for a in operands) \
        + 4 * B * fc_w.shape[1]

    out = pl.pallas_call(
        _densenet_kernel,
        out_shape=jax.ShapeDtypeStruct((B, fc_w.shape[1]), jnp.float32),
        in_specs=[_vmem()] * len(operands),
        out_specs=_vmem(),
        compiler_params=_COMPILER_PARAMS,
        cost_estimate=pl.CostEstimate(flops=int(flops),
                                      transcendentals=int(transcendentals),
                                      bytes_accessed=int(bytes_accessed)),
    )(*operands)
    return out[:, :NUM_CLASSES]


# ------------------------------ parameter creation -------------------------------- #

def init_params(key, growth=GROWTH, n_layers=N_LAYERS, num_classes=NUM_CLASSES):
    keys = iter(jax.random.split(key, 64))
    f32, bf16 = jnp.float32, jnp.bfloat16

    def conv_w(cout, cin, k):
        std = math.sqrt(2.0 / (cin * k * k))
        return std * jax.random.normal(next(keys), (cout, cin, k, k), dtype=f32)

    def bn_params(c, cp):
        g = 1.0 + 0.1 * jax.random.normal(next(keys), (c,), dtype=f32)
        b = 0.1 * jax.random.normal(next(keys), (c,), dtype=f32)
        return (jnp.zeros((cp,), f32).at[:c].set(g),
                jnp.zeros((cp,), f32).at[:c].set(b))

    p = {}

    # Stem conv 3->64 (7x7): rows = (ti*7+tj)*3 + cin, lane-dense 128 output columns.
    w = conv_w(64, 3, 7)
    w = jnp.transpose(w, (2, 3, 1, 0)).reshape(49 * 3, 64)
    k0p = _round_up(49 * 3, 128)
    p["w0"] = jnp.zeros((k0p, 128), f32).at[:49 * 3, :64].set(w).astype(bf16)

    def dense_block(c0, cp, center_only):
        gams, bets, ws = [], [], []
        c = c0
        off = cp - 128                       # lane offset of the 128-lane output group
        for _ in range(n_layers):
            g, b = bn_params(c, cp)
            w = conv_w(growth, c, 3)                              # [G, c, 3, 3]
            w = jnp.transpose(w, (2, 3, 1, 0))                    # [di, dj, c, G]
            col = c - off
            if center_only:                                       # 1x1 spatial block
                wl = (jnp.zeros((cp, 128), f32)
                      .at[:c, col:col + growth].set(w[1, 1]))
            else:                                                  # tap-stacked [9*cp, 128]
                wl = (jnp.zeros((9, cp, 128), f32)
                      .at[:, :c, col:col + growth].set(w.reshape(9, c, growth))
                      .reshape(9 * cp, 128))
            gams.append(g)
            bets.append(b)
            ws.append(wl.astype(bf16))
            c += growth
        return (jnp.stack(gams), jnp.stack(bets), jnp.stack(ws)), c

    def transition(c_in, cp_in, c_out):
        g, b = bn_params(c_in, cp_in)
        w = conv_w(c_out, c_in, 1)[:, :, 0, 0]                    # [c_out, c_in]
        wt = (jnp.zeros((cp_in, 128), f32)
              .at[:c_in, :c_out].set(jnp.transpose(w)).astype(bf16))
        return (g.reshape(1, cp_in), b.reshape(1, cp_in), wt)

    cp1 = _round_up(64 + n_layers * growth, 128)                  # 128
    p["block1"], c = dense_block(64, cp1, center_only=False)      # c = 100
    cp2 = _round_up(128 + n_layers * growth, 128)                 # 256
    p["trans1"] = transition(c, cp1, 128)

    p["block2"], c = dense_block(128, cp2, center_only=False)     # c = 164
    cp3 = _round_up(64 + n_layers * growth, 128)                  # 128
    p["trans2"] = transition(c, cp2, 64)

    # Final block runs at 1x1 spatial for 16x16 inputs -> only the 3x3 centre tap.
    p["block3"], c = dense_block(64, cp3, center_only=True)       # c = 100

    std = math.sqrt(1.0 / c)
    fw = std * jax.random.normal(next(keys), (num_classes, c), dtype=f32)
    fb = std * jax.random.normal(next(keys), (num_classes,), dtype=f32)
    npad = _round_up(num_classes, 128)                            # 128
    p["fc_w"] = (jnp.zeros((cp3, npad), f32)
                 .at[:c, :num_classes].set(jnp.transpose(fw)).astype(bf16))
    p["fc_b"] = jnp.zeros((1, npad), f32).at[0, :num_classes].set(fb)
    return p


# ------------------------------------ main ----------------------------------------- #

if __name__ == "__main__":
    x = jax.random.normal(jax.random.PRNGKey(0), (2, 3, 16, 16),
                          dtype=jnp.float32)       # NCHW, same as the PyTorch module
    params = init_params(jax.random.PRNGKey(42))

    fwd = jax.jit(simple_densenet_forward)
    logits = fwd(x, params)
    jax.block_until_ready(logits)

    assert logits.shape == (2, NUM_CLASSES), logits.shape
    assert bool(jnp.all(jnp.isfinite(logits)))
    print("KERNEL_OK")
</pallas_src>

<mosaic_0001>
module attributes {stable_mosaic.version = 11 : i64} {
  func.func @_densenet_kernel(%arg0: memref<288x256xf32, #tpu.memory_space<vmem>>, %arg1: memref<256x128xbf16, #tpu.memory_space<vmem>>, %arg2: memref<288x32xbf16, #tpu.memory_space<vmem>>, %arg3: memref<3x128xf32, #tpu.memory_space<vmem>>, %arg4: memref<3x128xf32, #tpu.memory_space<vmem>>, %arg5: memref<3x1152x128xbf16, #tpu.memory_space<vmem>>, %arg6: memref<1x128xf32, #tpu.memory_space<vmem>>, %arg7: memref<1x128xf32, #tpu.memory_space<vmem>>, %arg8: memref<8x32xbf16, #tpu.memory_space<vmem>>, %arg9: memref<128x128xbf16, #tpu.memory_space<vmem>>, %arg10: memref<72x8xbf16, #tpu.memory_space<vmem>>, %arg11: memref<3x256xf32, #tpu.memory_space<vmem>>, %arg12: memref<3x256xf32, #tpu.memory_space<vmem>>, %arg13: memref<3x2304x128xbf16, #tpu.memory_space<vmem>>, %arg14: memref<1x256xf32, #tpu.memory_space<vmem>>, %arg15: memref<1x256xf32, #tpu.memory_space<vmem>>, %arg16: memref<2x8xbf16, #tpu.memory_space<vmem>>, %arg17: memref<256x128xbf16, #tpu.memory_space<vmem>>, %arg18: memref<3x128xf32, #tpu.memory_space<vmem>>, %arg19: memref<3x128xf32, #tpu.memory_space<vmem>>, %arg20: memref<3x128x128xbf16, #tpu.memory_space<vmem>>, %arg21: memref<2x2xbf16, #tpu.memory_space<vmem>>, %arg22: memref<128x128xbf16, #tpu.memory_space<vmem>>, %arg23: memref<1x128xf32, #tpu.memory_space<vmem>>, %arg24: memref<2x128xf32, #tpu.memory_space<vmem>>) attributes {dimension_semantics = [], scalar_prefetch = 0 : i64, scratch_operands = 0 : i64, tpu.core_type = #tpu.core_type<tc>} {
    %c0 = arith.constant 0 : index
    %c0_0 = arith.constant 0 : index
    %0 = vector.load %arg0[%c0, %c0_0] : memref<288x256xf32, #tpu.memory_space<vmem>>, vector<288x256xf32>
    %1 = arith.truncf %0 : vector<288x256xf32> to vector<288x256xbf16>
    %c0_1 = arith.constant 0 : index
    %c0_2 = arith.constant 0 : index
    %2 = vector.load %arg1[%c0_1, %c0_2] : memref<256x128xbf16, #tpu.memory_space<vmem>>, vector<256x128xbf16>
    %cst = arith.constant dense<0.000000e+00> : vector<288x128xf32>
    %3 = tpu.matmul %1, %2, %cst {dimension_numbers = #tpu.dot_dimension_numbers<[1], [0], [0], [1], [0, 0, 1, 1], [], []>} : vector<288x256xbf16>, vector<256x128xbf16>, vector<288x128xf32> -> vector<288x128xf32>
    %4 = vector.extract_strided_slice %3 {offsets = [0, 0], sizes = [32, 128], strides = [1, 1]} : vector<288x128xf32> to vector<32x128xf32>
    %5 = vector.extract_strided_slice %3 {offsets = [32, 0], sizes = [32, 128], strides = [1, 1]} : vector<288x128xf32> to vector<32x128xf32>
    %6 = arith.maximumf %4, %5 : vector<32x128xf32>
    %7 = vector.extract_strided_slice %3 {offsets = [64, 0], sizes = [32, 128], strides = [1, 1]} : vector<288x128xf32> to vector<32x128xf32>
    %8 = arith.maximumf %6, %7 : vector<32x128xf32>
    %9 = vector.extract_strided_slice %3 {offsets = [96, 0], sizes = [32, 128], strides = [1, 1]} : vector<288x128xf32> to vector<32x128xf32>
    %10 = arith.maximumf %8, %9 : vector<32x128xf32>
    %11 = vector.extract_strided_slice %3 {offsets = [128, 0], sizes = [32, 128], strides = [1, 1]} : vector<288x128xf32> to vector<32x128xf32>
    %12 = arith.maximumf %10, %11 : vector<32x128xf32>
    %13 = vector.extract_strided_slice %3 {offsets = [160, 0], sizes = [32, 128], strides = [1, 1]} : vector<288x128xf32> to vector<32x128xf32>
    %14 = arith.maximumf %12, %13 : vector<32x128xf32>
    %15 = vector.extract_strided_slice %3 {offsets = [192, 0], sizes = [32, 128], strides = [1, 1]} : vector<288x128xf32> to vector<32x128xf32>
    %16 = arith.maximumf %14, %15 : vector<32x128xf32>
    %17 = vector.extract_strided_slice %3 {offsets = [224, 0], sizes = [32, 128], strides = [1, 1]} : vector<288x128xf32> to vector<32x128xf32>
    %18 = arith.maximumf %16, %17 : vector<32x128xf32>
    %19 = vector.extract_strided_slice %3 {offsets = [256, 0], sizes = [32, 128], strides = [1, 1]} : vector<288x128xf32> to vector<32x128xf32>
    %20 = arith.maximumf %18, %19 : vector<32x128xf32>
    %c0_3 = arith.constant 0 : index
    %c0_4 = arith.constant 0 : index
    %21 = vector.load %arg3[%c0_3, %c0_4] : memref<3x128xf32, #tpu.memory_space<vmem>>, vector<1x128xf32>
    %c0_5 = arith.constant 0 : index
    %c0_6 = arith.constant 0 : index
    %22 = vector.load %arg4[%c0_5, %c0_6] : memref<3x128xf32, #tpu.memory_space<vmem>>, vector<1x128xf32>
    %cst_7 = arith.constant dense<0.000000e+00> : vector<128xf32>
    %23 = vector.multi_reduction <add>, %20, %cst_7 [0] : vector<32x128xf32> to vector<128xf32>
    %24 = vector.shape_cast %23 : vector<128xf32> to vector<1x128xf32>
    %cst_8 = arith.constant 3.200000e+01 : f32
    %25 = vector.broadcast %cst_8 : f32 to vector<1x128xf32>
    %26 = arith.divf %24, %25 : vector<1x128xf32>
    %27 = vector.broadcast %26 : vector<1x128xf32> to vector<32x128xf32>
    %28 = arith.subf %20, %27 : vector<32x128xf32>
    %29 = arith.mulf %28, %28 : vector<32x128xf32>
    %cst_9 = arith.constant dense<0.000000e+00> : vector<128xf32>
    %30 = vector.multi_reduction <add>, %29, %cst_9 [0] : vector<32x128xf32> to vector<128xf32>
    %31 = vector.shape_cast %30 : vector<128xf32> to vector<1x128xf32>
    %cst_10 = arith.constant 3.200000e+01 : f32
    %32 = vector.broadcast %cst_10 : f32 to vector<1x128xf32>
    %33 = arith.divf %31, %32 : vector<1x128xf32>
    %cst_11 = arith.constant 9.99999974E-6 : f32
    %34 = vector.broadcast %cst_11 : f32 to vector<1x128xf32>
    %35 = arith.addf %33, %34 : vector<1x128xf32>
    %36 = math.rsqrt %35 : vector<1x128xf32>
    %37 = arith.mulf %36, %21 : vector<1x128xf32>
    %38 = vector.broadcast %37 : vector<1x128xf32> to vector<32x128xf32>
    %39 = arith.mulf %28, %38 : vector<32x128xf32>
    %40 = vector.broadcast %22 : vector<1x128xf32> to vector<32x128xf32>
    %41 = arith.addf %39, %40 : vector<32x128xf32>
    %cst_12 = arith.constant 0.000000e+00 : f32
    %42 = vector.broadcast %cst_12 : f32 to vector<32x128xf32>
    %43 = arith.maximumf %41, %42 : vector<32x128xf32>
    %44 = arith.truncf %43 : vector<32x128xf32> to vector<32x128xbf16>
    %c0_13 = arith.constant 0 : index
    %c0_14 = arith.constant 0 : index
    %c0_15 = arith.constant 0 : index
    %45 = vector.load %arg5[%c0_13, %c0_14, %c0_15] : memref<3x1152x128xbf16, #tpu.memory_space<vmem>>, vector<1x1152x128xbf16>
    %46 = vector.shape_cast %45 : vector<1x1152x128xbf16> to vector<1152x128xbf16>
    %c0_16 = arith.constant 0 : index
    %c0_17 = arith.constant 0 : index
    %47 = vector.load %arg2[%c0_16, %c0_17] : memref<288x32xbf16, #tpu.memory_space<vmem>>, vector<32x32xbf16>
    %cst_18 = arith.constant dense<0.000000e+00> : vector<32x128xf32>
    %48 = tpu.matmul %47, %44, %cst_18 {dimension_numbers = #tpu.dot_dimension_numbers<[1], [0], [0], [1], [0, 0, 1, 1], [], []>} : vector<32x32xbf16>, vector<32x128xbf16>, vector<32x128xf32> -> vector<32x128xf32>
    %49 = arith.truncf %48 : vector<32x128xf32> to vector<32x128xbf16>
    %c32 = arith.constant 32 : index
    %c0_19 = arith.constant 0 : index
    %50 = vector.load %arg2[%c32, %c0_19] : memref<288x32xbf16, #tpu.memory_space<vmem>>, vector<32x32xbf16>
    %cst_20 = arith.constant dense<0.000000e+00> : vector<32x128xf32>
    %51 = tpu.matmul %50, %44, %cst_20 {dimension_numbers = #tpu.dot_dimension_numbers<[1], [0], [0], [1], [0, 0, 1, 1], [], []>} : vector<32x32xbf16>, vector<32x128xbf16>, vector<32x128xf32> -> vector<32x128xf32>
    %52 = arith.truncf %51 : vector<32x128xf32> to vector<32x128xbf16>
    %c64 = arith.constant 64 : index
    %c0_21 = arith.constant 0 : index
    %53 = vector.load %arg2[%c64, %c0_21] : memref<288x32xbf16, #tpu.memory_space<vmem>>, vector<32x32xbf16>
    %cst_22 = arith.constant dense<0.000000e+00> : vector<32x128xf32>
    %54 = tpu.matmul %53, %44, %cst_22 {dimension_numbers = #tpu.dot_dimension_numbers<[1], [0], [0], [1], [0, 0, 1, 1], [], []>} : vector<32x32xbf16>, vector<32x128xbf16>, vector<32x128xf32> -> vector<32x128xf32>
    %55 = arith.truncf %54 : vector<32x128xf32> to vector<32x128xbf16>
    %c96 = arith.constant 96 : index
    %c0_23 = arith.constant 0 : index
    %56 = vector.load %arg2[%c96, %c0_23] : memref<288x32xbf16, #tpu.memory_space<vmem>>, vector<32x32xbf16>
    %cst_24 = arith.constant dense<0.000000e+00> : vector<32x128xf32>
    %57 = tpu.matmul %56, %44, %cst_24 {dimension_numbers = #tpu.dot_dimension_numbers<[1], [0], [0], [1], [0, 0, 1, 1], [], []>} : vector<32x32xbf16>, vector<32x128xbf16>, vector<32x128xf32> -> vector<32x128xf32>
    %58 = arith.truncf %57 : vector<32x128xf32> to vector<32x128xbf16>
    %c128 = arith.constant 128 : index
    %c0_25 = arith.constant 0 : index
    %59 = vector.load %arg2[%c128, %c0_25] : memref<288x32xbf16, #tpu.memory_space<vmem>>, vector<32x32xbf16>
    %cst_26 = arith.constant dense<0.000000e+00> : vector<32x128xf32>
    %60 = tpu.matmul %59, %44, %cst_26 {dimension_numbers = #tpu.dot_dimension_numbers<[1], [0], [0], [1], [0, 0, 1, 1], [], []>} : vector<32x32xbf16>, vector<32x128xbf16>, vector<32x128xf32> -> vector<32x128xf32>
    %61 = arith.truncf %60 : vector<32x128xf32> to vector<32x128xbf16>
    %c160 = arith.constant 160 : index
    %c0_27 = arith.constant 0 : index
    %62 = vector.load %arg2[%c160, %c0_27] : memref<288x32xbf16, #tpu.memory_space<vmem>>, vector<32x32xbf16>
    %cst_28 = arith.constant dense<0.000000e+00> : vector<32x128xf32>
    %63 = tpu.matmul %62, %44, %cst_28 {dimension_numbers = #tpu.dot_dimension_numbers<[1], [0], [0], [1], [0, 0, 1, 1], [], []>} : vector<32x32xbf16>, vector<32x128xbf16>, vector<32x128xf32> -> vector<32x128xf32>
    %64 = arith.truncf %63 : vector<32x128xf32> to vector<32x128xbf16>
    %c192 = arith.constant 192 : index
    %c0_29 = arith.constant 0 : index
    %65 = vector.load %arg2[%c192, %c0_29] : memref<288x32xbf16, #tpu.memory_space<vmem>>, vector<32x32xbf16>
    %cst_30 = arith.constant dense<0.000000e+00> : vector<32x128xf32>
    %66 = tpu.matmul %65, %44, %cst_30 {dimension_numbers = #tpu.dot_dimension_numbers<[1], [0], [0], [1], [0, 0, 1, 1], [], []>} : vector<32x32xbf16>, vector<32x128xbf16>, vector<32x128xf32> -> vector<32x128xf32>
    %67 = arith.truncf %66 : vector<32x128xf32> to vector<32x128xbf16>
    %c224 = arith.constant 224 : index
    %c0_31 = arith.constant 0 : index
    %68 = vector.load %arg2[%c224, %c0_31] : memref<288x32xbf16, #tpu.memory_space<vmem>>, vector<32x32xbf16>
    %cst_32 = arith.constant dense<0.000000e+00> : vector<32x128xf32>
    %69 = tpu.matmul %68, %44, %cst_32 {dimension_numbers = #tpu.dot_dimension_numbers<[1], [0], [0], [1], [0, 0, 1, 1], [], []>} : vector<32x32xbf16>, vector<32x128xbf16>, vector<32x128xf32> -> vector<32x128xf32>
    %70 = arith.truncf %69 : vector<32x128xf32> to vector<32x128xbf16>
    %c256 = arith.constant 256 : index
    %c0_33 = arith.constant 0 : index
    %71 = vector.load %arg2[%c256, %c0_33] : memref<288x32xbf16, #tpu.memory_space<vmem>>, vector<32x32xbf16>
    %cst_34 = arith.constant dense<0.000000e+00> : vector<32x128xf32>
    %72 = tpu.matmul %71, %44, %cst_34 {dimension_numbers = #tpu.dot_dimension_numbers<[1], [0], [0], [1], [0, 0, 1, 1], [], []>} : vector<32x32xbf16>, vector<32x128xbf16>, vector<32x128xf32> -> vector<32x128xf32>
    %73 = arith.truncf %72 : vector<32x128xf32> to vector<32x128xbf16>
    %74 = tpu.concatenate %49, %52, %55, %58, %61, %64, %67, %70, %73 in 1 : vector<32x128xbf16>, vector<32x128xbf16>, vector<32x128xbf16>, vector<32x128xbf16>, vector<32x128xbf16>, vector<32x128xbf16>, vector<32x128xbf16>, vector<32x128xbf16>, vector<32x128xbf16> -> vector<32x1152xbf16>
    %cst_35 = arith.constant dense<0.000000e+00> : vector<32x128xf32>
    %75 = tpu.matmul %74, %46, %cst_35 {dimension_numbers = #tpu.dot_dimension_numbers<[1], [0], [0], [1], [0, 0, 1, 1], [], []>} : vector<32x1152xbf16>, vector<1152x128xbf16>, vector<32x128xf32> -> vector<32x128xf32>
    %76 = arith.addf %20, %75 : vector<32x128xf32>
    %c1 = arith.constant 1 : index
    %c0_36 = arith.constant 0 : index
    %77 = vector.load %arg3[%c1, %c0_36] : memref<3x128xf32, #tpu.memory_space<vmem>>, vector<1x128xf32>
    %c1_37 = arith.constant 1 : index
    %c0_38 = arith.constant 0 : index
    %78 = vector.load %arg4[%c1_37, %c0_38] : memref<3x128xf32, #tpu.memory_space<vmem>>, vector<1x128xf32>
    %cst_39 = arith.constant dense<0.000000e+00> : vector<128xf32>
    %79 = vector.multi_reduction <add>, %76, %cst_39 [0] : vector<32x128xf32> to vector<128xf32>
    %80 = vector.shape_cast %79 : vector<128xf32> to vector<1x128xf32>
    %cst_40 = arith.constant 3.200000e+01 : f32
    %81 = vector.broadcast %cst_40 : f32 to vector<1x128xf32>
    %82 = arith.divf %80, %81 : vector<1x128xf32>
    %83 = vector.broadcast %82 : vector<1x128xf32> to vector<32x128xf32>
    %84 = arith.subf %76, %83 : vector<32x128xf32>
    %85 = arith.mulf %84, %84 : vector<32x128xf32>
    %cst_41 = arith.constant dense<0.000000e+00> : vector<128xf32>
    %86 = vector.multi_reduction <add>, %85, %cst_41 [0] : vector<32x128xf32> to vector<128xf32>
    %87 = vector.shape_cast %86 : vector<128xf32> to vector<1x128xf32>
    %cst_42 = arith.constant 3.200000e+01 : f32
    %88 = vector.broadcast %cst_42 : f32 to vector<1x128xf32>
    %89 = arith.divf %87, %88 : vector<1x128xf32>
    %cst_43 = arith.constant 9.99999974E-6 : f32
    %90 = vector.broadcast %cst_43 : f32 to vector<1x128xf32>
    %91 = arith.addf %89, %90 : vector<1x128xf32>
    %92 = math.rsqrt %91 : vector<1x128xf32>
    %93 = arith.mulf %92, %77 : vector<1x128xf32>
    %94 = vector.broadcast %93 : vector<1x128xf32> to vector<32x128xf32>
    %95 = arith.mulf %84, %94 : vector<32x128xf32>
    %96 = vector.broadcast %78 : vector<1x128xf32> to vector<32x128xf32>
    %97 = arith.addf %95, %96 : vector<32x128xf32>
    %cst_44 = arith.constant 0.000000e+00 : f32
    %98 = vector.broadcast %cst_44 : f32 to vector<32x128xf32>
    %99 = arith.maximumf %97, %98 : vector<32x128xf32>
    %100 = arith.truncf %99 : vector<32x128xf32> to vector<32x128xbf16>
    %c1_45 = arith.constant 1 : index
    %c0_46 = arith.constant 0 : index
    %c0_47 = arith.constant 0 : index
    %101 = vector.load %arg5[%c1_45, %c0_46, %c0_47] : memref<3x1152x128xbf16, #tpu.memory_space<vmem>>, vector<1x1152x128xbf16>
    %102 = vector.shape_cast %101 : vector<1x1152x128xbf16> to vector<1152x128xbf16>
    %c0_48 = arith.constant 0 : index
    %c0_49 = arith.constant 0 : index
    %103 = vector.load %arg2[%c0_48, %c0_49] : memref<288x32xbf16, #tpu.memory_space<vmem>>, vector<32x32xbf16>
    %cst_50 = arith.constant dense<0.000000e+00> : vector<32x128xf32>
    %104 = tpu.matmul %103, %100, %cst_50 {dimension_numbers = #tpu.dot_dimension_numbers<[1], [0], [0], [1], [0, 0, 1, 1], [], []>} : vector<32x32xbf16>, vector<32x128xbf16>, vector<32x128xf32> -> vector<32x128xf32>
    %105 = arith.truncf %104 : vector<32x128xf32> to vector<32x128xbf16>
    %c32_51 = arith.constant 32 : index
    %c0_52 = arith.constant 0 : index
    %106 = vector.load %arg2[%c32_51, %c0_52] : memref<288x32xbf16, #tpu.memory_space<vmem>>, vector<32x32xbf16>
    %cst_53 = arith.constant dense<0.000000e+00> : vector<32x128xf32>
    %107 = tpu.matmul %106, %100, %cst_53 {dimension_numbers = #tpu.dot_dimension_numbers<[1], [0], [0], [1], [0, 0, 1, 1], [], []>} : vector<32x32xbf16>, vector<32x128xbf16>, vector<32x128xf32> -> vector<32x128xf32>
    %108 = arith.truncf %107 : vector<32x128xf32> to vector<32x128xbf16>
    %c64_54 = arith.constant 64 : index
    %c0_55 = arith.constant 0 : index
    %109 = vector.load %arg2[%c64_54, %c0_55] : memref<288x32xbf16, #tpu.memory_space<vmem>>, vector<32x32xbf16>
    %cst_56 = arith.constant dense<0.000000e+00> : vector<32x128xf32>
    %110 = tpu.matmul %109, %100, %cst_56 {dimension_numbers = #tpu.dot_dimension_numbers<[1], [0], [0], [1], [0, 0, 1, 1], [], []>} : vector<32x32xbf16>, vector<32x128xbf16>, vector<32x128xf32> -> vector<32x128xf32>
    %111 = arith.truncf %110 : vector<32x128xf32> to vector<32x128xbf16>
    %c96_57 = arith.constant 96 : index
    %c0_58 = arith.constant 0 : index
    %112 = vector.load %arg2[%c96_57, %c0_58] : memref<288x32xbf16, #tpu.memory_space<vmem>>, vector<32x32xbf16>
    %cst_59 = arith.constant dense<0.000000e+00> : vector<32x128xf32>
    %113 = tpu.matmul %112, %100, %cst_59 {dimension_numbers = #tpu.dot_dimension_numbers<[1], [0], [0], [1], [0, 0, 1, 1], [], []>} : vector<32x32xbf16>, vector<32x128xbf16>, vector<32x128xf32> -> vector<32x128xf32>
    %114 = arith.truncf %113 : vector<32x128xf32> to vector<32x128xbf16>
    %c128_60 = arith.constant 128 : index
    %c0_61 = arith.constant 0 : index
    %115 = vector.load %arg2[%c128_60, %c0_61] : memref<288x32xbf16, #tpu.memory_space<vmem>>, vector<32x32xbf16>
    %cst_62 = arith.constant dense<0.000000e+00> : vector<32x128xf32>
    %116 = tpu.matmul %115, %100, %cst_62 {dimension_numbers = #tpu.dot_dimension_numbers<[1], [0], [0], [1], [0, 0, 1, 1], [], []>} : vector<32x32xbf16>, vector<32x128xbf16>, vector<32x128xf32> -> vector<32x128xf32>
    %117 = arith.truncf %116 : vector<32x128xf32> to vector<32x128xbf16>
    %c160_63 = arith.constant 160 : index
    %c0_64 = arith.constant 0 : index
    %118 = vector.load %arg2[%c160_63, %c0_64] : memref<288x32xbf16, #tpu.memory_space<vmem>>, vector<32x32xbf16>
    %cst_65 = arith.constant dense<0.000000e+00> : vector<32x128xf32>
    %119 = tpu.matmul %118, %100, %cst_65 {dimension_numbers = #tpu.dot_dimension_numbers<[1], [0], [0], [1], [0, 0, 1, 1], [], []>} : vector<32x32xbf16>, vector<32x128xbf16>, vector<32x128xf32> -> vector<32x128xf32>
    %120 = arith.truncf %119 : vector<32x128xf32> to vector<32x128xbf16>
    %c192_66 = arith.constant 192 : index
    %c0_67 = arith.constant 0 : index
    %121 = vector.load %arg2[%c192_66, %c0_67] : memref<288x32xbf16, #tpu.memory_space<vmem>>, vector<32x32xbf16>
    %cst_68 = arith.constant dense<0.000000e+00> : vector<32x128xf32>
    %122 = tpu.matmul %121, %100, %cst_68 {dimension_numbers = #tpu.dot_dimension_numbers<[1], [0], [0], [1], [0, 0, 1, 1], [], []>} : vector<32x32xbf16>, vector<32x128xbf16>, vector<32x128xf32> -> vector<32x128xf32>
    %123 = arith.truncf %122 : vector<32x128xf32> to vector<32x128xbf16>
    %c224_69 = arith.constant 224 : index
    %c0_70 = arith.constant 0 : index
    %124 = vector.load %arg2[%c224_69, %c0_70] : memref<288x32xbf16, #tpu.memory_space<vmem>>, vector<32x32xbf16>
    %cst_71 = arith.constant dense<0.000000e+00> : vector<32x128xf32>
    %125 = tpu.matmul %124, %100, %cst_71 {dimension_numbers = #tpu.dot_dimension_numbers<[1], [0], [0], [1], [0, 0, 1, 1], [], []>} : vector<32x32xbf16>, vector<32x128xbf16>, vector<32x128xf32> -> vector<32x128xf32>
    %126 = arith.truncf %125 : vector<32x128xf32> to vector<32x128xbf16>
    %c256_72 = arith.constant 256 : index
    %c0_73 = arith.constant 0 : index
    %127 = vector.load %arg2[%c256_72, %c0_73] : memref<288x32xbf16, #tpu.memory_space<vmem>>, vector<32x32xbf16>
    %cst_74 = arith.constant dense<0.000000e+00> : vector<32x128xf32>
    %128 = tpu.matmul %127, %100, %cst_74 {dimension_numbers = #tpu.dot_dimension_numbers<[1], [0], [0], [1], [0, 0, 1, 1], [], []>} : vector<32x32xbf16>, vector<32x128xbf16>, vector<32x128xf32> -> vector<32x128xf32>
    %129 = arith.truncf %128 : vector<32x128xf32> to vector<32x128xbf16>
    %130 = tpu.concatenate %105, %108, %111, %114, %117, %120, %123, %126, %129 in 1 : vector<32x128xbf16>, vector<32x128xbf16>, vector<32x128xbf16>, vector<32x128xbf16>, vector<32x128xbf16>, vector<32x128xbf16>, vector<32x128xbf16>, vector<32x128xbf16>, vector<32x128xbf16> -> vector<32x1152xbf16>
    %cst_75 = arith.constant dense<0.000000e+00> : vector<32x128xf32>
    %131 = tpu.matmul %130, %102, %cst_75 {dimension_numbers = #tpu.dot_dimension_numbers<[1], [0], [0], [1], [0, 0, 1, 1], [], []>} : vector<32x1152xbf16>, vector<1152x128xbf16>, vector<32x128xf32> -> vector<32x128xf32>
    %132 = arith.addf %76, %131 : vector<32x128xf32>
    %c2 = arith.constant 2 : index
    %c0_76 = arith.constant 0 : index
    %133 = vector.load %arg3[%c2, %c0_76] : memref<3x128xf32, #tpu.memory_space<vmem>>, vector<1x128xf32>
    %c2_77 = arith.constant 2 : index
    %c0_78 = arith.constant 0 : index
    %134 = vector.load %arg4[%c2_77, %c0_78] : memref<3x128xf32, #tpu.memory_space<vmem>>, vector<1x128xf32>
    %cst_79 = arith.constant dense<0.000000e+00> : vector<128xf32>
    %135 = vector.multi_reduction <add>, %132, %cst_79 [0] : vector<32x128xf32> to vector<128xf32>
    %136 = vector.shape_cast %135 : vector<128xf32> to vector<1x128xf32>
    %cst_80 = arith.constant 3.200000e+01 : f32
    %137 = vector.broadcast %cst_80 : f32 to vector<1x128xf32>
    %138 = arith.divf %136, %137 : vector<1x128xf32>
    %139 = vector.broadcast %138 : vector<1x128xf32> to vector<32x128xf32>
    %140 = arith.subf %132, %139 : vector<32x128xf32>
    %141 = arith.mulf %140, %140 : vector<32x128xf32>
    %cst_81 = arith.constant dense<0.000000e+00> : vector<128xf32>
    %142 = vector.multi_reduction <add>, %141, %cst_81 [0] : vector<32x128xf32> to vector<128xf32>
    %143 = vector.shape_cast %142 : vector<128xf32> to vector<1x128xf32>
    %cst_82 = arith.constant 3.200000e+01 : f32
    %144 = vector.broadcast %cst_82 : f32 to vector<1x128xf32>
    %145 = arith.divf %143, %144 : vector<1x128xf32>
    %cst_83 = arith.constant 9.99999974E-6 : f32
    %146 = vector.broadcast %cst_83 : f32 to vector<1x128xf32>
    %147 = arith.addf %145, %146 : vector<1x128xf32>
    %148 = math.rsqrt %147 : vector<1x128xf32>
    %149 = arith.mulf %148, %133 : vector<1x128xf32>
    %150 = vector.broadcast %149 : vector<1x128xf32> to vector<32x128xf32>
    %151 = arith.mulf %140, %150 : vector<32x128xf32>
    %152 = vector.broadcast %134 : vector<1x128xf32> to vector<32x128xf32>
    %153 = arith.addf %151, %152 : vector<32x128xf32>
    %cst_84 = arith.constant 0.000000e+00 : f32
    %154 = vector.broadcast %cst_84 : f32 to vector<32x128xf32>
    %155 = arith.maximumf %153, %154 : vector<32x128xf32>
    %156 = arith.truncf %155 : vector<32x128xf32> to vector<32x128xbf16>
    %c2_85 = arith.constant 2 : index
    %c0_86 = arith.constant 0 : index
    %c0_87 = arith.constant 0 : index
    %157 = vector.load %arg5[%c2_85, %c0_86, %c0_87] : memref<3x1152x128xbf16, #tpu.memory_space<vmem>>, vector<1x1152x128xbf16>
    %158 = vector.shape_cast %157 : vector<1x1152x128xbf16> to vector<1152x128xbf16>
    %c0_88 = arith.constant 0 : index
    %c0_89 = arith.constant 0 : index
    %159 = vector.load %arg2[%c0_88, %c0_89] : memref<288x32xbf16, #tpu.memory_space<vmem>>, vector<32x32xbf16>
    %cst_90 = arith.constant dense<0.000000e+00> : vector<32x128xf32>
    %160 = tpu.matmul %159, %156, %cst_90 {dimension_numbers = #tpu.dot_dimension_numbers<[1], [0], [0], [1], [0, 0, 1, 1], [], []>} : vector<32x32xbf16>, vector<32x128xbf16>, vector<32x128xf32> -> vector<32x128xf32>
    %161 = arith.truncf %160 : vector<32x128xf32> to vector<32x128xbf16>
    %c32_91 = arith.constant 32 : index
    %c0_92 = arith.constant 0 : index
    %162 = vector.load %arg2[%c32_91, %c0_92] : memref<288x32xbf16, #tpu.memory_space<vmem>>, vector<32x32xbf16>
    %cst_93 = arith.constant dense<0.000000e+00> : vector<32x128xf32>
    %163 = tpu.matmul %162, %156, %cst_93 {dimension_numbers = #tpu.dot_dimension_numbers<[1], [0], [0], [1], [0, 0, 1, 1], [], []>} : vector<32x32xbf16>, vector<32x128xbf16>, vector<32x128xf32> -> vector<32x128xf32>
    %164 = arith.truncf %163 : vector<32x128xf32> to vector<32x128xbf16>
    %c64_94 = arith.constant 64 : index
    %c0_95 = arith.constant 0 : index
    %165 = vector.load %arg2[%c64_94, %c0_95] : memref<288x32xbf16, #tpu.memory_space<vmem>>, vector<32x32xbf16>
    %cst_96 = arith.constant dense<0.000000e+00> : vector<32x128xf32>
    %166 = tpu.matmul %165, %156, %cst_96 {dimension_numbers = #tpu.dot_dimension_numbers<[1], [0], [0], [1], [0, 0, 1, 1], [], []>} : vector<32x32xbf16>, vector<32x128xbf16>, vector<32x128xf32> -> vector<32x128xf32>
    %167 = arith.truncf %166 : vector<32x128xf32> to vector<32x128xbf16>
    %c96_97 = arith.constant 96 : index
    %c0_98 = arith.constant 0 : index
    %168 = vector.load %arg2[%c96_97, %c0_98] : memref<288x32xbf16, #tpu.memory_space<vmem>>, vector<32x32xbf16>
    %cst_99 = arith.constant dense<0.000000e+00> : vector<32x128xf32>
    %169 = tpu.matmul %168, %156, %cst_99 {dimension_numbers = #tpu.dot_dimension_numbers<[1], [0], [0], [1], [0, 0, 1, 1], [], []>} : vector<32x32xbf16>, vector<32x128xbf16>, vector<32x128xf32> -> vector<32x128xf32>
    %170 = arith.truncf %169 : vector<32x128xf32> to vector<32x128xbf16>
    %c128_100 = arith.constant 128 : index
    %c0_101 = arith.constant 0 : index
    %171 = vector.load %arg2[%c128_100, %c0_101] : memref<288x32xbf16, #tpu.memory_space<vmem>>, vector<32x32xbf16>
    %cst_102 = arith.constant dense<0.000000e+00> : vector<32x128xf32>
    %172 = tpu.matmul %171, %156, %cst_102 {dimension_numbers = #tpu.dot_dimension_numbers<[1], [0], [0], [1], [0, 0, 1, 1], [], []>} : vector<32x32xbf16>, vector<32x128xbf16>, vector<32x128xf32> -> vector<32x128xf32>
    %173 = arith.truncf %172 : vector<32x128xf32> to vector<32x128xbf16>
    %c160_103 = arith.constant 160 : index
    %c0_104 = arith.constant 0 : index
    %174 = vector.load %arg2[%c160_103, %c0_104] : memref<288x32xbf16, #tpu.memory_space<vmem>>, vector<32x32xbf16>
    %cst_105 = arith.constant dense<0.000000e+00> : vector<32x128xf32>
    %175 = tpu.matmul %174, %156, %cst_105 {dimension_numbers = #tpu.dot_dimension_numbers<[1], [0], [0], [1], [0, 0, 1, 1], [], []>} : vector<32x32xbf16>, vector<32x128xbf16>, vector<32x128xf32> -> vector<32x128xf32>
    %176 = arith.truncf %175 : vector<32x128xf32> to vector<32x128xbf16>
    %c192_106 = arith.constant 192 : index
    %c0_107 = arith.constant 0 : index
    %177 = vector.load %arg2[%c192_106, %c0_107] : memref<288x32xbf16, #tpu.memory_space<vmem>>, vector<32x32xbf16>
    %cst_108 = arith.constant dense<0.000000e+00> : vector<32x128xf32>
    %178 = tpu.matmul %177, %156, %cst_108 {dimension_numbers = #tpu.dot_dimension_numbers<[1], [0], [0], [1], [0, 0, 1, 1], [], []>} : vector<32x32xbf16>, vector<32x128xbf16>, vector<32x128xf32> -> vector<32x128xf32>
    %179 = arith.truncf %178 : vector<32x128xf32> to vector<32x128xbf16>
    %c224_109 = arith.constant 224 : index
    %c0_110 = arith.constant 0 : index
    %180 = vector.load %arg2[%c224_109, %c0_110] : memref<288x32xbf16, #tpu.memory_space<vmem>>, vector<32x32xbf16>
    %cst_111 = arith.constant dense<0.000000e+00> : vector<32x128xf32>
    %181 = tpu.matmul %180, %156, %cst_111 {dimension_numbers = #tpu.dot_dimension_numbers<[1], [0], [0], [1], [0, 0, 1, 1], [], []>} : vector<32x32xbf16>, vector<32x128xbf16>, vector<32x128xf32> -> vector<32x128xf32>
    %182 = arith.truncf %181 : vector<32x128xf32> to vector<32x128xbf16>
    %c256_112 = arith.constant 256 : index
    %c0_113 = arith.constant 0 : index
    %183 = vector.load %arg2[%c256_112, %c0_113] : memref<288x32xbf16, #tpu.memory_space<vmem>>, vector<32x32xbf16>
    %cst_114 = arith.constant dense<0.000000e+00> : vector<32x128xf32>
    %184 = tpu.matmul %183, %156, %cst_114 {dimension_numbers = #tpu.dot_dimension_numbers<[1], [0], [0], [1], [0, 0, 1, 1], [], []>} : vector<32x32xbf16>, vector<32x128xbf16>, vector<32x128xf32> -> vector<32x128xf32>
    %185 = arith.truncf %184 : vector<32x128xf32> to vector<32x128xbf16>
    %186 = tpu.concatenate %161, %164, %167, %170, %173, %176, %179, %182, %185 in 1 : vector<32x128xbf16>, vector<32x128xbf16>, vector<32x128xbf16>, vector<32x128xbf16>, vector<32x128xbf16>, vector<32x128xbf16>, vector<32x128xbf16>, vector<32x128xbf16>, vector<32x128xbf16> -> vector<32x1152xbf16>
    %cst_115 = arith.constant dense<0.000000e+00> : vector<32x128xf32>
    %187 = tpu.matmul %186, %158, %cst_115 {dimension_numbers = #tpu.dot_dimension_numbers<[1], [0], [0], [1], [0, 0, 1, 1], [], []>} : vector<32x1152xbf16>, vector<1152x128xbf16>, vector<32x128xf32> -> vector<32x128xf32>
    %188 = arith.addf %132, %187 : vector<32x128xf32>
    %c0_116 = arith.constant 0 : index
    %c0_117 = arith.constant 0 : index
    %189 = vector.load %arg6[%c0_116, %c0_117] : memref<1x128xf32, #tpu.memory_space<vmem>>, vector<1x128xf32>
    %c0_118 = arith.constant 0 : index
    %c0_119 = arith.constant 0 : index
    %190 = vector.load %arg7[%c0_118, %c0_119] : memref<1x128xf32, #tpu.memory_space<vmem>>, vector<1x128xf32>
    %cst_120 = arith.constant dense<0.000000e+00> : vector<128xf32>
    %191 = vector.multi_reduction <add>, %188, %cst_120 [0] : vector<32x128xf32> to vector<128xf32>
    %192 = vector.shape_cast %191 : vector<128xf32> to vector<1x128xf32>
    %cst_121 = arith.constant 3.200000e+01 : f32
    %193 = vector.broadcast %cst_121 : f32 to vector<1x128xf32>
    %194 = arith.divf %192, %193 : vector<1x128xf32>
    %195 = vector.broadcast %194 : vector<1x128xf32> to vector<32x128xf32>
    %196 = arith.subf %188, %195 : vector<32x128xf32>
    %197 = arith.mulf %196, %196 : vector<32x128xf32>
    %cst_122 = arith.constant dense<0.000000e+00> : vector<128xf32>
    %198 = vector.multi_reduction <add>, %197, %cst_122 [0] : vector<32x128xf32> to vector<128xf32>
    %199 = vector.shape_cast %198 : vector<128xf32> to vector<1x128xf32>
    %cst_123 = arith.constant 3.200000e+01 : f32
    %200 = vector.broadcast %cst_123 : f32 to vector<1x128xf32>
    %201 = arith.divf %199, %200 : vector<1x128xf32>
    %cst_124 = arith.constant 9.99999974E-6 : f32
    %202 = vector.broadcast %cst_124 : f32 to vector<1x128xf32>
    %203 = arith.addf %201, %202 : vector<1x128xf32>
    %204 = math.rsqrt %203 : vector<1x128xf32>
    %205 = arith.mulf %204, %189 : vector<1x128xf32>
    %206 = vector.broadcast %205 : vector<1x128xf32> to vector<32x128xf32>
    %207 = arith.mulf %196, %206 : vector<32x128xf32>
    %208 = vector.broadcast %190 : vector<1x128xf32> to vector<32x128xf32>
    %209 = arith.addf %207, %208 : vector<32x128xf32>
    %cst_125 = arith.constant 0.000000e+00 : f32
    %210 = vector.broadcast %cst_125 : f32 to vector<32x128xf32>
    %211 = arith.maximumf %209, %210 : vector<32x128xf32>
    %212 = arith.truncf %211 : vector<32x128xf32> to vector<32x128xbf16>
    %c0_126 = arith.constant 0 : index
    %c0_127 = arith.constant 0 : index
    %213 = vector.load %arg9[%c0_126, %c0_127] : memref<128x128xbf16, #tpu.memory_space<vmem>>, vector<128x128xbf16>
    %cst_128 = arith.constant dense<0.000000e+00> : vector<32x128xf32>
    %214 = tpu.matmul %212, %213, %cst_128 {dimension_numbers = #tpu.dot_dimension_numbers<[1], [0], [0], [1], [0, 0, 1, 1], [], []>} : vector<32x128xbf16>, vector<128x128xbf16>, vector<32x128xf32> -> vector<32x128xf32>
    %c0_129 = arith.constant 0 : index
    %c0_130 = arith.constant 0 : index
    %215 = vector.load %arg8[%c0_129, %c0_130] : memref<8x32xbf16, #tpu.memory_space<vmem>>, vector<8x32xbf16>
    %216 = arith.truncf %214 : vector<32x128xf32> to vector<32x128xbf16>
    %cst_131 = arith.constant dense<0.000000e+00> : vector<8x128xf32>
    %217 = tpu.matmul %215, %216, %cst_131 {dimension_numbers = #tpu.dot_dimension_numbers<[1], [0], [0], [1], [0, 0, 1, 1], [], []>} : vector<8x32xbf16>, vector<32x128xbf16>, vector<8x128xf32> -> vector<8x128xf32>
    %cst_132 = arith.constant 0.000000e+00 : f32
    %218 = vector.broadcast %cst_132 : f32 to vector<8x128xf32>
    %219 = tpu.concatenate %217, %218 in 1 : vector<8x128xf32>, vector<8x128xf32> -> vector<8x256xf32>
    %c0_133 = arith.constant 0 : index
    %c0_134 = arith.constant 0 : index
    %220 = vector.load %arg11[%c0_133, %c0_134] : memref<3x256xf32, #tpu.memory_space<vmem>>, vector<1x256xf32>
    %c0_135 = arith.constant 0 : index
    %c0_136 = arith.constant 0 : index
    %221 = vector.load %arg12[%c0_135, %c0_136] : memref<3x256xf32, #tpu.memory_space<vmem>>, vector<1x256xf32>
    %cst_137 = arith.constant dense<0.000000e+00> : vector<256xf32>
    %222 = vector.multi_reduction <add>, %219, %cst_137 [0] : vector<8x256xf32> to vector<256xf32>
    %223 = vector.shape_cast %222 : vector<256xf32> to vector<1x256xf32>
    %cst_138 = arith.constant 8.000000e+00 : f32
    %224 = vector.broadcast %cst_138 : f32 to vector<1x256xf32>
    %225 = arith.divf %223, %224 : vector<1x256xf32>
    %226 = vector.broadcast %225 : vector<1x256xf32> to vector<8x256xf32>
    %227 = arith.subf %219, %226 : vector<8x256xf32>
    %228 = arith.mulf %227, %227 : vector<8x256xf32>
    %cst_139 = arith.constant dense<0.000000e+00> : vector<256xf32>
    %229 = vector.multi_reduction <add>, %228, %cst_139 [0] : vector<8x256xf32> to vector<256xf32>
    %230 = vector.shape_cast %229 : vector<256xf32> to vector<1x256xf32>
    %cst_140 = arith.constant 8.000000e+00 : f32
    %231 = vector.broadcast %cst_140 : f32 to vector<1x256xf32>
    %232 = arith.divf %230, %231 : vector<1x256xf32>
    %cst_141 = arith.constant 9.99999974E-6 : f32
    %233 = vector.broadcast %cst_141 : f32 to vector<1x256xf32>
    %234 = arith.addf %232, %233 : vector<1x256xf32>
    %235 = math.rsqrt %234 : vector<1x256xf32>
    %236 = arith.mulf %235, %220 : vector<1x256xf32>
    %237 = vector.broadcast %236 : vector<1x256xf32> to vector<8x256xf32>
    %238 = arith.mulf %227, %237 : vector<8x256xf32>
    %239 = vector.broadcast %221 : vector<1x256xf32> to vector<8x256xf32>
    %240 = arith.addf %238, %239 : vector<8x256xf32>
    %cst_142 = arith.constant 0.000000e+00 : f32
    %241 = vector.broadcast %cst_142 : f32 to vector<8x256xf32>
    %242 = arith.maximumf %240, %241 : vector<8x256xf32>
    %243 = arith.truncf %242 : vector<8x256xf32> to vector<8x256xbf16>
    %c0_143 = arith.constant 0 : index
    %c0_144 = arith.constant 0 : index
    %c0_145 = arith.constant 0 : index
    %244 = vector.load %arg13[%c0_143, %c0_144, %c0_145] : memref<3x2304x128xbf16, #tpu.memory_space<vmem>>, vector<1x2304x128xbf16>
    %245 = vector.shape_cast %244 : vector<1x2304x128xbf16> to vector<2304x128xbf16>
    %c0_146 = arith.constant 0 : index
    %c0_147 = arith.constant 0 : index
    %246 = vector.load %arg10[%c0_146, %c0_147] : memref<72x8xbf16, #tpu.memory_space<vmem>>, vector<8x8xbf16>
    %cst_148 = arith.constant dense<0.000000e+00> : vector<8x256xf32>
    %247 = tpu.matmul %246, %243, %cst_148 {dimension_numbers = #tpu.dot_dimension_numbers<[1], [0], [0], [1], [0, 0, 1, 1], [], []>} : vector<8x8xbf16>, vector<8x256xbf16>, vector<8x256xf32> -> vector<8x256xf32>
    %248 = arith.truncf %247 : vector<8x256xf32> to vector<8x256xbf16>
    %c8 = arith.constant 8 : index
    %c0_149 = arith.constant 0 : index
    %249 = vector.load %arg10[%c8, %c0_149] : memref<72x8xbf16, #tpu.memory_space<vmem>>, vector<8x8xbf16>
    %cst_150 = arith.constant dense<0.000000e+00> : vector<8x256xf32>
    %250 = tpu.matmul %249, %243, %cst_150 {dimension_numbers = #tpu.dot_dimension_numbers<[1], [0], [0], [1], [0, 0, 1, 1], [], []>} : vector<8x8xbf16>, vector<8x256xbf16>, vector<8x256xf32> -> vector<8x256xf32>
    %251 = arith.truncf %250 : vector<8x256xf32> to vector<8x256xbf16>
    %c16 = arith.constant 16 : index
    %c0_151 = arith.constant 0 : index
    %252 = vector.load %arg10[%c16, %c0_151] : memref<72x8xbf16, #tpu.memory_space<vmem>>, vector<8x8xbf16>
    %cst_152 = arith.constant dense<0.000000e+00> : vector<8x256xf32>
    %253 = tpu.matmul %252, %243, %cst_152 {dimension_numbers = #tpu.dot_dimension_numbers<[1], [0], [0], [1], [0, 0, 1, 1], [], []>} : vector<8x8xbf16>, vector<8x256xbf16>, vector<8x256xf32> -> vector<8x256xf32>
    %254 = arith.truncf %253 : vector<8x256xf32> to vector<8x256xbf16>
    %c24 = arith.constant 24 : index
    %c0_153 = arith.constant 0 : index
    %255 = vector.load %arg10[%c24, %c0_153] : memref<72x8xbf16, #tpu.memory_space<vmem>>, vector<8x8xbf16>
    %cst_154 = arith.constant dense<0.000000e+00> : vector<8x256xf32>
    %256 = tpu.matmul %255, %243, %cst_154 {dimension_numbers = #tpu.dot_dimension_numbers<[1], [0], [0], [1], [0, 0, 1, 1], [], []>} : vector<8x8xbf16>, vector<8x256xbf16>, vector<8x256xf32> -> vector<8x256xf32>
    %257 = arith.truncf %256 : vector<8x256xf32> to vector<8x256xbf16>
    %c32_155 = arith.constant 32 : index
    %c0_156 = arith.constant 0 : index
    %258 = vector.load %arg10[%c32_155, %c0_156] : memref<72x8xbf16, #tpu.memory_space<vmem>>, vector<8x8xbf16>
    %cst_157 = arith.constant dense<0.000000e+00> : vector<8x256xf32>
    %259 = tpu.matmul %258, %243, %cst_157 {dimension_numbers = #tpu.dot_dimension_numbers<[1], [0], [0], [1], [0, 0, 1, 1], [], []>} : vector<8x8xbf16>, vector<8x256xbf16>, vector<8x256xf32> -> vector<8x256xf32>
    %260 = arith.truncf %259 : vector<8x256xf32> to vector<8x256xbf16>
    %c40 = arith.constant 40 : index
    %c0_158 = arith.constant 0 : index
    %261 = vector.load %arg10[%c40, %c0_158] : memref<72x8xbf16, #tpu.memory_space<vmem>>, vector<8x8xbf16>
    %cst_159 = arith.constant dense<0.000000e+00> : vector<8x256xf32>
    %262 = tpu.matmul %261, %243, %cst_159 {dimension_numbers = #tpu.dot_dimension_numbers<[1], [0], [0], [1], [0, 0, 1, 1], [], []>} : vector<8x8xbf16>, vector<8x256xbf16>, vector<8x256xf32> -> vector<8x256xf32>
    %263 = arith.truncf %262 : vector<8x256xf32> to vector<8x256xbf16>
    %c48 = arith.constant 48 : index
    %c0_160 = arith.constant 0 : index
    %264 = vector.load %arg10[%c48, %c0_160] : memref<72x8xbf16, #tpu.memory_space<vmem>>, vector<8x8xbf16>
    %cst_161 = arith.constant dense<0.000000e+00> : vector<8x256xf32>
    %265 = tpu.matmul %264, %243, %cst_161 {dimension_numbers = #tpu.dot_dimension_numbers<[1], [0], [0], [1], [0, 0, 1, 1], [], []>} : vector<8x8xbf16>, vector<8x256xbf16>, vector<8x256xf32> -> vector<8x256xf32>
    %266 = arith.truncf %265 : vector<8x256xf32> to vector<8x256xbf16>
    %c56 = arith.constant 56 : index
    %c0_162 = arith.constant 0 : index
    %267 = vector.load %arg10[%c56, %c0_162] : memref<72x8xbf16, #tpu.memory_space<vmem>>, vector<8x8xbf16>
    %cst_163 = arith.constant dense<0.000000e+00> : vector<8x256xf32>
    %268 = tpu.matmul %267, %243, %cst_163 {dimension_numbers = #tpu.dot_dimension_numbers<[1], [0], [0], [1], [0, 0, 1, 1], [], []>} : vector<8x8xbf16>, vector<8x256xbf16>, vector<8x256xf32> -> vector<8x256xf32>
    %269 = arith.truncf %268 : vector<8x256xf32> to vector<8x256xbf16>
    %c64_164 = arith.constant 64 : index
    %c0_165 = arith.constant 0 : index
    %270 = vector.load %arg10[%c64_164, %c0_165] : memref<72x8xbf16, #tpu.memory_space<vmem>>, vector<8x8xbf16>
    %cst_166 = arith.constant dense<0.000000e+00> : vector<8x256xf32>
    %271 = tpu.matmul %270, %243, %cst_166 {dimension_numbers = #tpu.dot_dimension_numbers<[1], [0], [0], [1], [0, 0, 1, 1], [], []>} : vector<8x8xbf16>, vector<8x256xbf16>, vector<8x256xf32> -> vector<8x256xf32>
    %272 = arith.truncf %271 : vector<8x256xf32> to vector<8x256xbf16>
    %273 = tpu.concatenate %248, %251, %254, %257, %260, %263, %266, %269, %272 in 1 : vector<8x256xbf16>, vector<8x256xbf16>, vector<8x256xbf16>, vector<8x256xbf16>, vector<8x256xbf16>, vector<8x256xbf16>, vector<8x256xbf16>, vector<8x256xbf16>, vector<8x256xbf16> -> vector<8x2304xbf16>
    %cst_167 = arith.constant dense<0.000000e+00> : vector<8x128xf32>
    %274 = tpu.matmul %273, %245, %cst_167 {dimension_numbers = #tpu.dot_dimension_numbers<[1], [0], [0], [1], [0, 0, 1, 1], [], []>} : vector<8x2304xbf16>, vector<2304x128xbf16>, vector<8x128xf32> -> vector<8x128xf32>
    %275 = vector.extract_strided_slice %219 {offsets = [0, 0], sizes = [8, 128], strides = [1, 1]} : vector<8x256xf32> to vector<8x128xf32>
    %276 = vector.extract_strided_slice %219 {offsets = [0, 128], sizes = [8, 128], strides = [1, 1]} : vector<8x256xf32> to vector<8x128xf32>
    %277 = arith.addf %276, %274 : vector<8x128xf32>
    %278 = tpu.concatenate %275, %277 in 1 : vector<8x128xf32>, vector<8x128xf32> -> vector<8x256xf32>
    %c1_168 = arith.constant 1 : index
    %c0_169 = arith.constant 0 : index
    %279 = vector.load %arg11[%c1_168, %c0_169] : memref<3x256xf32, #tpu.memory_space<vmem>>, vector<1x256xf32>
    %c1_170 = arith.constant 1 : index
    %c0_171 = arith.constant 0 : index
    %280 = vector.load %arg12[%c1_170, %c0_171] : memref<3x256xf32, #tpu.memory_space<vmem>>, vector<1x256xf32>
    %cst_172 = arith.constant dense<0.000000e+00> : vector<256xf32>
    %281 = vector.multi_reduction <add>, %278, %cst_172 [0] : vector<8x256xf32> to vector<256xf32>
    %282 = vector.shape_cast %281 : vector<256xf32> to vector<1x256xf32>
    %cst_173 = arith.constant 8.000000e+00 : f32
    %283 = vector.broadcast %cst_173 : f32 to vector<1x256xf32>
    %284 = arith.divf %282, %283 : vector<1x256xf32>
    %285 = vector.broadcast %284 : vector<1x256xf32> to vector<8x256xf32>
    %286 = arith.subf %278, %285 : vector<8x256xf32>
    %287 = arith.mulf %286, %286 : vector<8x256xf32>
    %cst_174 = arith.constant dense<0.000000e+00> : vector<256xf32>
    %288 = vector.multi_reduction <add>, %287, %cst_174 [0] : vector<8x256xf32> to vector<256xf32>
    %289 = vector.shape_cast %288 : vector<256xf32> to vector<1x256xf32>
    %cst_175 = arith.constant 8.000000e+00 : f32
    %290 = vector.broadcast %cst_175 : f32 to vector<1x256xf32>
    %291 = arith.divf %289, %290 : vector<1x256xf32>
    %cst_176 = arith.constant 9.99999974E-6 : f32
    %292 = vector.broadcast %cst_176 : f32 to vector<1x256xf32>
    %293 = arith.addf %291, %292 : vector<1x256xf32>
    %294 = math.rsqrt %293 : vector<1x256xf32>
    %295 = arith.mulf %294, %279 : vector<1x256xf32>
    %296 = vector.broadcast %295 : vector<1x256xf32> to vector<8x256xf32>
    %297 = arith.mulf %286, %296 : vector<8x256xf32>
    %298 = vector.broadcast %280 : vector<1x256xf32> to vector<8x256xf32>
    %299 = arith.addf %297, %298 : vector<8x256xf32>
    %cst_177 = arith.constant 0.000000e+00 : f32
    %300 = vector.broadcast %cst_177 : f32 to vector<8x256xf32>
    %301 = arith.maximumf %299, %300 : vector<8x256xf32>
    %302 = arith.truncf %301 : vector<8x256xf32> to vector<8x256xbf16>
    %c1_178 = arith.constant 1 : index
    %c0_179 = arith.constant 0 : index
    %c0_180 = arith.constant 0 : index
    %303 = vector.load %arg13[%c1_178, %c0_179, %c0_180] : memref<3x2304x128xbf16, #tpu.memory_space<vmem>>, vector<1x2304x128xbf16>
    %304 = vector.shape_cast %303 : vector<1x2304x128xbf16> to vector<2304x128xbf16>
    %c0_181 = arith.constant 0 : index
    %c0_182 = arith.constant 0 : index
    %305 = vector.load %arg10[%c0_181, %c0_182] : memref<72x8xbf16, #tpu.memory_space<vmem>>, vector<8x8xbf16>
    %cst_183 = arith.constant dense<0.000000e+00> : vector<8x256xf32>
    %306 = tpu.matmul %305, %302, %cst_183 {dimension_numbers = #tpu.dot_dimension_numbers<[1], [0], [0], [1], [0, 0, 1, 1], [], []>} : vector<8x8xbf16>, vector<8x256xbf16>, vector<8x256xf32> -> vector<8x256xf32>
    %307 = arith.truncf %306 : vector<8x256xf32> to vector<8x256xbf16>
    %c8_184 = arith.constant 8 : index
    %c0_185 = arith.constant 0 : index
    %308 = vector.load %arg10[%c8_184, %c0_185] : memref<72x8xbf16, #tpu.memory_space<vmem>>, vector<8x8xbf16>
    %cst_186 = arith.constant dense<0.000000e+00> : vector<8x256xf32>
    %309 = tpu.matmul %308, %302, %cst_186 {dimension_numbers = #tpu.dot_dimension_numbers<[1], [0], [0], [1], [0, 0, 1, 1], [], []>} : vector<8x8xbf16>, vector<8x256xbf16>, vector<8x256xf32> -> vector<8x256xf32>
    %310 = arith.truncf %309 : vector<8x256xf32> to vector<8x256xbf16>
    %c16_187 = arith.constant 16 : index
    %c0_188 = arith.constant 0 : index
    %311 = vector.load %arg10[%c16_187, %c0_188] : memref<72x8xbf16, #tpu.memory_space<vmem>>, vector<8x8xbf16>
    %cst_189 = arith.constant dense<0.000000e+00> : vector<8x256xf32>
    %312 = tpu.matmul %311, %302, %cst_189 {dimension_numbers = #tpu.dot_dimension_numbers<[1], [0], [0], [1], [0, 0, 1, 1], [], []>} : vector<8x8xbf16>, vector<8x256xbf16>, vector<8x256xf32> -> vector<8x256xf32>
    %313 = arith.truncf %312 : vector<8x256xf32> to vector<8x256xbf16>
    %c24_190 = arith.constant 24 : index
    %c0_191 = arith.constant 0 : index
    %314 = vector.load %arg10[%c24_190, %c0_191] : memref<72x8xbf16, #tpu.memory_space<vmem>>, vector<8x8xbf16>
    %cst_192 = arith.constant dense<0.000000e+00> : vector<8x256xf32>
    %315 = tpu.matmul %314, %302, %cst_192 {dimension_numbers = #tpu.dot_dimension_numbers<[1], [0], [0], [1], [0, 0, 1, 1], [], []>} : vector<8x8xbf16>, vector<8x256xbf16>, vector<8x256xf32> -> vector<8x256xf32>
    %316 = arith.truncf %315 : vector<8x256xf32> to vector<8x256xbf16>
    %c32_193 = arith.constant 32 : index
    %c0_194 = arith.constant 0 : index
    %317 = vector.load %arg10[%c32_193, %c0_194] : memref<72x8xbf16, #tpu.memory_space<vmem>>, vector<8x8xbf16>
    %cst_195 = arith.constant dense<0.000000e+00> : vector<8x256xf32>
    %318 = tpu.matmul %317, %302, %cst_195 {dimension_numbers = #tpu.dot_dimension_numbers<[1], [0], [0], [1], [0, 0, 1, 1], [], []>} : vector<8x8xbf16>, vector<8x256xbf16>, vector<8x256xf32> -> vector<8x256xf32>
    %319 = arith.truncf %318 : vector<8x256xf32> to vector<8x256xbf16>
    %c40_196 = arith.constant 40 : index
    %c0_197 = arith.constant 0 : index
    %320 = vector.load %arg10[%c40_196, %c0_197] : memref<72x8xbf16, #tpu.memory_space<vmem>>, vector<8x8xbf16>
    %cst_198 = arith.constant dense<0.000000e+00> : vector<8x256xf32>
    %321 = tpu.matmul %320, %302, %cst_198 {dimension_numbers = #tpu.dot_dimension_numbers<[1], [0], [0], [1], [0, 0, 1, 1], [], []>} : vector<8x8xbf16>, vector<8x256xbf16>, vector<8x256xf32> -> vector<8x256xf32>
    %322 = arith.truncf %321 : vector<8x256xf32> to vector<8x256xbf16>
    %c48_199 = arith.constant 48 : index
    %c0_200 = arith.constant 0 : index
    %323 = vector.load %arg10[%c48_199, %c0_200] : memref<72x8xbf16, #tpu.memory_space<vmem>>, vector<8x8xbf16>
    %cst_201 = arith.constant dense<0.000000e+00> : vector<8x256xf32>
    %324 = tpu.matmul %323, %302, %cst_201 {dimension_numbers = #tpu.dot_dimension_numbers<[1], [0], [0], [1], [0, 0, 1, 1], [], []>} : vector<8x8xbf16>, vector<8x256xbf16>, vector<8x256xf32> -> vector<8x256xf32>
    %325 = arith.truncf %324 : vector<8x256xf32> to vector<8x256xbf16>
    %c56_202 = arith.constant 56 : index
    %c0_203 = arith.constant 0 : index
    %326 = vector.load %arg10[%c56_202, %c0_203] : memref<72x8xbf16, #tpu.memory_space<vmem>>, vector<8x8xbf16>
    %cst_204 = arith.constant dense<0.000000e+00> : vector<8x256xf32>
    %327 = tpu.matmul %326, %302, %cst_204 {dimension_numbers = #tpu.dot_dimension_numbers<[1], [0], [0], [1], [0, 0, 1, 1], [], []>} : vector<8x8xbf16>, vector<8x256xbf16>, vector<8x256xf32> -> vector<8x256xf32>
    %328 = arith.truncf %327 : vector<8x256xf32> to vector<8x256xbf16>
    %c64_205 = arith.constant 64 : index
    %c0_206 = arith.constant 0 : index
    %329 = vector.load %arg10[%c64_205, %c0_206] : memref<72x8xbf16, #tpu.memory_space<vmem>>, vector<8x8xbf16>
    %cst_207 = arith.constant dense<0.000000e+00> : vector<8x256xf32>
    %330 = tpu.matmul %329, %302, %cst_207 {dimension_numbers = #tpu.dot_dimension_numbers<[1], [0], [0], [1], [0, 0, 1, 1], [], []>} : vector<8x8xbf16>, vector<8x256xbf16>, vector<8x256xf32> -> vector<8x256xf32>
    %331 = arith.truncf %330 : vector<8x256xf32> to vector<8x256xbf16>
    %332 = tpu.concatenate %307, %310, %313, %316, %319, %322, %325, %328, %331 in 1 : vector<8x256xbf16>, vector<8x256xbf16>, vector<8x256xbf16>, vector<8x256xbf16>, vector<8x256xbf16>, vector<8x256xbf16>, vector<8x256xbf16>, vector<8x256xbf16>, vector<8x256xbf16> -> vector<8x2304xbf16>
    %cst_208 = arith.constant dense<0.000000e+00> : vector<8x128xf32>
    %333 = tpu.matmul %332, %304, %cst_208 {dimension_numbers = #tpu.dot_dimension_numbers<[1], [0], [0], [1], [0, 0, 1, 1], [], []>} : vector<8x2304xbf16>, vector<2304x128xbf16>, vector<8x128xf32> -> vector<8x128xf32>
    %334 = vector.extract_strided_slice %278 {offsets = [0, 0], sizes = [8, 128], strides = [1, 1]} : vector<8x256xf32> to vector<8x128xf32>
    %335 = vector.extract_strided_slice %278 {offsets = [0, 128], sizes = [8, 128], strides = [1, 1]} : vector<8x256xf32> to vector<8x128xf32>
    %336 = arith.addf %335, %333 : vector<8x128xf32>
    %337 = tpu.concatenate %334, %336 in 1 : vector<8x128xf32>, vector<8x128xf32> -> vector<8x256xf32>
    %c2_209 = arith.constant 2 : index
    %c0_210 = arith.constant 0 : index
    %338 = vector.load %arg11[%c2_209, %c0_210] : memref<3x256xf32, #tpu.memory_space<vmem>>, vector<1x256xf32>
    %c2_211 = arith.constant 2 : index
    %c0_212 = arith.constant 0 : index
    %339 = vector.load %arg12[%c2_211, %c0_212] : memref<3x256xf32, #tpu.memory_space<vmem>>, vector<1x256xf32>
    %cst_213 = arith.constant dense<0.000000e+00> : vector<256xf32>
    %340 = vector.multi_reduction <add>, %337, %cst_213 [0] : vector<8x256xf32> to vector<256xf32>
    %341 = vector.shape_cast %340 : vector<256xf32> to vector<1x256xf32>
    %cst_214 = arith.constant 8.000000e+00 : f32
    %342 = vector.broadcast %cst_214 : f32 to vector<1x256xf32>
    %343 = arith.divf %341, %342 : vector<1x256xf32>
    %344 = vector.broadcast %343 : vector<1x256xf32> to vector<8x256xf32>
    %345 = arith.subf %337, %344 : vector<8x256xf32>
    %346 = arith.mulf %345, %345 : vector<8x256xf32>
    %cst_215 = arith.constant dense<0.000000e+00> : vector<256xf32>
    %347 = vector.multi_reduction <add>, %346, %cst_215 [0] : vector<8x256xf32> to vector<256xf32>
    %348 = vector.shape_cast %347 : vector<256xf32> to vector<1x256xf32>
    %cst_216 = arith.constant 8.000000e+00 : f32
    %349 = vector.broadcast %cst_216 : f32 to vector<1x256xf32>
    %350 = arith.divf %348, %349 : vector<1x256xf32>
    %cst_217 = arith.constant 9.99999974E-6 : f32
    %351 = vector.broadcast %cst_217 : f32 to vector<1x256xf32>
    %352 = arith.addf %350, %351 : vector<1x256xf32>
    %353 = math.rsqrt %352 : vector<1x256xf32>
    %354 = arith.mulf %353, %338 : vector<1x256xf32>
    %355 = vector.broadcast %354 : vector<1x256xf32> to vector<8x256xf32>
    %356 = arith.mulf %345, %355 : vector<8x256xf32>
    %357 = vector.broadcast %339 : vector<1x256xf32> to vector<8x256xf32>
    %358 = arith.addf %356, %357 : vector<8x256xf32>
    %cst_218 = arith.constant 0.000000e+00 : f32
    %359 = vector.broadcast %cst_218 : f32 to vector<8x256xf32>
    %360 = arith.maximumf %358, %359 : vector<8x256xf32>
    %361 = arith.truncf %360 : vector<8x256xf32> to vector<8x256xbf16>
    %c2_219 = arith.constant 2 : index
    %c0_220 = arith.constant 0 : index
    %c0_221 = arith.constant 0 : index
    %362 = vector.load %arg13[%c2_219, %c0_220, %c0_221] : memref<3x2304x128xbf16, #tpu.memory_space<vmem>>, vector<1x2304x128xbf16>
    %363 = vector.shape_cast %362 : vector<1x2304x128xbf16> to vector<2304x128xbf16>
    %c0_222 = arith.constant 0 : index
    %c0_223 = arith.constant 0 : index
    %364 = vector.load %arg10[%c0_222, %c0_223] : memref<72x8xbf16, #tpu.memory_space<vmem>>, vector<8x8xbf16>
    %cst_224 = arith.constant dense<0.000000e+00> : vector<8x256xf32>
    %365 = tpu.matmul %364, %361, %cst_224 {dimension_numbers = #tpu.dot_dimension_numbers<[1], [0], [0], [1], [0, 0, 1, 1], [], []>} : vector<8x8xbf16>, vector<8x256xbf16>, vector<8x256xf32> -> vector<8x256xf32>
    %366 = arith.truncf %365 : vector<8x256xf32> to vector<8x256xbf16>
    %c8_225 = arith.constant 8 : index
    %c0_226 = arith.constant 0 : index
    %367 = vector.load %arg10[%c8_225, %c0_226] : memref<72x8xbf16, #tpu.memory_space<vmem>>, vector<8x8xbf16>
    %cst_227 = arith.constant dense<0.000000e+00> : vector<8x256xf32>
    %368 = tpu.matmul %367, %361, %cst_227 {dimension_numbers = #tpu.dot_dimension_numbers<[1], [0], [0], [1], [0, 0, 1, 1], [], []>} : vector<8x8xbf16>, vector<8x256xbf16>, vector<8x256xf32> -> vector<8x256xf32>
    %369 = arith.truncf %368 : vector<8x256xf32> to vector<8x256xbf16>
    %c16_228 = arith.constant 16 : index
    %c0_229 = arith.constant 0 : index
    %370 = vector.load %arg10[%c16_228, %c0_229] : memref<72x8xbf16, #tpu.memory_space<vmem>>, vector<8x8xbf16>
    %cst_230 = arith.constant dense<0.000000e+00> : vector<8x256xf32>
    %371 = tpu.matmul %370, %361, %cst_230 {dimension_numbers = #tpu.dot_dimension_numbers<[1], [0], [0], [1], [0, 0, 1, 1], [], []>} : vector<8x8xbf16>, vector<8x256xbf16>, vector<8x256xf32> -> vector<8x256xf32>
    %372 = arith.truncf %371 : vector<8x256xf32> to vector<8x256xbf16>
    %c24_231 = arith.constant 24 : index
    %c0_232 = arith.constant 0 : index
    %373 = vector.load %arg10[%c24_231, %c0_232] : memref<72x8xbf16, #tpu.memory_space<vmem>>, vector<8x8xbf16>
    %cst_233 = arith.constant dense<0.000000e+00> : vector<8x256xf32>
    %374 = tpu.matmul %373, %361, %cst_233 {dimension_numbers = #tpu.dot_dimension_numbers<[1], [0], [0], [1], [0, 0, 1, 1], [], []>} : vector<8x8xbf16>, vector<8x256xbf16>, vector<8x256xf32> -> vector<8x256xf32>
    %375 = arith.truncf %374 : vector<8x256xf32> to vector<8x256xbf16>
    %c32_234 = arith.constant 32 : index
    %c0_235 = arith.constant 0 : index
    %376 = vector.load %arg10[%c32_234, %c0_235] : memref<72x8xbf16, #tpu.memory_space<vmem>>, vector<8x8xbf16>
    %cst_236 = arith.constant dense<0.000000e+00> : vector<8x256xf32>
    %377 = tpu.matmul %376, %361, %cst_236 {dimension_numbers = #tpu.dot_dimension_numbers<[1], [0], [0], [1], [0, 0, 1, 1], [], []>} : vector<8x8xbf16>, vector<8x256xbf16>, vector<8x256xf32> -> vector<8x256xf32>
    %378 = arith.truncf %377 : vector<8x256xf32> to vector<8x256xbf16>
    %c40_237 = arith.constant 40 : index
    %c0_238 = arith.constant 0 : index
    %379 = vector.load %arg10[%c40_237, %c0_238] : memref<72x8xbf16, #tpu.memory_space<vmem>>, vector<8x8xbf16>
    %cst_239 = arith.constant dense<0.000000e+00> : vector<8x256xf32>
    %380 = tpu.matmul %379, %361, %cst_239 {dimension_numbers = #tpu.dot_dimension_numbers<[1], [0], [0], [1], [0, 0, 1, 1], [], []>} : vector<8x8xbf16>, vector<8x256xbf16>, vector<8x256xf32> -> vector<8x256xf32>
    %381 = arith.truncf %380 : vector<8x256xf32> to vector<8x256xbf16>
    %c48_240 = arith.constant 48 : index
    %c0_241 = arith.constant 0 : index
    %382 = vector.load %arg10[%c48_240, %c0_241] : memref<72x8xbf16, #tpu.memory_space<vmem>>, vector<8x8xbf16>
    %cst_242 = arith.constant dense<0.000000e+00> : vector<8x256xf32>
    %383 = tpu.matmul %382, %361, %cst_242 {dimension_numbers = #tpu.dot_dimension_numbers<[1], [0], [0], [1], [0, 0, 1, 1], [], []>} : vector<8x8xbf16>, vector<8x256xbf16>, vector<8x256xf32> -> vector<8x256xf32>
    %384 = arith.truncf %383 : vector<8x256xf32> to vector<8x256xbf16>
    %c56_243 = arith.constant 56 : index
    %c0_244 = arith.constant 0 : index
    %385 = vector.load %arg10[%c56_243, %c0_244] : memref<72x8xbf16, #tpu.memory_space<vmem>>, vector<8x8xbf16>
    %cst_245 = arith.constant dense<0.000000e+00> : vector<8x256xf32>
    %386 = tpu.matmul %385, %361, %cst_245 {dimension_numbers = #tpu.dot_dimension_numbers<[1], [0], [0], [1], [0, 0, 1, 1], [], []>} : vector<8x8xbf16>, vector<8x256xbf16>, vector<8x256xf32> -> vector<8x256xf32>
    %387 = arith.truncf %386 : vector<8x256xf32> to vector<8x256xbf16>
    %c64_246 = arith.constant 64 : index
    %c0_247 = arith.constant 0 : index
    %388 = vector.load %arg10[%c64_246, %c0_247] : memref<72x8xbf16, #tpu.memory_space<vmem>>, vector<8x8xbf16>
    %cst_248 = arith.constant dense<0.000000e+00> : vector<8x256xf32>
    %389 = tpu.matmul %388, %361, %cst_248 {dimension_numbers = #tpu.dot_dimension_numbers<[1], [0], [0], [1], [0, 0, 1, 1], [], []>} : vector<8x8xbf16>, vector<8x256xbf16>, vector<8x256xf32> -> vector<8x256xf32>
    %390 = arith.truncf %389 : vector<8x256xf32> to vector<8x256xbf16>
    %391 = tpu.concatenate %366, %369, %372, %375, %378, %381, %384, %387, %390 in 1 : vector<8x256xbf16>, vector<8x256xbf16>, vector<8x256xbf16>, vector<8x256xbf16>, vector<8x256xbf16>, vector<8x256xbf16>, vector<8x256xbf16>, vector<8x256xbf16>, vector<8x256xbf16> -> vector<8x2304xbf16>
    %cst_249 = arith.constant dense<0.000000e+00> : vector<8x128xf32>
    %392 = tpu.matmul %391, %363, %cst_249 {dimension_numbers = #tpu.dot_dimension_numbers<[1], [0], [0], [1], [0, 0, 1, 1], [], []>} : vector<8x2304xbf16>, vector<2304x128xbf16>, vector<8x128xf32> -> vector<8x128xf32>
    %393 = vector.extract_strided_slice %337 {offsets = [0, 0], sizes = [8, 128], strides = [1, 1]} : vector<8x256xf32> to vector<8x128xf32>
    %394 = vector.extract_strided_slice %337 {offsets = [0, 128], sizes = [8, 128], strides = [1, 1]} : vector<8x256xf32> to vector<8x128xf32>
    %395 = arith.addf %394, %392 : vector<8x128xf32>
    %396 = tpu.concatenate %393, %395 in 1 : vector<8x128xf32>, vector<8x128xf32> -> vector<8x256xf32>
    %c0_250 = arith.constant 0 : index
    %c0_251 = arith.constant 0 : index
    %397 = vector.load %arg14[%c0_250, %c0_251] : memref<1x256xf32, #tpu.memory_space<vmem>>, vector<1x256xf32>
    %c0_252 = arith.constant 0 : index
    %c0_253 = arith.constant 0 : index
    %398 = vector.load %arg15[%c0_252, %c0_253] : memref<1x256xf32, #tpu.memory_space<vmem>>, vector<1x256xf32>
    %cst_254 = arith.constant dense<0.000000e+00> : vector<256xf32>
    %399 = vector.multi_reduction <add>, %396, %cst_254 [0] : vector<8x256xf32> to vector<256xf32>
    %400 = vector.shape_cast %399 : vector<256xf32> to vector<1x256xf32>
    %cst_255 = arith.constant 8.000000e+00 : f32
    %401 = vector.broadcast %cst_255 : f32 to vector<1x256xf32>
    %402 = arith.divf %400, %401 : vector<1x256xf32>
    %403 = vector.broadcast %402 : vector<1x256xf32> to vector<8x256xf32>
    %404 = arith.subf %396, %403 : vector<8x256xf32>
    %405 = arith.mulf %404, %404 : vector<8x256xf32>
    %cst_256 = arith.constant dense<0.000000e+00> : vector<256xf32>
    %406 = vector.multi_reduction <add>, %405, %cst_256 [0] : vector<8x256xf32> to vector<256xf32>
    %407 = vector.shape_cast %406 : vector<256xf32> to vector<1x256xf32>
    %cst_257 = arith.constant 8.000000e+00 : f32
    %408 = vector.broadcast %cst_257 : f32 to vector<1x256xf32>
    %409 = arith.divf %407, %408 : vector<1x256xf32>
    %cst_258 = arith.constant 9.99999974E-6 : f32
    %410 = vector.broadcast %cst_258 : f32 to vector<1x256xf32>
    %411 = arith.addf %409, %410 : vector<1x256xf32>
    %412 = math.rsqrt %411 : vector<1x256xf32>
    %413 = arith.mulf %412, %397 : vector<1x256xf32>
    %414 = vector.broadcast %413 : vector<1x256xf32> to vector<8x256xf32>
    %415 = arith.mulf %404, %414 : vector<8x256xf32>
    %416 = vector.broadcast %398 : vector<1x256xf32> to vector<8x256xf32>
    %417 = arith.addf %415, %416 : vector<8x256xf32>
    %cst_259 = arith.constant 0.000000e+00 : f32
    %418 = vector.broadcast %cst_259 : f32 to vector<8x256xf32>
    %419 = arith.maximumf %417, %418 : vector<8x256xf32>
    %420 = arith.truncf %419 : vector<8x256xf32> to vector<8x256xbf16>
    %c0_260 = arith.constant 0 : index
    %c0_261 = arith.constant 0 : index
    %421 = vector.load %arg17[%c0_260, %c0_261] : memref<256x128xbf16, #tpu.memory_space<vmem>>, vector<256x128xbf16>
    %cst_262 = arith.constant dense<0.000000e+00> : vector<8x128xf32>
    %422 = tpu.matmul %420, %421, %cst_262 {dimension_numbers = #tpu.dot_dimension_numbers<[1], [0], [0], [1], [0, 0, 1, 1], [], []>} : vector<8x256xbf16>, vector<256x128xbf16>, vector<8x128xf32> -> vector<8x128xf32>
    %c0_263 = arith.constant 0 : index
    %c0_264 = arith.constant 0 : index
    %423 = vector.load %arg16[%c0_263, %c0_264] : memref<2x8xbf16, #tpu.memory_space<vmem>>, vector<2x8xbf16>
    %424 = arith.truncf %422 : vector<8x128xf32> to vector<8x128xbf16>
    %cst_265 = arith.constant dense<0.000000e+00> : vector<2x128xf32>
    %425 = tpu.matmul %423, %424, %cst_265 {dimension_numbers = #tpu.dot_dimension_numbers<[1], [0], [0], [1], [0, 0, 1, 1], [], []>} : vector<2x8xbf16>, vector<8x128xbf16>, vector<2x128xf32> -> vector<2x128xf32>
    %c0_266 = arith.constant 0 : index
    %c0_267 = arith.constant 0 : index
    %426 = vector.load %arg18[%c0_266, %c0_267] : memref<3x128xf32, #tpu.memory_space<vmem>>, vector<1x128xf32>
    %c0_268 = arith.constant 0 : index
    %c0_269 = arith.constant 0 : index
    %427 = vector.load %arg19[%c0_268, %c0_269] : memref<3x128xf32, #tpu.memory_space<vmem>>, vector<1x128xf32>
    %cst_270 = arith.constant dense<0.000000e+00> : vector<128xf32>
    %428 = vector.multi_reduction <add>, %425, %cst_270 [0] : vector<2x128xf32> to vector<128xf32>
    %429 = vector.shape_cast %428 : vector<128xf32> to vector<1x128xf32>
    %cst_271 = arith.constant 2.000000e+00 : f32
    %430 = vector.broadcast %cst_271 : f32 to vector<1x128xf32>
    %431 = arith.divf %429, %430 : vector<1x128xf32>
    %432 = vector.broadcast %431 : vector<1x128xf32> to vector<2x128xf32>
    %433 = arith.subf %425, %432 : vector<2x128xf32>
    %434 = arith.mulf %433, %433 : vector<2x128xf32>
    %cst_272 = arith.constant dense<0.000000e+00> : vector<128xf32>
    %435 = vector.multi_reduction <add>, %434, %cst_272 [0] : vector<2x128xf32> to vector<128xf32>
    %436 = vector.shape_cast %435 : vector<128xf32> to vector<1x128xf32>
    %cst_273 = arith.constant 2.000000e+00 : f32
    %437 = vector.broadcast %cst_273 : f32 to vector<1x128xf32>
    %438 = arith.divf %436, %437 : vector<1x128xf32>
    %cst_274 = arith.constant 9.99999974E-6 : f32
    %439 = vector.broadcast %cst_274 : f32 to vector<1x128xf32>
    %440 = arith.addf %438, %439 : vector<1x128xf32>
    %441 = math.rsqrt %440 : vector<1x128xf32>
    %442 = arith.mulf %441, %426 : vector<1x128xf32>
    %443 = vector.broadcast %442 : vector<1x128xf32> to vector<2x128xf32>
    %444 = arith.mulf %433, %443 : vector<2x128xf32>
    %445 = vector.broadcast %427 : vector<1x128xf32> to vector<2x128xf32>
    %446 = arith.addf %444, %445 : vector<2x128xf32>
    %cst_275 = arith.constant 0.000000e+00 : f32
    %447 = vector.broadcast %cst_275 : f32 to vector<2x128xf32>
    %448 = arith.maximumf %446, %447 : vector<2x128xf32>
    %449 = arith.truncf %448 : vector<2x128xf32> to vector<2x128xbf16>
    %c0_276 = arith.constant 0 : index
    %c0_277 = arith.constant 0 : index
    %c0_278 = arith.constant 0 : index
    %450 = vector.load %arg20[%c0_276, %c0_277, %c0_278] : memref<3x128x128xbf16, #tpu.memory_space<vmem>>, vector<1x128x128xbf16>
    %451 = vector.shape_cast %450 : vector<1x128x128xbf16> to vector<128x128xbf16>
    %cst_279 = arith.constant dense<0.000000e+00> : vector<2x128xf32>
    %452 = tpu.matmul %449, %451, %cst_279 {dimension_numbers = #tpu.dot_dimension_numbers<[1], [0], [0], [1], [0, 0, 1, 1], [], []>} : vector<2x128xbf16>, vector<128x128xbf16>, vector<2x128xf32> -> vector<2x128xf32>
    %453 = arith.addf %425, %452 : vector<2x128xf32>
    %c1_280 = arith.constant 1 : index
    %c0_281 = arith.constant 0 : index
    %454 = vector.load %arg18[%c1_280, %c0_281] : memref<3x128xf32, #tpu.memory_space<vmem>>, vector<1x128xf32>
    %c1_282 = arith.constant 1 : index
    %c0_283 = arith.constant 0 : index
    %455 = vector.load %arg19[%c1_282, %c0_283] : memref<3x128xf32, #tpu.memory_space<vmem>>, vector<1x128xf32>
    %cst_284 = arith.constant dense<0.000000e+00> : vector<128xf32>
    %456 = vector.multi_reduction <add>, %453, %cst_284 [0] : vector<2x128xf32> to vector<128xf32>
    %457 = vector.shape_cast %456 : vector<128xf32> to vector<1x128xf32>
    %cst_285 = arith.constant 2.000000e+00 : f32
    %458 = vector.broadcast %cst_285 : f32 to vector<1x128xf32>
    %459 = arith.divf %457, %458 : vector<1x128xf32>
    %460 = vector.broadcast %459 : vector<1x128xf32> to vector<2x128xf32>
    %461 = arith.subf %453, %460 : vector<2x128xf32>
    %462 = arith.mulf %461, %461 : vector<2x128xf32>
    %cst_286 = arith.constant dense<0.000000e+00> : vector<128xf32>
    %463 = vector.multi_reduction <add>, %462, %cst_286 [0] : vector<2x128xf32> to vector<128xf32>
    %464 = vector.shape_cast %463 : vector<128xf32> to vector<1x128xf32>
    %cst_287 = arith.constant 2.000000e+00 : f32
    %465 = vector.broadcast %cst_287 : f32 to vector<1x128xf32>
    %466 = arith.divf %464, %465 : vector<1x128xf32>
    %cst_288 = arith.constant 9.99999974E-6 : f32
    %467 = vector.broadcast %cst_288 : f32 to vector<1x128xf32>
    %468 = arith.addf %466, %467 : vector<1x128xf32>
    %469 = math.rsqrt %468 : vector<1x128xf32>
    %470 = arith.mulf %469, %454 : vector<1x128xf32>
    %471 = vector.broadcast %470 : vector<1x128xf32> to vector<2x128xf32>
    %472 = arith.mulf %461, %471 : vector<2x128xf32>
    %473 = vector.broadcast %455 : vector<1x128xf32> to vector<2x128xf32>
    %474 = arith.addf %472, %473 : vector<2x128xf32>
    %cst_289 = arith.constant 0.000000e+00 : f32
    %475 = vector.broadcast %cst_289 : f32 to vector<2x128xf32>
    %476 = arith.maximumf %474, %475 : vector<2x128xf32>
    %477 = arith.truncf %476 : vector<2x128xf32> to vector<2x128xbf16>
    %c1_290 = arith.constant 1 : index
    %c0_291 = arith.constant 0 : index
    %c0_292 = arith.constant 0 : index
    %478 = vector.load %arg20[%c1_290, %c0_291, %c0_292] : memref<3x128x128xbf16, #tpu.memory_space<vmem>>, vector<1x128x128xbf16>
    %479 = vector.shape_cast %478 : vector<1x128x128xbf16> to vector<128x128xbf16>
    %cst_293 = arith.constant dense<0.000000e+00> : vector<2x128xf32>
    %480 = tpu.matmul %477, %479, %cst_293 {dimension_numbers = #tpu.dot_dimension_numbers<[1], [0], [0], [1], [0, 0, 1, 1], [], []>} : vector<2x128xbf16>, vector<128x128xbf16>, vector<2x128xf32> -> vector<2x128xf32>
    %481 = arith.addf %453, %480 : vector<2x128xf32>
    %c2_294 = arith.constant 2 : index
    %c0_295 = arith.constant 0 : index
    %482 = vector.load %arg18[%c2_294, %c0_295] : memref<3x128xf32, #tpu.memory_space<vmem>>, vector<1x128xf32>
    %c2_296 = arith.constant 2 : index
    %c0_297 = arith.constant 0 : index
    %483 = vector.load %arg19[%c2_296, %c0_297] : memref<3x128xf32, #tpu.memory_space<vmem>>, vector<1x128xf32>
    %cst_298 = arith.constant dense<0.000000e+00> : vector<128xf32>
    %484 = vector.multi_reduction <add>, %481, %cst_298 [0] : vector<2x128xf32> to vector<128xf32>
    %485 = vector.shape_cast %484 : vector<128xf32> to vector<1x128xf32>
    %cst_299 = arith.constant 2.000000e+00 : f32
    %486 = vector.broadcast %cst_299 : f32 to vector<1x128xf32>
    %487 = arith.divf %485, %486 : vector<1x128xf32>
    %488 = vector.broadcast %487 : vector<1x128xf32> to vector<2x128xf32>
    %489 = arith.subf %481, %488 : vector<2x128xf32>
    %490 = arith.mulf %489, %489 : vector<2x128xf32>
    %cst_300 = arith.constant dense<0.000000e+00> : vector<128xf32>
    %491 = vector.multi_reduction <add>, %490, %cst_300 [0] : vector<2x128xf32> to vector<128xf32>
    %492 = vector.shape_cast %491 : vector<128xf32> to vector<1x128xf32>
    %cst_301 = arith.constant 2.000000e+00 : f32
    %493 = vector.broadcast %cst_301 : f32 to vector<1x128xf32>
    %494 = arith.divf %492, %493 : vector<1x128xf32>
    %cst_302 = arith.constant 9.99999974E-6 : f32
    %495 = vector.broadcast %cst_302 : f32 to vector<1x128xf32>
    %496 = arith.addf %494, %495 : vector<1x128xf32>
    %497 = math.rsqrt %496 : vector<1x128xf32>
    %498 = arith.mulf %497, %482 : vector<1x128xf32>
    %499 = vector.broadcast %498 : vector<1x128xf32> to vector<2x128xf32>
    %500 = arith.mulf %489, %499 : vector<2x128xf32>
    %501 = vector.broadcast %483 : vector<1x128xf32> to vector<2x128xf32>
    %502 = arith.addf %500, %501 : vector<2x128xf32>
    %cst_303 = arith.constant 0.000000e+00 : f32
    %503 = vector.broadcast %cst_303 : f32 to vector<2x128xf32>
    %504 = arith.maximumf %502, %503 : vector<2x128xf32>
    %505 = arith.truncf %504 : vector<2x128xf32> to vector<2x128xbf16>
    %c2_304 = arith.constant 2 : index
    %c0_305 = arith.constant 0 : index
    %c0_306 = arith.constant 0 : index
    %506 = vector.load %arg20[%c2_304, %c0_305, %c0_306] : memref<3x128x128xbf16, #tpu.memory_space<vmem>>, vector<1x128x128xbf16>
    %507 = vector.shape_cast %506 : vector<1x128x128xbf16> to vector<128x128xbf16>
    %cst_307 = arith.constant dense<0.000000e+00> : vector<2x128xf32>
    %508 = tpu.matmul %505, %507, %cst_307 {dimension_numbers = #tpu.dot_dimension_numbers<[1], [0], [0], [1], [0, 0, 1, 1], [], []>} : vector<2x128xbf16>, vector<128x128xbf16>, vector<2x128xf32> -> vector<2x128xf32>
    %509 = arith.addf %481, %508 : vector<2x128xf32>
    %c0_308 = arith.constant 0 : index
    %c0_309 = arith.constant 0 : index
    %510 = vector.load %arg21[%c0_308, %c0_309] : memref<2x2xbf16, #tpu.memory_space<vmem>>, vector<2x2xbf16>
    %511 = arith.truncf %509 : vector<2x128xf32> to vector<2x128xbf16>
    %cst_310 = arith.constant dense<0.000000e+00> : vector<2x128xf32>
    %512 = tpu.matmul %510, %511, %cst_310 {dimension_numbers = #tpu.dot_dimension_numbers<[1], [0], [0], [1], [0, 0, 1, 1], [], []>} : vector<2x2xbf16>, vector<2x128xbf16>, vector<2x128xf32> -> vector<2x128xf32>
    %513 = arith.truncf %512 : vector<2x128xf32> to vector<2x128xbf16>
    %c0_311 = arith.constant 0 : index
    %c0_312 = arith.constant 0 : index
    %514 = vector.load %arg22[%c0_311, %c0_312] : memref<128x128xbf16, #tpu.memory_space<vmem>>, vector<128x128xbf16>
    %cst_313 = arith.constant dense<0.000000e+00> : vector<2x128xf32>
    %515 = tpu.matmul %513, %514, %cst_313 {dimension_numbers = #tpu.dot_dimension_numbers<[1], [0], [0], [1], [0, 0, 1, 1], [], []>} : vector<2x128xbf16>, vector<128x128xbf16>, vector<2x128xf32> -> vector<2x128xf32>
    %c0_314 = arith.constant 0 : index
    %c0_315 = arith.constant 0 : index
    %516 = vector.load %arg23[%c0_314, %c0_315] : memref<1x128xf32, #tpu.memory_space<vmem>>, vector<1x128xf32>
    %517 = vector.broadcast %516 : vector<1x128xf32> to vector<2x128xf32>
    %518 = arith.addf %515, %517 : vector<2x128xf32>
    %c0_316 = arith.constant 0 : index
    %c0_317 = arith.constant 0 : index
    %519 = vector.load %arg24[%c0_316, %c0_317] : memref<2x128xf32, #tpu.memory_space<vmem>>, vector<2x128xf32>
    tpu.vector_store %arg24[%c0_316, %c0_317], %518 {strides = array<i32>} : memref<2x128xf32, #tpu.memory_space<vmem>>, vector<2x128xf32>,
    return
  }
}

</mosaic_0001>

<llo_original>
// kernel: simple_densenet_forward.1
$region0: #{simple_densenet_forward.1}
  #allocation0 [shape = 'u32[]', space=smem, size = 0x4, offset = 0x4, fixed_abs, tag = 'smem constant byte address 0x4 - core index']
  #allocation1 [shape = 'u32[144,128]{1,0:T(1,128)}', space=vmem, size = 0x12000, scoped, tag = 'internal scratch']
  %s0 = inlined_call_operand.vmem [shape: f32[288,256], index: 0, kind: input, shape index: {}]
  %s1 = inlined_call_operand.vmem [shape: bf16[256,128], index: 1, kind: input, shape index: {}]
  %s2 = inlined_call_operand.vmem [shape: bf16[288,32], index: 2, kind: input, shape index: {}]
  %s3 = inlined_call_operand.vmem [shape: f32[3,128], index: 3, kind: input, shape index: {}]
  %s4 = inlined_call_operand.vmem [shape: f32[3,128], index: 4, kind: input, shape index: {}]
  %s5 = inlined_call_operand.vmem [shape: bf16[3,1152,128], index: 5, kind: input, shape index: {}]
  %s6 = inlined_call_operand.vmem [shape: f32[1,128], index: 6, kind: input, shape index: {}]
  %s7 = inlined_call_operand.vmem [shape: f32[1,128], index: 7, kind: input, shape index: {}]
  %s8 = inlined_call_operand.vmem [shape: bf16[8,32], index: 8, kind: input, shape index: {}]
  %s9 = inlined_call_operand.vmem [shape: bf16[128,128], index: 9, kind: input, shape index: {}]
  %s10 = inlined_call_operand.vmem [shape: bf16[72,8], index: 10, kind: input, shape index: {}]
  %s11 = inlined_call_operand.vmem [shape: f32[3,256], index: 11, kind: input, shape index: {}]
  %s12 = inlined_call_operand.vmem [shape: f32[3,256], index: 12, kind: input, shape index: {}]
  %s13 = inlined_call_operand.vmem [shape: bf16[3,2304,128], index: 13, kind: input, shape index: {}]
  %s14 = inlined_call_operand.vmem [shape: f32[1,256], index: 14, kind: input, shape index: {}]
  %s15 = inlined_call_operand.vmem [shape: f32[1,256], index: 15, kind: input, shape index: {}]
  %s16 = inlined_call_operand.vmem [shape: bf16[2,8], index: 16, kind: input, shape index: {}]
  %s17 = inlined_call_operand.vmem [shape: bf16[256,128], index: 17, kind: input, shape index: {}]
  %s18 = inlined_call_operand.vmem [shape: f32[3,128], index: 18, kind: input, shape index: {}]
  %s19 = inlined_call_operand.vmem [shape: f32[3,128], index: 19, kind: input, shape index: {}]
  %s20 = inlined_call_operand.vmem [shape: bf16[3,128,128], index: 20, kind: input, shape index: {}]
  %s21 = inlined_call_operand.vmem [shape: bf16[2,2], index: 21, kind: input, shape index: {}]
  %s22 = inlined_call_operand.vmem [shape: bf16[128,128], index: 22, kind: input, shape index: {}]
  %s23 = inlined_call_operand.vmem [shape: f32[1,128], index: 23, kind: input, shape index: {}]
  %s24 = inlined_call_operand.hbm [shape: f32[2,128], index: 24, kind: output, shape index: {}]
  %s25 = sld [smem:[#allocation0]]
  $region106: #{simple_densenet_forward.1} parent=0
    _
  %s27 = ssub.s32 1, %s25
  %s28 = scalar_select 0, %s27, %s25
  $region1: #{simple_densenet_forward.1} parent=0
    #allocation2 [shape = 'u8[1024]{0}', space=vmem, size = 0x400, scoped, tag = 'output window, operand 0, single buffered']
    #allocation3 [shape = 's32[1]{0}', space=sflag, size = 0x4, scoped, tag = 'scoped memory for simple_densenet_forward.1']
    %29 = vsyncpa [#allocation3], 0
    // Predicated region
    $region2: #{simple_densenet_forward.1} parent=1 // pred_check
      _
    $region3: #{simple_densenet_forward.1} parent=1 // pred_check_branch
      %31 = sbr.rel (0) target = $region5
    $region4: #{simple_densenet_forward.1} parent=1 // pred_region
      _
    $region5: #{simple_densenet_forward.1} parent=1 // pred_fallthru
      _
    // Predicated region
    $region6: #{simple_densenet_forward.1} parent=1 // pred_check
      _
    $region7: #{simple_densenet_forward.1} parent=1 // pred_check_branch
      %33 = sbr.rel (0) target = $region9
    $region8: #{simple_densenet_forward.1} parent=1 // pred_region
      _
    $region9: #{simple_densenet_forward.1} parent=1 // pred_fallthru
      _
    // Predicated region
    $region10: #{simple_densenet_forward.1} parent=1 // pred_check
      _
    $region11: #{simple_densenet_forward.1} parent=1 // pred_check_branch
      %35 = sbr.rel (0) target = $region13
    $region12: #{simple_densenet_forward.1} parent=1 // pred_region
      _
    $region13: #{simple_densenet_forward.1} parent=1 // pred_fallthru
      _
    // Predicated region
    $region14: #{simple_densenet_forward.1} parent=1 // pred_check
      _
    $region15: #{simple_densenet_forward.1} parent=1 // pred_check_branch
      %37 = sbr.rel (0) target = $region17
    $region16: #{simple_densenet_forward.1} parent=1 // pred_region
      _
    $region17: #{simple_densenet_forward.1} parent=1 // pred_fallthru
      _
    // Predicated region
    $region18: #{simple_densenet_forward.1} parent=1 // pred_check
      _
    $region19: #{simple_densenet_forward.1} parent=1 // pred_check_branch
      %39 = sbr.rel (0) target = $region21
    $region20: #{simple_densenet_forward.1} parent=1 // pred_region
      _
    $region21: #{simple_densenet_forward.1} parent=1 // pred_fallthru
      _
    // Predicated region
    $region22: #{simple_densenet_forward.1} parent=1 // pred_check
      _
    $region23: #{simple_densenet_forward.1} parent=1 // pred_check_branch
      %41 = sbr.rel (0) target = $region25
    $region24: #{simple_densenet_forward.1} parent=1 // pred_region
      _
    $region25: #{simple_densenet_forward.1} parent=1 // pred_fallthru
      _
    // Predicated region
    $region26: #{simple_densenet_forward.1} parent=1 // pred_check
      _
    $region27: #{simple_densenet_forward.1} parent=1 // pred_check_branch
      %43 = sbr.rel (0) target = $region29
    $region28: #{simple_densenet_forward.1} parent=1 // pred_region
      _
    $region29: #{simple_densenet_forward.1} parent=1 // pred_fallthru
      _
    // Predicated region
    $region30: #{simple_densenet_forward.1} parent=1 // pred_check
      _
    $region31: #{simple_densenet_forward.1} parent=1 // pred_check_branch
      %45 = sbr.rel (0) target = $region33
    $region32: #{simple_densenet_forward.1} parent=1 // pred_region
      _
    $region33: #{simple_densenet_forward.1} parent=1 // pred_fallthru
      _
    // Predicated region
    $region34: #{simple_densenet_forward.1} parent=1 // pred_check
      _
    $region35: #{simple_densenet_forward.1} parent=1 // pred_check_branch
      %47 = sbr.rel (0) target = $region37
    $region36: #{simple_densenet_forward.1} parent=1 // pred_region
      _
    $region37: #{simple_densenet_forward.1} parent=1 // pred_fallthru
      _
    // Predicated region
    $region38: #{simple_densenet_forward.1} parent=1 // pred_check
      _
    $region39: #{simple_densenet_forward.1} parent=1 // pred_check_branch
      %49 = sbr.rel (0) target = $region41
    $region40: #{simple_densenet_forward.1} parent=1 // pred_region
      _
    $region41: #{simple_densenet_forward.1} parent=1 // pred_fallthru
      _
    // Predicated region
    $region42: #{simple_densenet_forward.1} parent=1 // pred_check
      _
    $region43: #{simple_densenet_forward.1} parent=1 // pred_check_branch
      %51 = sbr.rel (0) target = $region45
    $region44: #{simple_densenet_forward.1} parent=1 // pred_region
      _
    $region45: #{simple_densenet_forward.1} parent=1 // pred_fallthru
      _
    // Predicated region
    $region46: #{simple_densenet_forward.1} parent=1 // pred_check
      _
    $region47: #{simple_densenet_forward.1} parent=1 // pred_check_branch
      %53 = sbr.rel (0) target = $region49
    $region48: #{simple_densenet_forward.1} parent=1 // pred_region
      _
    $region49: #{simple_densenet_forward.1} parent=1 // pred_fallthru
      _
    // Predicated region
    $region50: #{simple_densenet_forward.1} parent=1 // pred_check
      _
    $region51: #{simple_densenet_forward.1} parent=1 // pred_check_branch
      %55 = sbr.rel (0) target = $region53
    $region52: #{simple_densenet_forward.1} parent=1 // pred_region
      _
    $region53: #{simple_densenet_forward.1} parent=1 // pred_fallthru
      _
    // Predicated region
    $region54: #{simple_densenet_forward.1} parent=1 // pred_check
      _
    $region55: #{simple_densenet_forward.1} parent=1 // pred_check_branch
      %57 = sbr.rel (0) target = $region57
    $region56: #{simple_densenet_forward.1} parent=1 // pred_region
      _
    $region57: #{simple_densenet_forward.1} parent=1 // pred_fallthru
      _
    // Predicated region
    $region58: #{simple_densenet_forward.1} parent=1 // pred_check
      _
    $region59: #{simple_densenet_forward.1} parent=1 // pred_check_branch
      %59 = sbr.rel (0) target = $region61
    $region60: #{simple_densenet_forward.1} parent=1 // pred_region
      _
    $region61: #{simple_densenet_forward.1} parent=1 // pred_fallthru
      _
    // Predicated region
    $region62: #{simple_densenet_forward.1} parent=1 // pred_check
      _
    $region63: #{simple_densenet_forward.1} parent=1 // pred_check_branch
      %61 = sbr.rel (0) target = $region65
    $region64: #{simple_densenet_forward.1} parent=1 // pred_region
      _
    $region65: #{simple_densenet_forward.1} parent=1 // pred_fallthru
      _
    // Predicated region
    $region66: #{simple_densenet_forward.1} parent=1 // pred_check
      _
    $region67: #{simple_densenet_forward.1} parent=1 // pred_check_branch
      %63 = sbr.rel (0) target = $region69
    $region68: #{simple_densenet_forward.1} parent=1 // pred_region
      _
    $region69: #{simple_densenet_forward.1} parent=1 // pred_fallthru
      _
    // Predicated region
    $region70: #{simple_densenet_forward.1} parent=1 // pred_check
      _
    $region71: #{simple_densenet_forward.1} parent=1 // pred_check_branch
      %65 = sbr.rel (0) target = $region73
    $region72: #{simple_densenet_forward.1} parent=1 // pred_region
      _
    $region73: #{simple_densenet_forward.1} parent=1 // pred_fallthru
      _
    // Predicated region
    $region74: #{simple_densenet_forward.1} parent=1 // pred_check
      _
    $region75: #{simple_densenet_forward.1} parent=1 // pred_check_branch
      %67 = sbr.rel (0) target = $region77
    $region76: #{simple_densenet_forward.1} parent=1 // pred_region
      _
    $region77: #{simple_densenet_forward.1} parent=1 // pred_fallthru
      _
    // Predicated region
    $region78: #{simple_densenet_forward.1} parent=1 // pred_check
      _
    $region79: #{simple_densenet_forward.1} parent=1 // pred_check_branch
      %69 = sbr.rel (0) target = $region81
    $region80: #{simple_densenet_forward.1} parent=1 // pred_region
      _
    $region81: #{simple_densenet_forward.1} parent=1 // pred_fallthru
      _
    // Predicated region
    $region82: #{simple_densenet_forward.1} parent=1 // pred_check
      _
    $region83: #{simple_densenet_forward.1} parent=1 // pred_check_branch
      %71 = sbr.rel (0) target = $region85
    $region84: #{simple_densenet_forward.1} parent=1 // pred_region
      _
    $region85: #{simple_densenet_forward.1} parent=1 // pred_fallthru
      _
    // Predicated region
    $region86: #{simple_densenet_forward.1} parent=1 // pred_check
      _
    $region87: #{simple_densenet_forward.1} parent=1 // pred_check_branch
      %73 = sbr.rel (0) target = $region89
    $region88: #{simple_densenet_forward.1} parent=1 // pred_region
      _
    $region89: #{simple_densenet_forward.1} parent=1 // pred_fallthru
      _
    // Predicated region
    $region90: #{simple_densenet_forward.1} parent=1 // pred_check
      _
    $region91: #{simple_densenet_forward.1} parent=1 // pred_check_branch
      %75 = sbr.rel (0) target = $region93
    $region92: #{simple_densenet_forward.1} parent=1 // pred_region
      _
    $region93: #{simple_densenet_forward.1} parent=1 // pred_fallthru
      _
    // Predicated region
    $region94: #{simple_densenet_forward.1} parent=1 // pred_check
      _
    $region95: #{simple_densenet_forward.1} parent=1 // pred_check_branch
      %77 = sbr.rel (0) target = $region97
    $region96: #{simple_densenet_forward.1} parent=1 // pred_region
      _
    $region97: #{simple_densenet_forward.1} parent=1 // pred_fallthru
      _
    %v79 = vld [vmem:[%s0] sm:$0xff]
    %v80 = vld [vmem:[%s0 + $0x8] sm:$0xff]
    %v81 = vld [vmem:[%s0 + $0x10] sm:$0xff]
    %v82 = vld [vmem:[%s0 + $0x18] sm:$0xff]
    %v83 = vld [vmem:[%s0 + $0x20] sm:$0xff]
    %v84 = vld [vmem:[%s0 + $0x28] sm:$0xff]
    %v85 = vld [vmem:[%s0 + $0x30] sm:$0xff]
    %v86 = vld [vmem:[%s0 + $0x38] sm:$0xff]
    %v87 = vld [vmem:[%s0 + $0x40] sm:$0xff]
    %v88 = vld [vmem:[%s0 + $0x48] sm:$0xff]
    %v89 = vld [vmem:[%s0 + $0x50] sm:$0xff]
    %v90 = vld [vmem:[%s0 + $0x58] sm:$0xff]
    %v91 = vld [vmem:[%s0 + $0x60] sm:$0xff]
    %v92 = vld [vmem:[%s0 + $0x68] sm:$0xff]
    %v93 = vld [vmem:[%s0 + $0x70] sm:$0xff]
    %v94 = vld [vmem:[%s0 + $0x78] sm:$0xff]
    %v95 = vld [vmem:[%s0 + $0x80] sm:$0xff]
    %v96 = vld [vmem:[%s0 + $0x88] sm:$0xff]
    %v97 = vld [vmem:[%s0 + $0x90] sm:$0xff]
    %v98 = vld [vmem:[%s0 + $0x98] sm:$0xff]
    %v99 = vld [vmem:[%s0 + $0xa0] sm:$0xff]
    %v100 = vld [vmem:[%s0 + $0xa8] sm:$0xff]
    %v101 = vld [vmem:[%s0 + $0xb0] sm:$0xff]
    %v102 = vld [vmem:[%s0 + $0xb8] sm:$0xff]
    %v103 = vld [vmem:[%s0 + $0xc0] sm:$0xff]
    %v104 = vld [vmem:[%s0 + $0xc8] sm:$0xff]
    %v105 = vld [vmem:[%s0 + $0xd0] sm:$0xff]
    %v106 = vld [vmem:[%s0 + $0xd8] sm:$0xff]
    %v107 = vld [vmem:[%s0 + $0xe0] sm:$0xff]
    %v108 = vld [vmem:[%s0 + $0xe8] sm:$0xff]
    %v109 = vld [vmem:[%s0 + $0xf0] sm:$0xff]
    %v110 = vld [vmem:[%s0 + $0xf8] sm:$0xff]
    %v111 = vld [vmem:[%s0 + $0x100] sm:$0xff]
    %v112 = vld [vmem:[%s0 + $0x108] sm:$0xff]
    %v113 = vld [vmem:[%s0 + $0x110] sm:$0xff]
    %v114 = vld [vmem:[%s0 + $0x118] sm:$0xff]
    %v115 = vld [vmem:[%s0 + $0x120] sm:$0xff]
    %v116 = vld [vmem:[%s0 + $0x128] sm:$0xff]
    %v117 = vld [vmem:[%s0 + $0x130] sm:$0xff]
    %v118 = vld [vmem:[%s0 + $0x138] sm:$0xff]
    %v119 = vld [vmem:[%s0 + $0x140] sm:$0xff]
    %v120 = vld [vmem:[%s0 + $0x148] sm:$0xff]
    %v121 = vld [vmem:[%s0 + $0x150] sm:$0xff]
    %v122 = vld [vmem:[%s0 + $0x158] sm:$0xff]
    %v123 = vld [vmem:[%s0 + $0x160] sm:$0xff]
    %v124 = vld [vmem:[%s0 + $0x168] sm:$0xff]
    %v125 = vld [vmem:[%s0 + $0x170] sm:$0xff]
    %v126 = vld [vmem:[%s0 + $0x178] sm:$0xff]
    %v127 = vld [vmem:[%s0 + $0x180] sm:$0xff]
    %v128 = vld [vmem:[%s0 + $0x188] sm:$0xff]
    %v129 = vld [vmem:[%s0 + $0x190] sm:$0xff]
    %v130 = vld [vmem:[%s0 + $0x198] sm:$0xff]
    %v131 = vld [vmem:[%s0 + $0x1a0] sm:$0xff]
    %v132 = vld [vmem:[%s0 + $0x1a8] sm:$0xff]
    %v133 = vld [vmem:[%s0 + $0x1b0] sm:$0xff]
    %v134 = vld [vmem:[%s0 + $0x1b8] sm:$0xff]
    %v135 = vld [vmem:[%s0 + $0x1c0] sm:$0xff]
    %v136 = vld [vmem:[%s0 + $0x1c8] sm:$0xff]
    %v137 = vld [vmem:[%s0 + $0x1d0] sm:$0xff]
    %v138 = vld [vmem:[%s0 + $0x1d8] sm:$0xff]
    %v139 = vld [vmem:[%s0 + $0x1e0] sm:$0xff]
    %v140 = vld [vmem:[%s0 + $0x1e8] sm:$0xff]
    %v141 = vld [vmem:[%s0 + $0x1f0] sm:$0xff]
    %v142 = vld [vmem:[%s0 + $0x1f8] sm:$0xff]
    %v143 = vld [vmem:[%s0 + $0x200] sm:$0xff]
    %v144 = vld [vmem:[%s0 + $0x208] sm:$0xff]
    %v145 = vld [vmem:[%s0 + $0x210] sm:$0xff]
    %v146 = vld [vmem:[%s0 + $0x218] sm:$0xff]
    %v147 = vld [vmem:[%s0 + $0x220] sm:$0xff]
    %v148 = vld [vmem:[%s0 + $0x228] sm:$0xff]
    %v149 = vld [vmem:[%s0 + $0x230] sm:$0xff]
    %v150 = vld [vmem:[%s0 + $0x238] sm:$0xff]
    %v151 = vpack.c.bf16 %v81, %v79
    %v152 = vpack.c.bf16 %v82, %v80
    %v153 = vpack.c.bf16 %v85, %v83
    %v154 = vpack.c.bf16 %v86, %v84
    %v155 = vpack.c.bf16 %v89, %v87
    %v156 = vpack.c.bf16 %v90, %v88
    %v157 = vpack.c.bf16 %v93, %v91
    %v158 = vpack.c.bf16 %v94, %v92
    %v159 = vpack.c.bf16 %v97, %v95
    %v160 = vpack.c.bf16 %v98, %v96
    %v161 = vpack.c.bf16 %v101, %v99
    %v162 = vpack.c.bf16 %v102, %v100
    %v163 = vpack.c.bf16 %v105, %v103
    %v164 = vpack.c.bf16 %v106, %v104
    %v165 = vpack.c.bf16 %v109, %v107
    %v166 = vpack.c.bf16 %v110, %v108
    %v167 = vpack.c.bf16 %v113, %v111
    %v168 = vpack.c.bf16 %v114, %v112
    %v169 = vpack.c.bf16 %v117, %v115
    %v170 = vpack.c.bf16 %v118, %v116
    %v171 = vpack.c.bf16 %v121, %v119
    %v172 = vpack.c.bf16 %v122, %v120
    %v173 = vpack.c.bf16 %v125, %v123
    %v174 = vpack.c.bf16 %v126, %v124
    %v175 = vpack.c.bf16 %v129, %v127
    %v176 = vpack.c.bf16 %v130, %v128
    %v177 = vpack.c.bf16 %v133, %v131
    %v178 = vpack.c.bf16 %v134, %v132
    %v179 = vpack.c.bf16 %v137, %v135
    %v180 = vpack.c.bf16 %v138, %v136
    %v181 = vpack.c.bf16 %v141, %v139
    %v182 = vpack.c.bf16 %v142, %v140
    %v183 = vpack.c.bf16 %v145, %v143
    %v184 = vpack.c.bf16 %v146, %v144
    %v185 = vpack.c.bf16 %v149, %v147
    %v186 = vpack.c.bf16 %v150, %v148
    %v187 = vld [vmem:[%s1] sm:$0xf]
    %v188 = vld [vmem:[%s1 + $0x4] sm:$0xf]
    %v189 = vld [vmem:[%s1 + $0x8] sm:$0xf]
    %v190 = vld [vmem:[%s1 + $0xc] sm:$0xf]
    %v191 = vld [vmem:[%s1 + $0x10] sm:$0xf]
    %v192 = vld [vmem:[%s1 + $0x14] sm:$0xf]
    %v193 = vld [vmem:[%s1 + $0x18] sm:$0xf]
    %v194 = vld [vmem:[%s1 + $0x1c] sm:$0xf]
    %v195 = vld [vmem:[%s1 + $0x20] sm:$0xf]
    %v196 = vld [vmem:[%s1 + $0x24] sm:$0xf]
    %v197 = vld [vmem:[%s1 + $0x28] sm:$0xf]
    %v198 = vld [vmem:[%s1 + $0x2c] sm:$0xf]
    %v199 = vld [vmem:[%s1 + $0x30] sm:$0xf]
    %v200 = vld [vmem:[%s1 + $0x34] sm:$0xf]
    %v201 = vld [vmem:[%s1 + $0x38] sm:$0xf]
    %v202 = vld [vmem:[%s1 + $0x3c] sm:$0xf]
    %v203 = vld [vmem:[%s1 + $0x40] sm:$0xf]
    %v204 = vld [vmem:[%s1 + $0x44] sm:$0xf]
    %v205 = vld [vmem:[%s1 + $0x48] sm:$0xf]
    %v206 = vld [vmem:[%s1 + $0x4c] sm:$0xf]
    %v207 = vld [vmem:[%s1 + $0x50] sm:$0xf]
    %v208 = vld [vmem:[%s1 + $0x54] sm:$0xf]
    %v209 = vld [vmem:[%s1 + $0x58] sm:$0xf]
    %v210 = vld [vmem:[%s1 + $0x5c] sm:$0xf]
    %v211 = vld [vmem:[%s1 + $0x60] sm:$0xf]
    %v212 = vld [vmem:[%s1 + $0x64] sm:$0xf]
    %v213 = vld [vmem:[%s1 + $0x68] sm:$0xf]
    %v214 = vld [vmem:[%s1 + $0x6c] sm:$0xf]
    %v215 = vld [vmem:[%s1 + $0x70] sm:$0xf]
    %v216 = vld [vmem:[%s1 + $0x74] sm:$0xf]
    %v217 = vld [vmem:[%s1 + $0x78] sm:$0xf]
    %v218 = vld [vmem:[%s1 + $0x7c] sm:$0xf]
    %v251 = vunpack.c.l.b16 %v187
    %v252 = vunpack.c.l.b16 %v188
    %v253 = vunpack.c.l.b16 %v189
    %v254 = vunpack.c.l.b16 %v190
    %v255 = vunpack.c.l.b16 %v191
    %v256 = vunpack.c.l.b16 %v192
    %v257 = vunpack.c.l.b16 %v193
    %v258 = vunpack.c.l.b16 %v194
    %v259 = vunpack.c.l.b16 %v195
    %v260 = vunpack.c.l.b16 %v196
    %v261 = vunpack.c.l.b16 %v197
    %v262 = vunpack.c.l.b16 %v198
    %v263 = vunpack.c.l.b16 %v199
    %v264 = vunpack.c.l.b16 %v200
    %v265 = vunpack.c.l.b16 %v201
    %v266 = vunpack.c.l.b16 %v202
    %v267 = vunpack.c.l.b16 %v203
    %v268 = vunpack.c.l.b16 %v204
    %v269 = vunpack.c.l.b16 %v205
    %v270 = vunpack.c.l.b16 %v206
    %v271 = vunpack.c.l.b16 %v207
    %v272 = vunpack.c.l.b16 %v208
    %v273 = vunpack.c.l.b16 %v209
    %v274 = vunpack.c.l.b16 %v210
    %v275 = vunpack.c.l.b16 %v211
    %v276 = vunpack.c.l.b16 %v212
    %v277 = vunpack.c.l.b16 %v213
    %v278 = vunpack.c.l.b16 %v214
    %v279 = vunpack.c.l.b16 %v215
    %v280 = vunpack.c.l.b16 %v216
    %v281 = vunpack.c.l.b16 %v217
    %v282 = vunpack.c.l.b16 %v218
    %v283 = vpack.c.b16 %v252, %v251
    %v284 = vpack.c.b16 %v254, %v253
    %v285 = vpack.c.b16 %v256, %v255
    %v286 = vpack.c.b16 %v258, %v257
    %v287 = vpack.c.b16 %v260, %v259
    %v288 = vpack.c.b16 %v262, %v261
    %v289 = vpack.c.b16 %v264, %v263
    %v290 = vpack.c.b16 %v266, %v265
    %v291 = vpack.c.b16 %v268, %v267
    %v292 = vpack.c.b16 %v270, %v269
    %v293 = vpack.c.b16 %v272, %v271
    %v294 = vpack.c.b16 %v274, %v273
    %v295 = vpack.c.b16 %v276, %v275
    %v296 = vpack.c.b16 %v278, %v277
    %v297 = vpack.c.b16 %v280, %v279
    %v298 = vpack.c.b16 %v282, %v281
    %315 = vmatprep.subr.bf16.mxu0 0
    %316 = vmatpush1.bf16.msra.mxu0 %v290
    %317 = vmatprep.subr.bf16.mxu0 0
    %318 = vmatpush1.bf16.msra.mxu0 %v289
    %319 = vmatprep.subr.bf16.mxu0 0
    %320 = vmatpush1.bf16.msra.mxu0 %v288
    %321 = vmatprep.subr.bf16.mxu0 0
    %322 = vmatpush1.bf16.msra.mxu0 %v287
    %323 = vmatprep.subr.bf16.mxu0 0
    %324 = vmatpush1.bf16.msra.mxu0 %v286
    %325 = vmatprep.subr.bf16.mxu0 0
    %326 = vmatpush1.bf16.msra.mxu0 %v285
    %327 = vmatprep.subr.bf16.mxu0 0
    %328 = vmatpush1.bf16.msra.mxu0 %v284
    %329 = vmatprep.subr.bf16.mxu0 0
    %330 = vmatpush1.bf16.msra.mxu0 %v283
    %331 = vmatprep.subr.bf16.mxu0 0
    %332 = vmatpush2.bf16.msra.mxu0 %v298
    %333 = vmatprep.subr.bf16.mxu0 0
    %334 = vmatpush2.bf16.msra.mxu0 %v297
    %335 = vmatprep.subr.bf16.mxu0 0
    %336 = vmatpush2.bf16.msra.mxu0 %v296
    %337 = vmatprep.subr.bf16.mxu0 0
    %338 = vmatpush2.bf16.msra.mxu0 %v295
    %339 = vmatprep.subr.bf16.mxu0 0
    %340 = vmatpush2.bf16.msra.mxu0 %v294
    %341 = vmatprep.subr.bf16.mxu0 0
    %342 = vmatpush2.bf16.msra.mxu0 %v293
    %343 = vmatprep.subr.bf16.mxu0 0
    %344 = vmatpush2.bf16.msra.mxu0 %v292
    %345 = vmatprep.subr.bf16.mxu0 0
    %346 = vmatpush2.bf16.msra.mxu0 %v291
    %347 = vmatprep.mubr.bf16.mxu0 %v152
    %348 = vmatmul.mubr.bf16.gmra.mxu0 %v151
    %v349 = vpop.f32.mrf.mxu0
    %v350 = vadd.f32 0.0, %v349
    %v351 = vpop.f32.mrf.mxu0
    %v352 = vpop.f32.mrf.mxu0
    %v353 = vadd.f32 0.0, %v352
    %v354 = vpop.f32.mrf.mxu0
    %355 = vmatprep.mubr.bf16.mxu0 %v154
    %356 = vmatmul.mubr.bf16.gmra.mxu0 %v153
    %v357 = vpop.f32.mrf.mxu0
    %v358 = vadd.f32 0.0, %v357
    %v359 = vpop.f32.mrf.mxu0
    %v360 = vpop.f32.mrf.mxu0
    %v361 = vadd.f32 0.0, %v360
    %v362 = vpop.f32.mrf.mxu0
    %363 = vmatprep.mubr.bf16.mxu0 %v156
    %364 = vmatmul.mubr.bf16.gmra.mxu0 %v155
    %v365 = vpop.f32.mrf.mxu0
    %v366 = vadd.f32 0.0, %v365
    %v367 = vpop.f32.mrf.mxu0
    %v368 = vpop.f32.mrf.mxu0
    %v369 = vadd.f32 0.0, %v368
    %v370 = vpop.f32.mrf.mxu0
    %371 = vmatprep.mubr.bf16.mxu0 %v158
    %372 = vmatmul.mubr.bf16.gmra.mxu0 %v157
    %v373 = vpop.f32.mrf.mxu0
    %v374 = vadd.f32 0.0, %v373
    %v375 = vpop.f32.mrf.mxu0
    %v376 = vpop.f32.mrf.mxu0
    %v377 = vadd.f32 0.0, %v376
    %v378 = vpop.f32.mrf.mxu0
    %379 = vmatprep.mubr.bf16.mxu0 %v160
    %380 = vmatmul.mubr.bf16.gmra.mxu0 %v159
    %v381 = vpop.f32.mrf.mxu0
    %v382 = vadd.f32 0.0, %v381
    %v383 = vpop.f32.mrf.mxu0
    %v384 = vpop.f32.mrf.mxu0
    %v385 = vadd.f32 0.0, %v384
    %v386 = vpop.f32.mrf.mxu0
    %387 = vmatprep.mubr.bf16.mxu0 %v162
    %388 = vmatmul.mubr.bf16.gmra.mxu0 %v161
    %v389 = vpop.f32.mrf.mxu0
    %v390 = vadd.f32 0.0, %v389
    %v391 = vpop.f32.mrf.mxu0
    %v392 = vpop.f32.mrf.mxu0
    %v393 = vadd.f32 0.0, %v392
    %v394 = vpop.f32.mrf.mxu0
    %395 = vmatprep.mubr.bf16.mxu0 %v164
    %396 = vmatmul.mubr.bf16.gmra.mxu0 %v163
    %v397 = vpop.f32.mrf.mxu0
    %v398 = vadd.f32 0.0, %v397
    %v399 = vpop.f32.mrf.mxu0
    %v400 = vpop.f32.mrf.mxu0
    %v401 = vadd.f32 0.0, %v400
    %v402 = vpop.f32.mrf.mxu0
    %403 = vmatprep.mubr.bf16.mxu0 %v166
    %404 = vmatmul.mubr.bf16.gmra.mxu0 %v165
    %v405 = vpop.f32.mrf.mxu0
    %v406 = vadd.f32 0.0, %v405
    %v407 = vpop.f32.mrf.mxu0
    %v408 = vpop.f32.mrf.mxu0
    %v409 = vadd.f32 0.0, %v408
    %v410 = vpop.f32.mrf.mxu0
    %411 = vmatprep.mubr.bf16.mxu0 %v168
    %412 = vmatmul.mubr.bf16.gmra.mxu0 %v167
    %v413 = vpop.f32.mrf.mxu0
    %v414 = vadd.f32 0.0, %v413
    %v415 = vpop.f32.mrf.mxu0
    %v416 = vpop.f32.mrf.mxu0
    %v417 = vadd.f32 0.0, %v416
    %v418 = vpop.f32.mrf.mxu0
    %419 = vmatprep.mubr.bf16.mxu0 %v170
    %420 = vmatmul.mubr.bf16.gmra.mxu0 %v169
    %v421 = vpop.f32.mrf.mxu0
    %v422 = vadd.f32 0.0, %v421
    %v423 = vpop.f32.mrf.mxu0
    %v424 = vpop.f32.mrf.mxu0
    %v425 = vadd.f32 0.0, %v424
    %v426 = vpop.f32.mrf.mxu0
    %427 = vmatprep.mubr.bf16.mxu0 %v172
    %428 = vmatmul.mubr.bf16.gmra.mxu0 %v171
    %v429 = vpop.f32.mrf.mxu0
    %v430 = vadd.f32 0.0, %v429
    %v431 = vpop.f32.mrf.mxu0
    %v432 = vpop.f32.mrf.mxu0
    %v433 = vadd.f32 0.0, %v432
    %v434 = vpop.f32.mrf.mxu0
    %435 = vmatprep.mubr.bf16.mxu0 %v174
    %436 = vmatmul.mubr.bf16.gmra.mxu0 %v173
    %v437 = vpop.f32.mrf.mxu0
    %v438 = vadd.f32 0.0, %v437
    %v439 = vpop.f32.mrf.mxu0
    %v440 = vpop.f32.mrf.mxu0
    %v441 = vadd.f32 0.0, %v440
    %v442 = vpop.f32.mrf.mxu0
    %443 = vmatprep.mubr.bf16.mxu0 %v176
    %444 = vmatmul.mubr.bf16.gmra.mxu0 %v175
    %v445 = vpop.f32.mrf.mxu0
    %v446 = vadd.f32 0.0, %v445
    %v447 = vpop.f32.mrf.mxu0
    %v448 = vpop.f32.mrf.mxu0
    %v449 = vadd.f32 0.0, %v448
    %v450 = vpop.f32.mrf.mxu0
    %451 = vmatprep.mubr.bf16.mxu0 %v178
    %452 = vmatmul.mubr.bf16.gmra.mxu0 %v177
    %v453 = vpop.f32.mrf.mxu0
    %v454 = vadd.f32 0.0, %v453
    %v455 = vpop.f32.mrf.mxu0
    %v456 = vpop.f32.mrf.mxu0
    %v457 = vadd.f32 0.0, %v456
    %v458 = vpop.f32.mrf.mxu0
    %459 = vmatprep.mubr.bf16.mxu0 %v180
    %460 = vmatmul.mubr.bf16.gmra.mxu0 %v179
    %v461 = vpop.f32.mrf.mxu0
    %v462 = vadd.f32 0.0, %v461
    %v463 = vpop.f32.mrf.mxu0
    %v464 = vpop.f32.mrf.mxu0
    %v465 = vadd.f32 0.0, %v464
    %v466 = vpop.f32.mrf.mxu0
    %467 = vmatprep.mubr.bf16.mxu0 %v182
    %468 = vmatmul.mubr.bf16.gmra.mxu0 %v181
    %v469 = vpop.f32.mrf.mxu0
    %v470 = vadd.f32 0.0, %v469
    %v471 = vpop.f32.mrf.mxu0
    %v472 = vpop.f32.mrf.mxu0
    %v473 = vadd.f32 0.0, %v472
    %v474 = vpop.f32.mrf.mxu0
    %475 = vmatprep.mubr.bf16.mxu0 %v184
    %476 = vmatmul.mubr.bf16.gmra.mxu0 %v183
    %v477 = vpop.f32.mrf.mxu0
    %v478 = vadd.f32 0.0, %v477
    %v479 = vpop.f32.mrf.mxu0
    %v480 = vpop.f32.mrf.mxu0
    %v481 = vadd.f32 0.0, %v480
    %v482 = vpop.f32.mrf.mxu0
    %483 = vmatprep.mubr.bf16.mxu0 %v186
    %484 = vmatmul.mubr.bf16.gmra.mxu0 %v185
    %v485 = vpop.f32.mrf.mxu0
    %v486 = vadd.f32 0.0, %v485
    %v487 = vpop.f32.mrf.mxu0
    %v488 = vpop.f32.mrf.mxu0
    %v489 = vadd.f32 0.0, %v488
    %v490 = vpop.f32.mrf.mxu0
    %491 = vdwg.mxu0
    %v492 = vmax.f32 %v350, %v366
    %v493 = vmax.f32 %v353, %v369
    %v494 = vmax.f32 %v358, %v374
    %v495 = vmax.f32 %v361, %v377
    %v496 = vmax.f32 %v492, %v382
    %v497 = vmax.f32 %v493, %v385
    %v498 = vmax.f32 %v494, %v390
    %v499 = vmax.f32 %v495, %v393
    %v500 = vmax.f32 %v496, %v398
    %v501 = vmax.f32 %v497, %v401
    %v502 = vmax.f32 %v498, %v406
    %v503 = vmax.f32 %v499, %v409
    %v504 = vmax.f32 %v500, %v414
    %v505 = vmax.f32 %v501, %v417
    %v506 = vmax.f32 %v502, %v422
    %v507 = vmax.f32 %v503, %v425
    %v508 = vmax.f32 %v504, %v430
    %v509 = vmax.f32 %v505, %v433
    %v510 = vmax.f32 %v506, %v438
    %v511 = vmax.f32 %v507, %v441
    %v512 = vmax.f32 %v508, %v446
    %v513 = vmax.f32 %v509, %v449
    %v514 = vmax.f32 %v510, %v454
    %v515 = vmax.f32 %v511, %v457
    %v516 = vmax.f32 %v512, %v462
    %v517 = vmax.f32 %v513, %v465
    %v518 = vmax.f32 %v514, %v470
    %v519 = vmax.f32 %v515, %v473
    %v520 = vmax.f32 %v516, %v478
    %v521 = vmax.f32 %v517, %v481
    %v522 = vmax.f32 %v518, %v486
    %v523 = vmax.f32 %v519, %v489
    %v524 = vld [vmem:[%s3] sm:$0x1]
    %v525 = vld [vmem:[%s4] sm:$0x1]
    %v526 = vadd.f32 %v520, %v521
    %v527 = vadd.f32 %v526, %v522
    %v528 = vadd.f32 %v527, %v523
    %v529 = vrot.slane %v528, 4
    %v530 = vadd.f32 %v528, %v529
    %v531 = vrot.slane %v530, 2
    %v532 = vadd.f32 %v530, %v531
    %v533 = vrot.slane %v532, 1
    %v534 = vadd.f32 %v532, %v533
    %v535 = vrcp.pop 32.0
    %v536 = vmul.f32 %v534, %v535
    %v537 = vsub.f32 %v520, %v536
    %v538 = vsub.f32 %v521, %v536
    %v539 = vsub.f32 %v522, %v536
    %v540 = vsub.f32 %v523, %v536
    %v541 = vmul.f32 %v537, %v537
    %v542 = vmul.f32 %v538, %v538
    %v543 = vmul.f32 %v539, %v539
    %v544 = vmul.f32 %v540, %v540
    %v545 = vadd.f32 %v541, %v542
    %v546 = vadd.f32 %v545, %v543
    %v547 = vadd.f32 %v546, %v544
    %v548 = vrot.slane %v547, 4
    %v549 = vadd.f32 %v547, %v548
    %v550 = vrot.slane %v549, 2
    %v551 = vadd.f32 %v549, %v550
    %v552 = vrot.slane %v551, 1
    %v553 = vadd.f32 %v551, %v552
    %v554 = vmul.f32 %v553, %v535
    %v555 = vadd.f32 %v554, 1e-05
    %v556 = vrsqrt.pop %v555
    %v557 = vmul.f32 %v556, %v524
    %v558 = vlaneseq
    %v559 = vshrl.u32 %v558, 7
    %v560 = vsub.s32 0, %v559
    %v561 = vrot.slane %v557, %v560
    %v562 = vmul.f32 %v537, %v561
    %v563 = vmul.f32 %v538, %v561
    %v564 = vmul.f32 %v539, %v561
    %v565 = vmul.f32 %v540, %v561
    %v566 = vlaneseq
    %v567 = vshrl.u32 %v566, 7
    %v568 = vsub.s32 0, %v567
    %v569 = vrot.slane %v525, %v568
    %v570 = vadd.f32 %v562, %v569
    %v571 = vadd.f32 %v563, %v569
    %v572 = vadd.f32 %v564, %v569
    %v573 = vadd.f32 %v565, %v569
    %v574 = vmax.f32 %v570, 0.0
    %v575 = vmax.f32 %v571, 0.0
    %v576 = vmax.f32 %v572, 0.0
    %v577 = vmax.f32 %v573, 0.0
    %v578 = vpack.c.bf16 %v575, %v574
    %v579 = vpack.c.bf16 %v577, %v576
    %v580 = vld [vmem:[%s5] sm:$0xf]
    %v581 = vld [vmem:[%s5 + $0x4] sm:$0xf]
    %v582 = vld [vmem:[%s5 + $0x8] sm:$0xf]
    %v583 = vld [vmem:[%s5 + $0xc] sm:$0xf]
    %v584 = vld [vmem:[%s5 + $0x10] sm:$0xf]
    %v585 = vld [vmem:[%s5 + $0x14] sm:$0xf]
    %v586 = vld [vmem:[%s5 + $0x18] sm:$0xf]
    %v587 = vld [vmem:[%s5 + $0x1c] sm:$0xf]
    %v588 = vld [vmem:[%s5 + $0x20] sm:$0xf]
    %v589 = vld [vmem:[%s5 + $0x24] sm:$0xf]
    %v590 = vld [vmem:[%s5 + $0x28] sm:$0xf]
    %v591 = vld [vmem:[%s5 + $0x2c] sm:$0xf]
    %v592 = vld [vmem:[%s5 + $0x30] sm:$0xf]
    %v593 = vld [vmem:[%s5 + $0x34] sm:$0xf]
    %v594 = vld [vmem:[%s5 + $0x38] sm:$0xf]
    %v595 = vld [vmem:[%s5 + $0x3c] sm:$0xf]
    %v596 = vld [vmem:[%s5 + $0x40] sm:$0xf]
    %v597 = vld [vmem:[%s5 + $0x44] sm:$0xf]
    %v598 = vld [vmem:[%s5 + $0x48] sm:$0xf]
    %v599 = vld [vmem:[%s5 + $0x4c] sm:$0xf]
    %v600 = vld [vmem:[%s5 + $0x50] sm:$0xf]
    %v601 = vld [vmem:[%s5 + $0x54] sm:$0xf]
    %v602 = vld [vmem:[%s5 + $0x58] sm:$0xf]
    %v603 = vld [vmem:[%s5 + $0x5c] sm:$0xf]
    %v604 = vld [vmem:[%s5 + $0x60] sm:$0xf]
    %v605 = vld [vmem:[%s5 + $0x64] sm:$0xf]
    %v606 = vld [vmem:[%s5 + $0x68] sm:$0xf]
    %v607 = vld [vmem:[%s5 + $0x6c] sm:$0xf]
    %v608 = vld [vmem:[%s5 + $0x70] sm:$0xf]
    %v609 = vld [vmem:[%s5 + $0x74] sm:$0xf]
    %v610 = vld [vmem:[%s5 + $0x78] sm:$0xf]
    %v611 = vld [vmem:[%s5 + $0x7c] sm:$0xf]
    %v612 = vld [vmem:[%s5 + $0x80] sm:$0xf]
    %v613 = vld [vmem:[%s5 + $0x84] sm:$0xf]
    %v614 = vld [vmem:[%s5 + $0x88] sm:$0xf]
    %v615 = vld [vmem:[%s5 + $0x8c] sm:$0xf]
    %v616 = vld [vmem:[%s5 + $0x90] sm:$0xf]
    %v617 = vld [vmem:[%s5 + $0x94] sm:$0xf]
    %v618 = vld [vmem:[%s5 + $0x98] sm:$0xf]
    %v619 = vld [vmem:[%s5 + $0x9c] sm:$0xf]
    %v620 = vld [vmem:[%s5 + $0xa0] sm:$0xf]
    %v621 = vld [vmem:[%s5 + $0xa4] sm:$0xf]
    %v622 = vld [vmem:[%s5 + $0xa8] sm:$0xf]
    %v623 = vld [vmem:[%s5 + $0xac] sm:$0xf]
    %v624 = vld [vmem:[%s5 + $0xb0] sm:$0xf]
    %v625 = vld [vmem:[%s5 + $0xb4] sm:$0xf]
    %v626 = vld [vmem:[%s5 + $0xb8] sm:$0xf]
    %v627 = vld [vmem:[%s5 + $0xbc] sm:$0xf]
    %v628 = vld [vmem:[%s5 + $0xc0] sm:$0xf]
    %v629 = vld [vmem:[%s5 + $0xc4] sm:$0xf]
    %v630 = vld [vmem:[%s5 + $0xc8] sm:$0xf]
    %v631 = vld [vmem:[%s5 + $0xcc] sm:$0xf]
    %v632 = vld [vmem:[%s5 + $0xd0] sm:$0xf]
    %v633 = vld [vmem:[%s5 + $0xd4] sm:$0xf]
    %v634 = vld [vmem:[%s5 + $0xd8] sm:$0xf]
    %v635 = vld [vmem:[%s5 + $0xdc] sm:$0xf]
    %v636 = vld [vmem:[%s5 + $0xe0] sm:$0xf]
    %v637 = vld [vmem:[%s5 + $0xe4] sm:$0xf]
    %v638 = vld [vmem:[%s5 + $0xe8] sm:$0xf]
    %v639 = vld [vmem:[%s5 + $0xec] sm:$0xf]
    %v640 = vld [vmem:[%s5 + $0xf0] sm:$0xf]
    %v641 = vld [vmem:[%s5 + $0xf4] sm:$0xf]
    %v642 = vld [vmem:[%s5 + $0xf8] sm:$0xf]
    %v643 = vld [vmem:[%s5 + $0xfc] sm:$0xf]
    %v644 = vld [vmem:[%s5 + $0x100] sm:$0xf]
    %v645 = vld [vmem:[%s5 + $0x104] sm:$0xf]
    %v646 = vld [vmem:[%s5 + $0x108] sm:$0xf]
    %v647 = vld [vmem:[%s5 + $0x10c] sm:$0xf]
    %v648 = vld [vmem:[%s5 + $0x110] sm:$0xf]
    %v649 = vld [vmem:[%s5 + $0x114] sm:$0xf]
    %v650 = vld [vmem:[%s5 + $0x118] sm:$0xf]
    %v651 = vld [vmem:[%s5 + $0x11c] sm:$0xf]
    %v652 = vld [vmem:[%s5 + $0x120] sm:$0xf]
    %v653 = vld [vmem:[%s5 + $0x124] sm:$0xf]
    %v654 = vld [vmem:[%s5 + $0x128] sm:$0xf]
    %v655 = vld [vmem:[%s5 + $0x12c] sm:$0xf]
    %v656 = vld [vmem:[%s5 + $0x130] sm:$0xf]
    %v657 = vld [vmem:[%s5 + $0x134] sm:$0xf]
    %v658 = vld [vmem:[%s5 + $0x138] sm:$0xf]
    %v659 = vld [vmem:[%s5 + $0x13c] sm:$0xf]
    %v660 = vld [vmem:[%s5 + $0x140] sm:$0xf]
    %v661 = vld [vmem:[%s5 + $0x144] sm:$0xf]
    %v662 = vld [vmem:[%s5 + $0x148] sm:$0xf]
    %v663 = vld [vmem:[%s5 + $0x14c] sm:$0xf]
    %v664 = vld [vmem:[%s5 + $0x150] sm:$0xf]
    %v665 = vld [vmem:[%s5 + $0x154] sm:$0xf]
    %v666 = vld [vmem:[%s5 + $0x158] sm:$0xf]
    %v667 = vld [vmem:[%s5 + $0x15c] sm:$0xf]
    %v668 = vld [vmem:[%s5 + $0x160] sm:$0xf]
    %v669 = vld [vmem:[%s5 + $0x164] sm:$0xf]
    %v670 = vld [vmem:[%s5 + $0x168] sm:$0xf]
    %v671 = vld [vmem:[%s5 + $0x16c] sm:$0xf]
    %v672 = vld [vmem:[%s5 + $0x170] sm:$0xf]
    %v673 = vld [vmem:[%s5 + $0x174] sm:$0xf]
    %v674 = vld [vmem:[%s5 + $0x178] sm:$0xf]
    %v675 = vld [vmem:[%s5 + $0x17c] sm:$0xf]
    %v676 = vld [vmem:[%s5 + $0x180] sm:$0xf]
    %v677 = vld [vmem:[%s5 + $0x184] sm:$0xf]
    %v678 = vld [vmem:[%s5 + $0x188] sm:$0xf]
    %v679 = vld [vmem:[%s5 + $0x18c] sm:$0xf]
    %v680 = vld [vmem:[%s5 + $0x190] sm:$0xf]
    %v681 = vld [vmem:[%s5 + $0x194] sm:$0xf]
    %v682 = vld [vmem:[%s5 + $0x198] sm:$0xf]
    %v683 = vld [vmem:[%s5 + $0x19c] sm:$0xf]
    %v684 = vld [vmem:[%s5 + $0x1a0] sm:$0xf]
    %v685 = vld [vmem:[%s5 + $0x1a4] sm:$0xf]
    %v686 = vld [vmem:[%s5 + $0x1a8] sm:$0xf]
    %v687 = vld [vmem:[%s5 + $0x1ac] sm:$0xf]
    %v688 = vld [vmem:[%s5 + $0x1b0] sm:$0xf]
    %v689 = vld [vmem:[%s5 + $0x1b4] sm:$0xf]
    %v690 = vld [vmem:[%s5 + $0x1b8] sm:$0xf]
    %v691 = vld [vmem:[%s5 + $0x1bc] sm:$0xf]
    %v692 = vld [vmem:[%s5 + $0x1c0] sm:$0xf]
    %v693 = vld [vmem:[%s5 + $0x1c4] sm:$0xf]
    %v694 = vld [vmem:[%s5 + $0x1c8] sm:$0xf]
    %v695 = vld [vmem:[%s5 + $0x1cc] sm:$0xf]
    %v696 = vld [vmem:[%s5 + $0x1d0] sm:$0xf]
    %v697 = vld [vmem:[%s5 + $0x1d4] sm:$0xf]
    %v698 = vld [vmem:[%s5 + $0x1d8] sm:$0xf]
    %v699 = vld [vmem:[%s5 + $0x1dc] sm:$0xf]
    %v700 = vld [vmem:[%s5 + $0x1e0] sm:$0xf]
    %v701 = vld [vmem:[%s5 + $0x1e4] sm:$0xf]
    %v702 = vld [vmem:[%s5 + $0x1e8] sm:$0xf]
    %v703 = vld [vmem:[%s5 + $0x1ec] sm:$0xf]
    %v704 = vld [vmem:[%s5 + $0x1f0] sm:$0xf]
    %v705 = vld [vmem:[%s5 + $0x1f4] sm:$0xf]
    %v706 = vld [vmem:[%s5 + $0x1f8] sm:$0xf]
    %v707 = vld [vmem:[%s5 + $0x1fc] sm:$0xf]
    %v708 = vld [vmem:[%s5 + $0x200] sm:$0xf]
    %v709 = vld [vmem:[%s5 + $0x204] sm:$0xf]
    %v710 = vld [vmem:[%s5 + $0x208] sm:$0xf]
    %v711 = vld [vmem:[%s5 + $0x20c] sm:$0xf]
    %v712 = vld [vmem:[%s5 + $0x210] sm:$0xf]
    %v713 = vld [vmem:[%s5 + $0x214] sm:$0xf]
    %v714 = vld [vmem:[%s5 + $0x218] sm:$0xf]
    %v715 = vld [vmem:[%s5 + $0x21c] sm:$0xf]
    %v716 = vld [vmem:[%s5 + $0x220] sm:$0xf]
    %v717 = vld [vmem:[%s5 + $0x224] sm:$0xf]
    %v718 = vld [vmem:[%s5 + $0x228] sm:$0xf]
    %v719 = vld [vmem:[%s5 + $0x22c] sm:$0xf]
    %v720 = vld [vmem:[%s5 + $0x230] sm:$0xf]
    %v721 = vld [vmem:[%s5 + $0x234] sm:$0xf]
    %v722 = vld [vmem:[%s5 + $0x238] sm:$0xf]
    %v723 = vld [vmem:[%s5 + $0x23c] sm:$0xf]
    %v724 = vld [vmem:[%s2] sm:$0xf]
    %v725 = vld [vmem:[%s2 + $0x4] sm:$0xf]
    %v726 = vld [vmem:[%s2 + $0x8] sm:$0xf]
    %v727 = vld [vmem:[%s2 + $0xc] sm:$0xf]
    %v732 = vunpack.c.l.b16 %v724
    %v733 = vunpack.c.l.b16 %v725
    %v734 = vunpack.c.l.b16 %v726
    %v735 = vunpack.c.l.b16 %v727
    %v736 = vpack.c.b16 %v733, %v732
    %v737 = vpack.c.b16 %v735, %v734
    %vm738 = vcmask 261120
    %v740 = vsel %vm738, %v736, 0
    %v743 = vsel %vm738, %v737, 0
    %745 = vmatprep.subr.bf16.mxu0 0
    %746 = vmatpush1.bf16.msra.mxu0 0
    %747 = vmatprep.subr.bf16.mxu0 0
    %748 = vmatpush1.bf16.msra.mxu0 0
    %749 = vmatprep.subr.bf16.mxu0 0
    %750 = vmatpush1.bf16.msra.mxu0 0
    %751 = vmatprep.subr.bf16.mxu0 0
    %752 = vmatpush1.bf16.msra.mxu0 0
    %753 = vmatprep.subr.bf16.mxu0 0
    %754 = vmatpush1.bf16.msra.mxu0 0
    %755 = vmatprep.subr.bf16.mxu0 0
    %756 = vmatpush1.bf16.msra.mxu0 0
    %757 = vmatprep.subr.bf16.mxu0 0
    %758 = vmatpush1.bf16.msra.mxu0 %v579
    %759 = vmatprep.subr.bf16.mxu0 0
    %760 = vmatpush1.bf16.msra.mxu0 %v578
    %761 = vmatprep.subr.bf16.mxu0 0
    %762 = vmatpush2.bf16.msra.mxu0 0
    %763 = vmatprep.subr.bf16.mxu0 0
    %764 = vmatpush2.bf16.msra.mxu0 0
    %765 = vmatprep.subr.bf16.mxu0 0
    %766 = vmatpush2.bf16.msra.mxu0 0
    %767 = vmatprep.subr.bf16.mxu0 0
    %768 = vmatpush2.bf16.msra.mxu0 0
    %769 = vmatprep.subr.bf16.mxu0 0
    %770 = vmatpush2.bf16.msra.mxu0 0
    %771 = vmatprep.subr.bf16.mxu0 0
    %772 = vmatpush2.bf16.msra.mxu0 0
    %773 = vmatprep.subr.bf16.mxu0 0
    %774 = vmatpush2.bf16.msra.mxu0 0
    %775 = vmatprep.subr.bf16.mxu0 0
    %776 = vmatpush2.bf16.msra.mxu0 0
    %777 = vmatprep.mubr.bf16.mxu0 0
    %778 = vmatmul.mubr.bf16.gmra.mxu0 %v740
    %v779 = vpop.f32.mrf.mxu0
    %v780 = vadd.f32 0.0, %v779
    %v781 = vpop.f32.mrf.mxu0
    %v782 = vpop.f32.mrf.mxu0
    %v783 = vadd.f32 0.0, %v782
    %v784 = vpop.f32.mrf.mxu0
    %785 = vmatprep.mubr.bf16.mxu0 0
    %786 = vmatmul.mubr.bf16.gmra.mxu0 %v743
    %v787 = vpop.f32.mrf.mxu0
    %v788 = vadd.f32 0.0, %v787
    %v789 = vpop.f32.mrf.mxu0
    %v790 = vpop.f32.mrf.mxu0
    %v791 = vadd.f32 0.0, %v790
    %v792 = vpop.f32.mrf.mxu0
    %793 = vdwg.mxu0
    %v794 = vpack.c.bf16 %v783, %v780
    %v795 = vpack.c.bf16 %v791, %v788
    %v796 = vld [vmem:[%s2 + $0x10] sm:$0xf]
    %v797 = vld [vmem:[%s2 + $0x14] sm:$0xf]
    %v798 = vld [vmem:[%s2 + $0x18] sm:$0xf]
    %v799 = vld [vmem:[%s2 + $0x1c] sm:$0xf]
    %v804 = vunpack.c.l.b16 %v796
    %v805 = vunpack.c.l.b16 %v797
    %v806 = vunpack.c.l.b16 %v798
    %v807 = vunpack.c.l.b16 %v799
    %v808 = vpack.c.b16 %v805, %v804
    %v809 = vpack.c.b16 %v807, %v806
    %v811 = vsel %vm738, %v808, 0
    %v814 = vsel %vm738, %v809, 0
    %816 = vmatprep.subr.bf16.mxu0 0
    %817 = vmatpush1.bf16.msra.mxu0 0
    %818 = vmatprep.subr.bf16.mxu0 0
    %819 = vmatpush1.bf16.msra.mxu0 0
    %820 = vmatprep.subr.bf16.mxu0 0
    %821 = vmatpush1.bf16.msra.mxu0 0
    %822 = vmatprep.subr.bf16.mxu0 0
    %823 = vmatpush1.bf16.msra.mxu0 0
    %824 = vmatprep.subr.bf16.mxu0 0
    %825 = vmatpush1.bf16.msra.mxu0 0
    %826 = vmatprep.subr.bf16.mxu0 0
    %827 = vmatpush1.bf16.msra.mxu0 0
    %828 = vmatprep.subr.bf16.mxu0 0
    %829 = vmatpush1.bf16.msra.mxu0 %v579
    %830 = vmatprep.subr.bf16.mxu0 0
    %831 = vmatpush1.bf16.msra.mxu0 %v578
    %832 = vmatprep.subr.bf16.mxu0 0
    %833 = vmatpush2.bf16.msra.mxu0 0
    %834 = vmatprep.subr.bf16.mxu0 0
    %835 = vmatpush2.bf16.msra.mxu0 0
    %836 = vmatprep.subr.bf16.mxu0 0
    %837 = vmatpush2.bf16.msra.mxu0 0
    %838 = vmatprep.subr.bf16.mxu0 0
    %839 = vmatpush2.bf16.msra.mxu0 0
    %840 = vmatprep.subr.bf16.mxu0 0
    %841 = vmatpush2.bf16.msra.mxu0 0
    %842 = vmatprep.subr.bf16.mxu0 0
    %843 = vmatpush2.bf16.msra.mxu0 0
    %844 = vmatprep.subr.bf16.mxu0 0
    %845 = vmatpush2.bf16.msra.mxu0 0
    %846 = vmatprep.subr.bf16.mxu0 0
    %847 = vmatpush2.bf16.msra.mxu0 0
    %848 = vmatprep.mubr.bf16.mxu0 0
    %849 = vmatmul.mubr.bf16.gmra.mxu0 %v811
    %v850 = vpop.f32.mrf.mxu0
    %v851 = vadd.f32 0.0, %v850
    %v852 = vpop.f32.mrf.mxu0
    %v853 = vpop.f32.mrf.mxu0
    %v854 = vadd.f32 0.0, %v853
    %v855 = vpop.f32.mrf.mxu0
    %856 = vmatprep.mubr.bf16.mxu0 0
    %857 = vmatmul.mubr.bf16.gmra.mxu0 %v814
    %v858 = vpop.f32.mrf.mxu0
    %v859 = vadd.f32 0.0, %v858
    %v860 = vpop.f32.mrf.mxu0
    %v861 = vpop.f32.mrf.mxu0
    %v862 = vadd.f32 0.0, %v861
    %v863 = vpop.f32.mrf.mxu0
    %864 = vdwg.mxu0
    %v865 = vpack.c.bf16 %v854, %v851
    %v866 = vpack.c.bf16 %v862, %v859
    %v867 = vld [vmem:[%s2 + $0x20] sm:$0xf]
    %v868 = vld [vmem:[%s2 + $0x24] sm:$0xf]
    %v869 = vld [vmem:[%s2 + $0x28] sm:$0xf]
    %v870 = vld [vmem:[%s2 + $0x2c] sm:$0xf]
    %v875 = vunpack.c.l.b16 %v867
    %v876 = vunpack.c.l.b16 %v868
    %v877 = vunpack.c.l.b16 %v869
    %v878 = vunpack.c.l.b16 %v870
    %v879 = vpack.c.b16 %v876, %v875
    %v880 = vpack.c.b16 %v878, %v877
    %v882 = vsel %vm738, %v879, 0
    %v885 = vsel %vm738, %v880, 0
    %887 = vmatprep.subr.bf16.mxu0 0
    %888 = vmatpush1.bf16.msra.mxu0 0
    %889 = vmatprep.subr.bf16.mxu0 0
    %890 = vmatpush1.bf16.msra.mxu0 0
    %891 = vmatprep.subr.bf16.mxu0 0
    %892 = vmatpush1.bf16.msra.mxu0 0
    %893 = vmatprep.subr.bf16.mxu0 0
    %894 = vmatpush1.bf16.msra.mxu0 0
    %895 = vmatprep.subr.bf16.mxu0 0
    %896 = vmatpush1.bf16.msra.mxu0 0
    %897 = vmatprep.subr.bf16.mxu0 0
    %898 = vmatpush1.bf16.msra.mxu0 0
    %899 = vmatprep.subr.bf16.mxu0 0
    %900 = vmatpush1.bf16.msra.mxu0 %v579
    %901 = vmatprep.subr.bf16.mxu0 0
    %902 = vmatpush1.bf16.msra.mxu0 %v578
    %903 = vmatprep.subr.bf16.mxu0 0
    %904 = vmatpush2.bf16.msra.mxu0 0
    %905 = vmatprep.subr.bf16.mxu0 0
    %906 = vmatpush2.bf16.msra.mxu0 0
    %907 = vmatprep.subr.bf16.mxu0 0
    %908 = vmatpush2.bf16.msra.mxu0 0
    %909 = vmatprep.subr.bf16.mxu0 0
    %910 = vmatpush2.bf16.msra.mxu0 0
    %911 = vmatprep.subr.bf16.mxu0 0
    %912 = vmatpush2.bf16.msra.mxu0 0
    %913 = vmatprep.subr.bf16.mxu0 0
    %914 = vmatpush2.bf16.msra.mxu0 0
    %915 = vmatprep.subr.bf16.mxu0 0
    %916 = vmatpush2.bf16.msra.mxu0 0
    %917 = vmatprep.subr.bf16.mxu0 0
    %918 = vmatpush2.bf16.msra.mxu0 0
    %919 = vmatprep.mubr.bf16.mxu0 0
    %920 = vmatmul.mubr.bf16.gmra.mxu0 %v882
    %v921 = vpop.f32.mrf.mxu0
    %v922 = vadd.f32 0.0, %v921
    %v923 = vpop.f32.mrf.mxu0
    %v924 = vpop.f32.mrf.mxu0
    %v925 = vadd.f32 0.0, %v924
    %v926 = vpop.f32.mrf.mxu0
    %927 = vmatprep.mubr.bf16.mxu0 0
    %928 = vmatmul.mubr.bf16.gmra.mxu0 %v885
    %v929 = vpop.f32.mrf.mxu0
    %v930 = vadd.f32 0.0, %v929
    %v931 = vpop.f32.mrf.mxu0
    %v932 = vpop.f32.mrf.mxu0
    %v933 = vadd.f32 0.0, %v932
    %v934 = vpop.f32.mrf.mxu0
    %935 = vdwg.mxu0
    %v936 = vpack.c.bf16 %v925, %v922
    %v937 = vpack.c.bf16 %v933, %v930
    %v938 = vld [vmem:[%s2 + $0x30] sm:$0xf]
    %v939 = vld [vmem:[%s2 + $0x34] sm:$0xf]
    %v940 = vld [vmem:[%s2 + $0x38] sm:$0xf]
    %v941 = vld [vmem:[%s2 + $0x3c] sm:$0xf]
    %v946 = vunpack.c.l.b16 %v938
    %v947 = vunpack.c.l.b16 %v939
    %v948 = vunpack.c.l.b16 %v940
    %v949 = vunpack.c.l.b16 %v941
    %v950 = vpack.c.b16 %v947, %v946
    %v951 = vpack.c.b16 %v949, %v948
    %v953 = vsel %vm738, %v950, 0
    %v956 = vsel %vm738, %v951, 0
    %958 = vmatprep.subr.bf16.mxu0 0
    %959 = vmatpush1.bf16.msra.mxu0 0
    %960 = vmatprep.subr.bf16.mxu0 0
    %961 = vmatpush1.bf16.msra.mxu0 0
    %962 = vmatprep.subr.bf16.mxu0 0
    %963 = vmatpush1.bf16.msra.mxu0 0
    %964 = vmatprep.subr.bf16.mxu0 0
    %965 = vmatpush1.bf16.msra.mxu0 0
    %966 = vmatprep.subr.bf16.mxu0 0
    %967 = vmatpush1.bf16.msra.mxu0 0
    %968 = vmatprep.subr.bf16.mxu0 0
    %969 = vmatpush1.bf16.msra.mxu0 0
    %970 = vmatprep.subr.bf16.mxu0 0
    %971 = vmatpush1.bf16.msra.mxu0 %v579
    %972 = vmatprep.subr.bf16.mxu0 0
    %973 = vmatpush1.bf16.msra.mxu0 %v578
    %974 = vmatprep.subr.bf16.mxu0 0
    %975 = vmatpush2.bf16.msra.mxu0 0
    %976 = vmatprep.subr.bf16.mxu0 0
    %977 = vmatpush2.bf16.msra.mxu0 0
    %978 = vmatprep.subr.bf16.mxu0 0
    %979 = vmatpush2.bf16.msra.mxu0 0
    %980 = vmatprep.subr.bf16.mxu0 0
    %981 = vmatpush2.bf16.msra.mxu0 0
    %982 = vmatprep.subr.bf16.mxu0 0
    %983 = vmatpush2.bf16.msra.mxu0 0
    %984 = vmatprep.subr.bf16.mxu0 0
    %985 = vmatpush2.bf16.msra.mxu0 0
    %986 = vmatprep.subr.bf16.mxu0 0
    %987 = vmatpush2.bf16.msra.mxu0 0
    %988 = vmatprep.subr.bf16.mxu0 0
    %989 = vmatpush2.bf16.msra.mxu0 0
    %990 = vmatprep.mubr.bf16.mxu0 0
    %991 = vmatmul.mubr.bf16.gmra.mxu0 %v953
    %v992 = vpop.f32.mrf.mxu0
    %v993 = vadd.f32 0.0, %v992
    %v994 = vpop.f32.mrf.mxu0
    %v995 = vpop.f32.mrf.mxu0
    %v996 = vadd.f32 0.0, %v995
    %v997 = vpop.f32.mrf.mxu0
    %998 = vmatprep.mubr.bf16.mxu0 0
    %999 = vmatmul.mubr.bf16.gmra.mxu0 %v956
    %v1000 = vpop.f32.mrf.mxu0
    %v1001 = vadd.f32 0.0, %v1000
    %v1002 = vpop.f32.mrf.mxu0
    %v1003 = vpop.f32.mrf.mxu0
    %v1004 = vadd.f32 0.0, %v1003
    %v1005 = vpop.f32.mrf.mxu0
    %1006 = vdwg.mxu0
    %v1007 = vpack.c.bf16 %v996, %v993
    %v1008 = vpack.c.bf16 %v1004, %v1001
    %v1009 = vld [vmem:[%s2 + $0x40] sm:$0xf]
    %v1010 = vld [vmem:[%s2 + $0x44] sm:$0xf]
    %v1011 = vld [vmem:[%s2 + $0x48] sm:$0xf]
    %v1012 = vld [vmem:[%s2 + $0x4c] sm:$0xf]
    %v1017 = vunpack.c.l.b16 %v1009
    %v1018 = vunpack.c.l.b16 %v1010
    %v1019 = vunpack.c.l.b16 %v1011
    %v1020 = vunpack.c.l.b16 %v1012
    %v1021 = vpack.c.b16 %v1018, %v1017
    %v1022 = vpack.c.b16 %v1020, %v1019
    %v1024 = vsel %vm738, %v1021, 0
    %v1027 = vsel %vm738, %v1022, 0
    %1029 = vmatprep.subr.bf16.mxu0 0
    %1030 = vmatpush1.bf16.msra.mxu0 0
    %1031 = vmatprep.subr.bf16.mxu0 0
    %1032 = vmatpush1.bf16.msra.mxu0 0
    %1033 = vmatprep.subr.bf16.mxu0 0
    %1034 = vmatpush1.bf16.msra.mxu0 0
    %1035 = vmatprep.subr.bf16.mxu0 0
    %1036 = vmatpush1.bf16.msra.mxu0 0
    %1037 = vmatprep.subr.bf16.mxu0 0
    %1038 = vmatpush1.bf16.msra.mxu0 0
    %1039 = vmatprep.subr.bf16.mxu0 0
    %1040 = vmatpush1.bf16.msra.mxu0 0
    %1041 = vmatprep.subr.bf16.mxu0 0
    %1042 = vmatpush1.bf16.msra.mxu0 %v579
    %1043 = vmatprep.subr.bf16.mxu0 0
    %1044 = vmatpush1.bf16.msra.mxu0 %v578
    %1045 = vmatprep.subr.bf16.mxu0 0
    %1046 = vmatpush2.bf16.msra.mxu0 0
    %1047 = vmatprep.subr.bf16.mxu0 0
    %1048 = vmatpush2.bf16.msra.mxu0 0
    %1049 = vmatprep.subr.bf16.mxu0 0
    %1050 = vmatpush2.bf16.msra.mxu0 0
    %1051 = vmatprep.subr.bf16.mxu0 0
    %1052 = vmatpush2.bf16.msra.mxu0 0
    %1053 = vmatprep.subr.bf16.mxu0 0
    %1054 = vmatpush2.bf16.msra.mxu0 0
    %1055 = vmatprep.subr.bf16.mxu0 0
    %1056 = vmatpush2.bf16.msra.mxu0 0
    %1057 = vmatprep.subr.bf16.mxu0 0
    %1058 = vmatpush2.bf16.msra.mxu0 0
    %1059 = vmatprep.subr.bf16.mxu0 0
    %1060 = vmatpush2.bf16.msra.mxu0 0
    %1061 = vmatprep.mubr.bf16.mxu0 0
    %1062 = vmatmul.mubr.bf16.gmra.mxu0 %v1024
    %v1063 = vpop.f32.mrf.mxu0
    %v1064 = vadd.f32 0.0, %v1063
    %v1065 = vpop.f32.mrf.mxu0
    %v1066 = vpop.f32.mrf.mxu0
    %v1067 = vadd.f32 0.0, %v1066
    %v1068 = vpop.f32.mrf.mxu0
    %1069 = vmatprep.mubr.bf16.mxu0 0
    %1070 = vmatmul.mubr.bf16.gmra.mxu0 %v1027
    %v1071 = vpop.f32.mrf.mxu0
    %v1072 = vadd.f32 0.0, %v1071
    %v1073 = vpop.f32.mrf.mxu0
    %v1074 = vpop.f32.mrf.mxu0
    %v1075 = vadd.f32 0.0, %v1074
    %v1076 = vpop.f32.mrf.mxu0
    %1077 = vdwg.mxu0
    %v1078 = vpack.c.bf16 %v1067, %v1064
    %v1079 = vpack.c.bf16 %v1075, %v1072
    %v1080 = vld [vmem:[%s2 + $0x50] sm:$0xf]
    %v1081 = vld [vmem:[%s2 + $0x54] sm:$0xf]
    %v1082 = vld [vmem:[%s2 + $0x58] sm:$0xf]
    %v1083 = vld [vmem:[%s2 + $0x5c] sm:$0xf]
    %v1088 = vunpack.c.l.b16 %v1080
    %v1089 = vunpack.c.l.b16 %v1081
    %v1090 = vunpack.c.l.b16 %v1082
    %v1091 = vunpack.c.l.b16 %v1083
    %v1092 = vpack.c.b16 %v1089, %v1088
    %v1093 = vpack.c.b16 %v1091, %v1090
    %v1095 = vsel %vm738, %v1092, 0
    %v1098 = vsel %vm738, %v1093, 0
    %1100 = vmatprep.subr.bf16.mxu0 0
    %1101 = vmatpush1.bf16.msra.mxu0 0
    %1102 = vmatprep.subr.bf16.mxu0 0
    %1103 = vmatpush1.bf16.msra.mxu0 0
    %1104 = vmatprep.subr.bf16.mxu0 0
    %1105 = vmatpush1.bf16.msra.mxu0 0
    %1106 = vmatprep.subr.bf16.mxu0 0
    %1107 = vmatpush1.bf16.msra.mxu0 0
    %1108 = vmatprep.subr.bf16.mxu0 0
    %1109 = vmatpush1.bf16.msra.mxu0 0
    %1110 = vmatprep.subr.bf16.mxu0 0
    %1111 = vmatpush1.bf16.msra.mxu0 0
    %1112 = vmatprep.subr.bf16.mxu0 0
    %1113 = vmatpush1.bf16.msra.mxu0 %v579
    %1114 = vmatprep.subr.bf16.mxu0 0
    %1115 = vmatpush1.bf16.msra.mxu0 %v578
    %1116 = vmatprep.subr.bf16.mxu0 0
    %1117 = vmatpush2.bf16.msra.mxu0 0
    %1118 = vmatprep.subr.bf16.mxu0 0
    %1119 = vmatpush2.bf16.msra.mxu0 0
    %1120 = vmatprep.subr.bf16.mxu0 0
    %1121 = vmatpush2.bf16.msra.mxu0 0
    %1122 = vmatprep.subr.bf16.mxu0 0
    %1123 = vmatpush2.bf16.msra.mxu0 0
    %1124 = vmatprep.subr.bf16.mxu0 0
    %1125 = vmatpush2.bf16.msra.mxu0 0
    %1126 = vmatprep.subr.bf16.mxu0 0
    %1127 = vmatpush2.bf16.msra.mxu0 0
    %1128 = vmatprep.subr.bf16.mxu0 0
    %1129 = vmatpush2.bf16.msra.mxu0 0
    %1130 = vmatprep.subr.bf16.mxu0 0
    %1131 = vmatpush2.bf16.msra.mxu0 0
    %1132 = vmatprep.mubr.bf16.mxu0 0
    %1133 = vmatmul.mubr.bf16.gmra.mxu0 %v1095
    %v1134 = vpop.f32.mrf.mxu0
    %v1135 = vadd.f32 0.0, %v1134
    %v1136 = vpop.f32.mrf.mxu0
    %v1137 = vpop.f32.mrf.mxu0
    %v1138 = vadd.f32 0.0, %v1137
    %v1139 = vpop.f32.mrf.mxu0
    %1140 = vmatprep.mubr.bf16.mxu0 0
    %1141 = vmatmul.mubr.bf16.gmra.mxu0 %v1098
    %v1142 = vpop.f32.mrf.mxu0
    %v1143 = vadd.f32 0.0, %v1142
    %v1144 = vpop.f32.mrf.mxu0
    %v1145 = vpop.f32.mrf.mxu0
    %v1146 = vadd.f32 0.0, %v1145
    %v1147 = vpop.f32.mrf.mxu0
    %1148 = vdwg.mxu0
    %v1149 = vpack.c.bf16 %v1138, %v1135
    %v1150 = vpack.c.bf16 %v1146, %v1143
    %v1151 = vld [vmem:[%s2 + $0x60] sm:$0xf]
    %v1152 = vld [vmem:[%s2 + $0x64] sm:$0xf]
    %v1153 = vld [vmem:[%s2 + $0x68] sm:$0xf]
    %v1154 = vld [vmem:[%s2 + $0x6c] sm:$0xf]
    %v1159 = vunpack.c.l.b16 %v1151
    %v1160 = vunpack.c.l.b16 %v1152
    %v1161 = vunpack.c.l.b16 %v1153
    %v1162 = vunpack.c.l.b16 %v1154
    %v1163 = vpack.c.b16 %v1160, %v1159
    %v1164 = vpack.c.b16 %v1162, %v1161
    %v1166 = vsel %vm738, %v1163, 0
    %v1169 = vsel %vm738, %v1164, 0
    %1171 = vmatprep.subr.bf16.mxu0 0
    %1172 = vmatpush1.bf16.msra.mxu0 0
    %1173 = vmatprep.subr.bf16.mxu0 0
    %1174 = vmatpush1.bf16.msra.mxu0 0
    %1175 = vmatprep.subr.bf16.mxu0 0
    %1176 = vmatpush1.bf16.msra.mxu0 0
    %1177 = vmatprep.subr.bf16.mxu0 0
    %1178 = vmatpush1.bf16.msra.mxu0 0
    %1179 = vmatprep.subr.bf16.mxu0 0
    %1180 = vmatpush1.bf16.msra.mxu0 0
    %1181 = vmatprep.subr.bf16.mxu0 0
    %1182 = vmatpush1.bf16.msra.mxu0 0
    %1183 = vmatprep.subr.bf16.mxu0 0
    %1184 = vmatpush1.bf16.msra.mxu0 %v579
    %1185 = vmatprep.subr.bf16.mxu0 0
    %1186 = vmatpush1.bf16.msra.mxu0 %v578
    %1187 = vmatprep.subr.bf16.mxu0 0
    %1188 = vmatpush2.bf16.msra.mxu0 0
    %1189 = vmatprep.subr.bf16.mxu0 0
    %1190 = vmatpush2.bf16.msra.mxu0 0
    %1191 = vmatprep.subr.bf16.mxu0 0
    %1192 = vmatpush2.bf16.msra.mxu0 0
    %1193 = vmatprep.subr.bf16.mxu0 0
    %1194 = vmatpush2.bf16.msra.mxu0 0
    %1195 = vmatprep.subr.bf16.mxu0 0
    %1196 = vmatpush2.bf16.msra.mxu0 0
    %1197 = vmatprep.subr.bf16.mxu0 0
    %1198 = vmatpush2.bf16.msra.mxu0 0
    %1199 = vmatprep.subr.bf16.mxu0 0
    %1200 = vmatpush2.bf16.msra.mxu0 0
    %1201 = vmatprep.subr.bf16.mxu0 0
    %1202 = vmatpush2.bf16.msra.mxu0 0
    %1203 = vmatprep.mubr.bf16.mxu0 0
    %1204 = vmatmul.mubr.bf16.gmra.mxu0 %v1166
    %v1205 = vpop.f32.mrf.mxu0
    %v1206 = vadd.f32 0.0, %v1205
    %v1207 = vpop.f32.mrf.mxu0
    %v1208 = vpop.f32.mrf.mxu0
    %v1209 = vadd.f32 0.0, %v1208
    %v1210 = vpop.f32.mrf.mxu0
    %1211 = vmatprep.mubr.bf16.mxu0 0
    %1212 = vmatmul.mubr.bf16.gmra.mxu0 %v1169
    %v1213 = vpop.f32.mrf.mxu0
    %v1214 = vadd.f32 0.0, %v1213
    %v1215 = vpop.f32.mrf.mxu0
    %v1216 = vpop.f32.mrf.mxu0
    %v1217 = vadd.f32 0.0, %v1216
    %v1218 = vpop.f32.mrf.mxu0
    %1219 = vdwg.mxu0
    %v1220 = vpack.c.bf16 %v1209, %v1206
    %v1221 = vpack.c.bf16 %v1217, %v1214
    %v1222 = vld [vmem:[%s2 + $0x70] sm:$0xf]
    %v1223 = vld [vmem:[%s2 + $0x74] sm:$0xf]
    %v1224 = vld [vmem:[%s2 + $0x78] sm:$0xf]
    %v1225 = vld [vmem:[%s2 + $0x7c] sm:$0xf]
    %v1230 = vunpack.c.l.b16 %v1222
    %v1231 = vunpack.c.l.b16 %v1223
    %v1232 = vunpack.c.l.b16 %v1224
    %v1233 = vunpack.c.l.b16 %v1225
    %v1234 = vpack.c.b16 %v1231, %v1230
    %v1235 = vpack.c.b16 %v1233, %v1232
    %v1237 = vsel %vm738, %v1234, 0
    %v1240 = vsel %vm738, %v1235, 0
    %1242 = vmatprep.subr.bf16.mxu0 0
    %1243 = vmatpush1.bf16.msra.mxu0 0
    %1244 = vmatprep.subr.bf16.mxu0 0
    %1245 = vmatpush1.bf16.msra.mxu0 0
    %1246 = vmatprep.subr.bf16.mxu0 0
    %1247 = vmatpush1.bf16.msra.mxu0 0
    %1248 = vmatprep.subr.bf16.mxu0 0
    %1249 = vmatpush1.bf16.msra.mxu0 0
    %1250 = vmatprep.subr.bf16.mxu0 0
    %1251 = vmatpush1.bf16.msra.mxu0 0
    %1252 = vmatprep.subr.bf16.mxu0 0
    %1253 = vmatpush1.bf16.msra.mxu0 0
    %1254 = vmatprep.subr.bf16.mxu0 0
    %1255 = vmatpush1.bf16.msra.mxu0 %v579
    %1256 = vmatprep.subr.bf16.mxu0 0
    %1257 = vmatpush1.bf16.msra.mxu0 %v578
    %1258 = vmatprep.subr.bf16.mxu0 0
    %1259 = vmatpush2.bf16.msra.mxu0 0
    %1260 = vmatprep.subr.bf16.mxu0 0
    %1261 = vmatpush2.bf16.msra.mxu0 0
    %1262 = vmatprep.subr.bf16.mxu0 0
    %1263 = vmatpush2.bf16.msra.mxu0 0
    %1264 = vmatprep.subr.bf16.mxu0 0
    %1265 = vmatpush2.bf16.msra.mxu0 0
    %1266 = vmatprep.subr.bf16.mxu0 0
    %1267 = vmatpush2.bf16.msra.mxu0 0
    %1268 = vmatprep.subr.bf16.mxu0 0
    %1269 = vmatpush2.bf16.msra.mxu0 0
    %1270 = vmatprep.subr.bf16.mxu0 0
    %1271 = vmatpush2.bf16.msra.mxu0 0
    %1272 = vmatprep.subr.bf16.mxu0 0
    %1273 = vmatpush2.bf16.msra.mxu0 0
    %1274 = vmatprep.mubr.bf16.mxu0 0
    %1275 = vmatmul.mubr.bf16.gmra.mxu0 %v1237
    %v1276 = vpop.f32.mrf.mxu0
    %v1277 = vadd.f32 0.0, %v1276
    %v1278 = vpop.f32.mrf.mxu0
    %v1279 = vpop.f32.mrf.mxu0
    %v1280 = vadd.f32 0.0, %v1279
    %v1281 = vpop.f32.mrf.mxu0
    %1282 = vmatprep.mubr.bf16.mxu0 0
    %1283 = vmatmul.mubr.bf16.gmra.mxu0 %v1240
    %v1284 = vpop.f32.mrf.mxu0
    %v1285 = vadd.f32 0.0, %v1284
    %v1286 = vpop.f32.mrf.mxu0
    %v1287 = vpop.f32.mrf.mxu0
    %v1288 = vadd.f32 0.0, %v1287
    %v1289 = vpop.f32.mrf.mxu0
    %1290 = vdwg.mxu0
    %v1291 = vpack.c.bf16 %v1280, %v1277
    %v1292 = vpack.c.bf16 %v1288, %v1285
    %v1293 = vld [vmem:[%s2 + $0x80] sm:$0xf]
    %v1294 = vld [vmem:[%s2 + $0x84] sm:$0xf]
    %v1295 = vld [vmem:[%s2 + $0x88] sm:$0xf]
    %v1296 = vld [vmem:[%s2 + $0x8c] sm:$0xf]
    %v1301 = vunpack.c.l.b16 %v1293
    %v1302 = vunpack.c.l.b16 %v1294
    %v1303 = vunpack.c.l.b16 %v1295
    %v1304 = vunpack.c.l.b16 %v1296
    %v1305 = vpack.c.b16 %v1302, %v1301
    %v1306 = vpack.c.b16 %v1304, %v1303
    %v1308 = vsel %vm738, %v1305, 0
    %v1311 = vsel %vm738, %v1306, 0
    %1313 = vmatprep.subr.bf16.mxu0 0
    %1314 = vmatpush1.bf16.msra.mxu0 0
    %1315 = vmatprep.subr.bf16.mxu0 0
    %1316 = vmatpush1.bf16.msra.mxu0 0
    %1317 = vmatprep.subr.bf16.mxu0 0
    %1318 = vmatpush1.bf16.msra.mxu0 0
    %1319 = vmatprep.subr.bf16.mxu0 0
    %1320 = vmatpush1.bf16.msra.mxu0 0
    %1321 = vmatprep.subr.bf16.mxu0 0
    %1322 = vmatpush1.bf16.msra.mxu0 0
    %1323 = vmatprep.subr.bf16.mxu0 0
    %1324 = vmatpush1.bf16.msra.mxu0 0
    %1325 = vmatprep.subr.bf16.mxu0 0
    %1326 = vmatpush1.bf16.msra.mxu0 %v579
    %1327 = vmatprep.subr.bf16.mxu0 0
    %1328 = vmatpush1.bf16.msra.mxu0 %v578
    %1329 = vmatprep.subr.bf16.mxu0 0
    %1330 = vmatpush2.bf16.msra.mxu0 0
    %1331 = vmatprep.subr.bf16.mxu0 0
    %1332 = vmatpush2.bf16.msra.mxu0 0
    %1333 = vmatprep.subr.bf16.mxu0 0
    %1334 = vmatpush2.bf16.msra.mxu0 0
    %1335 = vmatprep.subr.bf16.mxu0 0
    %1336 = vmatpush2.bf16.msra.mxu0 0
    %1337 = vmatprep.subr.bf16.mxu0 0
    %1338 = vmatpush2.bf16.msra.mxu0 0
    %1339 = vmatprep.subr.bf16.mxu0 0
    %1340 = vmatpush2.bf16.msra.mxu0 0
    %1341 = vmatprep.subr.bf16.mxu0 0
    %1342 = vmatpush2.bf16.msra.mxu0 0
    %1343 = vmatprep.subr.bf16.mxu0 0
    %1344 = vmatpush2.bf16.msra.mxu0 0
    %1345 = vmatprep.mubr.bf16.mxu0 0
    %1346 = vmatmul.mubr.bf16.gmra.mxu0 %v1308
    %v1347 = vpop.f32.mrf.mxu0
    %v1348 = vadd.f32 0.0, %v1347
    %v1349 = vpop.f32.mrf.mxu0
    %v1350 = vpop.f32.mrf.mxu0
    %v1351 = vadd.f32 0.0, %v1350
    %v1352 = vpop.f32.mrf.mxu0
    %1353 = vmatprep.mubr.bf16.mxu0 0
    %1354 = vmatmul.mubr.bf16.gmra.mxu0 %v1311
    %v1355 = vpop.f32.mrf.mxu0
    %v1356 = vadd.f32 0.0, %v1355
    %v1357 = vpop.f32.mrf.mxu0
    %v1358 = vpop.f32.mrf.mxu0
    %v1359 = vadd.f32 0.0, %v1358
    %v1360 = vpop.f32.mrf.mxu0
    %1361 = vdwg.mxu0
    %v1362 = vpack.c.bf16 %v1351, %v1348
    %v1363 = vpack.c.bf16 %v1359, %v1356
    %v1508 = vunpack.c.l.b16 %v580
    %v1509 = vunpack.c.l.b16 %v581
    %v1510 = vunpack.c.l.b16 %v582
    %v1511 = vunpack.c.l.b16 %v583
    %v1512 = vunpack.c.l.b16 %v584
    %v1513 = vunpack.c.l.b16 %v585
    %v1514 = vunpack.c.l.b16 %v586
    %v1515 = vunpack.c.l.b16 %v587
    %v1516 = vunpack.c.l.b16 %v588
    %v1517 = vunpack.c.l.b16 %v589
    %v1518 = vunpack.c.l.b16 %v590
    %v1519 = vunpack.c.l.b16 %v591
    %v1520 = vunpack.c.l.b16 %v592
    %v1521 = vunpack.c.l.b16 %v593
    %v1522 = vunpack.c.l.b16 %v594
    %v1523 = vunpack.c.l.b16 %v595
    %v1524 = vunpack.c.l.b16 %v596
    %v1525 = vunpack.c.l.b16 %v597
    %v1526 = vunpack.c.l.b16 %v598
    %v1527 = vunpack.c.l.b16 %v599
    %v1528 = vunpack.c.l.b16 %v600
    %v1529 = vunpack.c.l.b16 %v601
    %v1530 = vunpack.c.l.b16 %v602
    %v1531 = vunpack.c.l.b16 %v603
    %v1532 = vunpack.c.l.b16 %v604
    %v1533 = vunpack.c.l.b16 %v605
    %v1534 = vunpack.c.l.b16 %v606
    %v1535 = vunpack.c.l.b16 %v607
    %v1536 = vunpack.c.l.b16 %v608
    %v1537 = vunpack.c.l.b16 %v609
    %v1538 = vunpack.c.l.b16 %v610
    %v1539 = vunpack.c.l.b16 %v611
    %v1540 = vunpack.c.l.b16 %v612
    %v1541 = vunpack.c.l.b16 %v613
    %v1542 = vunpack.c.l.b16 %v614
    %v1543 = vunpack.c.l.b16 %v615
    %v1544 = vunpack.c.l.b16 %v616
    %v1545 = vunpack.c.l.b16 %v617
    %v1546 = vunpack.c.l.b16 %v618
    %v1547 = vunpack.c.l.b16 %v619
    %v1548 = vunpack.c.l.b16 %v620
    %v1549 = vunpack.c.l.b16 %v621
    %v1550 = vunpack.c.l.b16 %v622
    %v1551 = vunpack.c.l.b16 %v623
    %v1552 = vunpack.c.l.b16 %v624
    %v1553 = vunpack.c.l.b16 %v625
    %v1554 = vunpack.c.l.b16 %v626
    %v1555 = vunpack.c.l.b16 %v627
    %v1556 = vunpack.c.l.b16 %v628
    %v1557 = vunpack.c.l.b16 %v629
    %v1558 = vunpack.c.l.b16 %v630
    %v1559 = vunpack.c.l.b16 %v631
    %v1560 = vunpack.c.l.b16 %v632
    %v1561 = vunpack.c.l.b16 %v633
    %v1562 = vunpack.c.l.b16 %v634
    %v1563 = vunpack.c.l.b16 %v635
    %v1564 = vunpack.c.l.b16 %v636
    %v1565 = vunpack.c.l.b16 %v637
    %v1566 = vunpack.c.l.b16 %v638
    %v1567 = vunpack.c.l.b16 %v639
    %v1568 = vunpack.c.l.b16 %v640
    %v1569 = vunpack.c.l.b16 %v641
    %v1570 = vunpack.c.l.b16 %v642
    %v1571 = vunpack.c.l.b16 %v643
    %v1572 = vunpack.c.l.b16 %v644
    %v1573 = vunpack.c.l.b16 %v645
    %v1574 = vunpack.c.l.b16 %v646
    %v1575 = vunpack.c.l.b16 %v647
    %v1576 = vunpack.c.l.b16 %v648
    %v1577 = vunpack.c.l.b16 %v649
    %v1578 = vunpack.c.l.b16 %v650
    %v1579 = vunpack.c.l.b16 %v651
    %v1580 = vunpack.c.l.b16 %v652
    %v1581 = vunpack.c.l.b16 %v653
    %v1582 = vunpack.c.l.b16 %v654
    %v1583 = vunpack.c.l.b16 %v655
    %v1584 = vunpack.c.l.b16 %v656
    %v1585 = vunpack.c.l.b16 %v657
    %v1586 = vunpack.c.l.b16 %v658
    %v1587 = vunpack.c.l.b16 %v659
    %v1588 = vunpack.c.l.b16 %v660
    %v1589 = vunpack.c.l.b16 %v661
    %v1590 = vunpack.c.l.b16 %v662
    %v1591 = vunpack.c.l.b16 %v663
    %v1592 = vunpack.c.l.b16 %v664
    %v1593 = vunpack.c.l.b16 %v665
    %v1594 = vunpack.c.l.b16 %v666
    %v1595 = vunpack.c.l.b16 %v667
    %v1596 = vunpack.c.l.b16 %v668
    %v1597 = vunpack.c.l.b16 %v669
    %v1598 = vunpack.c.l.b16 %v670
    %v1599 = vunpack.c.l.b16 %v671
    %v1600 = vunpack.c.l.b16 %v672
    %v1601 = vunpack.c.l.b16 %v673
    %v1602 = vunpack.c.l.b16 %v674
    %v1603 = vunpack.c.l.b16 %v675
    %v1604 = vunpack.c.l.b16 %v676
    %v1605 = vunpack.c.l.b16 %v677
    %v1606 = vunpack.c.l.b16 %v678
    %v1607 = vunpack.c.l.b16 %v679
    %v1608 = vunpack.c.l.b16 %v680
    %v1609 = vunpack.c.l.b16 %v681
    %v1610 = vunpack.c.l.b16 %v682
    %v1611 = vunpack.c.l.b16 %v683
    %v1612 = vunpack.c.l.b16 %v684
    %v1613 = vunpack.c.l.b16 %v685
    %v1614 = vunpack.c.l.b16 %v686
    %v1615 = vunpack.c.l.b16 %v687
    %v1616 = vunpack.c.l.b16 %v688
    %v1617 = vunpack.c.l.b16 %v689
    %v1618 = vunpack.c.l.b16 %v690
    %v1619 = vunpack.c.l.b16 %v691
    %v1620 = vunpack.c.l.b16 %v692
    %v1621 = vunpack.c.l.b16 %v693
    %v1622 = vunpack.c.l.b16 %v694
    %v1623 = vunpack.c.l.b16 %v695
    %v1624 = vunpack.c.l.b16 %v696
    %v1625 = vunpack.c.l.b16 %v697
    %v1626 = vunpack.c.l.b16 %v698
    %v1627 = vunpack.c.l.b16 %v699
    %v1628 = vunpack.c.l.b16 %v700
    %v1629 = vunpack.c.l.b16 %v701
    %v1630 = vunpack.c.l.b16 %v702
    %v1631 = vunpack.c.l.b16 %v703
    %v1632 = vunpack.c.l.b16 %v704
    %v1633 = vunpack.c.l.b16 %v705
    %v1634 = vunpack.c.l.b16 %v706
    %v1635 = vunpack.c.l.b16 %v707
    %v1636 = vunpack.c.l.b16 %v708
    %v1637 = vunpack.c.l.b16 %v709
    %v1638 = vunpack.c.l.b16 %v710
    %v1639 = vunpack.c.l.b16 %v711
    %v1640 = vunpack.c.l.b16 %v712
    %v1641 = vunpack.c.l.b16 %v713
    %v1642 = vunpack.c.l.b16 %v714
    %v1643 = vunpack.c.l.b16 %v715
    %v1644 = vunpack.c.l.b16 %v716
    %v1645 = vunpack.c.l.b16 %v717
    %v1646 = vunpack.c.l.b16 %v718
    %v1647 = vunpack.c.l.b16 %v719
    %v1648 = vunpack.c.l.b16 %v720
    %v1649 = vunpack.c.l.b16 %v721
    %v1650 = vunpack.c.l.b16 %v722
    %v1651 = vunpack.c.l.b16 %v723
    %v1652 = vpack.c.b16 %v1509, %v1508
    %v1653 = vpack.c.b16 %v1511, %v1510
    %v1654 = vpack.c.b16 %v1513, %v1512
    %v1655 = vpack.c.b16 %v1515, %v1514
    %v1656 = vpack.c.b16 %v1517, %v1516
    %v1657 = vpack.c.b16 %v1519, %v1518
    %v1658 = vpack.c.b16 %v1521, %v1520
    %v1659 = vpack.c.b16 %v1523, %v1522
    %v1660 = vpack.c.b16 %v1525, %v1524
    %v1661 = vpack.c.b16 %v1527, %v1526
    %v1662 = vpack.c.b16 %v1529, %v1528
    %v1663 = vpack.c.b16 %v1531, %v1530
    %v1664 = vpack.c.b16 %v1533, %v1532
    %v1665 = vpack.c.b16 %v1535, %v1534
    %v1666 = vpack.c.b16 %v1537, %v1536
    %v1667 = vpack.c.b16 %v1539, %v1538
    %v1668 = vpack.c.b16 %v1541, %v1540
    %v1669 = vpack.c.b16 %v1543, %v1542
    %v1670 = vpack.c.b16 %v1545, %v1544
    %v1671 = vpack.c.b16 %v1547, %v1546
    %v1672 = vpack.c.b16 %v1549, %v1548
    %v1673 = vpack.c.b16 %v1551, %v1550
    %v1674 = vpack.c.b16 %v1553, %v1552
    %v1675 = vpack.c.b16 %v1555, %v1554
    %v1676 = vpack.c.b16 %v1557, %v1556
    %v1677 = vpack.c.b16 %v1559, %v1558
    %v1678 = vpack.c.b16 %v1561, %v1560
    %v1679 = vpack.c.b16 %v1563, %v1562
    %v1680 = vpack.c.b16 %v1565, %v1564
    %v1681 = vpack.c.b16 %v1567, %v1566
    %v1682 = vpack.c.b16 %v1569, %v1568
    %v1683 = vpack.c.b16 %v1571, %v1570
    %v1684 = vpack.c.b16 %v1573, %v1572
    %v1685 = vpack.c.b16 %v1575, %v1574
    %v1686 = vpack.c.b16 %v1577, %v1576
    %v1687 = vpack.c.b16 %v1579, %v1578
    %v1688 = vpack.c.b16 %v1581, %v1580
    %v1689 = vpack.c.b16 %v1583, %v1582
    %v1690 = vpack.c.b16 %v1585, %v1584
    %v1691 = vpack.c.b16 %v1587, %v1586
    %v1692 = vpack.c.b16 %v1589, %v1588
    %v1693 = vpack.c.b16 %v1591, %v1590
    %v1694 = vpack.c.b16 %v1593, %v1592
    %v1695 = vpack.c.b16 %v1595, %v1594
    %v1696 = vpack.c.b16 %v1597, %v1596
    %v1697 = vpack.c.b16 %v1599, %v1598
    %v1698 = vpack.c.b16 %v1601, %v1600
    %v1699 = vpack.c.b16 %v1603, %v1602
    %v1700 = vpack.c.b16 %v1605, %v1604
    %v1701 = vpack.c.b16 %v1607, %v1606
    %v1702 = vpack.c.b16 %v1609, %v1608
    %v1703 = vpack.c.b16 %v1611, %v1610
    %v1704 = vpack.c.b16 %v1613, %v1612
    %v1705 = vpack.c.b16 %v1615, %v1614
    %v1706 = vpack.c.b16 %v1617, %v1616
    %v1707 = vpack.c.b16 %v1619, %v1618
    %v1708 = vpack.c.b16 %v1621, %v1620
    %v1709 = vpack.c.b16 %v1623, %v1622
    %v1710 = vpack.c.b16 %v1625, %v1624
    %v1711 = vpack.c.b16 %v1627, %v1626
    %v1712 = vpack.c.b16 %v1629, %v1628
    %v1713 = vpack.c.b16 %v1631, %v1630
    %v1714 = vpack.c.b16 %v1633, %v1632
    %v1715 = vpack.c.b16 %v1635, %v1634
    %v1716 = vpack.c.b16 %v1637, %v1636
    %v1717 = vpack.c.b16 %v1639, %v1638
    %v1718 = vpack.c.b16 %v1641, %v1640
    %v1719 = vpack.c.b16 %v1643, %v1642
    %v1720 = vpack.c.b16 %v1645, %v1644
    %v1721 = vpack.c.b16 %v1647, %v1646
    %v1722 = vpack.c.b16 %v1649, %v1648
    %v1723 = vpack.c.b16 %v1651, %v1650
    %1796 = vmatprep.subr.bf16.mxu0 0
    %1797 = vmatpush1.bf16.msra.mxu0 %v1659
    %1798 = vmatprep.subr.bf16.mxu0 0
    %1799 = vmatpush1.bf16.msra.mxu0 %v1658
    %1800 = vmatprep.subr.bf16.mxu0 0
    %1801 = vmatpush1.bf16.msra.mxu0 %v1657
    %1802 = vmatprep.subr.bf16.mxu0 0
    %1803 = vmatpush1.bf16.msra.mxu0 %v1656
    %1804 = vmatprep.subr.bf16.mxu0 0
    %1805 = vmatpush1.bf16.msra.mxu0 %v1655
    %1806 = vmatprep.subr.bf16.mxu0 0
    %1807 = vmatpush1.bf16.msra.mxu0 %v1654
    %1808 = vmatprep.subr.bf16.mxu0 0
    %1809 = vmatpush1.bf16.msra.mxu0 %v1653
    %1810 = vmatprep.subr.bf16.mxu0 0
    %1811 = vmatpush1.bf16.msra.mxu0 %v1652
    %1812 = vmatprep.subr.bf16.mxu0 0
    %1813 = vmatpush2.bf16.msra.mxu0 %v1667
    %1814 = vmatprep.subr.bf16.mxu0 0
    %1815 = vmatpush2.bf16.msra.mxu0 %v1666
    %1816 = vmatprep.subr.bf16.mxu0 0
    %1817 = vmatpush2.bf16.msra.mxu0 %v1665
    %1818 = vmatprep.subr.bf16.mxu0 0
    %1819 = vmatpush2.bf16.msra.mxu0 %v1664
    %1820 = vmatprep.subr.bf16.mxu0 0
    %1821 = vmatpush2.bf16.msra.mxu0 %v1663
    %1822 = vmatprep.subr.bf16.mxu0 0
    %1823 = vmatpush2.bf16.msra.mxu0 %v1662
    %1824 = vmatprep.subr.bf16.mxu0 0
    %1825 = vmatpush2.bf16.msra.mxu0 %v1661
    %1826 = vmatprep.subr.bf16.mxu0 0
    %1827 = vmatpush2.bf16.msra.mxu0 %v1660
    %1828 = vmatprep.mubr.bf16.mxu0 %v865
    %1829 = vmatmul.mubr.bf16.gmra.mxu0 %v794
    %v1830 = vpop.f32.mrf.mxu0
    %v1831 = vadd.f32 0.0, %v1830
    %v1832 = vpop.f32.mrf.mxu0
    %v1833 = vpop.f32.mrf.mxu0
    %v1834 = vadd.f32 0.0, %v1833
    %v1835 = vpop.f32.mrf.mxu0
    %1836 = vmatprep.mubr.bf16.mxu0 %v866
    %1837 = vmatmul.mubr.bf16.gmra.mxu0 %v795
    %v1838 = vpop.f32.mrf.mxu0
    %v1839 = vadd.f32 0.0, %v1838
    %v1840 = vpop.f32.mrf.mxu0
    %v1841 = vpop.f32.mrf.mxu0
    %v1842 = vadd.f32 0.0, %v1841
    %v1843 = vpop.f32.mrf.mxu0
    %1844 = vdwg.mxu0
    %1845 = vmatprep.subr.bf16.mxu0 0
    %1846 = vmatpush1.bf16.msra.mxu0 %v1675
    %1847 = vmatprep.subr.bf16.mxu0 0
    %1848 = vmatpush1.bf16.msra.mxu0 %v1674
    %1849 = vmatprep.subr.bf16.mxu0 0
    %1850 = vmatpush1.bf16.msra.mxu0 %v1673
    %1851 = vmatprep.subr.bf16.mxu0 0
    %1852 = vmatpush1.bf16.msra.mxu0 %v1672
    %1853 = vmatprep.subr.bf16.mxu0 0
    %1854 = vmatpush1.bf16.msra.mxu0 %v1671
    %1855 = vmatprep.subr.bf16.mxu0 0
    %1856 = vmatpush1.bf16.msra.mxu0 %v1670
    %1857 = vmatprep.subr.bf16.mxu0 0
    %1858 = vmatpush1.bf16.msra.mxu0 %v1669
    %1859 = vmatprep.subr.bf16.mxu0 0
    %1860 = vmatpush1.bf16.msra.mxu0 %v1668
    %1861 = vmatprep.subr.bf16.mxu0 0
    %1862 = vmatpush2.bf16.msra.mxu0 %v1683
    %1863 = vmatprep.subr.bf16.mxu0 0
    %1864 = vmatpush2.bf16.msra.mxu0 %v1682
    %1865 = vmatprep.subr.bf16.mxu0 0
    %1866 = vmatpush2.bf16.msra.mxu0 %v1681
    %1867 = vmatprep.subr.bf16.mxu0 0
    %1868 = vmatpush2.bf16.msra.mxu0 %v1680
    %1869 = vmatprep.subr.bf16.mxu0 0
    %1870 = vmatpush2.bf16.msra.mxu0 %v1679
    %1871 = vmatprep.subr.bf16.mxu0 0
    %1872 = vmatpush2.bf16.msra.mxu0 %v1678
    %1873 = vmatprep.subr.bf16.mxu0 0
    %1874 = vmatpush2.bf16.msra.mxu0 %v1677
    %1875 = vmatprep.subr.bf16.mxu0 0
    %1876 = vmatpush2.bf16.msra.mxu0 %v1676
    %1877 = vmatprep.mubr.bf16.mxu0 %v1007
    %1878 = vmatmul.mubr.bf16.gmra.mxu0 %v936
    %v1879 = vpop.f32.mrf.mxu0
    %v1880 = vadd.f32 %v1831, %v1879
    %v1881 = vpop.f32.mrf.mxu0
    %v1882 = vpop.f32.mrf.mxu0
    %v1883 = vadd.f32 %v1834, %v1882
    %v1884 = vpop.f32.mrf.mxu0
    %1885 = vmatprep.mubr.bf16.mxu0 %v1008
    %1886 = vmatmul.mubr.bf16.gmra.mxu0 %v937
    %v1887 = vpop.f32.mrf.mxu0
    %v1888 = vadd.f32 %v1839, %v1887
    %v1889 = vpop.f32.mrf.mxu0
    %v1890 = vpop.f32.mrf.mxu0
    %v1891 = vadd.f32 %v1842, %v1890
    %v1892 = vpop.f32.mrf.mxu0
    %1893 = vdwg.mxu0
    %1894 = vmatprep.subr.bf16.mxu0 0
    %1895 = vmatpush1.bf16.msra.mxu0 %v1691
    %1896 = vmatprep.subr.bf16.mxu0 0
    %1897 = vmatpush1.bf16.msra.mxu0 %v1690
    %1898 = vmatprep.subr.bf16.mxu0 0
    %1899 = vmatpush1.bf16.msra.mxu0 %v1689
    %1900 = vmatprep.subr.bf16.mxu0 0
    %1901 = vmatpush1.bf16.msra.mxu0 %v1688
    %1902 = vmatprep.subr.bf16.mxu0 0
    %1903 = vmatpush1.bf16.msra.mxu0 %v1687
    %1904 = vmatprep.subr.bf16.mxu0 0
    %1905 = vmatpush1.bf16.msra.mxu0 %v1686
    %1906 = vmatprep.subr.bf16.mxu0 0
    %1907 = vmatpush1.bf16.msra.mxu0 %v1685
    %1908 = vmatprep.subr.bf16.mxu0 0
    %1909 = vmatpush1.bf16.msra.mxu0 %v1684
    %1910 = vmatprep.subr.bf16.mxu0 0
    %1911 = vmatpush2.bf16.msra.mxu0 %v1699
    %1912 = vmatprep.subr.bf16.mxu0 0
    %1913 = vmatpush2.bf16.msra.mxu0 %v1698
    %1914 = vmatprep.subr.bf16.mxu0 0
    %1915 = vmatpush2.bf16.msra.mxu0 %v1697
    %1916 = vmatprep.subr.bf16.mxu0 0
    %1917 = vmatpush2.bf16.msra.mxu0 %v1696
    %1918 = vmatprep.subr.bf16.mxu0 0
    %1919 = vmatpush2.bf16.msra.mxu0 %v1695
    %1920 = vmatprep.subr.bf16.mxu0 0
    %1921 = vmatpush2.bf16.msra.mxu0 %v1694
    %1922 = vmatprep.subr.bf16.mxu0 0
    %1923 = vmatpush2.bf16.msra.mxu0 %v1693
    %1924 = vmatprep.subr.bf16.mxu0 0
    %1925 = vmatpush2.bf16.msra.mxu0 %v1692
    %1926 = vmatprep.mubr.bf16.mxu0 %v1149
    %1927 = vmatmul.mubr.bf16.gmra.mxu0 %v1078
    %v1928 = vpop.f32.mrf.mxu0
    %v1929 = vadd.f32 %v1880, %v1928
    %v1930 = vpop.f32.mrf.mxu0
    %v1931 = vpop.f32.mrf.mxu0
    %v1932 = vadd.f32 %v1883, %v1931
    %v1933 = vpop.f32.mrf.mxu0
    %1934 = vmatprep.mubr.bf16.mxu0 %v1150
    %1935 = vmatmul.mubr.bf16.gmra.mxu0 %v1079
    %v1936 = vpop.f32.mrf.mxu0
    %v1937 = vadd.f32 %v1888, %v1936
    %v1938 = vpop.f32.mrf.mxu0
    %v1939 = vpop.f32.mrf.mxu0
    %v1940 = vadd.f32 %v1891, %v1939
    %v1941 = vpop.f32.mrf.mxu0
    %1942 = vdwg.mxu0
    %1943 = vmatprep.subr.bf16.mxu0 0
    %1944 = vmatpush1.bf16.msra.mxu0 %v1707
    %1945 = vmatprep.subr.bf16.mxu0 0
    %1946 = vmatpush1.bf16.msra.mxu0 %v1706
    %1947 = vmatprep.subr.bf16.mxu0 0
    %1948 = vmatpush1.bf16.msra.mxu0 %v1705
    %1949 = vmatprep.subr.bf16.mxu0 0
    %1950 = vmatpush1.bf16.msra.mxu0 %v1704
    %1951 = vmatprep.subr.bf16.mxu0 0
    %1952 = vmatpush1.bf16.msra.mxu0 %v1703
    %1953 = vmatprep.subr.bf16.mxu0 0
    %1954 = vmatpush1.bf16.msra.mxu0 %v1702
    %1955 = vmatprep.subr.bf16.mxu0 0
    %1956 = vmatpush1.bf16.msra.mxu0 %v1701
    %1957 = vmatprep.subr.bf16.mxu0 0
    %1958 = vmatpush1.bf16.msra.mxu0 %v1700
    %1959 = vmatprep.subr.bf16.mxu0 0
    %1960 = vmatpush2.bf16.msra.mxu0 %v1715
    %1961 = vmatprep.subr.bf16.mxu0 0
    %1962 = vmatpush2.bf16.msra.mxu0 %v1714
    %1963 = vmatprep.subr.bf16.mxu0 0
    %1964 = vmatpush2.bf16.msra.mxu0 %v1713
    %1965 = vmatprep.subr.bf16.mxu0 0
    %1966 = vmatpush2.bf16.msra.mxu0 %v1712
    %1967 = vmatprep.subr.bf16.mxu0 0
    %1968 = vmatpush2.bf16.msra.mxu0 %v1711
    %1969 = vmatprep.subr.bf16.mxu0 0
    %1970 = vmatpush2.bf16.msra.mxu0 %v1710
    %1971 = vmatprep.subr.bf16.mxu0 0
    %1972 = vmatpush2.bf16.msra.mxu0 %v1709
    %1973 = vmatprep.subr.bf16.mxu0 0
    %1974 = vmatpush2.bf16.msra.mxu0 %v1708
    %1975 = vmatprep.mubr.bf16.mxu0 %v1291
    %1976 = vmatmul.mubr.bf16.gmra.mxu0 %v1220
    %v1977 = vpop.f32.mrf.mxu0
    %v1978 = vadd.f32 %v1929, %v1977
    %v1979 = vpop.f32.mrf.mxu0
    %v1980 = vpop.f32.mrf.mxu0
    %v1981 = vadd.f32 %v1932, %v1980
    %v1982 = vpop.f32.mrf.mxu0
    %1983 = vmatprep.mubr.bf16.mxu0 %v1292
    %1984 = vmatmul.mubr.bf16.gmra.mxu0 %v1221
    %v1985 = vpop.f32.mrf.mxu0
    %v1986 = vadd.f32 %v1937, %v1985
    %v1987 = vpop.f32.mrf.mxu0
    %v1988 = vpop.f32.mrf.mxu0
    %v1989 = vadd.f32 %v1940, %v1988
    %v1990 = vpop.f32.mrf.mxu0
    %1991 = vdwg.mxu0
    %1992 = vmatprep.subr.bf16.mxu0 0
    %1993 = vmatpush1.bf16.msra.mxu0 %v1723
    %1994 = vmatprep.subr.bf16.mxu0 0
    %1995 = vmatpush1.bf16.msra.mxu0 %v1722
    %1996 = vmatprep.subr.bf16.mxu0 0
    %1997 = vmatpush1.bf16.msra.mxu0 %v1721
    %1998 = vmatprep.subr.bf16.mxu0 0
    %1999 = vmatpush1.bf16.msra.mxu0 %v1720
    %2000 = vmatprep.subr.bf16.mxu0 0
    %2001 = vmatpush1.bf16.msra.mxu0 %v1719
    %2002 = vmatprep.subr.bf16.mxu0 0
    %2003 = vmatpush1.bf16.msra.mxu0 %v1718
    %2004 = vmatprep.subr.bf16.mxu0 0
    %2005 = vmatpush1.bf16.msra.mxu0 %v1717
    %2006 = vmatprep.subr.bf16.mxu0 0
    %2007 = vmatpush1.bf16.msra.mxu0 %v1716
    %2008 = vmatprep.subr.bf16.mxu0 0
    %2009 = vmatpush2.bf16.msra.mxu0 0
    %2010 = vmatprep.subr.bf16.mxu0 0
    %2011 = vmatpush2.bf16.msra.mxu0 0
    %2012 = vmatprep.subr.bf16.mxu0 0
    %2013 = vmatpush2.bf16.msra.mxu0 0
    %2014 = vmatprep.subr.bf16.mxu0 0
    %2015 = vmatpush2.bf16.msra.mxu0 0
    %2016 = vmatprep.subr.bf16.mxu0 0
    %2017 = vmatpush2.bf16.msra.mxu0 0
    %2018 = vmatprep.subr.bf16.mxu0 0
    %2019 = vmatpush2.bf16.msra.mxu0 0
    %2020 = vmatprep.subr.bf16.mxu0 0
    %2021 = vmatpush2.bf16.msra.mxu0 0
    %2022 = vmatprep.subr.bf16.mxu0 0
    %2023 = vmatpush2.bf16.msra.mxu0 0
    %2024 = vmatprep.mubr.bf16.mxu0 0
    %2025 = vmatmul.mubr.bf16.gmra.mxu0 %v1362
    %v2026 = vpop.f32.mrf.mxu0
    %v2027 = vadd.f32 %v1978, %v2026
    %v2028 = vpop.f32.mrf.mxu0
    %v2029 = vpop.f32.mrf.mxu0
    %v2030 = vadd.f32 %v1981, %v2029
    %v2031 = vpop.f32.mrf.mxu0
    %2032 = vmatprep.mubr.bf16.mxu0 0
    %2033 = vmatmul.mubr.bf16.gmra.mxu0 %v1363
    %v2034 = vpop.f32.mrf.mxu0
    %v2035 = vadd.f32 %v1986, %v2034
    %v2036 = vpop.f32.mrf.mxu0
    %v2037 = vpop.f32.mrf.mxu0
    %v2038 = vadd.f32 %v1989, %v2037
    %v2039 = vpop.f32.mrf.mxu0
    %2040 = vdwg.mxu0
    %v2041 = vadd.f32 %v520, %v2027
    %v2042 = vadd.f32 %v521, %v2030
    %v2043 = vadd.f32 %v522, %v2035
    %v2044 = vadd.f32 %v523, %v2038
    %v2045 = vld [vmem:[%s3 + $0x1] sm:$0x1]
    %v2046 = vld [vmem:[%s4 + $0x1] sm:$0x1]
    %v2047 = vadd.f32 %v2041, %v2042
    %v2048 = vadd.f32 %v2047, %v2043
    %v2049 = vadd.f32 %v2048, %v2044
    %v2050 = vrot.slane %v2049, 4
    %v2051 = vadd.f32 %v2049, %v2050
    %v2052 = vrot.slane %v2051, 2
    %v2053 = vadd.f32 %v2051, %v2052
    %v2054 = vrot.slane %v2053, 1
    %v2055 = vadd.f32 %v2053, %v2054
    %v2056 = vmul.f32 %v2055, %v535
    %v2057 = vsub.f32 %v2041, %v2056
    %v2058 = vsub.f32 %v2042, %v2056
    %v2059 = vsub.f32 %v2043, %v2056
    %v2060 = vsub.f32 %v2044, %v2056
    %v2061 = vmul.f32 %v2057, %v2057
    %v2062 = vmul.f32 %v2058, %v2058
    %v2063 = vmul.f32 %v2059, %v2059
    %v2064 = vmul.f32 %v2060, %v2060
    %v2065 = vadd.f32 %v2061, %v2062
    %v2066 = vadd.f32 %v2065, %v2063
    %v2067 = vadd.f32 %v2066, %v2064
    %v2068 = vrot.slane %v2067, 4
    %v2069 = vadd.f32 %v2067, %v2068
    %v2070 = vrot.slane %v2069, 2
    %v2071 = vadd.f32 %v2069, %v2070
    %v2072 = vrot.slane %v2071, 1
    %v2073 = vadd.f32 %v2071, %v2072
    %v2074 = vmul.f32 %v2073, %v535
    %v2075 = vadd.f32 %v2074, 1e-05
    %v2076 = vrsqrt.pop %v2075
    %v2077 = vmul.f32 %v2076, %v2045
    %v2078 = vlaneseq
    %v2079 = vshrl.u32 %v2078, 7
    %v2080 = vsub.s32 0, %v2079
    %v2081 = vrot.slane %v2077, %v2080
    %v2082 = vmul.f32 %v2057, %v2081
    %v2083 = vmul.f32 %v2058, %v2081
    %v2084 = vmul.f32 %v2059, %v2081
    %v2085 = vmul.f32 %v2060, %v2081
    %v2086 = vlaneseq
    %v2087 = vshrl.u32 %v2086, 7
    %v2088 = vsub.s32 0, %v2087
    %v2089 = vrot.slane %v2046, %v2088
    %v2090 = vadd.f32 %v2082, %v2089
    %v2091 = vadd.f32 %v2083, %v2089
    %v2092 = vadd.f32 %v2084, %v2089
    %v2093 = vadd.f32 %v2085, %v2089
    %v2094 = vmax.f32 %v2090, 0.0
    %v2095 = vmax.f32 %v2091, 0.0
    %v2096 = vmax.f32 %v2092, 0.0
    %v2097 = vmax.f32 %v2093, 0.0
    %v2098 = vpack.c.bf16 %v2095, %v2094
    %v2099 = vpack.c.bf16 %v2097, %v2096
    %s2100 = scalar_lea.vmem %s5, 576
    %v2101 = vld [vmem:[%s2100] sm:$0xf]
    %v2102 = vld [vmem:[%s2100 + $0x4] sm:$0xf]
    %v2103 = vld [vmem:[%s2100 + $0x8] sm:$0xf]
    %v2104 = vld [vmem:[%s2100 + $0xc] sm:$0xf]
    %v2105 = vld [vmem:[%s2100 + $0x10] sm:$0xf]
    %v2106 = vld [vmem:[%s2100 + $0x14] sm:$0xf]
    %v2107 = vld [vmem:[%s2100 + $0x18] sm:$0xf]
    %v2108 = vld [vmem:[%s2100 + $0x1c] sm:$0xf]
    %v2109 = vld [vmem:[%s2100 + $0x20] sm:$0xf]
    %v2110 = vld [vmem:[%s2100 + $0x24] sm:$0xf]
    %v2111 = vld [vmem:[%s2100 + $0x28] sm:$0xf]
    %v2112 = vld [vmem:[%s2100 + $0x2c] sm:$0xf]
    %v2113 = vld [vmem:[%s2100 + $0x30] sm:$0xf]
    %v2114 = vld [vmem:[%s2100 + $0x34] sm:$0xf]
    %v2115 = vld [vmem:[%s2100 + $0x38] sm:$0xf]
    %v2116 = vld [vmem:[%s2100 + $0x3c] sm:$0xf]
    %v2117 = vld [vmem:[%s2100 + $0x40] sm:$0xf]
    %v2118 = vld [vmem:[%s2100 + $0x44] sm:$0xf]
    %v2119 = vld [vmem:[%s2100 + $0x48] sm:$0xf]
    %v2120 = vld [vmem:[%s2100 + $0x4c] sm:$0xf]
    %v2121 = vld [vmem:[%s2100 + $0x50] sm:$0xf]
    %v2122 = vld [vmem:[%s2100 + $0x54] sm:$0xf]
    %v2123 = vld [vmem:[%s2100 + $0x58] sm:$0xf]
    %v2124 = vld [vmem:[%s2100 + $0x5c] sm:$0xf]
    %v2125 = vld [vmem:[%s2100 + $0x60] sm:$0xf]
    %v2126 = vld [vmem:[%s2100 + $0x64] sm:$0xf]
    %v2127 = vld [vmem:[%s2100 + $0x68] sm:$0xf]
    %v2128 = vld [vmem:[%s2100 + $0x6c] sm:$0xf]
    %v2129 = vld [vmem:[%s2100 + $0x70] sm:$0xf]
    %v2130 = vld [vmem:[%s2100 + $0x74] sm:$0xf]
    %v2131 = vld [vmem:[%s2100 + $0x78] sm:$0xf]
    %v2132 = vld [vmem:[%s2100 + $0x7c] sm:$0xf]
    %v2133 = vld [vmem:[%s2100 + $0x80] sm:$0xf]
    %v2134 = vld [vmem:[%s2100 + $0x84] sm:$0xf]
    %v2135 = vld [vmem:[%s2100 + $0x88] sm:$0xf]
    %v2136 = vld [vmem:[%s2100 + $0x8c] sm:$0xf]
    %v2137 = vld [vmem:[%s2100 + $0x90] sm:$0xf]
    %v2138 = vld [vmem:[%s2100 + $0x94] sm:$0xf]
    %v2139 = vld [vmem:[%s2100 + $0x98] sm:$0xf]
    %v2140 = vld [vmem:[%s2100 + $0x9c] sm:$0xf]
    %v2141 = vld [vmem:[%s2100 + $0xa0] sm:$0xf]
    %v2142 = vld [vmem:[%s2100 + $0xa4] sm:$0xf]
    %v2143 = vld [vmem:[%s2100 + $0xa8] sm:$0xf]
    %v2144 = vld [vmem:[%s2100 + $0xac] sm:$0xf]
    %v2145 = vld [vmem:[%s2100 + $0xb0] sm:$0xf]
    %v2146 = vld [vmem:[%s2100 + $0xb4] sm:$0xf]
    %v2147 = vld [vmem:[%s2100 + $0xb8] sm:$0xf]
    %v2148 = vld [vmem:[%s2100 + $0xbc] sm:$0xf]
    %v2149 = vld [vmem:[%s2100 + $0xc0] sm:$0xf]
    %v2150 = vld [vmem:[%s2100 + $0xc4] sm:$0xf]
    %v2151 = vld [vmem:[%s2100 + $0xc8] sm:$0xf]
    %v2152 = vld [vmem:[%s2100 + $0xcc] sm:$0xf]
    %v2153 = vld [vmem:[%s2100 + $0xd0] sm:$0xf]
    %v2154 = vld [vmem:[%s2100 + $0xd4] sm:$0xf]
    %v2155 = vld [vmem:[%s2100 + $0xd8] sm:$0xf]
    %v2156 = vld [vmem:[%s2100 + $0xdc] sm:$0xf]
    %v2157 = vld [vmem:[%s2100 + $0xe0] sm:$0xf]
    %v2158 = vld [vmem:[%s2100 + $0xe4] sm:$0xf]
    %v2159 = vld [vmem:[%s2100 + $0xe8] sm:$0xf]
    %v2160 = vld [vmem:[%s2100 + $0xec] sm:$0xf]
    %v2161 = vld [vmem:[%s2100 + $0xf0] sm:$0xf]
    %v2162 = vld [vmem:[%s2100 + $0xf4] sm:$0xf]
    %v2163 = vld [vmem:[%s2100 + $0xf8] sm:$0xf]
    %v2164 = vld [vmem:[%s2100 + $0xfc] sm:$0xf]
    %v2165 = vld [vmem:[%s2100 + $0x100] sm:$0xf]
    %v2166 = vld [vmem:[%s2100 + $0x104] sm:$0xf]
    %v2167 = vld [vmem:[%s2100 + $0x108] sm:$0xf]
    %v2168 = vld [vmem:[%s2100 + $0x10c] sm:$0xf]
    %v2169 = vld [vmem:[%s2100 + $0x110] sm:$0xf]
    %v2170 = vld [vmem:[%s2100 + $0x114] sm:$0xf]
    %v2171 = vld [vmem:[%s2100 + $0x118] sm:$0xf]
    %v2172 = vld [vmem:[%s2100 + $0x11c] sm:$0xf]
    %v2173 = vld [vmem:[%s2100 + $0x120] sm:$0xf]
    %v2174 = vld [vmem:[%s2100 + $0x124] sm:$0xf]
    %v2175 = vld [vmem:[%s2100 + $0x128] sm:$0xf]
    %v2176 = vld [vmem:[%s2100 + $0x12c] sm:$0xf]
    %v2177 = vld [vmem:[%s2100 + $0x130] sm:$0xf]
    %v2178 = vld [vmem:[%s2100 + $0x134] sm:$0xf]
    %v2179 = vld [vmem:[%s2100 + $0x138] sm:$0xf]
    %v2180 = vld [vmem:[%s2100 + $0x13c] sm:$0xf]
    %v2181 = vld [vmem:[%s2100 + $0x140] sm:$0xf]
    %v2182 = vld [vmem:[%s2100 + $0x144] sm:$0xf]
    %v2183 = vld [vmem:[%s2100 + $0x148] sm:$0xf]
    %v2184 = vld [vmem:[%s2100 + $0x14c] sm:$0xf]
    %v2185 = vld [vmem:[%s2100 + $0x150] sm:$0xf]
    %v2186 = vld [vmem:[%s2100 + $0x154] sm:$0xf]
    %v2187 = vld [vmem:[%s2100 + $0x158] sm:$0xf]
    %v2188 = vld [vmem:[%s2100 + $0x15c] sm:$0xf]
    %v2189 = vld [vmem:[%s2100 + $0x160] sm:$0xf]
    %v2190 = vld [vmem:[%s2100 + $0x164] sm:$0xf]
    %v2191 = vld [vmem:[%s2100 + $0x168] sm:$0xf]
    %v2192 = vld [vmem:[%s2100 + $0x16c] sm:$0xf]
    %v2193 = vld [vmem:[%s2100 + $0x170] sm:$0xf]
    %v2194 = vld [vmem:[%s2100 + $0x174] sm:$0xf]
    %v2195 = vld [vmem:[%s2100 + $0x178] sm:$0xf]
    %v2196 = vld [vmem:[%s2100 + $0x17c] sm:$0xf]
    %v2197 = vld [vmem:[%s2100 + $0x180] sm:$0xf]
    %v2198 = vld [vmem:[%s2100 + $0x184] sm:$0xf]
    %v2199 = vld [vmem:[%s2100 + $0x188] sm:$0xf]
    %v2200 = vld [vmem:[%s2100 + $0x18c] sm:$0xf]
    %v2201 = vld [vmem:[%s2100 + $0x190] sm:$0xf]
    %v2202 = vld [vmem:[%s2100 + $0x194] sm:$0xf]
    %v2203 = vld [vmem:[%s2100 + $0x198] sm:$0xf]
    %v2204 = vld [vmem:[%s2100 + $0x19c] sm:$0xf]
    %v2205 = vld [vmem:[%s2100 + $0x1a0] sm:$0xf]
    %v2206 = vld [vmem:[%s2100 + $0x1a4] sm:$0xf]
    %v2207 = vld [vmem:[%s2100 + $0x1a8] sm:$0xf]
    %v2208 = vld [vmem:[%s2100 + $0x1ac] sm:$0xf]
    %v2209 = vld [vmem:[%s2100 + $0x1b0] sm:$0xf]
    %v2210 = vld [vmem:[%s2100 + $0x1b4] sm:$0xf]
    %v2211 = vld [vmem:[%s2100 + $0x1b8] sm:$0xf]
    %v2212 = vld [vmem:[%s2100 + $0x1bc] sm:$0xf]
    %v2213 = vld [vmem:[%s2100 + $0x1c0] sm:$0xf]
    %v2214 = vld [vmem:[%s2100 + $0x1c4] sm:$0xf]
    %v2215 = vld [vmem:[%s2100 + $0x1c8] sm:$0xf]
    %v2216 = vld [vmem:[%s2100 + $0x1cc] sm:$0xf]
    %v2217 = vld [vmem:[%s2100 + $0x1d0] sm:$0xf]
    %v2218 = vld [vmem:[%s2100 + $0x1d4] sm:$0xf]
    %v2219 = vld [vmem:[%s2100 + $0x1d8] sm:$0xf]
    %v2220 = vld [vmem:[%s2100 + $0x1dc] sm:$0xf]
    %v2221 = vld [vmem:[%s2100 + $0x1e0] sm:$0xf]
    %v2222 = vld [vmem:[%s2100 + $0x1e4] sm:$0xf]
    %v2223 = vld [vmem:[%s2100 + $0x1e8] sm:$0xf]
    %v2224 = vld [vmem:[%s2100 + $0x1ec] sm:$0xf]
    %v2225 = vld [vmem:[%s2100 + $0x1f0] sm:$0xf]
    %v2226 = vld [vmem:[%s2100 + $0x1f4] sm:$0xf]
    %v2227 = vld [vmem:[%s2100 + $0x1f8] sm:$0xf]
    %v2228 = vld [vmem:[%s2100 + $0x1fc] sm:$0xf]
    %v2229 = vld [vmem:[%s2100 + $0x200] sm:$0xf]
    %v2230 = vld [vmem:[%s2100 + $0x204] sm:$0xf]
    %v2231 = vld [vmem:[%s2100 + $0x208] sm:$0xf]
    %v2232 = vld [vmem:[%s2100 + $0x20c] sm:$0xf]
    %v2233 = vld [vmem:[%s2100 + $0x210] sm:$0xf]
    %v2234 = vld [vmem:[%s2100 + $0x214] sm:$0xf]
    %v2235 = vld [vmem:[%s2100 + $0x218] sm:$0xf]
    %v2236 = vld [vmem:[%s2100 + $0x21c] sm:$0xf]
    %v2237 = vld [vmem:[%s2100 + $0x220] sm:$0xf]
    %v2238 = vld [vmem:[%s2100 + $0x224] sm:$0xf]
    %v2239 = vld [vmem:[%s2100 + $0x228] sm:$0xf]
    %v2240 = vld [vmem:[%s2100 + $0x22c] sm:$0xf]
    %v2241 = vld [vmem:[%s2100 + $0x230] sm:$0xf]
    %v2242 = vld [vmem:[%s2100 + $0x234] sm:$0xf]
    %v2243 = vld [vmem:[%s2100 + $0x238] sm:$0xf]
    %v2244 = vld [vmem:[%s2100 + $0x23c] sm:$0xf]
    %2245 = vmatprep.subr.bf16.mxu0 0
    %2246 = vmatpush1.bf16.msra.mxu0 0
    %2247 = vmatprep.subr.bf16.mxu0 0
    %2248 = vmatpush1.bf16.msra.mxu0 0
    %2249 = vmatprep.subr.bf16.mxu0 0
    %2250 = vmatpush1.bf16.msra.mxu0 0
    %2251 = vmatprep.subr.bf16.mxu0 0
    %2252 = vmatpush1.bf16.msra.mxu0 0
    %2253 = vmatprep.subr.bf16.mxu0 0
    %2254 = vmatpush1.bf16.msra.mxu0 0
    %2255 = vmatprep.subr.bf16.mxu0 0
    %2256 = vmatpush1.bf16.msra.mxu0 0
    %2257 = vmatprep.subr.bf16.mxu0 0
    %2258 = vmatpush1.bf16.msra.mxu0 %v2099
    %2259 = vmatprep.subr.bf16.mxu0 0
    %2260 = vmatpush1.bf16.msra.mxu0 %v2098
    %2261 = vmatprep.subr.bf16.mxu0 0
    %2262 = vmatpush2.bf16.msra.mxu0 0
    %2263 = vmatprep.subr.bf16.mxu0 0
    %2264 = vmatpush2.bf16.msra.mxu0 0
    %2265 = vmatprep.subr.bf16.mxu0 0
    %2266 = vmatpush2.bf16.msra.mxu0 0
    %2267 = vmatprep.subr.bf16.mxu0 0
    %2268 = vmatpush2.bf16.msra.mxu0 0
    %2269 = vmatprep.subr.bf16.mxu0 0
    %2270 = vmatpush2.bf16.msra.mxu0 0
    %2271 = vmatprep.subr.bf16.mxu0 0
    %2272 = vmatpush2.bf16.msra.mxu0 0
    %2273 = vmatprep.subr.bf16.mxu0 0
    %2274 = vmatpush2.bf16.msra.mxu0 0
    %2275 = vmatprep.subr.bf16.mxu0 0
    %2276 = vmatpush2.bf16.msra.mxu0 0
    %2277 = vmatprep.mubr.bf16.mxu0 0
    %2278 = vmatmul.mubr.bf16.gmra.mxu0 %v740
    %v2279 = vpop.f32.mrf.mxu0
    %v2280 = vadd.f32 0.0, %v2279
    %v2281 = vpop.f32.mrf.mxu0
    %v2282 = vpop.f32.mrf.mxu0
    %v2283 = vadd.f32 0.0, %v2282
    %v2284 = vpop.f32.mrf.mxu0
    %2285 = vmatprep.mubr.bf16.mxu0 0
    %2286 = vmatmul.mubr.bf16.gmra.mxu0 %v743
    %v2287 = vpop.f32.mrf.mxu0
    %v2288 = vadd.f32 0.0, %v2287
    %v2289 = vpop.f32.mrf.mxu0
    %v2290 = vpop.f32.mrf.mxu0
    %v2291 = vadd.f32 0.0, %v2290
    %v2292 = vpop.f32.mrf.mxu0
    %2293 = vdwg.mxu0
    %v2294 = vpack.c.bf16 %v2283, %v2280
    %v2295 = vpack.c.bf16 %v2291, %v2288
    %2296 = vmatprep.subr.bf16.mxu0 0
    %2297 = vmatpush1.bf16.msra.mxu0 0
    %2298 = vmatprep.subr.bf16.mxu0 0
    %2299 = vmatpush1.bf16.msra.mxu0 0
    %2300 = vmatprep.subr.bf16.mxu0 0
    %2301 = vmatpush1.bf16.msra.mxu0 0
    %2302 = vmatprep.subr.bf16.mxu0 0
    %2303 = vmatpush1.bf16.msra.mxu0 0
    %2304 = vmatprep.subr.bf16.mxu0 0
    %2305 = vmatpush1.bf16.msra.mxu0 0
    %2306 = vmatprep.subr.bf16.mxu0 0
    %2307 = vmatpush1.bf16.msra.mxu0 0
    %2308 = vmatprep.subr.bf16.mxu0 0
    %2309 = vmatpush1.bf16.msra.mxu0 %v2099
    %2310 = vmatprep.subr.bf16.mxu0 0
    %2311 = vmatpush1.bf16.msra.mxu0 %v2098
    %2312 = vmatprep.subr.bf16.mxu0 0
    %2313 = vmatpush2.bf16.msra.mxu0 0
    %2314 = vmatprep.subr.bf16.mxu0 0
    %2315 = vmatpush2.bf16.msra.mxu0 0
    %2316 = vmatprep.subr.bf16.mxu0 0
    %2317 = vmatpush2.bf16.msra.mxu0 0
    %2318 = vmatprep.subr.bf16.mxu0 0
    %2319 = vmatpush2.bf16.msra.mxu0 0
    %2320 = vmatprep.subr.bf16.mxu0 0
    %2321 = vmatpush2.bf16.msra.mxu0 0
    %2322 = vmatprep.subr.bf16.mxu0 0
    %2323 = vmatpush2.bf16.msra.mxu0 0
    %2324 = vmatprep.subr.bf16.mxu0 0
    %2325 = vmatpush2.bf16.msra.mxu0 0
    %2326 = vmatprep.subr.bf16.mxu0 0
    %2327 = vmatpush2.bf16.msra.mxu0 0
    %2328 = vmatprep.mubr.bf16.mxu0 0
    %2329 = vmatmul.mubr.bf16.gmra.mxu0 %v811
    %v2330 = vpop.f32.mrf.mxu0
    %v2331 = vadd.f32 0.0, %v2330
    %v2332 = vpop.f32.mrf.mxu0
    %v2333 = vpop.f32.mrf.mxu0
    %v2334 = vadd.f32 0.0, %v2333
    %v2335 = vpop.f32.mrf.mxu0
    %2336 = vmatprep.mubr.bf16.mxu0 0
    %2337 = vmatmul.mubr.bf16.gmra.mxu0 %v814
    %v2338 = vpop.f32.mrf.mxu0
    %v2339 = vadd.f32 0.0, %v2338
    %v2340 = vpop.f32.mrf.mxu0
    %v2341 = vpop.f32.mrf.mxu0
    %v2342 = vadd.f32 0.0, %v2341
    %v2343 = vpop.f32.mrf.mxu0
    %2344 = vdwg.mxu0
    %v2345 = vpack.c.bf16 %v2334, %v2331
    %v2346 = vpack.c.bf16 %v2342, %v2339
    %2347 = vmatprep.subr.bf16.mxu0 0
    %2348 = vmatpush1.bf16.msra.mxu0 0
    %2349 = vmatprep.subr.bf16.mxu0 0
    %2350 = vmatpush1.bf16.msra.mxu0 0
    %2351 = vmatprep.subr.bf16.mxu0 0
    %2352 = vmatpush1.bf16.msra.mxu0 0
    %2353 = vmatprep.subr.bf16.mxu0 0
    %2354 = vmatpush1.bf16.msra.mxu0 0
    %2355 = vmatprep.subr.bf16.mxu0 0
    %2356 = vmatpush1.bf16.msra.mxu0 0
    %2357 = vmatprep.subr.bf16.mxu0 0
    %2358 = vmatpush1.bf16.msra.mxu0 0
    %2359 = vmatprep.subr.bf16.mxu0 0
    %2360 = vmatpush1.bf16.msra.mxu0 %v2099
    %2361 = vmatprep.subr.bf16.mxu0 0
    %2362 = vmatpush1.bf16.msra.mxu0 %v2098
    %2363 = vmatprep.subr.bf16.mxu0 0
    %2364 = vmatpush2.bf16.msra.mxu0 0
    %2365 = vmatprep.subr.bf16.mxu0 0
    %2366 = vmatpush2.bf16.msra.mxu0 0
    %2367 = vmatprep.subr.bf16.mxu0 0
    %2368 = vmatpush2.bf16.msra.mxu0 0
    %2369 = vmatprep.subr.bf16.mxu0 0
    %2370 = vmatpush2.bf16.msra.mxu0 0
    %2371 = vmatprep.subr.bf16.mxu0 0
    %2372 = vmatpush2.bf16.msra.mxu0 0
    %2373 = vmatprep.subr.bf16.mxu0 0
    %2374 = vmatpush2.bf16.msra.mxu0 0
    %2375 = vmatprep.subr.bf16.mxu0 0
    %2376 = vmatpush2.bf16.msra.mxu0 0
    %2377 = vmatprep.subr.bf16.mxu0 0
    %2378 = vmatpush2.bf16.msra.mxu0 0
    %2379 = vmatprep.mubr.bf16.mxu0 0
    %2380 = vmatmul.mubr.bf16.gmra.mxu0 %v882
    %v2381 = vpop.f32.mrf.mxu0
    %v2382 = vadd.f32 0.0, %v2381
    %v2383 = vpop.f32.mrf.mxu0
    %v2384 = vpop.f32.mrf.mxu0
    %v2385 = vadd.f32 0.0, %v2384
    %v2386 = vpop.f32.mrf.mxu0
    %2387 = vmatprep.mubr.bf16.mxu0 0
    %2388 = vmatmul.mubr.bf16.gmra.mxu0 %v885
    %v2389 = vpop.f32.mrf.mxu0
    %v2390 = vadd.f32 0.0, %v2389
    %v2391 = vpop.f32.mrf.mxu0
    %v2392 = vpop.f32.mrf.mxu0
    %v2393 = vadd.f32 0.0, %v2392
    %v2394 = vpop.f32.mrf.mxu0
    %2395 = vdwg.mxu0
    %v2396 = vpack.c.bf16 %v2385, %v2382
    %v2397 = vpack.c.bf16 %v2393, %v2390
    %2398 = vmatprep.subr.bf16.mxu0 0
    %2399 = vmatpush1.bf16.msra.mxu0 0
    %2400 = vmatprep.subr.bf16.mxu0 0
    %2401 = vmatpush1.bf16.msra.mxu0 0
    %2402 = vmatprep.subr.bf16.mxu0 0
    %2403 = vmatpush1.bf16.msra.mxu0 0
    %2404 = vmatprep.subr.bf16.mxu0 0
    %2405 = vmatpush1.bf16.msra.mxu0 0
    %2406 = vmatprep.subr.bf16.mxu0 0
    %2407 = vmatpush1.bf16.msra.mxu0 0
    %2408 = vmatprep.subr.bf16.mxu0 0
    %2409 = vmatpush1.bf16.msra.mxu0 0
    %2410 = vmatprep.subr.bf16.mxu0 0
    %2411 = vmatpush1.bf16.msra.mxu0 %v2099
    %2412 = vmatprep.subr.bf16.mxu0 0
    %2413 = vmatpush1.bf16.msra.mxu0 %v2098
    %2414 = vmatprep.subr.bf16.mxu0 0
    %2415 = vmatpush2.bf16.msra.mxu0 0
    %2416 = vmatprep.subr.bf16.mxu0 0
    %2417 = vmatpush2.bf16.msra.mxu0 0
    %2418 = vmatprep.subr.bf16.mxu0 0
    %2419 = vmatpush2.bf16.msra.mxu0 0
    %2420 = vmatprep.subr.bf16.mxu0 0
    %2421 = vmatpush2.bf16.msra.mxu0 0
    %2422 = vmatprep.subr.bf16.mxu0 0
    %2423 = vmatpush2.bf16.msra.mxu0 0
    %2424 = vmatprep.subr.bf16.mxu0 0
    %2425 = vmatpush2.bf16.msra.mxu0 0
    %2426 = vmatprep.subr.bf16.mxu0 0
    %2427 = vmatpush2.bf16.msra.mxu0 0
    %2428 = vmatprep.subr.bf16.mxu0 0
    %2429 = vmatpush2.bf16.msra.mxu0 0
    %2430 = vmatprep.mubr.bf16.mxu0 0
    %2431 = vmatmul.mubr.bf16.gmra.mxu0 %v953
    %v2432 = vpop.f32.mrf.mxu0
    %v2433 = vadd.f32 0.0, %v2432
    %v2434 = vpop.f32.mrf.mxu0
    %v2435 = vpop.f32.mrf.mxu0
    %v2436 = vadd.f32 0.0, %v2435
    %v2437 = vpop.f32.mrf.mxu0
    %2438 = vmatprep.mubr.bf16.mxu0 0
    %2439 = vmatmul.mubr.bf16.gmra.mxu0 %v956
    %v2440 = vpop.f32.mrf.mxu0
    %v2441 = vadd.f32 0.0, %v2440
    %v2442 = vpop.f32.mrf.mxu0
    %v2443 = vpop.f32.mrf.mxu0
    %v2444 = vadd.f32 0.0, %v2443
    %v2445 = vpop.f32.mrf.mxu0
    %2446 = vdwg.mxu0
    %v2447 = vpack.c.bf16 %v2436, %v2433
    %v2448 = vpack.c.bf16 %v2444, %v2441
    %2449 = vmatprep.subr.bf16.mxu0 0
    %2450 = vmatpush1.bf16.msra.mxu0 0
    %2451 = vmatprep.subr.bf16.mxu0 0
    %2452 = vmatpush1.bf16.msra.mxu0 0
    %2453 = vmatprep.subr.bf16.mxu0 0
    %2454 = vmatpush1.bf16.msra.mxu0 0
    %2455 = vmatprep.subr.bf16.mxu0 0
    %2456 = vmatpush1.bf16.msra.mxu0 0
    %2457 = vmatprep.subr.bf16.mxu0 0
    %2458 = vmatpush1.bf16.msra.mxu0 0
    %2459 = vmatprep.subr.bf16.mxu0 0
    %2460 = vmatpush1.bf16.msra.mxu0 0
    %2461 = vmatprep.subr.bf16.mxu0 0
    %2462 = vmatpush1.bf16.msra.mxu0 %v2099
    %2463 = vmatprep.subr.bf16.mxu0 0
    %2464 = vmatpush1.bf16.msra.mxu0 %v2098
    %2465 = vmatprep.subr.bf16.mxu0 0
    %2466 = vmatpush2.bf16.msra.mxu0 0
    %2467 = vmatprep.subr.bf16.mxu0 0
    %2468 = vmatpush2.bf16.msra.mxu0 0
    %2469 = vmatprep.subr.bf16.mxu0 0
    %2470 = vmatpush2.bf16.msra.mxu0 0
    %2471 = vmatprep.subr.bf16.mxu0 0
    %2472 = vmatpush2.bf16.msra.mxu0 0
    %2473 = vmatprep.subr.bf16.mxu0 0
    %2474 = vmatpush2.bf16.msra.mxu0 0
    %2475 = vmatprep.subr.bf16.mxu0 0
    %2476 = vmatpush2.bf16.msra.mxu0 0
    %2477 = vmatprep.subr.bf16.mxu0 0
    %2478 = vmatpush2.bf16.msra.mxu0 0
    %2479 = vmatprep.subr.bf16.mxu0 0
    %2480 = vmatpush2.bf16.msra.mxu0 0
    %2481 = vmatprep.mubr.bf16.mxu0 0
    %2482 = vmatmul.mubr.bf16.gmra.mxu0 %v1024
    %v2483 = vpop.f32.mrf.mxu0
    %v2484 = vadd.f32 0.0, %v2483
    %v2485 = vpop.f32.mrf.mxu0
    %v2486 = vpop.f32.mrf.mxu0
    %v2487 = vadd.f32 0.0, %v2486
    %v2488 = vpop.f32.mrf.mxu0
    %2489 = vmatprep.mubr.bf16.mxu0 0
    %2490 = vmatmul.mubr.bf16.gmra.mxu0 %v1027
    %v2491 = vpop.f32.mrf.mxu0
    %v2492 = vadd.f32 0.0, %v2491
    %v2493 = vpop.f32.mrf.mxu0
    %v2494 = vpop.f32.mrf.mxu0
    %v2495 = vadd.f32 0.0, %v2494
    %v2496 = vpop.f32.mrf.mxu0
    %2497 = vdwg.mxu0
    %v2498 = vpack.c.bf16 %v2487, %v2484
    %v2499 = vpack.c.bf16 %v2495, %v2492
    %2500 = vmatprep.subr.bf16.mxu0 0
    %2501 = vmatpush1.bf16.msra.mxu0 0
    %2502 = vmatprep.subr.bf16.mxu0 0
    %2503 = vmatpush1.bf16.msra.mxu0 0
    %2504 = vmatprep.subr.bf16.mxu0 0
    %2505 = vmatpush1.bf16.msra.mxu0 0
    %2506 = vmatprep.subr.bf16.mxu0 0
    %2507 = vmatpush1.bf16.msra.mxu0 0
    %2508 = vmatprep.subr.bf16.mxu0 0
    %2509 = vmatpush1.bf16.msra.mxu0 0
    %2510 = vmatprep.subr.bf16.mxu0 0
    %2511 = vmatpush1.bf16.msra.mxu0 0
    %2512 = vmatprep.subr.bf16.mxu0 0
    %2513 = vmatpush1.bf16.msra.mxu0 %v2099
    %2514 = vmatprep.subr.bf16.mxu0 0
    %2515 = vmatpush1.bf16.msra.mxu0 %v2098
    %2516 = vmatprep.subr.bf16.mxu0 0
    %2517 = vmatpush2.bf16.msra.mxu0 0
    %2518 = vmatprep.subr.bf16.mxu0 0
    %2519 = vmatpush2.bf16.msra.mxu0 0
    %2520 = vmatprep.subr.bf16.mxu0 0
    %2521 = vmatpush2.bf16.msra.mxu0 0
    %2522 = vmatprep.subr.bf16.mxu0 0
    %2523 = vmatpush2.bf16.msra.mxu0 0
    %2524 = vmatprep.subr.bf16.mxu0 0
    %2525 = vmatpush2.bf16.msra.mxu0 0
    %2526 = vmatprep.subr.bf16.mxu0 0
    %2527 = vmatpush2.bf16.msra.mxu0 0
    %2528 = vmatprep.subr.bf16.mxu0 0
    %2529 = vmatpush2.bf16.msra.mxu0 0
    %2530 = vmatprep.subr.bf16.mxu0 0
    %2531 = vmatpush2.bf16.msra.mxu0 0
    %2532 = vmatprep.mubr.bf16.mxu0 0
    %2533 = vmatmul.mubr.bf16.gmra.mxu0 %v1095
    %v2534 = vpop.f32.mrf.mxu0
    %v2535 = vadd.f32 0.0, %v2534
    %v2536 = vpop.f32.mrf.mxu0
    %v2537 = vpop.f32.mrf.mxu0
    %v2538 = vadd.f32 0.0, %v2537
    %v2539 = vpop.f32.mrf.mxu0
    %2540 = vmatprep.mubr.bf16.mxu0 0
    %2541 = vmatmul.mubr.bf16.gmra.mxu0 %v1098
    %v2542 = vpop.f32.mrf.mxu0
    %v2543 = vadd.f32 0.0, %v2542
    %v2544 = vpop.f32.mrf.mxu0
    %v2545 = vpop.f32.mrf.mxu0
    %v2546 = vadd.f32 0.0, %v2545
    %v2547 = vpop.f32.mrf.mxu0
    %2548 = vdwg.mxu0
    %v2549 = vpack.c.bf16 %v2538, %v2535
    %v2550 = vpack.c.bf16 %v2546, %v2543
    %2551 = vmatprep.subr.bf16.mxu0 0
    %2552 = vmatpush1.bf16.msra.mxu0 0
    %2553 = vmatprep.subr.bf16.mxu0 0
    %2554 = vmatpush1.bf16.msra.mxu0 0
    %2555 = vmatprep.subr.bf16.mxu0 0
    %2556 = vmatpush1.bf16.msra.mxu0 0
    %2557 = vmatprep.subr.bf16.mxu0 0
    %2558 = vmatpush1.bf16.msra.mxu0 0
    %2559 = vmatprep.subr.bf16.mxu0 0
    %2560 = vmatpush1.bf16.msra.mxu0 0
    %2561 = vmatprep.subr.bf16.mxu0 0
    %2562 = vmatpush1.bf16.msra.mxu0 0
    %2563 = vmatprep.subr.bf16.mxu0 0
    %2564 = vmatpush1.bf16.msra.mxu0 %v2099
    %2565 = vmatprep.subr.bf16.mxu0 0
    %2566 = vmatpush1.bf16.msra.mxu0 %v2098
    %2567 = vmatprep.subr.bf16.mxu0 0
    %2568 = vmatpush2.bf16.msra.mxu0 0
    %2569 = vmatprep.subr.bf16.mxu0 0
    %2570 = vmatpush2.bf16.msra.mxu0 0
    %2571 = vmatprep.subr.bf16.mxu0 0
    %2572 = vmatpush2.bf16.msra.mxu0 0
    %2573 = vmatprep.subr.bf16.mxu0 0
    %2574 = vmatpush2.bf16.msra.mxu0 0
    %2575 = vmatprep.subr.bf16.mxu0 0
    %2576 = vmatpush2.bf16.msra.mxu0 0
    %2577 = vmatprep.subr.bf16.mxu0 0
    %2578 = vmatpush2.bf16.msra.mxu0 0
    %2579 = vmatprep.subr.bf16.mxu0 0
    %2580 = vmatpush2.bf16.msra.mxu0 0
    %2581 = vmatprep.subr.bf16.mxu0 0
    %2582 = vmatpush2.bf16.msra.mxu0 0
    %2583 = vmatprep.mubr.bf16.mxu0 0
    %2584 = vmatmul.mubr.bf16.gmra.mxu0 %v1166
    %v2585 = vpop.f32.mrf.mxu0
    %v2586 = vadd.f32 0.0, %v2585
    %v2587 = vpop.f32.mrf.mxu0
    %v2588 = vpop.f32.mrf.mxu0
    %v2589 = vadd.f32 0.0, %v2588
    %v2590 = vpop.f32.mrf.mxu0
    %2591 = vmatprep.mubr.bf16.mxu0 0
    %2592 = vmatmul.mubr.bf16.gmra.mxu0 %v1169
    %v2593 = vpop.f32.mrf.mxu0
    %v2594 = vadd.f32 0.0, %v2593
    %v2595 = vpop.f32.mrf.mxu0
    %v2596 = vpop.f32.mrf.mxu0
    %v2597 = vadd.f32 0.0, %v2596
    %v2598 = vpop.f32.mrf.mxu0
    %2599 = vdwg.mxu0
    %v2600 = vpack.c.bf16 %v2589, %v2586
    %v2601 = vpack.c.bf16 %v2597, %v2594
    %2602 = vmatprep.subr.bf16.mxu0 0
    %2603 = vmatpush1.bf16.msra.mxu0 0
    %2604 = vmatprep.subr.bf16.mxu0 0
    %2605 = vmatpush1.bf16.msra.mxu0 0
    %2606 = vmatprep.subr.bf16.mxu0 0
    %2607 = vmatpush1.bf16.msra.mxu0 0
    %2608 = vmatprep.subr.bf16.mxu0 0
    %2609 = vmatpush1.bf16.msra.mxu0 0
    %2610 = vmatprep.subr.bf16.mxu0 0
    %2611 = vmatpush1.bf16.msra.mxu0 0
    %2612 = vmatprep.subr.bf16.mxu0 0
    %2613 = vmatpush1.bf16.msra.mxu0 0
    %2614 = vmatprep.subr.bf16.mxu0 0
    %2615 = vmatpush1.bf16.msra.mxu0 %v2099
    %2616 = vmatprep.subr.bf16.mxu0 0
    %2617 = vmatpush1.bf16.msra.mxu0 %v2098
    %2618 = vmatprep.subr.bf16.mxu0 0
    %2619 = vmatpush2.bf16.msra.mxu0 0
    %2620 = vmatprep.subr.bf16.mxu0 0
    %2621 = vmatpush2.bf16.msra.mxu0 0
    %2622 = vmatprep.subr.bf16.mxu0 0
    %2623 = vmatpush2.bf16.msra.mxu0 0
    %2624 = vmatprep.subr.bf16.mxu0 0
    %2625 = vmatpush2.bf16.msra.mxu0 0
    %2626 = vmatprep.subr.bf16.mxu0 0
    %2627 = vmatpush2.bf16.msra.mxu0 0
    %2628 = vmatprep.subr.bf16.mxu0 0
    %2629 = vmatpush2.bf16.msra.mxu0 0
    %2630 = vmatprep.subr.bf16.mxu0 0
    %2631 = vmatpush2.bf16.msra.mxu0 0
    %2632 = vmatprep.subr.bf16.mxu0 0
    %2633 = vmatpush2.bf16.msra.mxu0 0
    %2634 = vmatprep.mubr.bf16.mxu0 0
    %2635 = vmatmul.mubr.bf16.gmra.mxu0 %v1237
    %v2636 = vpop.f32.mrf.mxu0
    %v2637 = vadd.f32 0.0, %v2636
    %v2638 = vpop.f32.mrf.mxu0
    %v2639 = vpop.f32.mrf.mxu0
    %v2640 = vadd.f32 0.0, %v2639
    %v2641 = vpop.f32.mrf.mxu0
    %2642 = vmatprep.mubr.bf16.mxu0 0
    %2643 = vmatmul.mubr.bf16.gmra.mxu0 %v1240
    %v2644 = vpop.f32.mrf.mxu0
    %v2645 = vadd.f32 0.0, %v2644
    %v2646 = vpop.f32.mrf.mxu0
    %v2647 = vpop.f32.mrf.mxu0
    %v2648 = vadd.f32 0.0, %v2647
    %v2649 = vpop.f32.mrf.mxu0
    %2650 = vdwg.mxu0
    %v2651 = vpack.c.bf16 %v2640, %v2637
    %v2652 = vpack.c.bf16 %v2648, %v2645
    %2653 = vmatprep.subr.bf16.mxu0 0
    %2654 = vmatpush1.bf16.msra.mxu0 0
    %2655 = vmatprep.subr.bf16.mxu0 0
    %2656 = vmatpush1.bf16.msra.mxu0 0
    %2657 = vmatprep.subr.bf16.mxu0 0
    %2658 = vmatpush1.bf16.msra.mxu0 0
    %2659 = vmatprep.subr.bf16.mxu0 0
    %2660 = vmatpush1.bf16.msra.mxu0 0
    %2661 = vmatprep.subr.bf16.mxu0 0
    %2662 = vmatpush1.bf16.msra.mxu0 0
    %2663 = vmatprep.subr.bf16.mxu0 0
    %2664 = vmatpush1.bf16.msra.mxu0 0
    %2665 = vmatprep.subr.bf16.mxu0 0
    %2666 = vmatpush1.bf16.msra.mxu0 %v2099
    %2667 = vmatprep.subr.bf16.mxu0 0
    %2668 = vmatpush1.bf16.msra.mxu0 %v2098
    %2669 = vmatprep.subr.bf16.mxu0 0
    %2670 = vmatpush2.bf16.msra.mxu0 0
    %2671 = vmatprep.subr.bf16.mxu0 0
    %2672 = vmatpush2.bf16.msra.mxu0 0
    %2673 = vmatprep.subr.bf16.mxu0 0
    %2674 = vmatpush2.bf16.msra.mxu0 0
    %2675 = vmatprep.subr.bf16.mxu0 0
    %2676 = vmatpush2.bf16.msra.mxu0 0
    %2677 = vmatprep.subr.bf16.mxu0 0
    %2678 = vmatpush2.bf16.msra.mxu0 0
    %2679 = vmatprep.subr.bf16.mxu0 0
    %2680 = vmatpush2.bf16.msra.mxu0 0
    %2681 = vmatprep.subr.bf16.mxu0 0
    %2682 = vmatpush2.bf16.msra.mxu0 0
    %2683 = vmatprep.subr.bf16.mxu0 0
    %2684 = vmatpush2.bf16.msra.mxu0 0
    %2685 = vmatprep.mubr.bf16.mxu0 0
    %2686 = vmatmul.mubr.bf16.gmra.mxu0 %v1308
    %v2687 = vpop.f32.mrf.mxu0
    %v2688 = vadd.f32 0.0, %v2687
    %v2689 = vpop.f32.mrf.mxu0
    %v2690 = vpop.f32.mrf.mxu0
    %v2691 = vadd.f32 0.0, %v2690
    %v2692 = vpop.f32.mrf.mxu0
    %2693 = vmatprep.mubr.bf16.mxu0 0
    %2694 = vmatmul.mubr.bf16.gmra.mxu0 %v1311
    %v2695 = vpop.f32.mrf.mxu0
    %v2696 = vadd.f32 0.0, %v2695
    %v2697 = vpop.f32.mrf.mxu0
    %v2698 = vpop.f32.mrf.mxu0
    %v2699 = vadd.f32 0.0, %v2698
    %v2700 = vpop.f32.mrf.mxu0
    %2701 = vdwg.mxu0
    %v2702 = vpack.c.bf16 %v2691, %v2688
    %v2703 = vpack.c.bf16 %v2699, %v2696
    %v2848 = vunpack.c.l.b16 %v2101
    %v2849 = vunpack.c.l.b16 %v2102
    %v2850 = vunpack.c.l.b16 %v2103
    %v2851 = vunpack.c.l.b16 %v2104
    %v2852 = vunpack.c.l.b16 %v2105
    %v2853 = vunpack.c.l.b16 %v2106
    %v2854 = vunpack.c.l.b16 %v2107
    %v2855 = vunpack.c.l.b16 %v2108
    %v2856 = vunpack.c.l.b16 %v2109
    %v2857 = vunpack.c.l.b16 %v2110
    %v2858 = vunpack.c.l.b16 %v2111
    %v2859 = vunpack.c.l.b16 %v2112
    %v2860 = vunpack.c.l.b16 %v2113
    %v2861 = vunpack.c.l.b16 %v2114
    %v2862 = vunpack.c.l.b16 %v2115
    %v2863 = vunpack.c.l.b16 %v2116
    %v2864 = vunpack.c.l.b16 %v2117
    %v2865 = vunpack.c.l.b16 %v2118
    %v2866 = vunpack.c.l.b16 %v2119
    %v2867 = vunpack.c.l.b16 %v2120
    %v2868 = vunpack.c.l.b16 %v2121
    %v2869 = vunpack.c.l.b16 %v2122
    %v2870 = vunpack.c.l.b16 %v2123
    %v2871 = vunpack.c.l.b16 %v2124
    %v2872 = vunpack.c.l.b16 %v2125
    %v2873 = vunpack.c.l.b16 %v2126
    %v2874 = vunpack.c.l.b16 %v2127
    %v2875 = vunpack.c.l.b16 %v2128
    %v2876 = vunpack.c.l.b16 %v2129
    %v2877 = vunpack.c.l.b16 %v2130
    %v2878 = vunpack.c.l.b16 %v2131
    %v2879 = vunpack.c.l.b16 %v2132
    %v2880 = vunpack.c.l.b16 %v2133
    %v2881 = vunpack.c.l.b16 %v2134
    %v2882 = vunpack.c.l.b16 %v2135
    %v2883 = vunpack.c.l.b16 %v2136
    %v2884 = vunpack.c.l.b16 %v2137
    %v2885 = vunpack.c.l.b16 %v2138
    %v2886 = vunpack.c.l.b16 %v2139
    %v2887 = vunpack.c.l.b16 %v2140
    %v2888 = vunpack.c.l.b16 %v2141
    %v2889 = vunpack.c.l.b16 %v2142
    %v2890 = vunpack.c.l.b16 %v2143
    %v2891 = vunpack.c.l.b16 %v2144
    %v2892 = vunpack.c.l.b16 %v2145
    %v2893 = vunpack.c.l.b16 %v2146
    %v2894 = vunpack.c.l.b16 %v2147
    %v2895 = vunpack.c.l.b16 %v2148
    %v2896 = vunpack.c.l.b16 %v2149
    %v2897 = vunpack.c.l.b16 %v2150
    %v2898 = vunpack.c.l.b16 %v2151
    %v2899 = vunpack.c.l.b16 %v2152
    %v2900 = vunpack.c.l.b16 %v2153
    %v2901 = vunpack.c.l.b16 %v2154
    %v2902 = vunpack.c.l.b16 %v2155
    %v2903 = vunpack.c.l.b16 %v2156
    %v2904 = vunpack.c.l.b16 %v2157
    %v2905 = vunpack.c.l.b16 %v2158
    %v2906 = vunpack.c.l.b16 %v2159
    %v2907 = vunpack.c.l.b16 %v2160
    %v2908 = vunpack.c.l.b16 %v2161
    %v2909 = vunpack.c.l.b16 %v2162
    %v2910 = vunpack.c.l.b16 %v2163
    %v2911 = vunpack.c.l.b16 %v2164
    %v2912 = vunpack.c.l.b16 %v2165
    %v2913 = vunpack.c.l.b16 %v2166
    %v2914 = vunpack.c.l.b16 %v2167
    %v2915 = vunpack.c.l.b16 %v2168
    %v2916 = vunpack.c.l.b16 %v2169
    %v2917 = vunpack.c.l.b16 %v2170
    %v2918 = vunpack.c.l.b16 %v2171
    %v2919 = vunpack.c.l.b16 %v2172
    %v2920 = vunpack.c.l.b16 %v2173
    %v2921 = vunpack.c.l.b16 %v2174
    %v2922 = vunpack.c.l.b16 %v2175
    %v2923 = vunpack.c.l.b16 %v2176
    %v2924 = vunpack.c.l.b16 %v2177
    %v2925 = vunpack.c.l.b16 %v2178
    %v2926 = vunpack.c.l.b16 %v2179
    %v2927 = vunpack.c.l.b16 %v2180
    %v2928 = vunpack.c.l.b16 %v2181
    %v2929 = vunpack.c.l.b16 %v2182
    %v2930 = vunpack.c.l.b16 %v2183
    %v2931 = vunpack.c.l.b16 %v2184
    %v2932 = vunpack.c.l.b16 %v2185
    %v2933 = vunpack.c.l.b16 %v2186
    %v2934 = vunpack.c.l.b16 %v2187
    %v2935 = vunpack.c.l.b16 %v2188
    %v2936 = vunpack.c.l.b16 %v2189
    %v2937 = vunpack.c.l.b16 %v2190
    %v2938 = vunpack.c.l.b16 %v2191
    %v2939 = vunpack.c.l.b16 %v2192
    %v2940 = vunpack.c.l.b16 %v2193
    %v2941 = vunpack.c.l.b16 %v2194
    %v2942 = vunpack.c.l.b16 %v2195
    %v2943 = vunpack.c.l.b16 %v2196
    %v2944 = vunpack.c.l.b16 %v2197
    %v2945 = vunpack.c.l.b16 %v2198
    %v2946 = vunpack.c.l.b16 %v2199
    %v2947 = vunpack.c.l.b16 %v2200
    %v2948 = vunpack.c.l.b16 %v2201
    %v2949 = vunpack.c.l.b16 %v2202
    %v2950 = vunpack.c.l.b16 %v2203
    %v2951 = vunpack.c.l.b16 %v2204
    %v2952 = vunpack.c.l.b16 %v2205
    %v2953 = vunpack.c.l.b16 %v2206
    %v2954 = vunpack.c.l.b16 %v2207
    %v2955 = vunpack.c.l.b16 %v2208
    %v2956 = vunpack.c.l.b16 %v2209
    %v2957 = vunpack.c.l.b16 %v2210
    %v2958 = vunpack.c.l.b16 %v2211
    %v2959 = vunpack.c.l.b16 %v2212
    %v2960 = vunpack.c.l.b16 %v2213
    %v2961 = vunpack.c.l.b16 %v2214
    %v2962 = vunpack.c.l.b16 %v2215
    %v2963 = vunpack.c.l.b16 %v2216
    %v2964 = vunpack.c.l.b16 %v2217
    %v2965 = vunpack.c.l.b16 %v2218
    %v2966 = vunpack.c.l.b16 %v2219
    %v2967 = vunpack.c.l.b16 %v2220
    %v2968 = vunpack.c.l.b16 %v2221
    %v2969 = vunpack.c.l.b16 %v2222
    %v2970 = vunpack.c.l.b16 %v2223
    %v2971 = vunpack.c.l.b16 %v2224
    %v2972 = vunpack.c.l.b16 %v2225
    %v2973 = vunpack.c.l.b16 %v2226
    %v2974 = vunpack.c.l.b16 %v2227
    %v2975 = vunpack.c.l.b16 %v2228
    %v2976 = vunpack.c.l.b16 %v2229
    %v2977 = vunpack.c.l.b16 %v2230
    %v2978 = vunpack.c.l.b16 %v2231
    %v2979 = vunpack.c.l.b16 %v2232
    %v2980 = vunpack.c.l.b16 %v2233
    %v2981 = vunpack.c.l.b16 %v2234
    %v2982 = vunpack.c.l.b16 %v2235
    %v2983 = vunpack.c.l.b16 %v2236
    %v2984 = vunpack.c.l.b16 %v2237
    %v2985 = vunpack.c.l.b16 %v2238
    %v2986 = vunpack.c.l.b16 %v2239
    %v2987 = vunpack.c.l.b16 %v2240
    %v2988 = vunpack.c.l.b16 %v2241
    %v2989 = vunpack.c.l.b16 %v2242
    %v2990 = vunpack.c.l.b16 %v2243
    %v2991 = vunpack.c.l.b16 %v2244
    %v2992 = vpack.c.b16 %v2849, %v2848
    %v2993 = vpack.c.b16 %v2851, %v2850
    %v2994 = vpack.c.b16 %v2853, %v2852
    %v2995 = vpack.c.b16 %v2855, %v2854
    %v2996 = vpack.c.b16 %v2857, %v2856
    %v2997 = vpack.c.b16 %v2859, %v2858
    %v2998 = vpack.c.b16 %v2861, %v2860
    %v2999 = vpack.c.b16 %v2863, %v2862
    %v3000 = vpack.c.b16 %v2865, %v2864
    %v3001 = vpack.c.b16 %v2867, %v2866
    %v3002 = vpack.c.b16 %v2869, %v2868
    %v3003 = vpack.c.b16 %v2871, %v2870
    %v3004 = vpack.c.b16 %v2873, %v2872
    %v3005 = vpack.c.b16 %v2875, %v2874
    %v3006 = vpack.c.b16 %v2877, %v2876
    %v3007 = vpack.c.b16 %v2879, %v2878
    %v3008 = vpack.c.b16 %v2881, %v2880
    %v3009 = vpack.c.b16 %v2883, %v2882
    %v3010 = vpack.c.b16 %v2885, %v2884
    %v3011 = vpack.c.b16 %v2887, %v2886
    %v3012 = vpack.c.b16 %v2889, %v2888
    %v3013 = vpack.c.b16 %v2891, %v2890
    %v3014 = vpack.c.b16 %v2893, %v2892
    %v3015 = vpack.c.b16 %v2895, %v2894
    %v3016 = vpack.c.b16 %v2897, %v2896
    %v3017 = vpack.c.b16 %v2899, %v2898
    %v3018 = vpack.c.b16 %v2901, %v2900
    %v3019 = vpack.c.b16 %v2903, %v2902
    %v3020 = vpack.c.b16 %v2905, %v2904
    %v3021 = vpack.c.b16 %v2907, %v2906
    %v3022 = vpack.c.b16 %v2909, %v2908
    %v3023 = vpack.c.b16 %v2911, %v2910
    %v3024 = vpack.c.b16 %v2913, %v2912
    %v3025 = vpack.c.b16 %v2915, %v2914
    %v3026 = vpack.c.b16 %v2917, %v2916
    %v3027 = vpack.c.b16 %v2919, %v2918
    %v3028 = vpack.c.b16 %v2921, %v2920
    %v3029 = vpack.c.b16 %v2923, %v2922
    %v3030 = vpack.c.b16 %v2925, %v2924
    %v3031 = vpack.c.b16 %v2927, %v2926
    %v3032 = vpack.c.b16 %v2929, %v2928
    %v3033 = vpack.c.b16 %v2931, %v2930
    %v3034 = vpack.c.b16 %v2933, %v2932
    %v3035 = vpack.c.b16 %v2935, %v2934
    %v3036 = vpack.c.b16 %v2937, %v2936
    %v3037 = vpack.c.b16 %v2939, %v2938
    %v3038 = vpack.c.b16 %v2941, %v2940
    %v3039 = vpack.c.b16 %v2943, %v2942
    %v3040 = vpack.c.b16 %v2945, %v2944
    %v3041 = vpack.c.b16 %v2947, %v2946
    %v3042 = vpack.c.b16 %v2949, %v2948
    %v3043 = vpack.c.b16 %v2951, %v2950
    %v3044 = vpack.c.b16 %v2953, %v2952
    %v3045 = vpack.c.b16 %v2955, %v2954
    %v3046 = vpack.c.b16 %v2957, %v2956
    %v3047 = vpack.c.b16 %v2959, %v2958
    %v3048 = vpack.c.b16 %v2961, %v2960
    %v3049 = vpack.c.b16 %v2963, %v2962
    %v3050 = vpack.c.b16 %v2965, %v2964
    %v3051 = vpack.c.b16 %v2967, %v2966
    %v3052 = vpack.c.b16 %v2969, %v2968
    %v3053 = vpack.c.b16 %v2971, %v2970
    %v3054 = vpack.c.b16 %v2973, %v2972
    %v3055 = vpack.c.b16 %v2975, %v2974
    %v3056 = vpack.c.b16 %v2977, %v2976
    %v3057 = vpack.c.b16 %v2979, %v2978
    %v3058 = vpack.c.b16 %v2981, %v2980
    %v3059 = vpack.c.b16 %v2983, %v2982
    %v3060 = vpack.c.b16 %v2985, %v2984
    %v3061 = vpack.c.b16 %v2987, %v2986
    %v3062 = vpack.c.b16 %v2989, %v2988
    %v3063 = vpack.c.b16 %v2991, %v2990
    %3136 = vmatprep.subr.bf16.mxu0 0
    %3137 = vmatpush1.bf16.msra.mxu0 %v2999
    %3138 = vmatprep.subr.bf16.mxu0 0
    %3139 = vmatpush1.bf16.msra.mxu0 %v2998
    %3140 = vmatprep.subr.bf16.mxu0 0
    %3141 = vmatpush1.bf16.msra.mxu0 %v2997
    %3142 = vmatprep.subr.bf16.mxu0 0
    %3143 = vmatpush1.bf16.msra.mxu0 %v2996
    %3144 = vmatprep.subr.bf16.mxu0 0
    %3145 = vmatpush1.bf16.msra.mxu0 %v2995
    %3146 = vmatprep.subr.bf16.mxu0 0
    %3147 = vmatpush1.bf16.msra.mxu0 %v2994
    %3148 = vmatprep.subr.bf16.mxu0 0
    %3149 = vmatpush1.bf16.msra.mxu0 %v2993
    %3150 = vmatprep.subr.bf16.mxu0 0
    %3151 = vmatpush1.bf16.msra.mxu0 %v2992
    %3152 = vmatprep.subr.bf16.mxu0 0
    %3153 = vmatpush2.bf16.msra.mxu0 %v3007
    %3154 = vmatprep.subr.bf16.mxu0 0
    %3155 = vmatpush2.bf16.msra.mxu0 %v3006
    %3156 = vmatprep.subr.bf16.mxu0 0
    %3157 = vmatpush2.bf16.msra.mxu0 %v3005
    %3158 = vmatprep.subr.bf16.mxu0 0
    %3159 = vmatpush2.bf16.msra.mxu0 %v3004
    %3160 = vmatprep.subr.bf16.mxu0 0
    %3161 = vmatpush2.bf16.msra.mxu0 %v3003
    %3162 = vmatprep.subr.bf16.mxu0 0
    %3163 = vmatpush2.bf16.msra.mxu0 %v3002
    %3164 = vmatprep.subr.bf16.mxu0 0
    %3165 = vmatpush2.bf16.msra.mxu0 %v3001
    %3166 = vmatprep.subr.bf16.mxu0 0
    %3167 = vmatpush2.bf16.msra.mxu0 %v3000
    %3168 = vmatprep.mubr.bf16.mxu0 %v2345
    %3169 = vmatmul.mubr.bf16.gmra.mxu0 %v2294
    %v3170 = vpop.f32.mrf.mxu0
    %v3171 = vadd.f32 0.0, %v3170
    %v3172 = vpop.f32.mrf.mxu0
    %v3173 = vpop.f32.mrf.mxu0
    %v3174 = vadd.f32 0.0, %v3173
    %v3175 = vpop.f32.mrf.mxu0
    %3176 = vmatprep.mubr.bf16.mxu0 %v2346
    %3177 = vmatmul.mubr.bf16.gmra.mxu0 %v2295
    %v3178 = vpop.f32.mrf.mxu0
    %v3179 = vadd.f32 0.0, %v3178
    %v3180 = vpop.f32.mrf.mxu0
    %v3181 = vpop.f32.mrf.mxu0
    %v3182 = vadd.f32 0.0, %v3181
    %v3183 = vpop.f32.mrf.mxu0
    %3184 = vdwg.mxu0
    %3185 = vmatprep.subr.bf16.mxu0 0
    %3186 = vmatpush1.bf16.msra.mxu0 %v3015
    %3187 = vmatprep.subr.bf16.mxu0 0
    %3188 = vmatpush1.bf16.msra.mxu0 %v3014
    %3189 = vmatprep.subr.bf16.mxu0 0
    %3190 = vmatpush1.bf16.msra.mxu0 %v3013
    %3191 = vmatprep.subr.bf16.mxu0 0
    %3192 = vmatpush1.bf16.msra.mxu0 %v3012
    %3193 = vmatprep.subr.bf16.mxu0 0
    %3194 = vmatpush1.bf16.msra.mxu0 %v3011
    %3195 = vmatprep.subr.bf16.mxu0 0
    %3196 = vmatpush1.bf16.msra.mxu0 %v3010
    %3197 = vmatprep.subr.bf16.mxu0 0
    %3198 = vmatpush1.bf16.msra.mxu0 %v3009
    %3199 = vmatprep.subr.bf16.mxu0 0
    %3200 = vmatpush1.bf16.msra.mxu0 %v3008
    %3201 = vmatprep.subr.bf16.mxu0 0
    %3202 = vmatpush2.bf16.msra.mxu0 %v3023
    %3203 = vmatprep.subr.bf16.mxu0 0
    %3204 = vmatpush2.bf16.msra.mxu0 %v3022
    %3205 = vmatprep.subr.bf16.mxu0 0
    %3206 = vmatpush2.bf16.msra.mxu0 %v3021
    %3207 = vmatprep.subr.bf16.mxu0 0
    %3208 = vmatpush2.bf16.msra.mxu0 %v3020
    %3209 = vmatprep.subr.bf16.mxu0 0
    %3210 = vmatpush2.bf16.msra.mxu0 %v3019
    %3211 = vmatprep.subr.bf16.mxu0 0
    %3212 = vmatpush2.bf16.msra.mxu0 %v3018
    %3213 = vmatprep.subr.bf16.mxu0 0
    %3214 = vmatpush2.bf16.msra.mxu0 %v3017
    %3215 = vmatprep.subr.bf16.mxu0 0
    %3216 = vmatpush2.bf16.msra.mxu0 %v3016
    %3217 = vmatprep.mubr.bf16.mxu0 %v2447
    %3218 = vmatmul.mubr.bf16.gmra.mxu0 %v2396
    %v3219 = vpop.f32.mrf.mxu0
    %v3220 = vadd.f32 %v3171, %v3219
    %v3221 = vpop.f32.mrf.mxu0
    %v3222 = vpop.f32.mrf.mxu0
    %v3223 = vadd.f32 %v3174, %v3222
    %v3224 = vpop.f32.mrf.mxu0
    %3225 = vmatprep.mubr.bf16.mxu0 %v2448
    %3226 = vmatmul.mubr.bf16.gmra.mxu0 %v2397
    %v3227 = vpop.f32.mrf.mxu0
    %v3228 = vadd.f32 %v3179, %v3227
    %v3229 = vpop.f32.mrf.mxu0
    %v3230 = vpop.f32.mrf.mxu0
    %v3231 = vadd.f32 %v3182, %v3230
    %v3232 = vpop.f32.mrf.mxu0
    %3233 = vdwg.mxu0
    %3234 = vmatprep.subr.bf16.mxu0 0
    %3235 = vmatpush1.bf16.msra.mxu0 %v3031
    %3236 = vmatprep.subr.bf16.mxu0 0
    %3237 = vmatpush1.bf16.msra.mxu0 %v3030
    %3238 = vmatprep.subr.bf16.mxu0 0
    %3239 = vmatpush1.bf16.msra.mxu0 %v3029
    %3240 = vmatprep.subr.bf16.mxu0 0
    %3241 = vmatpush1.bf16.msra.mxu0 %v3028
    %3242 = vmatprep.subr.bf16.mxu0 0
    %3243 = vmatpush1.bf16.msra.mxu0 %v3027
    %3244 = vmatprep.subr.bf16.mxu0 0
    %3245 = vmatpush1.bf16.msra.mxu0 %v3026
    %3246 = vmatprep.subr.bf16.mxu0 0
    %3247 = vmatpush1.bf16.msra.mxu0 %v3025
    %3248 = vmatprep.subr.bf16.mxu0 0
    %3249 = vmatpush1.bf16.msra.mxu0 %v3024
    %3250 = vmatprep.subr.bf16.mxu0 0
    %3251 = vmatpush2.bf16.msra.mxu0 %v3039
    %3252 = vmatprep.subr.bf16.mxu0 0
    %3253 = vmatpush2.bf16.msra.mxu0 %v3038
    %3254 = vmatprep.subr.bf16.mxu0 0
    %3255 = vmatpush2.bf16.msra.mxu0 %v3037
    %3256 = vmatprep.subr.bf16.mxu0 0
    %3257 = vmatpush2.bf16.msra.mxu0 %v3036
    %3258 = vmatprep.subr.bf16.mxu0 0
    %3259 = vmatpush2.bf16.msra.mxu0 %v3035
    %3260 = vmatprep.subr.bf16.mxu0 0
    %3261 = vmatpush2.bf16.msra.mxu0 %v3034
    %3262 = vmatprep.subr.bf16.mxu0 0
    %3263 = vmatpush2.bf16.msra.mxu0 %v3033
    %3264 = vmatprep.subr.bf16.mxu0 0
    %3265 = vmatpush2.bf16.msra.mxu0 %v3032
    %3266 = vmatprep.mubr.bf16.mxu0 %v2549
    %3267 = vmatmul.mubr.bf16.gmra.mxu0 %v2498
    %v3268 = vpop.f32.mrf.mxu0
    %v3269 = vadd.f32 %v3220, %v3268
    %v3270 = vpop.f32.mrf.mxu0
    %v3271 = vpop.f32.mrf.mxu0
    %v3272 = vadd.f32 %v3223, %v3271
    %v3273 = vpop.f32.mrf.mxu0
    %3274 = vmatprep.mubr.bf16.mxu0 %v2550
    %3275 = vmatmul.mubr.bf16.gmra.mxu0 %v2499
    %v3276 = vpop.f32.mrf.mxu0
    %v3277 = vadd.f32 %v3228, %v3276
    %v3278 = vpop.f32.mrf.mxu0
    %v3279 = vpop.f32.mrf.mxu0
    %v3280 = vadd.f32 %v3231, %v3279
    %v3281 = vpop.f32.mrf.mxu0
    %3282 = vdwg.mxu0
    %3283 = vmatprep.subr.bf16.mxu0 0
    %3284 = vmatpush1.bf16.msra.mxu0 %v3047
    %3285 = vmatprep.subr.bf16.mxu0 0
    %3286 = vmatpush1.bf16.msra.mxu0 %v3046
    %3287 = vmatprep.subr.bf16.mxu0 0
    %3288 = vmatpush1.bf16.msra.mxu0 %v3045
    %3289 = vmatprep.subr.bf16.mxu0 0
    %3290 = vmatpush1.bf16.msra.mxu0 %v3044
    %3291 = vmatprep.subr.bf16.mxu0 0
    %3292 = vmatpush1.bf16.msra.mxu0 %v3043
    %3293 = vmatprep.subr.bf16.mxu0 0
    %3294 = vmatpush1.bf16.msra.mxu0 %v3042
    %3295 = vmatprep.subr.bf16.mxu0 0
    %3296 = vmatpush1.bf16.msra.mxu0 %v3041
    %3297 = vmatprep.subr.bf16.mxu0 0
    %3298 = vmatpush1.bf16.msra.mxu0 %v3040
    %3299 = vmatprep.subr.bf16.mxu0 0
    %3300 = vmatpush2.bf16.msra.mxu0 %v3055
    %3301 = vmatprep.subr.bf16.mxu0 0
    %3302 = vmatpush2.bf16.msra.mxu0 %v3054
    %3303 = vmatprep.subr.bf16.mxu0 0
    %3304 = vmatpush2.bf16.msra.mxu0 %v3053
    %3305 = vmatprep.subr.bf16.mxu0 0
    %3306 = vmatpush2.bf16.msra.mxu0 %v3052
    %3307 = vmatprep.subr.bf16.mxu0 0
    %3308 = vmatpush2.bf16.msra.mxu0 %v3051
    %3309 = vmatprep.subr.bf16.mxu0 0
    %3310 = vmatpush2.bf16.msra.mxu0 %v3050
    %3311 = vmatprep.subr.bf16.mxu0 0
    %3312 = vmatpush2.bf16.msra.mxu0 %v3049
    %3313 = vmatprep.subr.bf16.mxu0 0
    %3314 = vmatpush2.bf16.msra.mxu0 %v3048
    %3315 = vmatprep.mubr.bf16.mxu0 %v2651
    %3316 = vmatmul.mubr.bf16.gmra.mxu0 %v2600
    %v3317 = vpop.f32.mrf.mxu0
    %v3318 = vadd.f32 %v3269, %v3317
    %v3319 = vpop.f32.mrf.mxu0
    %v3320 = vpop.f32.mrf.mxu0
    %v3321 = vadd.f32 %v3272, %v3320
    %v3322 = vpop.f32.mrf.mxu0
    %3323 = vmatprep.mubr.bf16.mxu0 %v2652
    %3324 = vmatmul.mubr.bf16.gmra.mxu0 %v2601
    %v3325 = vpop.f32.mrf.mxu0
    %v3326 = vadd.f32 %v3277, %v3325
    %v3327 = vpop.f32.mrf.mxu0
    %v3328 = vpop.f32.mrf.mxu0
    %v3329 = vadd.f32 %v3280, %v3328
    %v3330 = vpop.f32.mrf.mxu0
    %3331 = vdwg.mxu0
    %3332 = vmatprep.subr.bf16.mxu0 0
    %3333 = vmatpush1.bf16.msra.mxu0 %v3063
    %3334 = vmatprep.subr.bf16.mxu0 0
    %3335 = vmatpush1.bf16.msra.mxu0 %v3062
    %3336 = vmatprep.subr.bf16.mxu0 0
    %3337 = vmatpush1.bf16.msra.mxu0 %v3061
    %3338 = vmatprep.subr.bf16.mxu0 0
    %3339 = vmatpush1.bf16.msra.mxu0 %v3060
    %3340 = vmatprep.subr.bf16.mxu0 0
    %3341 = vmatpush1.bf16.msra.mxu0 %v3059
    %3342 = vmatprep.subr.bf16.mxu0 0
    %3343 = vmatpush1.bf16.msra.mxu0 %v3058
    %3344 = vmatprep.subr.bf16.mxu0 0
    %3345 = vmatpush1.bf16.msra.mxu0 %v3057
    %3346 = vmatprep.subr.bf16.mxu0 0
    %3347 = vmatpush1.bf16.msra.mxu0 %v3056
    %3348 = vmatprep.subr.bf16.mxu0 0
    %3349 = vmatpush2.bf16.msra.mxu0 0
    %3350 = vmatprep.subr.bf16.mxu0 0
    %3351 = vmatpush2.bf16.msra.mxu0 0
    %3352 = vmatprep.subr.bf16.mxu0 0
    %3353 = vmatpush2.bf16.msra.mxu0 0
    %3354 = vmatprep.subr.bf16.mxu0 0
    %3355 = vmatpush2.bf16.msra.mxu0 0
    %3356 = vmatprep.subr.bf16.mxu0 0
    %3357 = vmatpush2.bf16.msra.mxu0 0
    %3358 = vmatprep.subr.bf16.mxu0 0
    %3359 = vmatpush2.bf16.msra.mxu0 0
    %3360 = vmatprep.subr.bf16.mxu0 0
    %3361 = vmatpush2.bf16.msra.mxu0 0
    %3362 = vmatprep.subr.bf16.mxu0 0
    %3363 = vmatpush2.bf16.msra.mxu0 0
    %3364 = vmatprep.mubr.bf16.mxu0 0
    %3365 = vmatmul.mubr.bf16.gmra.mxu0 %v2702
    %v3366 = vpop.f32.mrf.mxu0
    %v3367 = vadd.f32 %v3318, %v3366
    %v3368 = vpop.f32.mrf.mxu0
    %v3369 = vpop.f32.mrf.mxu0
    %v3370 = vadd.f32 %v3321, %v3369
    %v3371 = vpop.f32.mrf.mxu0
    %3372 = vmatprep.mubr.bf16.mxu0 0
    %3373 = vmatmul.mubr.bf16.gmra.mxu0 %v2703
    %v3374 = vpop.f32.mrf.mxu0
    %v3375 = vadd.f32 %v3326, %v3374
    %v3376 = vpop.f32.mrf.mxu0
    %v3377 = vpop.f32.mrf.mxu0
    %v3378 = vadd.f32 %v3329, %v3377
    %v3379 = vpop.f32.mrf.mxu0
    %3380 = vdwg.mxu0
    %v3381 = vadd.f32 %v2041, %v3367
    %v3382 = vadd.f32 %v2042, %v3370
    %v3383 = vadd.f32 %v2043, %v3375
    %v3384 = vadd.f32 %v2044, %v3378
    %v3385 = vld [vmem:[%s3 + $0x2] sm:$0x1]
    %v3386 = vld [vmem:[%s4 + $0x2] sm:$0x1]
    %v3387 = vadd.f32 %v3381, %v3382
    %v3388 = vadd.f32 %v3387, %v3383
    %v3389 = vadd.f32 %v3388, %v3384
    %v3390 = vrot.slane %v3389, 4
    %v3391 = vadd.f32 %v3389, %v3390
    %v3392 = vrot.slane %v3391, 2
    %v3393 = vadd.f32 %v3391, %v3392
    %v3394 = vrot.slane %v3393, 1
    %v3395 = vadd.f32 %v3393, %v3394
    %v3396 = vmul.f32 %v3395, %v535
    %v3397 = vsub.f32 %v3381, %v3396
    %v3398 = vsub.f32 %v3382, %v3396
    %v3399 = vsub.f32 %v3383, %v3396
    %v3400 = vsub.f32 %v3384, %v3396
    %v3401 = vmul.f32 %v3397, %v3397
    %v3402 = vmul.f32 %v3398, %v3398
    %v3403 = vmul.f32 %v3399, %v3399
    %v3404 = vmul.f32 %v3400, %v3400
    %v3405 = vadd.f32 %v3401, %v3402
    %v3406 = vadd.f32 %v3405, %v3403
    %v3407 = vadd.f32 %v3406, %v3404
    %v3408 = vrot.slane %v3407, 4
    %v3409 = vadd.f32 %v3407, %v3408
    %v3410 = vrot.slane %v3409, 2
    %v3411 = vadd.f32 %v3409, %v3410
    %v3412 = vrot.slane %v3411, 1
    %v3413 = vadd.f32 %v3411, %v3412
    %v3414 = vmul.f32 %v3413, %v535
    %v3415 = vadd.f32 %v3414, 1e-05
    %v3416 = vrsqrt.pop %v3415
    %v3417 = vmul.f32 %v3416, %v3385
    %v3418 = vlaneseq
    %v3419 = vshrl.u32 %v3418, 7
    %v3420 = vsub.s32 0, %v3419
    %v3421 = vrot.slane %v3417, %v3420
    %v3422 = vmul.f32 %v3397, %v3421
    %v3423 = vmul.f32 %v3398, %v3421
    %v3424 = vmul.f32 %v3399, %v3421
    %v3425 = vmul.f32 %v3400, %v3421
    %v3426 = vlaneseq
    %v3427 = vshrl.u32 %v3426, 7
    %v3428 = vsub.s32 0, %v3427
    %v3429 = vrot.slane %v3386, %v3428
    %v3430 = vadd.f32 %v3422, %v3429
    %v3431 = vadd.f32 %v3423, %v3429
    %v3432 = vadd.f32 %v3424, %v3429
    %v3433 = vadd.f32 %v3425, %v3429
    %v3434 = vmax.f32 %v3430, 0.0
    %v3435 = vmax.f32 %v3431, 0.0
    %v3436 = vmax.f32 %v3432, 0.0
    %v3437 = vmax.f32 %v3433, 0.0
    %v3438 = vpack.c.bf16 %v3435, %v3434
    %v3439 = vpack.c.bf16 %v3437, %v3436
    %s3440 = scalar_lea.vmem %s5, 1152
    %v3441 = vld [vmem:[%s3440] sm:$0xf]
    %v3442 = vld [vmem:[%s3440 + $0x4] sm:$0xf]
    %v3443 = vld [vmem:[%s3440 + $0x8] sm:$0xf]
    %v3444 = vld [vmem:[%s3440 + $0xc] sm:$0xf]
    %v3445 = vld [vmem:[%s3440 + $0x10] sm:$0xf]
    %v3446 = vld [vmem:[%s3440 + $0x14] sm:$0xf]
    %v3447 = vld [vmem:[%s3440 + $0x18] sm:$0xf]
    %v3448 = vld [vmem:[%s3440 + $0x1c] sm:$0xf]
    %v3449 = vld [vmem:[%s3440 + $0x20] sm:$0xf]
    %v3450 = vld [vmem:[%s3440 + $0x24] sm:$0xf]
    %v3451 = vld [vmem:[%s3440 + $0x28] sm:$0xf]
    %v3452 = vld [vmem:[%s3440 + $0x2c] sm:$0xf]
    %v3453 = vld [vmem:[%s3440 + $0x30] sm:$0xf]
    %v3454 = vld [vmem:[%s3440 + $0x34] sm:$0xf]
    %v3455 = vld [vmem:[%s3440 + $0x38] sm:$0xf]
    %v3456 = vld [vmem:[%s3440 + $0x3c] sm:$0xf]
    %v3457 = vld [vmem:[%s3440 + $0x40] sm:$0xf]
    %v3458 = vld [vmem:[%s3440 + $0x44] sm:$0xf]
    %v3459 = vld [vmem:[%s3440 + $0x48] sm:$0xf]
    %v3460 = vld [vmem:[%s3440 + $0x4c] sm:$0xf]
    %v3461 = vld [vmem:[%s3440 + $0x50] sm:$0xf]
    %v3462 = vld [vmem:[%s3440 + $0x54] sm:$0xf]
    %v3463 = vld [vmem:[%s3440 + $0x58] sm:$0xf]
    %v3464 = vld [vmem:[%s3440 + $0x5c] sm:$0xf]
    %v3465 = vld [vmem:[%s3440 + $0x60] sm:$0xf]
    %v3466 = vld [vmem:[%s3440 + $0x64] sm:$0xf]
    %v3467 = vld [vmem:[%s3440 + $0x68] sm:$0xf]
    %v3468 = vld [vmem:[%s3440 + $0x6c] sm:$0xf]
    %v3469 = vld [vmem:[%s3440 + $0x70] sm:$0xf]
    %v3470 = vld [vmem:[%s3440 + $0x74] sm:$0xf]
    %v3471 = vld [vmem:[%s3440 + $0x78] sm:$0xf]
    %v3472 = vld [vmem:[%s3440 + $0x7c] sm:$0xf]
    %v3473 = vld [vmem:[%s3440 + $0x80] sm:$0xf]
    %v3474 = vld [vmem:[%s3440 + $0x84] sm:$0xf]
    %v3475 = vld [vmem:[%s3440 + $0x88] sm:$0xf]
    %v3476 = vld [vmem:[%s3440 + $0x8c] sm:$0xf]
    %v3477 = vld [vmem:[%s3440 + $0x90] sm:$0xf]
    %v3478 = vld [vmem:[%s3440 + $0x94] sm:$0xf]
    %v3479 = vld [vmem:[%s3440 + $0x98] sm:$0xf]
    %v3480 = vld [vmem:[%s3440 + $0x9c] sm:$0xf]
    %v3481 = vld [vmem:[%s3440 + $0xa0] sm:$0xf]
    %v3482 = vld [vmem:[%s3440 + $0xa4] sm:$0xf]
    %v3483 = vld [vmem:[%s3440 + $0xa8] sm:$0xf]
    %v3484 = vld [vmem:[%s3440 + $0xac] sm:$0xf]
    %v3485 = vld [vmem:[%s3440 + $0xb0] sm:$0xf]
    %v3486 = vld [vmem:[%s3440 + $0xb4] sm:$0xf]
    %v3487 = vld [vmem:[%s3440 + $0xb8] sm:$0xf]
    %v3488 = vld [vmem:[%s3440 + $0xbc] sm:$0xf]
    %v3489 = vld [vmem:[%s3440 + $0xc0] sm:$0xf]
    %v3490 = vld [vmem:[%s3440 + $0xc4] sm:$0xf]
    %v3491 = vld [vmem:[%s3440 + $0xc8] sm:$0xf]
    %v3492 = vld [vmem:[%s3440 + $0xcc] sm:$0xf]
    %v3493 = vld [vmem:[%s3440 + $0xd0] sm:$0xf]
    %v3494 = vld [vmem:[%s3440 + $0xd4] sm:$0xf]
    %v3495 = vld [vmem:[%s3440 + $0xd8] sm:$0xf]
    %v3496 = vld [vmem:[%s3440 + $0xdc] sm:$0xf]
    %v3497 = vld [vmem:[%s3440 + $0xe0] sm:$0xf]
    %v3498 = vld [vmem:[%s3440 + $0xe4] sm:$0xf]
    %v3499 = vld [vmem:[%s3440 + $0xe8] sm:$0xf]
    %v3500 = vld [vmem:[%s3440 + $0xec] sm:$0xf]
    %v3501 = vld [vmem:[%s3440 + $0xf0] sm:$0xf]
    %v3502 = vld [vmem:[%s3440 + $0xf4] sm:$0xf]
    %v3503 = vld [vmem:[%s3440 + $0xf8] sm:$0xf]
    %v3504 = vld [vmem:[%s3440 + $0xfc] sm:$0xf]
    %v3505 = vld [vmem:[%s3440 + $0x100] sm:$0xf]
    %v3506 = vld [vmem:[%s3440 + $0x104] sm:$0xf]
    %v3507 = vld [vmem:[%s3440 + $0x108] sm:$0xf]
    %v3508 = vld [vmem:[%s3440 + $0x10c] sm:$0xf]
    %v3509 = vld [vmem:[%s3440 + $0x110] sm:$0xf]
    %v3510 = vld [vmem:[%s3440 + $0x114] sm:$0xf]
    %v3511 = vld [vmem:[%s3440 + $0x118] sm:$0xf]
    %v3512 = vld [vmem:[%s3440 + $0x11c] sm:$0xf]
    %v3513 = vld [vmem:[%s3440 + $0x120] sm:$0xf]
    %v3514 = vld [vmem:[%s3440 + $0x124] sm:$0xf]
    %v3515 = vld [vmem:[%s3440 + $0x128] sm:$0xf]
    %v3516 = vld [vmem:[%s3440 + $0x12c] sm:$0xf]
    %v3517 = vld [vmem:[%s3440 + $0x130] sm:$0xf]
    %v3518 = vld [vmem:[%s3440 + $0x134] sm:$0xf]
    %v3519 = vld [vmem:[%s3440 + $0x138] sm:$0xf]
    %v3520 = vld [vmem:[%s3440 + $0x13c] sm:$0xf]
    %v3521 = vld [vmem:[%s3440 + $0x140] sm:$0xf]
    %v3522 = vld [vmem:[%s3440 + $0x144] sm:$0xf]
    %v3523 = vld [vmem:[%s3440 + $0x148] sm:$0xf]
    %v3524 = vld [vmem:[%s3440 + $0x14c] sm:$0xf]
    %v3525 = vld [vmem:[%s3440 + $0x150] sm:$0xf]
    %v3526 = vld [vmem:[%s3440 + $0x154] sm:$0xf]
    %v3527 = vld [vmem:[%s3440 + $0x158] sm:$0xf]
    %v3528 = vld [vmem:[%s3440 + $0x15c] sm:$0xf]
    %v3529 = vld [vmem:[%s3440 + $0x160] sm:$0xf]
    %v3530 = vld [vmem:[%s3440 + $0x164] sm:$0xf]
    %v3531 = vld [vmem:[%s3440 + $0x168] sm:$0xf]
    %v3532 = vld [vmem:[%s3440 + $0x16c] sm:$0xf]
    %v3533 = vld [vmem:[%s3440 + $0x170] sm:$0xf]
    %v3534 = vld [vmem:[%s3440 + $0x174] sm:$0xf]
    %v3535 = vld [vmem:[%s3440 + $0x178] sm:$0xf]
    %v3536 = vld [vmem:[%s3440 + $0x17c] sm:$0xf]
    %v3537 = vld [vmem:[%s3440 + $0x180] sm:$0xf]
    %v3538 = vld [vmem:[%s3440 + $0x184] sm:$0xf]
    %v3539 = vld [vmem:[%s3440 + $0x188] sm:$0xf]
    %v3540 = vld [vmem:[%s3440 + $0x18c] sm:$0xf]
    %v3541 = vld [vmem:[%s3440 + $0x190] sm:$0xf]
    %v3542 = vld [vmem:[%s3440 + $0x194] sm:$0xf]
    %v3543 = vld [vmem:[%s3440 + $0x198] sm:$0xf]
    %v3544 = vld [vmem:[%s3440 + $0x19c] sm:$0xf]
    %v3545 = vld [vmem:[%s3440 + $0x1a0] sm:$0xf]
    %v3546 = vld [vmem:[%s3440 + $0x1a4] sm:$0xf]
    %v3547 = vld [vmem:[%s3440 + $0x1a8] sm:$0xf]
    %v3548 = vld [vmem:[%s3440 + $0x1ac] sm:$0xf]
    %v3549 = vld [vmem:[%s3440 + $0x1b0] sm:$0xf]
    %v3550 = vld [vmem:[%s3440 + $0x1b4] sm:$0xf]
    %v3551 = vld [vmem:[%s3440 + $0x1b8] sm:$0xf]
    %v3552 = vld [vmem:[%s3440 + $0x1bc] sm:$0xf]
    %v3553 = vld [vmem:[%s3440 + $0x1c0] sm:$0xf]
    %v3554 = vld [vmem:[%s3440 + $0x1c4] sm:$0xf]
    %v3555 = vld [vmem:[%s3440 + $0x1c8] sm:$0xf]
    %v3556 = vld [vmem:[%s3440 + $0x1cc] sm:$0xf]
    %v3557 = vld [vmem:[%s3440 + $0x1d0] sm:$0xf]
    %v3558 = vld [vmem:[%s3440 + $0x1d4] sm:$0xf]
    %v3559 = vld [vmem:[%s3440 + $0x1d8] sm:$0xf]
    %v3560 = vld [vmem:[%s3440 + $0x1dc] sm:$0xf]
    %v3561 = vld [vmem:[%s3440 + $0x1e0] sm:$0xf]
    %v3562 = vld [vmem:[%s3440 + $0x1e4] sm:$0xf]
    %v3563 = vld [vmem:[%s3440 + $0x1e8] sm:$0xf]
    %v3564 = vld [vmem:[%s3440 + $0x1ec] sm:$0xf]
    %v3565 = vld [vmem:[%s3440 + $0x1f0] sm:$0xf]
    %v3566 = vld [vmem:[%s3440 + $0x1f4] sm:$0xf]
    %v3567 = vld [vmem:[%s3440 + $0x1f8] sm:$0xf]
    %v3568 = vld [vmem:[%s3440 + $0x1fc] sm:$0xf]
    %v3569 = vld [vmem:[%s3440 + $0x200] sm:$0xf]
    %v3570 = vld [vmem:[%s3440 + $0x204] sm:$0xf]
    %v3571 = vld [vmem:[%s3440 + $0x208] sm:$0xf]
    %v3572 = vld [vmem:[%s3440 + $0x20c] sm:$0xf]
    %v3573 = vld [vmem:[%s3440 + $0x210] sm:$0xf]
    %v3574 = vld [vmem:[%s3440 + $0x214] sm:$0xf]
    %v3575 = vld [vmem:[%s3440 + $0x218] sm:$0xf]
    %v3576 = vld [vmem:[%s3440 + $0x21c] sm:$0xf]
    %v3577 = vld [vmem:[%s3440 + $0x220] sm:$0xf]
    %v3578 = vld [vmem:[%s3440 + $0x224] sm:$0xf]
    %v3579 = vld [vmem:[%s3440 + $0x228] sm:$0xf]
    %v3580 = vld [vmem:[%s3440 + $0x22c] sm:$0xf]
    %v3581 = vld [vmem:[%s3440 + $0x230] sm:$0xf]
    %v3582 = vld [vmem:[%s3440 + $0x234] sm:$0xf]
    %v3583 = vld [vmem:[%s3440 + $0x238] sm:$0xf]
    %v3584 = vld [vmem:[%s3440 + $0x23c] sm:$0xf]
    %3585 = vmatprep.subr.bf16.mxu0 0
    %3586 = vmatpush1.bf16.msra.mxu0 0
    %3587 = vmatprep.subr.bf16.mxu0 0
    %3588 = vmatpush1.bf16.msra.mxu0 0
    %3589 = vmatprep.subr.bf16.mxu0 0
    %3590 = vmatpush1.bf16.msra.mxu0 0
    %3591 = vmatprep.subr.bf16.mxu0 0
    %3592 = vmatpush1.bf16.msra.mxu0 0
    %3593 = vmatprep.subr.bf16.mxu0 0
    %3594 = vmatpush1.bf16.msra.mxu0 0
    %3595 = vmatprep.subr.bf16.mxu0 0
    %3596 = vmatpush1.bf16.msra.mxu0 0
    %3597 = vmatprep.subr.bf16.mxu0 0
    %3598 = vmatpush1.bf16.msra.mxu0 %v3439
    %3599 = vmatprep.subr.bf16.mxu0 0
    %3600 = vmatpush1.bf16.msra.mxu0 %v3438
    %3601 = vmatprep.subr.bf16.mxu0 0
    %3602 = vmatpush2.bf16.msra.mxu0 0
    %3603 = vmatprep.subr.bf16.mxu0 0
    %3604 = vmatpush2.bf16.msra.mxu0 0
    %3605 = vmatprep.subr.bf16.mxu0 0
    %3606 = vmatpush2.bf16.msra.mxu0 0
    %3607 = vmatprep.subr.bf16.mxu0 0
    %3608 = vmatpush2.bf16.msra.mxu0 0
    %3609 = vmatprep.subr.bf16.mxu0 0
    %3610 = vmatpush2.bf16.msra.mxu0 0
    %3611 = vmatprep.subr.bf16.mxu0 0
    %3612 = vmatpush2.bf16.msra.mxu0 0
    %3613 = vmatprep.subr.bf16.mxu0 0
    %3614 = vmatpush2.bf16.msra.mxu0 0
    %3615 = vmatprep.subr.bf16.mxu0 0
    %3616 = vmatpush2.bf16.msra.mxu0 0
    %3617 = vmatprep.mubr.bf16.mxu0 0
    %3618 = vmatmul.mubr.bf16.gmra.mxu0 %v740
    %v3619 = vpop.f32.mrf.mxu0
    %v3620 = vadd.f32 0.0, %v3619
    %v3621 = vpop.f32.mrf.mxu0
    %v3622 = vpop.f32.mrf.mxu0
    %v3623 = vadd.f32 0.0, %v3622
    %v3624 = vpop.f32.mrf.mxu0
    %3625 = vmatprep.mubr.bf16.mxu0 0
    %3626 = vmatmul.mubr.bf16.gmra.mxu0 %v743
    %v3627 = vpop.f32.mrf.mxu0
    %v3628 = vadd.f32 0.0, %v3627
    %v3629 = vpop.f32.mrf.mxu0
    %v3630 = vpop.f32.mrf.mxu0
    %v3631 = vadd.f32 0.0, %v3630
    %v3632 = vpop.f32.mrf.mxu0
    %3633 = vdwg.mxu0
    %v3634 = vpack.c.bf16 %v3623, %v3620
    %v3635 = vpack.c.bf16 %v3631, %v3628
    %3636 = vmatprep.subr.bf16.mxu0 0
    %3637 = vmatpush1.bf16.msra.mxu0 0
    %3638 = vmatprep.subr.bf16.mxu0 0
    %3639 = vmatpush1.bf16.msra.mxu0 0
    %3640 = vmatprep.subr.bf16.mxu0 0
    %3641 = vmatpush1.bf16.msra.mxu0 0
    %3642 = vmatprep.subr.bf16.mxu0 0
    %3643 = vmatpush1.bf16.msra.mxu0 0
    %3644 = vmatprep.subr.bf16.mxu0 0
    %3645 = vmatpush1.bf16.msra.mxu0 0
    %3646 = vmatprep.subr.bf16.mxu0 0
    %3647 = vmatpush1.bf16.msra.mxu0 0
    %3648 = vmatprep.subr.bf16.mxu0 0
    %3649 = vmatpush1.bf16.msra.mxu0 %v3439
    %3650 = vmatprep.subr.bf16.mxu0 0
    %3651 = vmatpush1.bf16.msra.mxu0 %v3438
    %3652 = vmatprep.subr.bf16.mxu0 0
    %3653 = vmatpush2.bf16.msra.mxu0 0
    %3654 = vmatprep.subr.bf16.mxu0 0
    %3655 = vmatpush2.bf16.msra.mxu0 0
    %3656 = vmatprep.subr.bf16.mxu0 0
    %3657 = vmatpush2.bf16.msra.mxu0 0
    %3658 = vmatprep.subr.bf16.mxu0 0
    %3659 = vmatpush2.bf16.msra.mxu0 0
    %3660 = vmatprep.subr.bf16.mxu0 0
    %3661 = vmatpush2.bf16.msra.mxu0 0
    %3662 = vmatprep.subr.bf16.mxu0 0
    %3663 = vmatpush2.bf16.msra.mxu0 0
    %3664 = vmatprep.subr.bf16.mxu0 0
    %3665 = vmatpush2.bf16.msra.mxu0 0
    %3666 = vmatprep.subr.bf16.mxu0 0
    %3667 = vmatpush2.bf16.msra.mxu0 0
    %3668 = vmatprep.mubr.bf16.mxu0 0
    %3669 = vmatmul.mubr.bf16.gmra.mxu0 %v811
    %v3670 = vpop.f32.mrf.mxu0
    %v3671 = vadd.f32 0.0, %v3670
    %v3672 = vpop.f32.mrf.mxu0
    %v3673 = vpop.f32.mrf.mxu0
    %v3674 = vadd.f32 0.0, %v3673
    %v3675 = vpop.f32.mrf.mxu0
    %3676 = vmatprep.mubr.bf16.mxu0 0
    %3677 = vmatmul.mubr.bf16.gmra.mxu0 %v814
    %v3678 = vpop.f32.mrf.mxu0
    %v3679 = vadd.f32 0.0, %v3678
    %v3680 = vpop.f32.mrf.mxu0
    %v3681 = vpop.f32.mrf.mxu0
    %v3682 = vadd.f32 0.0, %v3681
    %v3683 = vpop.f32.mrf.mxu0
    %3684 = vdwg.mxu0
    %v3685 = vpack.c.bf16 %v3674, %v3671
    %v3686 = vpack.c.bf16 %v3682, %v3679
    %3687 = vmatprep.subr.bf16.mxu0 0
    %3688 = vmatpush1.bf16.msra.mxu0 0
    %3689 = vmatprep.subr.bf16.mxu0 0
    %3690 = vmatpush1.bf16.msra.mxu0 0
    %3691 = vmatprep.subr.bf16.mxu0 0
    %3692 = vmatpush1.bf16.msra.mxu0 0
    %3693 = vmatprep.subr.bf16.mxu0 0
    %3694 = vmatpush1.bf16.msra.mxu0 0
    %3695 = vmatprep.subr.bf16.mxu0 0
    %3696 = vmatpush1.bf16.msra.mxu0 0
    %3697 = vmatprep.subr.bf16.mxu0 0
    %3698 = vmatpush1.bf16.msra.mxu0 0
    %3699 = vmatprep.subr.bf16.mxu0 0
    %3700 = vmatpush1.bf16.msra.mxu0 %v3439
    %3701 = vmatprep.subr.bf16.mxu0 0
    %3702 = vmatpush1.bf16.msra.mxu0 %v3438
    %3703 = vmatprep.subr.bf16.mxu0 0
    %3704 = vmatpush2.bf16.msra.mxu0 0
    %3705 = vmatprep.subr.bf16.mxu0 0
    %3706 = vmatpush2.bf16.msra.mxu0 0
    %3707 = vmatprep.subr.bf16.mxu0 0
    %3708 = vmatpush2.bf16.msra.mxu0 0
    %3709 = vmatprep.subr.bf16.mxu0 0
    %3710 = vmatpush2.bf16.msra.mxu0 0
    %3711 = vmatprep.subr.bf16.mxu0 0
    %3712 = vmatpush2.bf16.msra.mxu0 0
    %3713 = vmatprep.subr.bf16.mxu0 0
    %3714 = vmatpush2.bf16.msra.mxu0 0
    %3715 = vmatprep.subr.bf16.mxu0 0
    %3716 = vmatpush2.bf16.msra.mxu0 0
    %3717 = vmatprep.subr.bf16.mxu0 0
    %3718 = vmatpush2.bf16.msra.mxu0 0
    %3719 = vmatprep.mubr.bf16.mxu0 0
    %3720 = vmatmul.mubr.bf16.gmra.mxu0 %v882
    %v3721 = vpop.f32.mrf.mxu0
    %v3722 = vadd.f32 0.0, %v3721
    %v3723 = vpop.f32.mrf.mxu0
    %v3724 = vpop.f32.mrf.mxu0
    %v3725 = vadd.f32 0.0, %v3724
    %v3726 = vpop.f32.mrf.mxu0
    %3727 = vmatprep.mubr.bf16.mxu0 0
    %3728 = vmatmul.mubr.bf16.gmra.mxu0 %v885
    %v3729 = vpop.f32.mrf.mxu0
    %v3730 = vadd.f32 0.0, %v3729
    %v3731 = vpop.f32.mrf.mxu0
    %v3732 = vpop.f32.mrf.mxu0
    %v3733 = vadd.f32 0.0, %v3732
    %v3734 = vpop.f32.mrf.mxu0
    %3735 = vdwg.mxu0
    %v3736 = vpack.c.bf16 %v3725, %v3722
    %v3737 = vpack.c.bf16 %v3733, %v3730
    %3738 = vmatprep.subr.bf16.mxu0 0
    %3739 = vmatpush1.bf16.msra.mxu0 0
    %3740 = vmatprep.subr.bf16.mxu0 0
    %3741 = vmatpush1.bf16.msra.mxu0 0
    %3742 = vmatprep.subr.bf16.mxu0 0
    %3743 = vmatpush1.bf16.msra.mxu0 0
    %3744 = vmatprep.subr.bf16.mxu0 0
    %3745 = vmatpush1.bf16.msra.mxu0 0
    %3746 = vmatprep.subr.bf16.mxu0 0
    %3747 = vmatpush1.bf16.msra.mxu0 0
    %3748 = vmatprep.subr.bf16.mxu0 0
    %3749 = vmatpush1.bf16.msra.mxu0 0
    %3750 = vmatprep.subr.bf16.mxu0 0
    %3751 = vmatpush1.bf16.msra.mxu0 %v3439
    %3752 = vmatprep.subr.bf16.mxu0 0
    %3753 = vmatpush1.bf16.msra.mxu0 %v3438
    %3754 = vmatprep.subr.bf16.mxu0 0
    %3755 = vmatpush2.bf16.msra.mxu0 0
    %3756 = vmatprep.subr.bf16.mxu0 0
    %3757 = vmatpush2.bf16.msra.mxu0 0
    %3758 = vmatprep.subr.bf16.mxu0 0
    %3759 = vmatpush2.bf16.msra.mxu0 0
    %3760 = vmatprep.subr.bf16.mxu0 0
    %3761 = vmatpush2.bf16.msra.mxu0 0
    %3762 = vmatprep.subr.bf16.mxu0 0
    %3763 = vmatpush2.bf16.msra.mxu0 0
    %3764 = vmatprep.subr.bf16.mxu0 0
    %3765 = vmatpush2.bf16.msra.mxu0 0
    %3766 = vmatprep.subr.bf16.mxu0 0
    %3767 = vmatpush2.bf16.msra.mxu0 0
    %3768 = vmatprep.subr.bf16.mxu0 0
    %3769 = vmatpush2.bf16.msra.mxu0 0
    %3770 = vmatprep.mubr.bf16.mxu0 0
    %3771 = vmatmul.mubr.bf16.gmra.mxu0 %v953
    %v3772 = vpop.f32.mrf.mxu0
    %v3773 = vadd.f32 0.0, %v3772
    %v3774 = vpop.f32.mrf.mxu0
    %v3775 = vpop.f32.mrf.mxu0
    %v3776 = vadd.f32 0.0, %v3775
    %v3777 = vpop.f32.mrf.mxu0
    %3778 = vmatprep.mubr.bf16.mxu0 0
    %3779 = vmatmul.mubr.bf16.gmra.mxu0 %v956
    %v3780 = vpop.f32.mrf.mxu0
    %v3781 = vadd.f32 0.0, %v3780
    %v3782 = vpop.f32.mrf.mxu0
    %v3783 = vpop.f32.mrf.mxu0
    %v3784 = vadd.f32 0.0, %v3783
    %v3785 = vpop.f32.mrf.mxu0
    %3786 = vdwg.mxu0
    %v3787 = vpack.c.bf16 %v3776, %v3773
    %v3788 = vpack.c.bf16 %v3784, %v3781
    %3789 = vmatprep.subr.bf16.mxu0 0
    %3790 = vmatpush1.bf16.msra.mxu0 0
    %3791 = vmatprep.subr.bf16.mxu0 0
    %3792 = vmatpush1.bf16.msra.mxu0 0
    %3793 = vmatprep.subr.bf16.mxu0 0
    %3794 = vmatpush1.bf16.msra.mxu0 0
    %3795 = vmatprep.subr.bf16.mxu0 0
    %3796 = vmatpush1.bf16.msra.mxu0 0
    %3797 = vmatprep.subr.bf16.mxu0 0
    %3798 = vmatpush1.bf16.msra.mxu0 0
    %3799 = vmatprep.subr.bf16.mxu0 0
    %3800 = vmatpush1.bf16.msra.mxu0 0
    %3801 = vmatprep.subr.bf16.mxu0 0
    %3802 = vmatpush1.bf16.msra.mxu0 %v3439
    %3803 = vmatprep.subr.bf16.mxu0 0
    %3804 = vmatpush1.bf16.msra.mxu0 %v3438
    %3805 = vmatprep.subr.bf16.mxu0 0
    %3806 = vmatpush2.bf16.msra.mxu0 0
    %3807 = vmatprep.subr.bf16.mxu0 0
    %3808 = vmatpush2.bf16.msra.mxu0 0
    %3809 = vmatprep.subr.bf16.mxu0 0
    %3810 = vmatpush2.bf16.msra.mxu0 0
    %3811 = vmatprep.subr.bf16.mxu0 0
    %3812 = vmatpush2.bf16.msra.mxu0 0
    %3813 = vmatprep.subr.bf16.mxu0 0
    %3814 = vmatpush2.bf16.msra.mxu0 0
    %3815 = vmatprep.subr.bf16.mxu0 0
    %3816 = vmatpush2.bf16.msra.mxu0 0
    %3817 = vmatprep.subr.bf16.mxu0 0
    %3818 = vmatpush2.bf16.msra.mxu0 0
    %3819 = vmatprep.subr.bf16.mxu0 0
    %3820 = vmatpush2.bf16.msra.mxu0 0
    %3821 = vmatprep.mubr.bf16.mxu0 0
    %3822 = vmatmul.mubr.bf16.gmra.mxu0 %v1024
    %v3823 = vpop.f32.mrf.mxu0
    %v3824 = vadd.f32 0.0, %v3823
    %v3825 = vpop.f32.mrf.mxu0
    %v3826 = vpop.f32.mrf.mxu0
    %v3827 = vadd.f32 0.0, %v3826
    %v3828 = vpop.f32.mrf.mxu0
    %3829 = vmatprep.mubr.bf16.mxu0 0
    %3830 = vmatmul.mubr.bf16.gmra.mxu0 %v1027
    %v3831 = vpop.f32.mrf.mxu0
    %v3832 = vadd.f32 0.0, %v3831
    %v3833 = vpop.f32.mrf.mxu0
    %v3834 = vpop.f32.mrf.mxu0
    %v3835 = vadd.f32 0.0, %v3834
    %v3836 = vpop.f32.mrf.mxu0
    %3837 = vdwg.mxu0
    %v3838 = vpack.c.bf16 %v3827, %v3824
    %v3839 = vpack.c.bf16 %v3835, %v3832
    %3840 = vmatprep.subr.bf16.mxu0 0
    %3841 = vmatpush1.bf16.msra.mxu0 0
    %3842 = vmatprep.subr.bf16.mxu0 0
    %3843 = vmatpush1.bf16.msra.mxu0 0
    %3844 = vmatprep.subr.bf16.mxu0 0
    %3845 = vmatpush1.bf16.msra.mxu0 0
    %3846 = vmatprep.subr.bf16.mxu0 0
    %3847 = vmatpush1.bf16.msra.mxu0 0
    %3848 = vmatprep.subr.bf16.mxu0 0
    %3849 = vmatpush1.bf16.msra.mxu0 0
    %3850 = vmatprep.subr.bf16.mxu0 0
    %3851 = vmatpush1.bf16.msra.mxu0 0
    %3852 = vmatprep.subr.bf16.mxu0 0
    %3853 = vmatpush1.bf16.msra.mxu0 %v3439
    %3854 = vmatprep.subr.bf16.mxu0 0
    %3855 = vmatpush1.bf16.msra.mxu0 %v3438
    %3856 = vmatprep.subr.bf16.mxu0 0
    %3857 = vmatpush2.bf16.msra.mxu0 0
    %3858 = vmatprep.subr.bf16.mxu0 0
    %3859 = vmatpush2.bf16.msra.mxu0 0
    %3860 = vmatprep.subr.bf16.mxu0 0
    %3861 = vmatpush2.bf16.msra.mxu0 0
    %3862 = vmatprep.subr.bf16.mxu0 0
    %3863 = vmatpush2.bf16.msra.mxu0 0
    %3864 = vmatprep.subr.bf16.mxu0 0
    %3865 = vmatpush2.bf16.msra.mxu0 0
    %3866 = vmatprep.subr.bf16.mxu0 0
    %3867 = vmatpush2.bf16.msra.mxu0 0
    %3868 = vmatprep.subr.bf16.mxu0 0
    %3869 = vmatpush2.bf16.msra.mxu0 0
    %3870 = vmatprep.subr.bf16.mxu0 0
    %3871 = vmatpush2.bf16.msra.mxu0 0
    %3872 = vmatprep.mubr.bf16.mxu0 0
    %3873 = vmatmul.mubr.bf16.gmra.mxu0 %v1095
    %v3874 = vpop.f32.mrf.mxu0
    %v3875 = vadd.f32 0.0, %v3874
    %v3876 = vpop.f32.mrf.mxu0
    %v3877 = vpop.f32.mrf.mxu0
    %v3878 = vadd.f32 0.0, %v3877
    %v3879 = vpop.f32.mrf.mxu0
    %3880 = vmatprep.mubr.bf16.mxu0 0
    %3881 = vmatmul.mubr.bf16.gmra.mxu0 %v1098
    %v3882 = vpop.f32.mrf.mxu0
    %v3883 = vadd.f32 0.0, %v3882
    %v3884 = vpop.f32.mrf.mxu0
    %v3885 = vpop.f32.mrf.mxu0
    %v3886 = vadd.f32 0.0, %v3885
    %v3887 = vpop.f32.mrf.mxu0
    %3888 = vdwg.mxu0
    %v3889 = vpack.c.bf16 %v3878, %v3875
    %v3890 = vpack.c.bf16 %v3886, %v3883
    %3891 = vmatprep.subr.bf16.mxu0 0
    %3892 = vmatpush1.bf16.msra.mxu0 0
    %3893 = vmatprep.subr.bf16.mxu0 0
    %3894 = vmatpush1.bf16.msra.mxu0 0
    %3895 = vmatprep.subr.bf16.mxu0 0
    %3896 = vmatpush1.bf16.msra.mxu0 0
    %3897 = vmatprep.subr.bf16.mxu0 0
    %3898 = vmatpush1.bf16.msra.mxu0 0
    %3899 = vmatprep.subr.bf16.mxu0 0
    %3900 = vmatpush1.bf16.msra.mxu0 0
    %3901 = vmatprep.subr.bf16.mxu0 0
    %3902 = vmatpush1.bf16.msra.mxu0 0
    %3903 = vmatprep.subr.bf16.mxu0 0
    %3904 = vmatpush1.bf16.msra.mxu0 %v3439
    %3905 = vmatprep.subr.bf16.mxu0 0
    %3906 = vmatpush1.bf16.msra.mxu0 %v3438
    %3907 = vmatprep.subr.bf16.mxu0 0
    %3908 = vmatpush2.bf16.msra.mxu0 0
    %3909 = vmatprep.subr.bf16.mxu0 0
    %3910 = vmatpush2.bf16.msra.mxu0 0
    %3911 = vmatprep.subr.bf16.mxu0 0
    %3912 = vmatpush2.bf16.msra.mxu0 0
    %3913 = vmatprep.subr.bf16.mxu0 0
    %3914 = vmatpush2.bf16.msra.mxu0 0
    %3915 = vmatprep.subr.bf16.mxu0 0
    %3916 = vmatpush2.bf16.msra.mxu0 0
    %3917 = vmatprep.subr.bf16.mxu0 0
    %3918 = vmatpush2.bf16.msra.mxu0 0
    %3919 = vmatprep.subr.bf16.mxu0 0
    %3920 = vmatpush2.bf16.msra.mxu0 0
    %3921 = vmatprep.subr.bf16.mxu0 0
    %3922 = vmatpush2.bf16.msra.mxu0 0
    %3923 = vmatprep.mubr.bf16.mxu0 0
    %3924 = vmatmul.mubr.bf16.gmra.mxu0 %v1166
    %v3925 = vpop.f32.mrf.mxu0
    %v3926 = vadd.f32 0.0, %v3925
    %v3927 = vpop.f32.mrf.mxu0
    %v3928 = vpop.f32.mrf.mxu0
    %v3929 = vadd.f32 0.0, %v3928
    %v3930 = vpop.f32.mrf.mxu0
    %3931 = vmatprep.mubr.bf16.mxu0 0
    %3932 = vmatmul.mubr.bf16.gmra.mxu0 %v1169
    %v3933 = vpop.f32.mrf.mxu0
    %v3934 = vadd.f32 0.0, %v3933
    %v3935 = vpop.f32.mrf.mxu0
    %v3936 = vpop.f32.mrf.mxu0
    %v3937 = vadd.f32 0.0, %v3936
    %v3938 = vpop.f32.mrf.mxu0
    %3939 = vdwg.mxu0
    %v3940 = vpack.c.bf16 %v3929, %v3926
    %v3941 = vpack.c.bf16 %v3937, %v3934
    %3942 = vmatprep.subr.bf16.mxu0 0
    %3943 = vmatpush1.bf16.msra.mxu0 0
    %3944 = vmatprep.subr.bf16.mxu0 0
    %3945 = vmatpush1.bf16.msra.mxu0 0
    %3946 = vmatprep.subr.bf16.mxu0 0
    %3947 = vmatpush1.bf16.msra.mxu0 0
    %3948 = vmatprep.subr.bf16.mxu0 0
    %3949 = vmatpush1.bf16.msra.mxu0 0
    %3950 = vmatprep.subr.bf16.mxu0 0
    %3951 = vmatpush1.bf16.msra.mxu0 0
    %3952 = vmatprep.subr.bf16.mxu0 0
    %3953 = vmatpush1.bf16.msra.mxu0 0
    %3954 = vmatprep.subr.bf16.mxu0 0
    %3955 = vmatpush1.bf16.msra.mxu0 %v3439
    %3956 = vmatprep.subr.bf16.mxu0 0
    %3957 = vmatpush1.bf16.msra.mxu0 %v3438
    %3958 = vmatprep.subr.bf16.mxu0 0
    %3959 = vmatpush2.bf16.msra.mxu0 0
    %3960 = vmatprep.subr.bf16.mxu0 0
    %3961 = vmatpush2.bf16.msra.mxu0 0
    %3962 = vmatprep.subr.bf16.mxu0 0
    %3963 = vmatpush2.bf16.msra.mxu0 0
    %3964 = vmatprep.subr.bf16.mxu0 0
    %3965 = vmatpush2.bf16.msra.mxu0 0
    %3966 = vmatprep.subr.bf16.mxu0 0
    %3967 = vmatpush2.bf16.msra.mxu0 0
    %3968 = vmatprep.subr.bf16.mxu0 0
    %3969 = vmatpush2.bf16.msra.mxu0 0
    %3970 = vmatprep.subr.bf16.mxu0 0
    %3971 = vmatpush2.bf16.msra.mxu0 0
    %3972 = vmatprep.subr.bf16.mxu0 0
    %3973 = vmatpush2.bf16.msra.mxu0 0
    %3974 = vmatprep.mubr.bf16.mxu0 0
    %3975 = vmatmul.mubr.bf16.gmra.mxu0 %v1237
    %v3976 = vpop.f32.mrf.mxu0
    %v3977 = vadd.f32 0.0, %v3976
    %v3978 = vpop.f32.mrf.mxu0
    %v3979 = vpop.f32.mrf.mxu0
    %v3980 = vadd.f32 0.0, %v3979
    %v3981 = vpop.f32.mrf.mxu0
    %3982 = vmatprep.mubr.bf16.mxu0 0
    %3983 = vmatmul.mubr.bf16.gmra.mxu0 %v1240
    %v3984 = vpop.f32.mrf.mxu0
    %v3985 = vadd.f32 0.0, %v3984
    %v3986 = vpop.f32.mrf.mxu0
    %v3987 = vpop.f32.mrf.mxu0
    %v3988 = vadd.f32 0.0, %v3987
    %v3989 = vpop.f32.mrf.mxu0
    %3990 = vdwg.mxu0
    %v3991 = vpack.c.bf16 %v3980, %v3977
    %v3992 = vpack.c.bf16 %v3988, %v3985
    %3993 = vmatprep.subr.bf16.mxu0 0
    %3994 = vmatpush1.bf16.msra.mxu0 0
    %3995 = vmatprep.subr.bf16.mxu0 0
    %3996 = vmatpush1.bf16.msra.mxu0 0
    %3997 = vmatprep.subr.bf16.mxu0 0
    %3998 = vmatpush1.bf16.msra.mxu0 0
    %3999 = vmatprep.subr.bf16.mxu0 0
    %4000 = vmatpush1.bf16.msra.mxu0 0
    %4001 = vmatprep.subr.bf16.mxu0 0
    %4002 = vmatpush1.bf16.msra.mxu0 0
    %4003 = vmatprep.subr.bf16.mxu0 0
    %4004 = vmatpush1.bf16.msra.mxu0 0
    %4005 = vmatprep.subr.bf16.mxu0 0
    %4006 = vmatpush1.bf16.msra.mxu0 %v3439
    %4007 = vmatprep.subr.bf16.mxu0 0
    %4008 = vmatpush1.bf16.msra.mxu0 %v3438
    %4009 = vmatprep.subr.bf16.mxu0 0
    %4010 = vmatpush2.bf16.msra.mxu0 0
    %4011 = vmatprep.subr.bf16.mxu0 0
    %4012 = vmatpush2.bf16.msra.mxu0 0
    %4013 = vmatprep.subr.bf16.mxu0 0
    %4014 = vmatpush2.bf16.msra.mxu0 0
    %4015 = vmatprep.subr.bf16.mxu0 0
    %4016 = vmatpush2.bf16.msra.mxu0 0
    %4017 = vmatprep.subr.bf16.mxu0 0
    %4018 = vmatpush2.bf16.msra.mxu0 0
    %4019 = vmatprep.subr.bf16.mxu0 0
    %4020 = vmatpush2.bf16.msra.mxu0 0
    %4021 = vmatprep.subr.bf16.mxu0 0
    %4022 = vmatpush2.bf16.msra.mxu0 0
    %4023 = vmatprep.subr.bf16.mxu0 0
    %4024 = vmatpush2.bf16.msra.mxu0 0
    %4025 = vmatprep.mubr.bf16.mxu0 0
    %4026 = vmatmul.mubr.bf16.gmra.mxu0 %v1308
    %v4027 = vpop.f32.mrf.mxu0
    %v4028 = vadd.f32 0.0, %v4027
    %v4029 = vpop.f32.mrf.mxu0
    %v4030 = vpop.f32.mrf.mxu0
    %v4031 = vadd.f32 0.0, %v4030
    %v4032 = vpop.f32.mrf.mxu0
    %4033 = vmatprep.mubr.bf16.mxu0 0
    %4034 = vmatmul.mubr.bf16.gmra.mxu0 %v1311
    %v4035 = vpop.f32.mrf.mxu0
    %v4036 = vadd.f32 0.0, %v4035
    %v4037 = vpop.f32.mrf.mxu0
    %v4038 = vpop.f32.mrf.mxu0
    %v4039 = vadd.f32 0.0, %v4038
    %v4040 = vpop.f32.mrf.mxu0
    %4041 = vdwg.mxu0
    %v4042 = vpack.c.bf16 %v4031, %v4028
    %v4043 = vpack.c.bf16 %v4039, %v4036
    %v4188 = vunpack.c.l.b16 %v3441
    %v4189 = vunpack.c.l.b16 %v3442
    %v4190 = vunpack.c.l.b16 %v3443
    %v4191 = vunpack.c.l.b16 %v3444
    %v4192 = vunpack.c.l.b16 %v3445
    %v4193 = vunpack.c.l.b16 %v3446
    %v4194 = vunpack.c.l.b16 %v3447
    %v4195 = vunpack.c.l.b16 %v3448
    %v4196 = vunpack.c.l.b16 %v3449
    %v4197 = vunpack.c.l.b16 %v3450
    %v4198 = vunpack.c.l.b16 %v3451
    %v4199 = vunpack.c.l.b16 %v3452
    %v4200 = vunpack.c.l.b16 %v3453
    %v4201 = vunpack.c.l.b16 %v3454
    %v4202 = vunpack.c.l.b16 %v3455
    %v4203 = vunpack.c.l.b16 %v3456
    %v4204 = vunpack.c.l.b16 %v3457
    %v4205 = vunpack.c.l.b16 %v3458
    %v4206 = vunpack.c.l.b16 %v3459
    %v4207 = vunpack.c.l.b16 %v3460
    %v4208 = vunpack.c.l.b16 %v3461
    %v4209 = vunpack.c.l.b16 %v3462
    %v4210 = vunpack.c.l.b16 %v3463
    %v4211 = vunpack.c.l.b16 %v3464
    %v4212 = vunpack.c.l.b16 %v3465
    %v4213 = vunpack.c.l.b16 %v3466
    %v4214 = vunpack.c.l.b16 %v3467
    %v4215 = vunpack.c.l.b16 %v3468
    %v4216 = vunpack.c.l.b16 %v3469
    %v4217 = vunpack.c.l.b16 %v3470
    %v4218 = vunpack.c.l.b16 %v3471
    %v4219 = vunpack.c.l.b16 %v3472
    %v4220 = vunpack.c.l.b16 %v3473
    %v4221 = vunpack.c.l.b16 %v3474
    %v4222 = vunpack.c.l.b16 %v3475
    %v4223 = vunpack.c.l.b16 %v3476
    %v4224 = vunpack.c.l.b16 %v3477
    %v4225 = vunpack.c.l.b16 %v3478
    %v4226 = vunpack.c.l.b16 %v3479
    %v4227 = vunpack.c.l.b16 %v3480
    %v4228 = vunpack.c.l.b16 %v3481
    %v4229 = vunpack.c.l.b16 %v3482
    %v4230 = vunpack.c.l.b16 %v3483
    %v4231 = vunpack.c.l.b16 %v3484
    %v4232 = vunpack.c.l.b16 %v3485
    %v4233 = vunpack.c.l.b16 %v3486
    %v4234 = vunpack.c.l.b16 %v3487
    %v4235 = vunpack.c.l.b16 %v3488
    %v4236 = vunpack.c.l.b16 %v3489
    %v4237 = vunpack.c.l.b16 %v3490
    %v4238 = vunpack.c.l.b16 %v3491
    %v4239 = vunpack.c.l.b16 %v3492
    %v4240 = vunpack.c.l.b16 %v3493
    %v4241 = vunpack.c.l.b16 %v3494
    %v4242 = vunpack.c.l.b16 %v3495
    %v4243 = vunpack.c.l.b16 %v3496
    %v4244 = vunpack.c.l.b16 %v3497
    %v4245 = vunpack.c.l.b16 %v3498
    %v4246 = vunpack.c.l.b16 %v3499
    %v4247 = vunpack.c.l.b16 %v3500
    %v4248 = vunpack.c.l.b16 %v3501
    %v4249 = vunpack.c.l.b16 %v3502
    %v4250 = vunpack.c.l.b16 %v3503
    %v4251 = vunpack.c.l.b16 %v3504
    %v4252 = vunpack.c.l.b16 %v3505
    %v4253 = vunpack.c.l.b16 %v3506
    %v4254 = vunpack.c.l.b16 %v3507
    %v4255 = vunpack.c.l.b16 %v3508
    %v4256 = vunpack.c.l.b16 %v3509
    %v4257 = vunpack.c.l.b16 %v3510
    %v4258 = vunpack.c.l.b16 %v3511
    %v4259 = vunpack.c.l.b16 %v3512
    %v4260 = vunpack.c.l.b16 %v3513
    %v4261 = vunpack.c.l.b16 %v3514
    %v4262 = vunpack.c.l.b16 %v3515
    %v4263 = vunpack.c.l.b16 %v3516
    %v4264 = vunpack.c.l.b16 %v3517
    %v4265 = vunpack.c.l.b16 %v3518
    %v4266 = vunpack.c.l.b16 %v3519
    %v4267 = vunpack.c.l.b16 %v3520
    %v4268 = vunpack.c.l.b16 %v3521
    %v4269 = vunpack.c.l.b16 %v3522
    %v4270 = vunpack.c.l.b16 %v3523
    %v4271 = vunpack.c.l.b16 %v3524
    %v4272 = vunpack.c.l.b16 %v3525
    %v4273 = vunpack.c.l.b16 %v3526
    %v4274 = vunpack.c.l.b16 %v3527
    %v4275 = vunpack.c.l.b16 %v3528
    %v4276 = vunpack.c.l.b16 %v3529
    %v4277 = vunpack.c.l.b16 %v3530
    %v4278 = vunpack.c.l.b16 %v3531
    %v4279 = vunpack.c.l.b16 %v3532
    %v4280 = vunpack.c.l.b16 %v3533
    %v4281 = vunpack.c.l.b16 %v3534
    %v4282 = vunpack.c.l.b16 %v3535
    %v4283 = vunpack.c.l.b16 %v3536
    %v4284 = vunpack.c.l.b16 %v3537
    %v4285 = vunpack.c.l.b16 %v3538
    %v4286 = vunpack.c.l.b16 %v3539
    %v4287 = vunpack.c.l.b16 %v3540
    %v4288 = vunpack.c.l.b16 %v3541
    %v4289 = vunpack.c.l.b16 %v3542
    %v4290 = vunpack.c.l.b16 %v3543
    %v4291 = vunpack.c.l.b16 %v3544
    %v4292 = vunpack.c.l.b16 %v3545
    %v4293 = vunpack.c.l.b16 %v3546
    %v4294 = vunpack.c.l.b16 %v3547
    %v4295 = vunpack.c.l.b16 %v3548
    %v4296 = vunpack.c.l.b16 %v3549
    %v4297 = vunpack.c.l.b16 %v3550
    %v4298 = vunpack.c.l.b16 %v3551
    %v4299 = vunpack.c.l.b16 %v3552
    %v4300 = vunpack.c.l.b16 %v3553
    %v4301 = vunpack.c.l.b16 %v3554
    %v4302 = vunpack.c.l.b16 %v3555
    %v4303 = vunpack.c.l.b16 %v3556
    %v4304 = vunpack.c.l.b16 %v3557
    %v4305 = vunpack.c.l.b16 %v3558
    %v4306 = vunpack.c.l.b16 %v3559
    %v4307 = vunpack.c.l.b16 %v3560
    %v4308 = vunpack.c.l.b16 %v3561
    %v4309 = vunpack.c.l.b16 %v3562
    %v4310 = vunpack.c.l.b16 %v3563
    %v4311 = vunpack.c.l.b16 %v3564
    %v4312 = vunpack.c.l.b16 %v3565
    %v4313 = vunpack.c.l.b16 %v3566
    %v4314 = vunpack.c.l.b16 %v3567
    %v4315 = vunpack.c.l.b16 %v3568
    %v4316 = vunpack.c.l.b16 %v3569
    %v4317 = vunpack.c.l.b16 %v3570
    %v4318 = vunpack.c.l.b16 %v3571
    %v4319 = vunpack.c.l.b16 %v3572
    %v4320 = vunpack.c.l.b16 %v3573
    %v4321 = vunpack.c.l.b16 %v3574
    %v4322 = vunpack.c.l.b16 %v3575
    %v4323 = vunpack.c.l.b16 %v3576
    %v4324 = vunpack.c.l.b16 %v3577
    %v4325 = vunpack.c.l.b16 %v3578
    %v4326 = vunpack.c.l.b16 %v3579
    %v4327 = vunpack.c.l.b16 %v3580
    %v4328 = vunpack.c.l.b16 %v3581
    %v4329 = vunpack.c.l.b16 %v3582
    %v4330 = vunpack.c.l.b16 %v3583
    %v4331 = vunpack.c.l.b16 %v3584
    %v4332 = vpack.c.b16 %v4189, %v4188
    %v4333 = vpack.c.b16 %v4191, %v4190
    %v4334 = vpack.c.b16 %v4193, %v4192
    %v4335 = vpack.c.b16 %v4195, %v4194
    %v4336 = vpack.c.b16 %v4197, %v4196
    %v4337 = vpack.c.b16 %v4199, %v4198
    %v4338 = vpack.c.b16 %v4201, %v4200
    %v4339 = vpack.c.b16 %v4203, %v4202
    %v4340 = vpack.c.b16 %v4205, %v4204
    %v4341 = vpack.c.b16 %v4207, %v4206
    %v4342 = vpack.c.b16 %v4209, %v4208
    %v4343 = vpack.c.b16 %v4211, %v4210
    %v4344 = vpack.c.b16 %v4213, %v4212
    %v4345 = vpack.c.b16 %v4215, %v4214
    %v4346 = vpack.c.b16 %v4217, %v4216
    %v4347 = vpack.c.b16 %v4219, %v4218
    %v4348 = vpack.c.b16 %v4221, %v4220
    %v4349 = vpack.c.b16 %v4223, %v4222
    %v4350 = vpack.c.b16 %v4225, %v4224
    %v4351 = vpack.c.b16 %v4227, %v4226
    %v4352 = vpack.c.b16 %v4229, %v4228
    %v4353 = vpack.c.b16 %v4231, %v4230
    %v4354 = vpack.c.b16 %v4233, %v4232
    %v4355 = vpack.c.b16 %v4235, %v4234
    %v4356 = vpack.c.b16 %v4237, %v4236
    %v4357 = vpack.c.b16 %v4239, %v4238
    %v4358 = vpack.c.b16 %v4241, %v4240
    %v4359 = vpack.c.b16 %v4243, %v4242
    %v4360 = vpack.c.b16 %v4245, %v4244
    %v4361 = vpack.c.b16 %v4247, %v4246
    %v4362 = vpack.c.b16 %v4249, %v4248
    %v4363 = vpack.c.b16 %v4251, %v4250
    %v4364 = vpack.c.b16 %v4253, %v4252
    %v4365 = vpack.c.b16 %v4255, %v4254
    %v4366 = vpack.c.b16 %v4257, %v4256
    %v4367 = vpack.c.b16 %v4259, %v4258
    %v4368 = vpack.c.b16 %v4261, %v4260
    %v4369 = vpack.c.b16 %v4263, %v4262
    %v4370 = vpack.c.b16 %v4265, %v4264
    %v4371 = vpack.c.b16 %v4267, %v4266
    %v4372 = vpack.c.b16 %v4269, %v4268
    %v4373 = vpack.c.b16 %v4271, %v4270
    %v4374 = vpack.c.b16 %v4273, %v4272
    %v4375 = vpack.c.b16 %v4275, %v4274
    %v4376 = vpack.c.b16 %v4277, %v4276
    %v4377 = vpack.c.b16 %v4279, %v4278
    %v4378 = vpack.c.b16 %v4281, %v4280
    %v4379 = vpack.c.b16 %v4283, %v4282
    %v4380 = vpack.c.b16 %v4285, %v4284
    %v4381 = vpack.c.b16 %v4287, %v4286
    %v4382 = vpack.c.b16 %v4289, %v4288
    %v4383 = vpack.c.b16 %v4291, %v4290
    %v4384 = vpack.c.b16 %v4293, %v4292
    %v4385 = vpack.c.b16 %v4295, %v4294
    %v4386 = vpack.c.b16 %v4297, %v4296
    %v4387 = vpack.c.b16 %v4299, %v4298
    %v4388 = vpack.c.b16 %v4301, %v4300
    %v4389 = vpack.c.b16 %v4303, %v4302
    %v4390 = vpack.c.b16 %v4305, %v4304
    %v4391 = vpack.c.b16 %v4307, %v4306
    %v4392 = vpack.c.b16 %v4309, %v4308
    %v4393 = vpack.c.b16 %v4311, %v4310
    %v4394 = vpack.c.b16 %v4313, %v4312
    %v4395 = vpack.c.b16 %v4315, %v4314
    %v4396 = vpack.c.b16 %v4317, %v4316
    %v4397 = vpack.c.b16 %v4319, %v4318
    %v4398 = vpack.c.b16 %v4321, %v4320
    %v4399 = vpack.c.b16 %v4323, %v4322
    %v4400 = vpack.c.b16 %v4325, %v4324
    %v4401 = vpack.c.b16 %v4327, %v4326
    %v4402 = vpack.c.b16 %v4329, %v4328
    %v4403 = vpack.c.b16 %v4331, %v4330
    %4476 = vmatprep.subr.bf16.mxu0 0
    %4477 = vmatpush1.bf16.msra.mxu0 %v4339
    %4478 = vmatprep.subr.bf16.mxu0 0
    %4479 = vmatpush1.bf16.msra.mxu0 %v4338
    %4480 = vmatprep.subr.bf16.mxu0 0
    %4481 = vmatpush1.bf16.msra.mxu0 %v4337
    %4482 = vmatprep.subr.bf16.mxu0 0
    %4483 = vmatpush1.bf16.msra.mxu0 %v4336
    %4484 = vmatprep.subr.bf16.mxu0 0
    %4485 = vmatpush1.bf16.msra.mxu0 %v4335
    %4486 = vmatprep.subr.bf16.mxu0 0
    %4487 = vmatpush1.bf16.msra.mxu0 %v4334
    %4488 = vmatprep.subr.bf16.mxu0 0
    %4489 = vmatpush1.bf16.msra.mxu0 %v4333
    %4490 = vmatprep.subr.bf16.mxu0 0
    %4491 = vmatpush1.bf16.msra.mxu0 %v4332
    %4492 = vmatprep.subr.bf16.mxu0 0
    %4493 = vmatpush2.bf16.msra.mxu0 %v4347
    %4494 = vmatprep.subr.bf16.mxu0 0
    %4495 = vmatpush2.bf16.msra.mxu0 %v4346
    %4496 = vmatprep.subr.bf16.mxu0 0
    %4497 = vmatpush2.bf16.msra.mxu0 %v4345
    %4498 = vmatprep.subr.bf16.mxu0 0
    %4499 = vmatpush2.bf16.msra.mxu0 %v4344
    %4500 = vmatprep.subr.bf16.mxu0 0
    %4501 = vmatpush2.bf16.msra.mxu0 %v4343
    %4502 = vmatprep.subr.bf16.mxu0 0
    %4503 = vmatpush2.bf16.msra.mxu0 %v4342
    %4504 = vmatprep.subr.bf16.mxu0 0
    %4505 = vmatpush2.bf16.msra.mxu0 %v4341
    %4506 = vmatprep.subr.bf16.mxu0 0
    %4507 = vmatpush2.bf16.msra.mxu0 %v4340
    %4508 = vmatprep.mubr.bf16.mxu0 %v3685
    %4509 = vmatmul.mubr.bf16.gmra.mxu0 %v3634
    %v4510 = vpop.f32.mrf.mxu0
    %v4511 = vadd.f32 0.0, %v4510
    %v4512 = vpop.f32.mrf.mxu0
    %v4513 = vpop.f32.mrf.mxu0
    %v4514 = vadd.f32 0.0, %v4513
    %v4515 = vpop.f32.mrf.mxu0
    %4516 = vmatprep.mubr.bf16.mxu0 %v3686
    %4517 = vmatmul.mubr.bf16.gmra.mxu0 %v3635
    %v4518 = vpop.f32.mrf.mxu0
    %v4519 = vadd.f32 0.0, %v4518
    %v4520 = vpop.f32.mrf.mxu0
    %v4521 = vpop.f32.mrf.mxu0
    %v4522 = vadd.f32 0.0, %v4521
    %v4523 = vpop.f32.mrf.mxu0
    %4524 = vdwg.mxu0
    %4525 = vmatprep.subr.bf16.mxu0 0
    %4526 = vmatpush1.bf16.msra.mxu0 %v4355
    %4527 = vmatprep.subr.bf16.mxu0 0
    %4528 = vmatpush1.bf16.msra.mxu0 %v4354
    %4529 = vmatprep.subr.bf16.mxu0 0
    %4530 = vmatpush1.bf16.msra.mxu0 %v4353
    %4531 = vmatprep.subr.bf16.mxu0 0
    %4532 = vmatpush1.bf16.msra.mxu0 %v4352
    %4533 = vmatprep.subr.bf16.mxu0 0
    %4534 = vmatpush1.bf16.msra.mxu0 %v4351
    %4535 = vmatprep.subr.bf16.mxu0 0
    %4536 = vmatpush1.bf16.msra.mxu0 %v4350
    %4537 = vmatprep.subr.bf16.mxu0 0
    %4538 = vmatpush1.bf16.msra.mxu0 %v4349
    %4539 = vmatprep.subr.bf16.mxu0 0
    %4540 = vmatpush1.bf16.msra.mxu0 %v4348
    %4541 = vmatprep.subr.bf16.mxu0 0
    %4542 = vmatpush2.bf16.msra.mxu0 %v4363
    %4543 = vmatprep.subr.bf16.mxu0 0
    %4544 = vmatpush2.bf16.msra.mxu0 %v4362
    %4545 = vmatprep.subr.bf16.mxu0 0
    %4546 = vmatpush2.bf16.msra.mxu0 %v4361
    %4547 = vmatprep.subr.bf16.mxu0 0
    %4548 = vmatpush2.bf16.msra.mxu0 %v4360
    %4549 = vmatprep.subr.bf16.mxu0 0
    %4550 = vmatpush2.bf16.msra.mxu0 %v4359
    %4551 = vmatprep.subr.bf16.mxu0 0
    %4552 = vmatpush2.bf16.msra.mxu0 %v4358
    %4553 = vmatprep.subr.bf16.mxu0 0
    %4554 = vmatpush2.bf16.msra.mxu0 %v4357
    %4555 = vmatprep.subr.bf16.mxu0 0
    %4556 = vmatpush2.bf16.msra.mxu0 %v4356
    %4557 = vmatprep.mubr.bf16.mxu0 %v3787
    %4558 = vmatmul.mubr.bf16.gmra.mxu0 %v3736
    %v4559 = vpop.f32.mrf.mxu0
    %v4560 = vadd.f32 %v4511, %v4559
    %v4561 = vpop.f32.mrf.mxu0
    %v4562 = vpop.f32.mrf.mxu0
    %v4563 = vadd.f32 %v4514, %v4562
    %v4564 = vpop.f32.mrf.mxu0
    %4565 = vmatprep.mubr.bf16.mxu0 %v3788
    %4566 = vmatmul.mubr.bf16.gmra.mxu0 %v3737
    %v4567 = vpop.f32.mrf.mxu0
    %v4568 = vadd.f32 %v4519, %v4567
    %v4569 = vpop.f32.mrf.mxu0
    %v4570 = vpop.f32.mrf.mxu0
    %v4571 = vadd.f32 %v4522, %v4570
    %v4572 = vpop.f32.mrf.mxu0
    %4573 = vdwg.mxu0
    %4574 = vmatprep.subr.bf16.mxu0 0
    %4575 = vmatpush1.bf16.msra.mxu0 %v4371
    %4576 = vmatprep.subr.bf16.mxu0 0
    %4577 = vmatpush1.bf16.msra.mxu0 %v4370
    %4578 = vmatprep.subr.bf16.mxu0 0
    %4579 = vmatpush1.bf16.msra.mxu0 %v4369
    %4580 = vmatprep.subr.bf16.mxu0 0
    %4581 = vmatpush1.bf16.msra.mxu0 %v4368
    %4582 = vmatprep.subr.bf16.mxu0 0
    %4583 = vmatpush1.bf16.msra.mxu0 %v4367
    %4584 = vmatprep.subr.bf16.mxu0 0
    %4585 = vmatpush1.bf16.msra.mxu0 %v4366
    %4586 = vmatprep.subr.bf16.mxu0 0
    %4587 = vmatpush1.bf16.msra.mxu0 %v4365
    %4588 = vmatprep.subr.bf16.mxu0 0
    %4589 = vmatpush1.bf16.msra.mxu0 %v4364
    %4590 = vmatprep.subr.bf16.mxu0 0
    %4591 = vmatpush2.bf16.msra.mxu0 %v4379
    %4592 = vmatprep.subr.bf16.mxu0 0
    %4593 = vmatpush2.bf16.msra.mxu0 %v4378
    %4594 = vmatprep.subr.bf16.mxu0 0
    %4595 = vmatpush2.bf16.msra.mxu0 %v4377
    %4596 = vmatprep.subr.bf16.mxu0 0
    %4597 = vmatpush2.bf16.msra.mxu0 %v4376
    %4598 = vmatprep.subr.bf16.mxu0 0
    %4599 = vmatpush2.bf16.msra.mxu0 %v4375
    %4600 = vmatprep.subr.bf16.mxu0 0
    %4601 = vmatpush2.bf16.msra.mxu0 %v4374
    %4602 = vmatprep.subr.bf16.mxu0 0
    %4603 = vmatpush2.bf16.msra.mxu0 %v4373
    %4604 = vmatprep.subr.bf16.mxu0 0
    %4605 = vmatpush2.bf16.msra.mxu0 %v4372
    %4606 = vmatprep.mubr.bf16.mxu0 %v3889
    %4607 = vmatmul.mubr.bf16.gmra.mxu0 %v3838
    %v4608 = vpop.f32.mrf.mxu0
    %v4609 = vadd.f32 %v4560, %v4608
    %v4610 = vpop.f32.mrf.mxu0
    %v4611 = vpop.f32.mrf.mxu0
    %v4612 = vadd.f32 %v4563, %v4611
    %v4613 = vpop.f32.mrf.mxu0
    %4614 = vmatprep.mubr.bf16.mxu0 %v3890
    %4615 = vmatmul.mubr.bf16.gmra.mxu0 %v3839
    %v4616 = vpop.f32.mrf.mxu0
    %v4617 = vadd.f32 %v4568, %v4616
    %v4618 = vpop.f32.mrf.mxu0
    %v4619 = vpop.f32.mrf.mxu0
    %v4620 = vadd.f32 %v4571, %v4619
    %v4621 = vpop.f32.mrf.mxu0
    %4622 = vdwg.mxu0
    %4623 = vmatprep.subr.bf16.mxu0 0
    %4624 = vmatpush1.bf16.msra.mxu0 %v4387
    %4625 = vmatprep.subr.bf16.mxu0 0
    %4626 = vmatpush1.bf16.msra.mxu0 %v4386
    %4627 = vmatprep.subr.bf16.mxu0 0
    %4628 = vmatpush1.bf16.msra.mxu0 %v4385
    %4629 = vmatprep.subr.bf16.mxu0 0
    %4630 = vmatpush1.bf16.msra.mxu0 %v4384
    %4631 = vmatprep.subr.bf16.mxu0 0
    %4632 = vmatpush1.bf16.msra.mxu0 %v4383
    %4633 = vmatprep.subr.bf16.mxu0 0
    %4634 = vmatpush1.bf16.msra.mxu0 %v4382
    %4635 = vmatprep.subr.bf16.mxu0 0
    %4636 = vmatpush1.bf16.msra.mxu0 %v4381
    %4637 = vmatprep.subr.bf16.mxu0 0
    %4638 = vmatpush1.bf16.msra.mxu0 %v4380
    %4639 = vmatprep.subr.bf16.mxu0 0
    %4640 = vmatpush2.bf16.msra.mxu0 %v4395
    %4641 = vmatprep.subr.bf16.mxu0 0
    %4642 = vmatpush2.bf16.msra.mxu0 %v4394
    %4643 = vmatprep.subr.bf16.mxu0 0
    %4644 = vmatpush2.bf16.msra.mxu0 %v4393
    %4645 = vmatprep.subr.bf16.mxu0 0
    %4646 = vmatpush2.bf16.msra.mxu0 %v4392
    %4647 = vmatprep.subr.bf16.mxu0 0
    %4648 = vmatpush2.bf16.msra.mxu0 %v4391
    %4649 = vmatprep.subr.bf16.mxu0 0
    %4650 = vmatpush2.bf16.msra.mxu0 %v4390
    %4651 = vmatprep.subr.bf16.mxu0 0
    %4652 = vmatpush2.bf16.msra.mxu0 %v4389
    %4653 = vmatprep.subr.bf16.mxu0 0
    %4654 = vmatpush2.bf16.msra.mxu0 %v4388
    %4655 = vmatprep.mubr.bf16.mxu0 %v3991
    %4656 = vmatmul.mubr.bf16.gmra.mxu0 %v3940
    %v4657 = vpop.f32.mrf.mxu0
    %v4658 = vadd.f32 %v4609, %v4657
    %v4659 = vpop.f32.mrf.mxu0
    %v4660 = vpop.f32.mrf.mxu0
    %v4661 = vadd.f32 %v4612, %v4660
    %v4662 = vpop.f32.mrf.mxu0
    %4663 = vmatprep.mubr.bf16.mxu0 %v3992
    %4664 = vmatmul.mubr.bf16.gmra.mxu0 %v3941
    %v4665 = vpop.f32.mrf.mxu0
    %v4666 = vadd.f32 %v4617, %v4665
    %v4667 = vpop.f32.mrf.mxu0
    %v4668 = vpop.f32.mrf.mxu0
    %v4669 = vadd.f32 %v4620, %v4668
    %v4670 = vpop.f32.mrf.mxu0
    %4671 = vdwg.mxu0
    %4672 = vmatprep.subr.bf16.mxu0 0
    %4673 = vmatpush1.bf16.msra.mxu0 %v4403
    %4674 = vmatprep.subr.bf16.mxu0 0
    %4675 = vmatpush1.bf16.msra.mxu0 %v4402
    %4676 = vmatprep.subr.bf16.mxu0 0
    %4677 = vmatpush1.bf16.msra.mxu0 %v4401
    %4678 = vmatprep.subr.bf16.mxu0 0
    %4679 = vmatpush1.bf16.msra.mxu0 %v4400
    %4680 = vmatprep.subr.bf16.mxu0 0
    %4681 = vmatpush1.bf16.msra.mxu0 %v4399
    %4682 = vmatprep.subr.bf16.mxu0 0
    %4683 = vmatpush1.bf16.msra.mxu0 %v4398
    %4684 = vmatprep.subr.bf16.mxu0 0
    %4685 = vmatpush1.bf16.msra.mxu0 %v4397
    %4686 = vmatprep.subr.bf16.mxu0 0
    %4687 = vmatpush1.bf16.msra.mxu0 %v4396
    %4688 = vmatprep.subr.bf16.mxu0 0
    %4689 = vmatpush2.bf16.msra.mxu0 0
    %4690 = vmatprep.subr.bf16.mxu0 0
    %4691 = vmatpush2.bf16.msra.mxu0 0
    %4692 = vmatprep.subr.bf16.mxu0 0
    %4693 = vmatpush2.bf16.msra.mxu0 0
    %4694 = vmatprep.subr.bf16.mxu0 0
    %4695 = vmatpush2.bf16.msra.mxu0 0
    %4696 = vmatprep.subr.bf16.mxu0 0
    %4697 = vmatpush2.bf16.msra.mxu0 0
    %4698 = vmatprep.subr.bf16.mxu0 0
    %4699 = vmatpush2.bf16.msra.mxu0 0
    %4700 = vmatprep.subr.bf16.mxu0 0
    %4701 = vmatpush2.bf16.msra.mxu0 0
    %4702 = vmatprep.subr.bf16.mxu0 0
    %4703 = vmatpush2.bf16.msra.mxu0 0
    %4704 = vmatprep.mubr.bf16.mxu0 0
    %4705 = vmatmul.mubr.bf16.gmra.mxu0 %v4042
    %v4706 = vpop.f32.mrf.mxu0
    %v4707 = vadd.f32 %v4658, %v4706
    %v4708 = vpop.f32.mrf.mxu0
    %v4709 = vpop.f32.mrf.mxu0
    %v4710 = vadd.f32 %v4661, %v4709
    %v4711 = vpop.f32.mrf.mxu0
    %4712 = vmatprep.mubr.bf16.mxu0 0
    %4713 = vmatmul.mubr.bf16.gmra.mxu0 %v4043
    %v4714 = vpop.f32.mrf.mxu0
    %v4715 = vadd.f32 %v4666, %v4714
    %v4716 = vpop.f32.mrf.mxu0
    %v4717 = vpop.f32.mrf.mxu0
    %v4718 = vadd.f32 %v4669, %v4717
    %v4719 = vpop.f32.mrf.mxu0
    %4720 = vdwg.mxu0
    %v4721 = vadd.f32 %v3381, %v4707
    %v4722 = vadd.f32 %v3382, %v4710
    %v4723 = vadd.f32 %v3383, %v4715
    %v4724 = vadd.f32 %v3384, %v4718
    %v4725 = vld [vmem:[%s6] sm:$0x1]
    %v4726 = vld [vmem:[%s7] sm:$0x1]
    %v4727 = vadd.f32 %v4721, %v4722
    %v4728 = vadd.f32 %v4727, %v4723
    %v4729 = vadd.f32 %v4728, %v4724
    %v4730 = vrot.slane %v4729, 4
    %v4731 = vadd.f32 %v4729, %v4730
    %v4732 = vrot.slane %v4731, 2
    %v4733 = vadd.f32 %v4731, %v4732
    %v4734 = vrot.slane %v4733, 1
    %v4735 = vadd.f32 %v4733, %v4734
    %v4736 = vmul.f32 %v4735, %v535
    %v4737 = vsub.f32 %v4721, %v4736
    %v4738 = vsub.f32 %v4722, %v4736
    %v4739 = vsub.f32 %v4723, %v4736
    %v4740 = vsub.f32 %v4724, %v4736
    %v4741 = vmul.f32 %v4737, %v4737
    %v4742 = vmul.f32 %v4738, %v4738
    %v4743 = vmul.f32 %v4739, %v4739
    %v4744 = vmul.f32 %v4740, %v4740
    %v4745 = vadd.f32 %v4741, %v4742
    %v4746 = vadd.f32 %v4745, %v4743
    %v4747 = vadd.f32 %v4746, %v4744
    %v4748 = vrot.slane %v4747, 4
    %v4749 = vadd.f32 %v4747, %v4748
    %v4750 = vrot.slane %v4749, 2
    %v4751 = vadd.f32 %v4749, %v4750
    %v4752 = vrot.slane %v4751, 1
    %v4753 = vadd.f32 %v4751, %v4752
    %v4754 = vmul.f32 %v4753, %v535
    %v4755 = vadd.f32 %v4754, 1e-05
    %v4756 = vrsqrt.pop %v4755
    %v4757 = vmul.f32 %v4756, %v4725
    %v4758 = vlaneseq
    %v4759 = vshrl.u32 %v4758, 7
    %v4760 = vsub.s32 0, %v4759
    %v4761 = vrot.slane %v4757, %v4760
    %v4762 = vmul.f32 %v4737, %v4761
    %v4763 = vmul.f32 %v4738, %v4761
    %v4764 = vmul.f32 %v4739, %v4761
    %v4765 = vmul.f32 %v4740, %v4761
    %v4767 = vlaneseq
    %v4768 = vshrl.u32 %v4767, 7
    %v4769 = vsub.s32 0, %v4768
    %v4770 = vrot.slane %v4726, %v4769
    %v4772 = vadd.f32 %v4762, %v4770
    %v4773 = vadd.f32 %v4763, %v4770
    %v4774 = vadd.f32 %v4764, %v4770
    %v4775 = vadd.f32 %v4765, %v4770
    %v4776 = vmax.f32 %v4772, 0.0
    %v4777 = vmax.f32 %v4773, 0.0
    %v4778 = vmax.f32 %v4774, 0.0
    %v4779 = vmax.f32 %v4775, 0.0
    %v4780 = vpack.c.bf16 %v4777, %v4776
    %v4781 = vpack.c.bf16 %v4779, %v4778
    %v4782 = vld [vmem:[%s9] sm:$0xf]
    %v4783 = vld [vmem:[%s9 + $0x4] sm:$0xf]
    %v4784 = vld [vmem:[%s9 + $0x8] sm:$0xf]
    %v4785 = vld [vmem:[%s9 + $0xc] sm:$0xf]
    %v4786 = vld [vmem:[%s9 + $0x10] sm:$0xf]
    %v4787 = vld [vmem:[%s9 + $0x14] sm:$0xf]
    %v4788 = vld [vmem:[%s9 + $0x18] sm:$0xf]
    %v4789 = vld [vmem:[%s9 + $0x1c] sm:$0xf]
    %v4790 = vld [vmem:[%s9 + $0x20] sm:$0xf]
    %v4791 = vld [vmem:[%s9 + $0x24] sm:$0xf]
    %v4792 = vld [vmem:[%s9 + $0x28] sm:$0xf]
    %v4793 = vld [vmem:[%s9 + $0x2c] sm:$0xf]
    %v4794 = vld [vmem:[%s9 + $0x30] sm:$0xf]
    %v4795 = vld [vmem:[%s9 + $0x34] sm:$0xf]
    %v4796 = vld [vmem:[%s9 + $0x38] sm:$0xf]
    %v4797 = vld [vmem:[%s9 + $0x3c] sm:$0xf]
    %v4814 = vunpack.c.l.b16 %v4782
    %v4815 = vunpack.c.l.b16 %v4783
    %v4816 = vunpack.c.l.b16 %v4784
    %v4817 = vunpack.c.l.b16 %v4785
    %v4818 = vunpack.c.l.b16 %v4786
    %v4819 = vunpack.c.l.b16 %v4787
    %v4820 = vunpack.c.l.b16 %v4788
    %v4821 = vunpack.c.l.b16 %v4789
    %v4822 = vunpack.c.l.b16 %v4790
    %v4823 = vunpack.c.l.b16 %v4791
    %v4824 = vunpack.c.l.b16 %v4792
    %v4825 = vunpack.c.l.b16 %v4793
    %v4826 = vunpack.c.l.b16 %v4794
    %v4827 = vunpack.c.l.b16 %v4795
    %v4828 = vunpack.c.l.b16 %v4796
    %v4829 = vunpack.c.l.b16 %v4797
    %v4830 = vpack.c.b16 %v4815, %v4814
    %v4831 = vpack.c.b16 %v4817, %v4816
    %v4832 = vpack.c.b16 %v4819, %v4818
    %v4833 = vpack.c.b16 %v4821, %v4820
    %v4834 = vpack.c.b16 %v4823, %v4822
    %v4835 = vpack.c.b16 %v4825, %v4824
    %v4836 = vpack.c.b16 %v4827, %v4826
    %v4837 = vpack.c.b16 %v4829, %v4828
    %4846 = vmatprep.subr.bf16.mxu0 0
    %4847 = vmatpush1.bf16.msra.mxu0 %v4837
    %4848 = vmatprep.subr.bf16.mxu0 0
    %4849 = vmatpush1.bf16.msra.mxu0 %v4836
    %4850 = vmatprep.subr.bf16.mxu0 0
    %4851 = vmatpush1.bf16.msra.mxu0 %v4835
    %4852 = vmatprep.subr.bf16.mxu0 0
    %4853 = vmatpush1.bf16.msra.mxu0 %v4834
    %4854 = vmatprep.subr.bf16.mxu0 0
    %4855 = vmatpush1.bf16.msra.mxu0 %v4833
    %4856 = vmatprep.subr.bf16.mxu0 0
    %4857 = vmatpush1.bf16.msra.mxu0 %v4832
    %4858 = vmatprep.subr.bf16.mxu0 0
    %4859 = vmatpush1.bf16.msra.mxu0 %v4831
    %4860 = vmatprep.subr.bf16.mxu0 0
    %4861 = vmatpush1.bf16.msra.mxu0 %v4830
    %4862 = vmatprep.subr.bf16.mxu0 0
    %4863 = vmatpush2.bf16.msra.mxu0 0
    %4864 = vmatprep.subr.bf16.mxu0 0
    %4865 = vmatpush2.bf16.msra.mxu0 0
    %4866 = vmatprep.subr.bf16.mxu0 0
    %4867 = vmatpush2.bf16.msra.mxu0 0
    %4868 = vmatprep.subr.bf16.mxu0 0
    %4869 = vmatpush2.bf16.msra.mxu0 0
    %4870 = vmatprep.subr.bf16.mxu0 0
    %4871 = vmatpush2.bf16.msra.mxu0 0
    %4872 = vmatprep.subr.bf16.mxu0 0
    %4873 = vmatpush2.bf16.msra.mxu0 0
    %4874 = vmatprep.subr.bf16.mxu0 0
    %4875 = vmatpush2.bf16.msra.mxu0 0
    %4876 = vmatprep.subr.bf16.mxu0 0
    %4877 = vmatpush2.bf16.msra.mxu0 0
    %4878 = vmatprep.mubr.bf16.mxu0 0
    %4879 = vmatmul.mubr.bf16.gmra.mxu0 %v4780
    %v4880 = vpop.f32.mrf.mxu0
    %v4881 = vadd.f32 0.0, %v4880
    %v4882 = vpop.f32.mrf.mxu0
    %v4883 = vpop.f32.mrf.mxu0
    %v4884 = vadd.f32 0.0, %v4883
    %v4885 = vpop.f32.mrf.mxu0
    %4886 = vmatprep.mubr.bf16.mxu0 0
    %4887 = vmatmul.mubr.bf16.gmra.mxu0 %v4781
    %v4888 = vpop.f32.mrf.mxu0
    %v4889 = vadd.f32 0.0, %v4888
    %v4890 = vpop.f32.mrf.mxu0
    %v4891 = vpop.f32.mrf.mxu0
    %v4892 = vadd.f32 0.0, %v4891
    %v4893 = vpop.f32.mrf.mxu0
    %4894 = vdwg.mxu0
    %v4895 = vld [vmem:[%s8] sm:$0xf]
    %v4896 = vpack.c.bf16 %v4884, %v4881
    %v4897 = vpack.c.bf16 %v4892, %v4889
    %v4899 = vsel %vm738, %v4895, 0
    %4901 = vmatprep.subr.bf16.mxu0 0
    %4902 = vmatpush1.bf16.msra.mxu0 0
    %4903 = vmatprep.subr.bf16.mxu0 0
    %4904 = vmatpush1.bf16.msra.mxu0 0
    %4905 = vmatprep.subr.bf16.mxu0 0
    %4906 = vmatpush1.bf16.msra.mxu0 0
    %4907 = vmatprep.subr.bf16.mxu0 0
    %4908 = vmatpush1.bf16.msra.mxu0 0
    %4909 = vmatprep.subr.bf16.mxu0 0
    %4910 = vmatpush1.bf16.msra.mxu0 0
    %4911 = vmatprep.subr.bf16.mxu0 0
    %4912 = vmatpush1.bf16.msra.mxu0 0
    %4913 = vmatprep.subr.bf16.mxu0 0
    %4914 = vmatpush1.bf16.msra.mxu0 %v4897
    %4915 = vmatprep.subr.bf16.mxu0 0
    %4916 = vmatpush1.bf16.msra.mxu0 %v4896
    %4917 = vmatprep.subr.bf16.mxu0 0
    %4918 = vmatpush2.bf16.msra.mxu0 0
    %4919 = vmatprep.subr.bf16.mxu0 0
    %4920 = vmatpush2.bf16.msra.mxu0 0
    %4921 = vmatprep.subr.bf16.mxu0 0
    %4922 = vmatpush2.bf16.msra.mxu0 0
    %4923 = vmatprep.subr.bf16.mxu0 0
    %4924 = vmatpush2.bf16.msra.mxu0 0
    %4925 = vmatprep.subr.bf16.mxu0 0
    %4926 = vmatpush2.bf16.msra.mxu0 0
    %4927 = vmatprep.subr.bf16.mxu0 0
    %4928 = vmatpush2.bf16.msra.mxu0 0
    %4929 = vmatprep.subr.bf16.mxu0 0
    %4930 = vmatpush2.bf16.msra.mxu0 0
    %4931 = vmatprep.subr.bf16.mxu0 0
    %4932 = vmatpush2.bf16.msra.mxu0 0
    %4933 = vmatprep.mubr.bf16.mxu0 0
    %4934 = vmatmul.mubr.bf16.gmra.mxu0 %v4899
    %v4935 = vpop.f32.mrf.mxu0
    %v4936 = vadd.f32 0.0, %v4935
    %v4937 = vpop.f32.mrf.mxu0
    %v4938 = vpop.f32.mrf.mxu0
    %v4939 = vpop.f32.mrf.mxu0
    %4940 = vdwg.mxu0
    %v4941 = vld [vmem:[%s11] ss:$4 sm:$0x3]
    %v4942 = vld [vmem:[%s12] ss:$4 sm:$0x3]
    %v4943 = vrot.slane %v4936, 4
    %v4944 = vadd.f32 %v4936, %v4943
    %v4945 = vrot.slane %v4944, 2
    %v4946 = vadd.f32 %v4944, %v4945
    %v4947 = vrot.slane %v4946, 1
    %v4948 = vadd.f32 %v4946, %v4947
    %v4949 = vrcp.pop 8.0
    %v4950 = vmul.f32 %v4948, %v4949
    %v4951 = vmul.f32 0.0, %v4949
    %v4952 = vsub.f32 %v4936, %v4950
    %v4953 = vsub.f32 0.0, %v4951
    %v4954 = vmul.f32 %v4952, %v4952
    %v4955 = vmul.f32 %v4953, %v4953
    %v4956 = vrot.slane %v4954, 4
    %v4957 = vadd.f32 %v4954, %v4956
    %v4958 = vrot.slane %v4957, 2
    %v4959 = vadd.f32 %v4957, %v4958
    %v4960 = vrot.slane %v4959, 1
    %v4961 = vadd.f32 %v4959, %v4960
    %v4962 = vrot.slane %v4955, 4
    %v4963 = vadd.f32 %v4955, %v4962
    %v4964 = vrot.slane %v4963, 2
    %v4965 = vadd.f32 %v4963, %v4964
    %v4966 = vrot.slane %v4965, 1
    %v4967 = vadd.f32 %v4965, %v4966
    %v4968 = vmul.f32 %v4961, %v4949
    %v4969 = vmul.f32 %v4967, %v4949
    %v4970 = vadd.f32 %v4968, 1e-05
    %v4971 = vadd.f32 %v4969, 1e-05
    %v4972 = vrsqrt.pop %v4970
    %v4973 = vrsqrt.pop %v4971
    %v4975 = vlaneseq
    %v4976 = vshrl.u32 %v4975, 7
    %v4977 = vsub.s32 0, %v4976
    %v4978 = vrot.slane %v4941, %v4977
    %v4979 = vlaneseq
    %v4980 = vshrl.u32 %v4979, 7
    %v4981 = vsub.s32 1, %v4980
    %v4982 = vrot.slane %v4941, %v4981
    %v4985 = vmul.f32 %v4972, %v4978
    %v4986 = vmul.f32 %v4973, %v4982
    %v4987 = vlaneseq
    %v4988 = vshrl.u32 %v4987, 7
    %v4989 = vsub.s32 0, %v4988
    %v4990 = vrot.slane %v4985, %v4989
    %v4991 = vlaneseq
    %v4992 = vshrl.u32 %v4991, 7
    %v4993 = vsub.s32 0, %v4992
    %v4994 = vrot.slane %v4986, %v4993
    %v4995 = vmul.f32 %v4952, %v4990
    %v4996 = vmul.f32 %v4953, %v4994
    %v4998 = vlaneseq
    %v4999 = vshrl.u32 %v4998, 7
    %v5000 = vsub.s32 0, %v4999
    %v5001 = vrot.slane %v4942, %v5000
    %v5002 = vlaneseq
    %v5003 = vshrl.u32 %v5002, 7
    %v5004 = vsub.s32 1, %v5003
    %v5005 = vrot.slane %v4942, %v5004
    %v5008 = vadd.f32 %v4995, %v5001
    %v5009 = vadd.f32 %v4996, %v5005
    %v5010 = vmax.f32 %v5008, 0.0
    %v5011 = vmax.f32 %v5009, 0.0
    %v5012 = vpack.c.bf16 %v5010, %v5010
    %v5013 = vpack.c.bf16 %v5011, %v5011
    %v5014 = vld [vmem:[%s13] sm:$0xf]
    %v5015 = vld [vmem:[%s13 + $0x4] sm:$0xf]
    %v5016 = vld [vmem:[%s13 + $0x8] sm:$0xf]
    %v5017 = vld [vmem:[%s13 + $0xc] sm:$0xf]
    %v5018 = vld [vmem:[%s13 + $0x10] sm:$0xf]
    %v5019 = vld [vmem:[%s13 + $0x14] sm:$0xf]
    %v5020 = vld [vmem:[%s13 + $0x18] sm:$0xf]
    %v5021 = vld [vmem:[%s13 + $0x1c] sm:$0xf]
    %v5022 = vld [vmem:[%s13 + $0x20] sm:$0xf]
    %v5023 = vld [vmem:[%s13 + $0x24] sm:$0xf]
    %v5024 = vld [vmem:[%s13 + $0x28] sm:$0xf]
    %v5025 = vld [vmem:[%s13 + $0x2c] sm:$0xf]
    %v5026 = vld [vmem:[%s13 + $0x30] sm:$0xf]
    %v5027 = vld [vmem:[%s13 + $0x34] sm:$0xf]
    %v5028 = vld [vmem:[%s13 + $0x38] sm:$0xf]
    %v5029 = vld [vmem:[%s13 + $0x3c] sm:$0xf]
    %v5030 = vld [vmem:[%s13 + $0x40] sm:$0xf]
    %v5031 = vld [vmem:[%s13 + $0x44] sm:$0xf]
    %v5032 = vld [vmem:[%s13 + $0x48] sm:$0xf]
    %v5033 = vld [vmem:[%s13 + $0x4c] sm:$0xf]
    %v5034 = vld [vmem:[%s13 + $0x50] sm:$0xf]
    %v5035 = vld [vmem:[%s13 + $0x54] sm:$0xf]
    %v5036 = vld [vmem:[%s13 + $0x58] sm:$0xf]
    %v5037 = vld [vmem:[%s13 + $0x5c] sm:$0xf]
    %v5038 = vld [vmem:[%s13 + $0x60] sm:$0xf]
    %v5039 = vld [vmem:[%s13 + $0x64] sm:$0xf]
    %v5040 = vld [vmem:[%s13 + $0x68] sm:$0xf]
    %v5041 = vld [vmem:[%s13 + $0x6c] sm:$0xf]
    %v5042 = vld [vmem:[%s13 + $0x70] sm:$0xf]
    %v5043 = vld [vmem:[%s13 + $0x74] sm:$0xf]
    %v5044 = vld [vmem:[%s13 + $0x78] sm:$0xf]
    %v5045 = vld [vmem:[%s13 + $0x7c] sm:$0xf]
    %v5046 = vld [vmem:[%s13 + $0x80] sm:$0xf]
    %v5047 = vld [vmem:[%s13 + $0x84] sm:$0xf]
    %v5048 = vld [vmem:[%s13 + $0x88] sm:$0xf]
    %v5049 = vld [vmem:[%s13 + $0x8c] sm:$0xf]
    %v5050 = vld [vmem:[%s13 + $0x90] sm:$0xf]
    %v5051 = vld [vmem:[%s13 + $0x94] sm:$0xf]
    %v5052 = vld [vmem:[%s13 + $0x98] sm:$0xf]
    %v5053 = vld [vmem:[%s13 + $0x9c] sm:$0xf]
    %v5054 = vld [vmem:[%s13 + $0xa0] sm:$0xf]
    %v5055 = vld [vmem:[%s13 + $0xa4] sm:$0xf]
    %v5056 = vld [vmem:[%s13 + $0xa8] sm:$0xf]
    %v5057 = vld [vmem:[%s13 + $0xac] sm:$0xf]
    %v5058 = vld [vmem:[%s13 + $0xb0] sm:$0xf]
    %v5059 = vld [vmem:[%s13 + $0xb4] sm:$0xf]
    %v5060 = vld [vmem:[%s13 + $0xb8] sm:$0xf]
    %v5061 = vld [vmem:[%s13 + $0xbc] sm:$0xf]
    %v5062 = vld [vmem:[%s13 + $0xc0] sm:$0xf]
    %v5063 = vld [vmem:[%s13 + $0xc4] sm:$0xf]
    %v5064 = vld [vmem:[%s13 + $0xc8] sm:$0xf]
    %v5065 = vld [vmem:[%s13 + $0xcc] sm:$0xf]
    %v5066 = vld [vmem:[%s13 + $0xd0] sm:$0xf]
    %v5067 = vld [vmem:[%s13 + $0xd4] sm:$0xf]
    %v5068 = vld [vmem:[%s13 + $0xd8] sm:$0xf]
    %v5069 = vld [vmem:[%s13 + $0xdc] sm:$0xf]
    %v5070 = vld [vmem:[%s13 + $0xe0] sm:$0xf]
    %v5071 = vld [vmem:[%s13 + $0xe4] sm:$0xf]
    %v5072 = vld [vmem:[%s13 + $0xe8] sm:$0xf]
    %v5073 = vld [vmem:[%s13 + $0xec] sm:$0xf]
    %v5074 = vld [vmem:[%s13 + $0xf0] sm:$0xf]
    %v5075 = vld [vmem:[%s13 + $0xf4] sm:$0xf]
    %v5076 = vld [vmem:[%s13 + $0xf8] sm:$0xf]
    %v5077 = vld [vmem:[%s13 + $0xfc] sm:$0xf]
    %v5078 = vld [vmem:[%s13 + $0x100] sm:$0xf]
    %v5079 = vld [vmem:[%s13 + $0x104] sm:$0xf]
    %v5080 = vld [vmem:[%s13 + $0x108] sm:$0xf]
    %v5081 = vld [vmem:[%s13 + $0x10c] sm:$0xf]
    %v5082 = vld [vmem:[%s13 + $0x110] sm:$0xf]
    %v5083 = vld [vmem:[%s13 + $0x114] sm:$0xf]
    %v5084 = vld [vmem:[%s13 + $0x118] sm:$0xf]
    %v5085 = vld [vmem:[%s13 + $0x11c] sm:$0xf]
    %v5086 = vld [vmem:[%s13 + $0x120] sm:$0xf]
    %v5087 = vld [vmem:[%s13 + $0x124] sm:$0xf]
    %v5088 = vld [vmem:[%s13 + $0x128] sm:$0xf]
    %v5089 = vld [vmem:[%s13 + $0x12c] sm:$0xf]
    %v5090 = vld [vmem:[%s13 + $0x130] sm:$0xf]
    %v5091 = vld [vmem:[%s13 + $0x134] sm:$0xf]
    %v5092 = vld [vmem:[%s13 + $0x138] sm:$0xf]
    %v5093 = vld [vmem:[%s13 + $0x13c] sm:$0xf]
    %v5094 = vld [vmem:[%s13 + $0x140] sm:$0xf]
    %v5095 = vld [vmem:[%s13 + $0x144] sm:$0xf]
    %v5096 = vld [vmem:[%s13 + $0x148] sm:$0xf]
    %v5097 = vld [vmem:[%s13 + $0x14c] sm:$0xf]
    %v5098 = vld [vmem:[%s13 + $0x150] sm:$0xf]
    %v5099 = vld [vmem:[%s13 + $0x154] sm:$0xf]
    %v5100 = vld [vmem:[%s13 + $0x158] sm:$0xf]
    %v5101 = vld [vmem:[%s13 + $0x15c] sm:$0xf]
    %v5102 = vld [vmem:[%s13 + $0x160] sm:$0xf]
    %v5103 = vld [vmem:[%s13 + $0x164] sm:$0xf]
    %v5104 = vld [vmem:[%s13 + $0x168] sm:$0xf]
    %v5105 = vld [vmem:[%s13 + $0x16c] sm:$0xf]
    %v5106 = vld [vmem:[%s13 + $0x170] sm:$0xf]
    %v5107 = vld [vmem:[%s13 + $0x174] sm:$0xf]
    %v5108 = vld [vmem:[%s13 + $0x178] sm:$0xf]
    %v5109 = vld [vmem:[%s13 + $0x17c] sm:$0xf]
    %v5110 = vld [vmem:[%s13 + $0x180] sm:$0xf]
    %v5111 = vld [vmem:[%s13 + $0x184] sm:$0xf]
    %v5112 = vld [vmem:[%s13 + $0x188] sm:$0xf]
    %v5113 = vld [vmem:[%s13 + $0x18c] sm:$0xf]
    %v5114 = vld [vmem:[%s13 + $0x190] sm:$0xf]
    %v5115 = vld [vmem:[%s13 + $0x194] sm:$0xf]
    %v5116 = vld [vmem:[%s13 + $0x198] sm:$0xf]
    %v5117 = vld [vmem:[%s13 + $0x19c] sm:$0xf]
    %v5118 = vld [vmem:[%s13 + $0x1a0] sm:$0xf]
    %v5119 = vld [vmem:[%s13 + $0x1a4] sm:$0xf]
    %v5120 = vld [vmem:[%s13 + $0x1a8] sm:$0xf]
    %v5121 = vld [vmem:[%s13 + $0x1ac] sm:$0xf]
    %v5122 = vld [vmem:[%s13 + $0x1b0] sm:$0xf]
    %v5123 = vld [vmem:[%s13 + $0x1b4] sm:$0xf]
    %v5124 = vld [vmem:[%s13 + $0x1b8] sm:$0xf]
    %v5125 = vld [vmem:[%s13 + $0x1bc] sm:$0xf]
    %v5126 = vld [vmem:[%s13 + $0x1c0] sm:$0xf]
    %v5127 = vld [vmem:[%s13 + $0x1c4] sm:$0xf]
    %v5128 = vld [vmem:[%s13 + $0x1c8] sm:$0xf]
    %v5129 = vld [vmem:[%s13 + $0x1cc] sm:$0xf]
    %v5130 = vld [vmem:[%s13 + $0x1d0] sm:$0xf]
    %v5131 = vld [vmem:[%s13 + $0x1d4] sm:$0xf]
    %v5132 = vld [vmem:[%s13 + $0x1d8] sm:$0xf]
    %v5133 = vld [vmem:[%s13 + $0x1dc] sm:$0xf]
    %v5134 = vld [vmem:[%s13 + $0x1e0] sm:$0xf]
    %v5135 = vld [vmem:[%s13 + $0x1e4] sm:$0xf]
    %v5136 = vld [vmem:[%s13 + $0x1e8] sm:$0xf]
    %v5137 = vld [vmem:[%s13 + $0x1ec] sm:$0xf]
    %v5138 = vld [vmem:[%s13 + $0x1f0] sm:$0xf]
    %v5139 = vld [vmem:[%s13 + $0x1f4] sm:$0xf]
    %v5140 = vld [vmem:[%s13 + $0x1f8] sm:$0xf]
    %v5141 = vld [vmem:[%s13 + $0x1fc] sm:$0xf]
    %v5142 = vld [vmem:[%s13 + $0x200] sm:$0xf]
    %v5143 = vld [vmem:[%s13 + $0x204] sm:$0xf]
    %v5144 = vld [vmem:[%s13 + $0x208] sm:$0xf]
    %v5145 = vld [vmem:[%s13 + $0x20c] sm:$0xf]
    %v5146 = vld [vmem:[%s13 + $0x210] sm:$0xf]
    %v5147 = vld [vmem:[%s13 + $0x214] sm:$0xf]
    %v5148 = vld [vmem:[%s13 + $0x218] sm:$0xf]
    %v5149 = vld [vmem:[%s13 + $0x21c] sm:$0xf]
    %v5150 = vld [vmem:[%s13 + $0x220] sm:$0xf]
    %v5151 = vld [vmem:[%s13 + $0x224] sm:$0xf]
    %v5152 = vld [vmem:[%s13 + $0x228] sm:$0xf]
    %v5153 = vld [vmem:[%s13 + $0x22c] sm:$0xf]
    %v5154 = vld [vmem:[%s13 + $0x230] sm:$0xf]
    %v5155 = vld [vmem:[%s13 + $0x234] sm:$0xf]
    %v5156 = vld [vmem:[%s13 + $0x238] sm:$0xf]
    %v5157 = vld [vmem:[%s13 + $0x23c] sm:$0xf]
    %v5158 = vld [vmem:[%s13 + $0x240] sm:$0xf]
    %v5159 = vld [vmem:[%s13 + $0x244] sm:$0xf]
    %v5160 = vld [vmem:[%s13 + $0x248] sm:$0xf]
    %v5161 = vld [vmem:[%s13 + $0x24c] sm:$0xf]
    %v5162 = vld [vmem:[%s13 + $0x250] sm:$0xf]
    %v5163 = vld [vmem:[%s13 + $0x254] sm:$0xf]
    %v5164 = vld [vmem:[%s13 + $0x258] sm:$0xf]
    %v5165 = vld [vmem:[%s13 + $0x25c] sm:$0xf]
    %v5166 = vld [vmem:[%s13 + $0x260] sm:$0xf]
    %v5167 = vld [vmem:[%s13 + $0x264] sm:$0xf]
    %v5168 = vld [vmem:[%s13 + $0x268] sm:$0xf]
    %v5169 = vld [vmem:[%s13 + $0x26c] sm:$0xf]
    %v5170 = vld [vmem:[%s13 + $0x270] sm:$0xf]
    %v5171 = vld [vmem:[%s13 + $0x274] sm:$0xf]
    %v5172 = vld [vmem:[%s13 + $0x278] sm:$0xf]
    %v5173 = vld [vmem:[%s13 + $0x27c] sm:$0xf]
    %v5174 = vld [vmem:[%s13 + $0x280] sm:$0xf]
    %v5175 = vld [vmem:[%s13 + $0x284] sm:$0xf]
    %v5176 = vld [vmem:[%s13 + $0x288] sm:$0xf]
    %v5177 = vld [vmem:[%s13 + $0x28c] sm:$0xf]
    %v5178 = vld [vmem:[%s13 + $0x290] sm:$0xf]
    %v5179 = vld [vmem:[%s13 + $0x294] sm:$0xf]
    %v5180 = vld [vmem:[%s13 + $0x298] sm:$0xf]
    %v5181 = vld [vmem:[%s13 + $0x29c] sm:$0xf]
    %v5182 = vld [vmem:[%s13 + $0x2a0] sm:$0xf]
    %v5183 = vld [vmem:[%s13 + $0x2a4] sm:$0xf]
    %v5184 = vld [vmem:[%s13 + $0x2a8] sm:$0xf]
    %v5185 = vld [vmem:[%s13 + $0x2ac] sm:$0xf]
    %v5186 = vld [vmem:[%s13 + $0x2b0] sm:$0xf]
    %v5187 = vld [vmem:[%s13 + $0x2b4] sm:$0xf]
    %v5188 = vld [vmem:[%s13 + $0x2b8] sm:$0xf]
    %v5189 = vld [vmem:[%s13 + $0x2bc] sm:$0xf]
    %v5190 = vld [vmem:[%s13 + $0x2c0] sm:$0xf]
    %v5191 = vld [vmem:[%s13 + $0x2c4] sm:$0xf]
    %v5192 = vld [vmem:[%s13 + $0x2c8] sm:$0xf]
    %v5193 = vld [vmem:[%s13 + $0x2cc] sm:$0xf]
    %v5194 = vld [vmem:[%s13 + $0x2d0] sm:$0xf]
    %v5195 = vld [vmem:[%s13 + $0x2d4] sm:$0xf]
    %v5196 = vld [vmem:[%s13 + $0x2d8] sm:$0xf]
    %v5197 = vld [vmem:[%s13 + $0x2dc] sm:$0xf]
    %v5198 = vld [vmem:[%s13 + $0x2e0] sm:$0xf]
    %v5199 = vld [vmem:[%s13 + $0x2e4] sm:$0xf]
    %v5200 = vld [vmem:[%s13 + $0x2e8] sm:$0xf]
    %v5201 = vld [vmem:[%s13 + $0x2ec] sm:$0xf]
    %v5202 = vld [vmem:[%s13 + $0x2f0] sm:$0xf]
    %v5203 = vld [vmem:[%s13 + $0x2f4] sm:$0xf]
    %v5204 = vld [vmem:[%s13 + $0x2f8] sm:$0xf]
    %v5205 = vld [vmem:[%s13 + $0x2fc] sm:$0xf]
    %v5206 = vld [vmem:[%s13 + $0x300] sm:$0xf]
    %v5207 = vld [vmem:[%s13 + $0x304] sm:$0xf]
    %v5208 = vld [vmem:[%s13 + $0x308] sm:$0xf]
    %v5209 = vld [vmem:[%s13 + $0x30c] sm:$0xf]
    %v5210 = vld [vmem:[%s13 + $0x310] sm:$0xf]
    %v5211 = vld [vmem:[%s13 + $0x314] sm:$0xf]
    %v5212 = vld [vmem:[%s13 + $0x318] sm:$0xf]
    %v5213 = vld [vmem:[%s13 + $0x31c] sm:$0xf]
    %v5214 = vld [vmem:[%s13 + $0x320] sm:$0xf]
    %v5215 = vld [vmem:[%s13 + $0x324] sm:$0xf]
    %v5216 = vld [vmem:[%s13 + $0x328] sm:$0xf]
    %v5217 = vld [vmem:[%s13 + $0x32c] sm:$0xf]
    %v5218 = vld [vmem:[%s13 + $0x330] sm:$0xf]
    %v5219 = vld [vmem:[%s13 + $0x334] sm:$0xf]
    %v5220 = vld [vmem:[%s13 + $0x338] sm:$0xf]
    %v5221 = vld [vmem:[%s13 + $0x33c] sm:$0xf]
    %v5222 = vld [vmem:[%s13 + $0x340] sm:$0xf]
    %v5223 = vld [vmem:[%s13 + $0x344] sm:$0xf]
    %v5224 = vld [vmem:[%s13 + $0x348] sm:$0xf]
    %v5225 = vld [vmem:[%s13 + $0x34c] sm:$0xf]
    %v5226 = vld [vmem:[%s13 + $0x350] sm:$0xf]
    %v5227 = vld [vmem:[%s13 + $0x354] sm:$0xf]
    %v5228 = vld [vmem:[%s13 + $0x358] sm:$0xf]
    %v5229 = vld [vmem:[%s13 + $0x35c] sm:$0xf]
    %v5230 = vld [vmem:[%s13 + $0x360] sm:$0xf]
    %v5231 = vld [vmem:[%s13 + $0x364] sm:$0xf]
    %v5232 = vld [vmem:[%s13 + $0x368] sm:$0xf]
    %v5233 = vld [vmem:[%s13 + $0x36c] sm:$0xf]
    %v5234 = vld [vmem:[%s13 + $0x370] sm:$0xf]
    %v5235 = vld [vmem:[%s13 + $0x374] sm:$0xf]
    %v5236 = vld [vmem:[%s13 + $0x378] sm:$0xf]
    %v5237 = vld [vmem:[%s13 + $0x37c] sm:$0xf]
    %v5238 = vld [vmem:[%s13 + $0x380] sm:$0xf]
    %v5239 = vld [vmem:[%s13 + $0x384] sm:$0xf]
    %v5240 = vld [vmem:[%s13 + $0x388] sm:$0xf]
    %v5241 = vld [vmem:[%s13 + $0x38c] sm:$0xf]
    %v5242 = vld [vmem:[%s13 + $0x390] sm:$0xf]
    %v5243 = vld [vmem:[%s13 + $0x394] sm:$0xf]
    %v5244 = vld [vmem:[%s13 + $0x398] sm:$0xf]
    %v5245 = vld [vmem:[%s13 + $0x39c] sm:$0xf]
    %v5246 = vld [vmem:[%s13 + $0x3a0] sm:$0xf]
    %v5247 = vld [vmem:[%s13 + $0x3a4] sm:$0xf]
    %v5248 = vld [vmem:[%s13 + $0x3a8] sm:$0xf]
    %v5249 = vld [vmem:[%s13 + $0x3ac] sm:$0xf]
    %v5250 = vld [vmem:[%s13 + $0x3b0] sm:$0xf]
    %v5251 = vld [vmem:[%s13 + $0x3b4] sm:$0xf]
    %v5252 = vld [vmem:[%s13 + $0x3b8] sm:$0xf]
    %v5253 = vld [vmem:[%s13 + $0x3bc] sm:$0xf]
    %v5254 = vld [vmem:[%s13 + $0x3c0] sm:$0xf]
    %v5255 = vld [vmem:[%s13 + $0x3c4] sm:$0xf]
    %v5256 = vld [vmem:[%s13 + $0x3c8] sm:$0xf]
    %v5257 = vld [vmem:[%s13 + $0x3cc] sm:$0xf]
    %v5258 = vld [vmem:[%s13 + $0x3d0] sm:$0xf]
    %v5259 = vld [vmem:[%s13 + $0x3d4] sm:$0xf]
    %v5260 = vld [vmem:[%s13 + $0x3d8] sm:$0xf]
    %v5261 = vld [vmem:[%s13 + $0x3dc] sm:$0xf]
    %v5262 = vld [vmem:[%s13 + $0x3e0] sm:$0xf]
    %v5263 = vld [vmem:[%s13 + $0x3e4] sm:$0xf]
    %v5264 = vld [vmem:[%s13 + $0x3e8] sm:$0xf]
    %v5265 = vld [vmem:[%s13 + $0x3ec] sm:$0xf]
    %v5266 = vld [vmem:[%s13 + $0x3f0] sm:$0xf]
    %v5267 = vld [vmem:[%s13 + $0x3f4] sm:$0xf]
    %v5268 = vld [vmem:[%s13 + $0x3f8] sm:$0xf]
    %v5269 = vld [vmem:[%s13 + $0x3fc] sm:$0xf]
    %v5270 = vld [vmem:[%s13 + $0x400] sm:$0xf]
    %v5271 = vld [vmem:[%s13 + $0x404] sm:$0xf]
    %v5272 = vld [vmem:[%s13 + $0x408] sm:$0xf]
    %v5273 = vld [vmem:[%s13 + $0x40c] sm:$0xf]
    %v5274 = vld [vmem:[%s13 + $0x410] sm:$0xf]
    %v5275 = vld [vmem:[%s13 + $0x414] sm:$0xf]
    %v5276 = vld [vmem:[%s13 + $0x418] sm:$0xf]
    %v5277 = vld [vmem:[%s13 + $0x41c] sm:$0xf]
    %v5278 = vld [vmem:[%s13 + $0x420] sm:$0xf]
    %v5279 = vld [vmem:[%s13 + $0x424] sm:$0xf]
    %v5280 = vld [vmem:[%s13 + $0x428] sm:$0xf]
    %v5281 = vld [vmem:[%s13 + $0x42c] sm:$0xf]
    %v5282 = vld [vmem:[%s13 + $0x430] sm:$0xf]
    %v5283 = vld [vmem:[%s13 + $0x434] sm:$0xf]
    %v5284 = vld [vmem:[%s13 + $0x438] sm:$0xf]
    %v5285 = vld [vmem:[%s13 + $0x43c] sm:$0xf]
    %v5286 = vld [vmem:[%s13 + $0x440] sm:$0xf]
    %v5287 = vld [vmem:[%s13 + $0x444] sm:$0xf]
    %v5288 = vld [vmem:[%s13 + $0x448] sm:$0xf]
    %v5289 = vld [vmem:[%s13 + $0x44c] sm:$0xf]
    %v5290 = vld [vmem:[%s13 + $0x450] sm:$0xf]
    %v5291 = vld [vmem:[%s13 + $0x454] sm:$0xf]
    %v5292 = vld [vmem:[%s13 + $0x458] sm:$0xf]
    %v5293 = vld [vmem:[%s13 + $0x45c] sm:$0xf]
    %v5294 = vld [vmem:[%s13 + $0x460] sm:$0xf]
    %v5295 = vld [vmem:[%s13 + $0x464] sm:$0xf]
    %v5296 = vld [vmem:[%s13 + $0x468] sm:$0xf]
    %v5297 = vld [vmem:[%s13 + $0x46c] sm:$0xf]
    %v5298 = vld [vmem:[%s13 + $0x470] sm:$0xf]
    %v5299 = vld [vmem:[%s13 + $0x474] sm:$0xf]
    %v5300 = vld [vmem:[%s13 + $0x478] sm:$0xf]
    %v5301 = vld [vmem:[%s13 + $0x47c] sm:$0xf]
    %v5302 = vld [vmem:[%s10] sm:$0xf]
    %vm5303 = vcmask 64512
    %v5305 = vsel %vm5303, %v5302, 0
    %vm5307 = vcmask 1043456
    %v5309 = vsel %vm5307, %v5012, 0
    %v5312 = vsel %vm5307, %v5013, 0
    %5314 = vmatprep.subr.bf16.mxu0 0
    %5315 = vmatpush1.bf16.msra.mxu0 0
    %5316 = vmatprep.subr.bf16.mxu0 0
    %5317 = vmatpush1.bf16.msra.mxu0 0
    %5318 = vmatprep.subr.bf16.mxu0 0
    %5319 = vmatpush1.bf16.msra.mxu0 0
    %5320 = vmatprep.subr.bf16.mxu0 0
    %5321 = vmatpush1.bf16.msra.mxu0 0
    %5322 = vmatprep.subr.bf16.mxu0 0
    %5323 = vmatpush1.bf16.msra.mxu0 0
    %5324 = vmatprep.subr.bf16.mxu0 0
    %5325 = vmatpush1.bf16.msra.mxu0 0
    %5326 = vmatprep.subr.bf16.mxu0 0
    %5327 = vmatpush1.bf16.msra.mxu0 0
    %5328 = vmatprep.subr.bf16.mxu0 %v5312
    %5329 = vmatpush1.bf16.msra.mxu0 %v5309
    %5330 = vmatprep.subr.bf16.mxu0 0
    %5331 = vmatpush2.bf16.msra.mxu0 0
    %5332 = vmatprep.subr.bf16.mxu0 0
    %5333 = vmatpush2.bf16.msra.mxu0 0
    %5334 = vmatprep.subr.bf16.mxu0 0
    %5335 = vmatpush2.bf16.msra.mxu0 0
    %5336 = vmatprep.subr.bf16.mxu0 0
    %5337 = vmatpush2.bf16.msra.mxu0 0
    %5338 = vmatprep.subr.bf16.mxu0 0
    %5339 = vmatpush2.bf16.msra.mxu0 0
    %5340 = vmatprep.subr.bf16.mxu0 0
    %5341 = vmatpush2.bf16.msra.mxu0 0
    %5342 = vmatprep.subr.bf16.mxu0 0
    %5343 = vmatpush2.bf16.msra.mxu0 0
    %5344 = vmatprep.subr.bf16.mxu0 0
    %5345 = vmatpush2.bf16.msra.mxu0 0
    %5346 = vmatprep.mubr.bf16.mxu0 0
    %5347 = vmatmul.mubr.bf16.gmra.mxu0 %v5305
    %v5348 = vpop.f32.mrf.mxu0
    %v5349 = vadd.f32 0.0, %v5348
    %v5350 = vpop.f32.mrf.mxu0
    %v5351 = vadd.f32 0.0, %v5350
    %v5352 = vpop.f32.mrf.mxu0
    %v5353 = vpop.f32.mrf.mxu0
    %5354 = vdwg.mxu0
    %v5355 = vpack.c.bf16 %v5349, %v5349
    %v5356 = vpack.c.bf16 %v5351, %v5351
    %v5357 = vld [vmem:[%s10 + $0x4] sm:$0xf]
    %v5359 = vsel %vm5303, %v5357, 0
    %5361 = vmatprep.subr.bf16.mxu0 0
    %5362 = vmatpush1.bf16.msra.mxu0 0
    %5363 = vmatprep.subr.bf16.mxu0 0
    %5364 = vmatpush1.bf16.msra.mxu0 0
    %5365 = vmatprep.subr.bf16.mxu0 0
    %5366 = vmatpush1.bf16.msra.mxu0 0
    %5367 = vmatprep.subr.bf16.mxu0 0
    %5368 = vmatpush1.bf16.msra.mxu0 0
    %5369 = vmatprep.subr.bf16.mxu0 0
    %5370 = vmatpush1.bf16.msra.mxu0 0
    %5371 = vmatprep.subr.bf16.mxu0 0
    %5372 = vmatpush1.bf16.msra.mxu0 0
    %5373 = vmatprep.subr.bf16.mxu0 0
    %5374 = vmatpush1.bf16.msra.mxu0 0
    %5375 = vmatprep.subr.bf16.mxu0 %v5312
    %5376 = vmatpush1.bf16.msra.mxu0 %v5309
    %5377 = vmatprep.subr.bf16.mxu0 0
    %5378 = vmatpush2.bf16.msra.mxu0 0
    %5379 = vmatprep.subr.bf16.mxu0 0
    %5380 = vmatpush2.bf16.msra.mxu0 0
    %5381 = vmatprep.subr.bf16.mxu0 0
    %5382 = vmatpush2.bf16.msra.mxu0 0
    %5383 = vmatprep.subr.bf16.mxu0 0
    %5384 = vmatpush2.bf16.msra.mxu0 0
    %5385 = vmatprep.subr.bf16.mxu0 0
    %5386 = vmatpush2.bf16.msra.mxu0 0
    %5387 = vmatprep.subr.bf16.mxu0 0
    %5388 = vmatpush2.bf16.msra.mxu0 0
    %5389 = vmatprep.subr.bf16.mxu0 0
    %5390 = vmatpush2.bf16.msra.mxu0 0
    %5391 = vmatprep.subr.bf16.mxu0 0
    %5392 = vmatpush2.bf16.msra.mxu0 0
    %5393 = vmatprep.mubr.bf16.mxu0 0
    %5394 = vmatmul.mubr.bf16.gmra.mxu0 %v5359
    %v5395 = vpop.f32.mrf.mxu0
    %v5396 = vadd.f32 0.0, %v5395
    %v5397 = vpop.f32.mrf.mxu0
    %v5398 = vadd.f32 0.0, %v5397
    %v5399 = vpop.f32.mrf.mxu0
    %v5400 = vpop.f32.mrf.mxu0
    %5401 = vdwg.mxu0
    %v5402 = vpack.c.bf16 %v5396, %v5396
    %v5403 = vpack.c.bf16 %v5398, %v5398
    %v5404 = vld [vmem:[%s10 + $0x8] sm:$0xf]
    %v5406 = vsel %vm5303, %v5404, 0
    %5408 = vmatprep.subr.bf16.mxu0 0
    %5409 = vmatpush1.bf16.msra.mxu0 0
    %5410 = vmatprep.subr.bf16.mxu0 0
    %5411 = vmatpush1.bf16.msra.mxu0 0
    %5412 = vmatprep.subr.bf16.mxu0 0
    %5413 = vmatpush1.bf16.msra.mxu0 0
    %5414 = vmatprep.subr.bf16.mxu0 0
    %5415 = vmatpush1.bf16.msra.mxu0 0
    %5416 = vmatprep.subr.bf16.mxu0 0
    %5417 = vmatpush1.bf16.msra.mxu0 0
    %5418 = vmatprep.subr.bf16.mxu0 0
    %5419 = vmatpush1.bf16.msra.mxu0 0
    %5420 = vmatprep.subr.bf16.mxu0 0
    %5421 = vmatpush1.bf16.msra.mxu0 0
    %5422 = vmatprep.subr.bf16.mxu0 %v5312
    %5423 = vmatpush1.bf16.msra.mxu0 %v5309
    %5424 = vmatprep.subr.bf16.mxu0 0
    %5425 = vmatpush2.bf16.msra.mxu0 0
    %5426 = vmatprep.subr.bf16.mxu0 0
    %5427 = vmatpush2.bf16.msra.mxu0 0
    %5428 = vmatprep.subr.bf16.mxu0 0
    %5429 = vmatpush2.bf16.msra.mxu0 0
    %5430 = vmatprep.subr.bf16.mxu0 0
    %5431 = vmatpush2.bf16.msra.mxu0 0
    %5432 = vmatprep.subr.bf16.mxu0 0
    %5433 = vmatpush2.bf16.msra.mxu0 0
    %5434 = vmatprep.subr.bf16.mxu0 0
    %5435 = vmatpush2.bf16.msra.mxu0 0
    %5436 = vmatprep.subr.bf16.mxu0 0
    %5437 = vmatpush2.bf16.msra.mxu0 0
    %5438 = vmatprep.subr.bf16.mxu0 0
    %5439 = vmatpush2.bf16.msra.mxu0 0
    %5440 = vmatprep.mubr.bf16.mxu0 0
    %5441 = vmatmul.mubr.bf16.gmra.mxu0 %v5406
    %v5442 = vpop.f32.mrf.mxu0
    %v5443 = vadd.f32 0.0, %v5442
    %v5444 = vpop.f32.mrf.mxu0
    %v5445 = vadd.f32 0.0, %v5444
    %v5446 = vpop.f32.mrf.mxu0
    %v5447 = vpop.f32.mrf.mxu0
    %5448 = vdwg.mxu0
    %v5449 = vpack.c.bf16 %v5443, %v5443
    %v5450 = vpack.c.bf16 %v5445, %v5445
    %v5451 = vld [vmem:[%s10 + $0xc] sm:$0xf]
    %v5453 = vsel %vm5303, %v5451, 0
    %5455 = vmatprep.subr.bf16.mxu0 0
    %5456 = vmatpush1.bf16.msra.mxu0 0
    %5457 = vmatprep.subr.bf16.mxu0 0
    %5458 = vmatpush1.bf16.msra.mxu0 0
    %5459 = vmatprep.subr.bf16.mxu0 0
    %5460 = vmatpush1.bf16.msra.mxu0 0
    %5461 = vmatprep.subr.bf16.mxu0 0
    %5462 = vmatpush1.bf16.msra.mxu0 0
    %5463 = vmatprep.subr.bf16.mxu0 0
    %5464 = vmatpush1.bf16.msra.mxu0 0
    %5465 = vmatprep.subr.bf16.mxu0 0
    %5466 = vmatpush1.bf16.msra.mxu0 0
    %5467 = vmatprep.subr.bf16.mxu0 0
    %5468 = vmatpush1.bf16.msra.mxu0 0
    %5469 = vmatprep.subr.bf16.mxu0 %v5312
    %5470 = vmatpush1.bf16.msra.mxu0 %v5309
    %5471 = vmatprep.subr.bf16.mxu0 0
    %5472 = vmatpush2.bf16.msra.mxu0 0
    %5473 = vmatprep.subr.bf16.mxu0 0
    %5474 = vmatpush2.bf16.msra.mxu0 0
    %5475 = vmatprep.subr.bf16.mxu0 0
    %5476 = vmatpush2.bf16.msra.mxu0 0
    %5477 = vmatprep.subr.bf16.mxu0 0
    %5478 = vmatpush2.bf16.msra.mxu0 0
    %5479 = vmatprep.subr.bf16.mxu0 0
    %5480 = vmatpush2.bf16.msra.mxu0 0
    %5481 = vmatprep.subr.bf16.mxu0 0
    %5482 = vmatpush2.bf16.msra.mxu0 0
    %5483 = vmatprep.subr.bf16.mxu0 0
    %5484 = vmatpush2.bf16.msra.mxu0 0
    %5485 = vmatprep.subr.bf16.mxu0 0
    %5486 = vmatpush2.bf16.msra.mxu0 0
    %5487 = vmatprep.mubr.bf16.mxu0 0
    %5488 = vmatmul.mubr.bf16.gmra.mxu0 %v5453
    %v5489 = vpop.f32.mrf.mxu0
    %v5490 = vadd.f32 0.0, %v5489
    %v5491 = vpop.f32.mrf.mxu0
    %v5492 = vadd.f32 0.0, %v5491
    %v5493 = vpop.f32.mrf.mxu0
    %v5494 = vpop.f32.mrf.mxu0
    %5495 = vdwg.mxu0
    %v5496 = vpack.c.bf16 %v5490, %v5490
    %v5497 = vpack.c.bf16 %v5492, %v5492
    %v5498 = vld [vmem:[%s10 + $0x10] sm:$0xf]
    %v5500 = vsel %vm5303, %v5498, 0
    %5502 = vmatprep.subr.bf16.mxu0 0
    %5503 = vmatpush1.bf16.msra.mxu0 0
    %5504 = vmatprep.subr.bf16.mxu0 0
    %5505 = vmatpush1.bf16.msra.mxu0 0
    %5506 = vmatprep.subr.bf16.mxu0 0
    %5507 = vmatpush1.bf16.msra.mxu0 0
    %5508 = vmatprep.subr.bf16.mxu0 0
    %5509 = vmatpush1.bf16.msra.mxu0 0
    %5510 = vmatprep.subr.bf16.mxu0 0
    %5511 = vmatpush1.bf16.msra.mxu0 0
    %5512 = vmatprep.subr.bf16.mxu0 0
    %5513 = vmatpush1.bf16.msra.mxu0 0
    %5514 = vmatprep.subr.bf16.mxu0 0
    %5515 = vmatpush1.bf16.msra.mxu0 0
    %5516 = vmatprep.subr.bf16.mxu0 %v5312
    %5517 = vmatpush1.bf16.msra.mxu0 %v5309
    %5518 = vmatprep.subr.bf16.mxu0 0
    %5519 = vmatpush2.bf16.msra.mxu0 0
    %5520 = vmatprep.subr.bf16.mxu0 0
    %5521 = vmatpush2.bf16.msra.mxu0 0
    %5522 = vmatprep.subr.bf16.mxu0 0
    %5523 = vmatpush2.bf16.msra.mxu0 0
    %5524 = vmatprep.subr.bf16.mxu0 0
    %5525 = vmatpush2.bf16.msra.mxu0 0
    %5526 = vmatprep.subr.bf16.mxu0 0
    %5527 = vmatpush2.bf16.msra.mxu0 0
    %5528 = vmatprep.subr.bf16.mxu0 0
    %5529 = vmatpush2.bf16.msra.mxu0 0
    %5530 = vmatprep.subr.bf16.mxu0 0
    %5531 = vmatpush2.bf16.msra.mxu0 0
    %5532 = vmatprep.subr.bf16.mxu0 0
    %5533 = vmatpush2.bf16.msra.mxu0 0
    %5534 = vmatprep.mubr.bf16.mxu0 0
    %5535 = vmatmul.mubr.bf16.gmra.mxu0 %v5500
    %v5536 = vpop.f32.mrf.mxu0
    %v5537 = vadd.f32 0.0, %v5536
    %v5538 = vpop.f32.mrf.mxu0
    %v5539 = vadd.f32 0.0, %v5538
    %v5540 = vpop.f32.mrf.mxu0
    %v5541 = vpop.f32.mrf.mxu0
    %5542 = vdwg.mxu0
    %v5543 = vpack.c.bf16 %v5537, %v5537
    %v5544 = vpack.c.bf16 %v5539, %v5539
    %v5545 = vld [vmem:[%s10 + $0x14] sm:$0xf]
    %v5547 = vsel %vm5303, %v5545, 0
    %5549 = vmatprep.subr.bf16.mxu0 0
    %5550 = vmatpush1.bf16.msra.mxu0 0
    %5551 = vmatprep.subr.bf16.mxu0 0
    %5552 = vmatpush1.bf16.msra.mxu0 0
    %5553 = vmatprep.subr.bf16.mxu0 0
    %5554 = vmatpush1.bf16.msra.mxu0 0
    %5555 = vmatprep.subr.bf16.mxu0 0
    %5556 = vmatpush1.bf16.msra.mxu0 0
    %5557 = vmatprep.subr.bf16.mxu0 0
    %5558 = vmatpush1.bf16.msra.mxu0 0
    %5559 = vmatprep.subr.bf16.mxu0 0
    %5560 = vmatpush1.bf16.msra.mxu0 0
    %5561 = vmatprep.subr.bf16.mxu0 0
    %5562 = vmatpush1.bf16.msra.mxu0 0
    %5563 = vmatprep.subr.bf16.mxu0 %v5312
    %5564 = vmatpush1.bf16.msra.mxu0 %v5309
    %5565 = vmatprep.subr.bf16.mxu0 0
    %5566 = vmatpush2.bf16.msra.mxu0 0
    %5567 = vmatprep.subr.bf16.mxu0 0
    %5568 = vmatpush2.bf16.msra.mxu0 0
    %5569 = vmatprep.subr.bf16.mxu0 0
    %5570 = vmatpush2.bf16.msra.mxu0 0
    %5571 = vmatprep.subr.bf16.mxu0 0
    %5572 = vmatpush2.bf16.msra.mxu0 0
    %5573 = vmatprep.subr.bf16.mxu0 0
    %5574 = vmatpush2.bf16.msra.mxu0 0
    %5575 = vmatprep.subr.bf16.mxu0 0
    %5576 = vmatpush2.bf16.msra.mxu0 0
    %5577 = vmatprep.subr.bf16.mxu0 0
    %5578 = vmatpush2.bf16.msra.mxu0 0
    %5579 = vmatprep.subr.bf16.mxu0 0
    %5580 = vmatpush2.bf16.msra.mxu0 0
    %5581 = vmatprep.mubr.bf16.mxu0 0
    %5582 = vmatmul.mubr.bf16.gmra.mxu0 %v5547
    %v5583 = vpop.f32.mrf.mxu0
    %v5584 = vadd.f32 0.0, %v5583
    %v5585 = vpop.f32.mrf.mxu0
    %v5586 = vadd.f32 0.0, %v5585
    %v5587 = vpop.f32.mrf.mxu0
    %v5588 = vpop.f32.mrf.mxu0
    %5589 = vdwg.mxu0
    %v5590 = vpack.c.bf16 %v5584, %v5584
    %v5591 = vpack.c.bf16 %v5586, %v5586
    %v5592 = vld [vmem:[%s10 + $0x18] sm:$0xf]
    %v5594 = vsel %vm5303, %v5592, 0
    %5596 = vmatprep.subr.bf16.mxu0 0
    %5597 = vmatpush1.bf16.msra.mxu0 0
    %5598 = vmatprep.subr.bf16.mxu0 0
    %5599 = vmatpush1.bf16.msra.mxu0 0
    %5600 = vmatprep.subr.bf16.mxu0 0
    %5601 = vmatpush1.bf16.msra.mxu0 0
    %5602 = vmatprep.subr.bf16.mxu0 0
    %5603 = vmatpush1.bf16.msra.mxu0 0
    %5604 = vmatprep.subr.bf16.mxu0 0
    %5605 = vmatpush1.bf16.msra.mxu0 0
    %5606 = vmatprep.subr.bf16.mxu0 0
    %5607 = vmatpush1.bf16.msra.mxu0 0
    %5608 = vmatprep.subr.bf16.mxu0 0
    %5609 = vmatpush1.bf16.msra.mxu0 0
    %5610 = vmatprep.subr.bf16.mxu0 %v5312
    %5611 = vmatpush1.bf16.msra.mxu0 %v5309
    %5612 = vmatprep.subr.bf16.mxu0 0
    %5613 = vmatpush2.bf16.msra.mxu0 0
    %5614 = vmatprep.subr.bf16.mxu0 0
    %5615 = vmatpush2.bf16.msra.mxu0 0
    %5616 = vmatprep.subr.bf16.mxu0 0
    %5617 = vmatpush2.bf16.msra.mxu0 0
    %5618 = vmatprep.subr.bf16.mxu0 0
    %5619 = vmatpush2.bf16.msra.mxu0 0
    %5620 = vmatprep.subr.bf16.mxu0 0
    %5621 = vmatpush2.bf16.msra.mxu0 0
    %5622 = vmatprep.subr.bf16.mxu0 0
    %5623 = vmatpush2.bf16.msra.mxu0 0
    %5624 = vmatprep.subr.bf16.mxu0 0
    %5625 = vmatpush2.bf16.msra.mxu0 0
    %5626 = vmatprep.subr.bf16.mxu0 0
    %5627 = vmatpush2.bf16.msra.mxu0 0
    %5628 = vmatprep.mubr.bf16.mxu0 0
    %5629 = vmatmul.mubr.bf16.gmra.mxu0 %v5594
    %v5630 = vpop.f32.mrf.mxu0
    %v5631 = vadd.f32 0.0, %v5630
    %v5632 = vpop.f32.mrf.mxu0
    %v5633 = vadd.f32 0.0, %v5632
    %v5634 = vpop.f32.mrf.mxu0
    %v5635 = vpop.f32.mrf.mxu0
    %5636 = vdwg.mxu0
    %v5637 = vpack.c.bf16 %v5631, %v5631
    %v5638 = vpack.c.bf16 %v5633, %v5633
    %v5639 = vld [vmem:[%s10 + $0x1c] sm:$0xf]
    %v5641 = vsel %vm5303, %v5639, 0
    %5643 = vmatprep.subr.bf16.mxu0 0
    %5644 = vmatpush1.bf16.msra.mxu0 0
    %5645 = vmatprep.subr.bf16.mxu0 0
    %5646 = vmatpush1.bf16.msra.mxu0 0
    %5647 = vmatprep.subr.bf16.mxu0 0
    %5648 = vmatpush1.bf16.msra.mxu0 0
    %5649 = vmatprep.subr.bf16.mxu0 0
    %5650 = vmatpush1.bf16.msra.mxu0 0
    %5651 = vmatprep.subr.bf16.mxu0 0
    %5652 = vmatpush1.bf16.msra.mxu0 0
    %5653 = vmatprep.subr.bf16.mxu0 0
    %5654 = vmatpush1.bf16.msra.mxu0 0
    %5655 = vmatprep.subr.bf16.mxu0 0
    %5656 = vmatpush1.bf16.msra.mxu0 0
    %5657 = vmatprep.subr.bf16.mxu0 %v5312
    %5658 = vmatpush1.bf16.msra.mxu0 %v5309
    %5659 = vmatprep.subr.bf16.mxu0 0
    %5660 = vmatpush2.bf16.msra.mxu0 0
    %5661 = vmatprep.subr.bf16.mxu0 0
    %5662 = vmatpush2.bf16.msra.mxu0 0
    %5663 = vmatprep.subr.bf16.mxu0 0
    %5664 = vmatpush2.bf16.msra.mxu0 0
    %5665 = vmatprep.subr.bf16.mxu0 0
    %5666 = vmatpush2.bf16.msra.mxu0 0
    %5667 = vmatprep.subr.bf16.mxu0 0
    %5668 = vmatpush2.bf16.msra.mxu0 0
    %5669 = vmatprep.subr.bf16.mxu0 0
    %5670 = vmatpush2.bf16.msra.mxu0 0
    %5671 = vmatprep.subr.bf16.mxu0 0
    %5672 = vmatpush2.bf16.msra.mxu0 0
    %5673 = vmatprep.subr.bf16.mxu0 0
    %5674 = vmatpush2.bf16.msra.mxu0 0
    %5675 = vmatprep.mubr.bf16.mxu0 0
    %5676 = vmatmul.mubr.bf16.gmra.mxu0 %v5641
    %v5677 = vpop.f32.mrf.mxu0
    %v5678 = vadd.f32 0.0, %v5677
    %v5679 = vpop.f32.mrf.mxu0
    %v5680 = vadd.f32 0.0, %v5679
    %v5681 = vpop.f32.mrf.mxu0
    %v5682 = vpop.f32.mrf.mxu0
    %5683 = vdwg.mxu0
    %v5684 = vpack.c.bf16 %v5678, %v5678
    %v5685 = vpack.c.bf16 %v5680, %v5680
    %v5686 = vld [vmem:[%s10 + $0x20] sm:$0xf]
    %v5688 = vsel %vm5303, %v5686, 0
    %5690 = vmatprep.subr.bf16.mxu0 0
    %5691 = vmatpush1.bf16.msra.mxu0 0
    %5692 = vmatprep.subr.bf16.mxu0 0
    %5693 = vmatpush1.bf16.msra.mxu0 0
    %5694 = vmatprep.subr.bf16.mxu0 0
    %5695 = vmatpush1.bf16.msra.mxu0 0
    %5696 = vmatprep.subr.bf16.mxu0 0
    %5697 = vmatpush1.bf16.msra.mxu0 0
    %5698 = vmatprep.subr.bf16.mxu0 0
    %5699 = vmatpush1.bf16.msra.mxu0 0
    %5700 = vmatprep.subr.bf16.mxu0 0
    %5701 = vmatpush1.bf16.msra.mxu0 0
    %5702 = vmatprep.subr.bf16.mxu0 0
    %5703 = vmatpush1.bf16.msra.mxu0 0
    %5704 = vmatprep.subr.bf16.mxu0 %v5312
    %5705 = vmatpush1.bf16.msra.mxu0 %v5309
    %5706 = vmatprep.subr.bf16.mxu0 0
    %5707 = vmatpush2.bf16.msra.mxu0 0
    %5708 = vmatprep.subr.bf16.mxu0 0
    %5709 = vmatpush2.bf16.msra.mxu0 0
    %5710 = vmatprep.subr.bf16.mxu0 0
    %5711 = vmatpush2.bf16.msra.mxu0 0
    %5712 = vmatprep.subr.bf16.mxu0 0
    %5713 = vmatpush2.bf16.msra.mxu0 0
    %5714 = vmatprep.subr.bf16.mxu0 0
    %5715 = vmatpush2.bf16.msra.mxu0 0
    %5716 = vmatprep.subr.bf16.mxu0 0
    %5717 = vmatpush2.bf16.msra.mxu0 0
    %5718 = vmatprep.subr.bf16.mxu0 0
    %5719 = vmatpush2.bf16.msra.mxu0 0
    %5720 = vmatprep.subr.bf16.mxu0 0
    %5721 = vmatpush2.bf16.msra.mxu0 0
    %5722 = vmatprep.mubr.bf16.mxu0 0
    %5723 = vmatmul.mubr.bf16.gmra.mxu0 %v5688
    %v5724 = vpop.f32.mrf.mxu0
    %v5725 = vadd.f32 0.0, %v5724
    %v5726 = vpop.f32.mrf.mxu0
    %v5727 = vadd.f32 0.0, %v5726
    %v5728 = vpop.f32.mrf.mxu0
    %v5729 = vpop.f32.mrf.mxu0
    %5730 = vdwg.mxu0
    %v5731 = vpack.c.bf16 %v5725, %v5725
    %v5732 = vpack.c.bf16 %v5727, %v5727
    %v6021 = vunpack.c.l.b16 %v5014
    %v6022 = vunpack.c.l.b16 %v5015
    %v6023 = vunpack.c.l.b16 %v5016
    %v6024 = vunpack.c.l.b16 %v5017
    %v6025 = vunpack.c.l.b16 %v5018
    %v6026 = vunpack.c.l.b16 %v5019
    %v6027 = vunpack.c.l.b16 %v5020
    %v6028 = vunpack.c.l.b16 %v5021
    %v6029 = vunpack.c.l.b16 %v5022
    %v6030 = vunpack.c.l.b16 %v5023
    %v6031 = vunpack.c.l.b16 %v5024
    %v6032 = vunpack.c.l.b16 %v5025
    %v6033 = vunpack.c.l.b16 %v5026
    %v6034 = vunpack.c.l.b16 %v5027
    %v6035 = vunpack.c.l.b16 %v5028
    %v6036 = vunpack.c.l.b16 %v5029
    %v6037 = vunpack.c.l.b16 %v5030
    %v6038 = vunpack.c.l.b16 %v5031
    %v6039 = vunpack.c.l.b16 %v5032
    %v6040 = vunpack.c.l.b16 %v5033
    %v6041 = vunpack.c.l.b16 %v5034
    %v6042 = vunpack.c.l.b16 %v5035
    %v6043 = vunpack.c.l.b16 %v5036
    %v6044 = vunpack.c.l.b16 %v5037
    %v6045 = vunpack.c.l.b16 %v5038
    %v6046 = vunpack.c.l.b16 %v5039
    %v6047 = vunpack.c.l.b16 %v5040
    %v6048 = vunpack.c.l.b16 %v5041
    %v6049 = vunpack.c.l.b16 %v5042
    %v6050 = vunpack.c.l.b16 %v5043
    %v6051 = vunpack.c.l.b16 %v5044
    %v6052 = vunpack.c.l.b16 %v5045
    %v6053 = vunpack.c.l.b16 %v5046
    %v6054 = vunpack.c.l.b16 %v5047
    %v6055 = vunpack.c.l.b16 %v5048
    %v6056 = vunpack.c.l.b16 %v5049
    %v6057 = vunpack.c.l.b16 %v5050
    %v6058 = vunpack.c.l.b16 %v5051
    %v6059 = vunpack.c.l.b16 %v5052
    %v6060 = vunpack.c.l.b16 %v5053
    %v6061 = vunpack.c.l.b16 %v5054
    %v6062 = vunpack.c.l.b16 %v5055
    %v6063 = vunpack.c.l.b16 %v5056
    %v6064 = vunpack.c.l.b16 %v5057
    %v6065 = vunpack.c.l.b16 %v5058
    %v6066 = vunpack.c.l.b16 %v5059
    %v6067 = vunpack.c.l.b16 %v5060
    %v6068 = vunpack.c.l.b16 %v5061
    %v6069 = vunpack.c.l.b16 %v5062
    %v6070 = vunpack.c.l.b16 %v5063
    %v6071 = vunpack.c.l.b16 %v5064
    %v6072 = vunpack.c.l.b16 %v5065
    %v6073 = vunpack.c.l.b16 %v5066
    %v6074 = vunpack.c.l.b16 %v5067
    %v6075 = vunpack.c.l.b16 %v5068
    %v6076 = vunpack.c.l.b16 %v5069
    %v6077 = vunpack.c.l.b16 %v5070
    %v6078 = vunpack.c.l.b16 %v5071
    %v6079 = vunpack.c.l.b16 %v5072
    %v6080 = vunpack.c.l.b16 %v5073
    %v6081 = vunpack.c.l.b16 %v5074
    %v6082 = vunpack.c.l.b16 %v5075
    %v6083 = vunpack.c.l.b16 %v5076
    %v6084 = vunpack.c.l.b16 %v5077
    %v6085 = vunpack.c.l.b16 %v5078
    %v6086 = vunpack.c.l.b16 %v5079
    %v6087 = vunpack.c.l.b16 %v5080
    %v6088 = vunpack.c.l.b16 %v5081
    %v6089 = vunpack.c.l.b16 %v5082
    %v6090 = vunpack.c.l.b16 %v5083
    %v6091 = vunpack.c.l.b16 %v5084
    %v6092 = vunpack.c.l.b16 %v5085
    %v6093 = vunpack.c.l.b16 %v5086
    %v6094 = vunpack.c.l.b16 %v5087
    %v6095 = vunpack.c.l.b16 %v5088
    %v6096 = vunpack.c.l.b16 %v5089
    %v6097 = vunpack.c.l.b16 %v5090
    %v6098 = vunpack.c.l.b16 %v5091
    %v6099 = vunpack.c.l.b16 %v5092
    %v6100 = vunpack.c.l.b16 %v5093
    %v6101 = vunpack.c.l.b16 %v5094
    %v6102 = vunpack.c.l.b16 %v5095
    %v6103 = vunpack.c.l.b16 %v5096
    %v6104 = vunpack.c.l.b16 %v5097
    %v6105 = vunpack.c.l.b16 %v5098
    %v6106 = vunpack.c.l.b16 %v5099
    %v6107 = vunpack.c.l.b16 %v5100
    %v6108 = vunpack.c.l.b16 %v5101
    %v6109 = vunpack.c.l.b16 %v5102
    %v6110 = vunpack.c.l.b16 %v5103
    %v6111 = vunpack.c.l.b16 %v5104
    %v6112 = vunpack.c.l.b16 %v5105
    %v6113 = vunpack.c.l.b16 %v5106
    %v6114 = vunpack.c.l.b16 %v5107
    %v6115 = vunpack.c.l.b16 %v5108
    %v6116 = vunpack.c.l.b16 %v5109
    %v6117 = vunpack.c.l.b16 %v5110
    %v6118 = vunpack.c.l.b16 %v5111
    %v6119 = vunpack.c.l.b16 %v5112
    %v6120 = vunpack.c.l.b16 %v5113
    %v6121 = vunpack.c.l.b16 %v5114
    %v6122 = vunpack.c.l.b16 %v5115
    %v6123 = vunpack.c.l.b16 %v5116
    %v6124 = vunpack.c.l.b16 %v5117
    %v6125 = vunpack.c.l.b16 %v5118
    %v6126 = vunpack.c.l.b16 %v5119
    %v6127 = vunpack.c.l.b16 %v5120
    %v6128 = vunpack.c.l.b16 %v5121
    %v6129 = vunpack.c.l.b16 %v5122
    %v6130 = vunpack.c.l.b16 %v5123
    %v6131 = vunpack.c.l.b16 %v5124
    %v6132 = vunpack.c.l.b16 %v5125
    %v6133 = vunpack.c.l.b16 %v5126
    %v6134 = vunpack.c.l.b16 %v5127
    %v6135 = vunpack.c.l.b16 %v5128
    %v6136 = vunpack.c.l.b16 %v5129
    %v6137 = vunpack.c.l.b16 %v5130
    %v6138 = vunpack.c.l.b16 %v5131
    %v6139 = vunpack.c.l.b16 %v5132
    %v6140 = vunpack.c.l.b16 %v5133
    %v6141 = vunpack.c.l.b16 %v5134
    %v6142 = vunpack.c.l.b16 %v5135
    %v6143 = vunpack.c.l.b16 %v5136
    %v6144 = vunpack.c.l.b16 %v5137
    %v6145 = vunpack.c.l.b16 %v5138
    %v6146 = vunpack.c.l.b16 %v5139
    %v6147 = vunpack.c.l.b16 %v5140
    %v6148 = vunpack.c.l.b16 %v5141
    %v6149 = vunpack.c.l.b16 %v5142
    %v6150 = vunpack.c.l.b16 %v5143
    %v6151 = vunpack.c.l.b16 %v5144
    %v6152 = vunpack.c.l.b16 %v5145
    %v6153 = vunpack.c.l.b16 %v5146
    %v6154 = vunpack.c.l.b16 %v5147
    %v6155 = vunpack.c.l.b16 %v5148
    %v6156 = vunpack.c.l.b16 %v5149
    %v6157 = vunpack.c.l.b16 %v5150
    %v6158 = vunpack.c.l.b16 %v5151
    %v6159 = vunpack.c.l.b16 %v5152
    %v6160 = vunpack.c.l.b16 %v5153
    %v6161 = vunpack.c.l.b16 %v5154
    %v6162 = vunpack.c.l.b16 %v5155
    %v6163 = vunpack.c.l.b16 %v5156
    %v6164 = vunpack.c.l.b16 %v5157
    %v6165 = vunpack.c.l.b16 %v5158
    %v6166 = vunpack.c.l.b16 %v5159
    %v6167 = vunpack.c.l.b16 %v5160
    %v6168 = vunpack.c.l.b16 %v5161
    %v6169 = vunpack.c.l.b16 %v5162
    %v6170 = vunpack.c.l.b16 %v5163
    %v6171 = vunpack.c.l.b16 %v5164
    %v6172 = vunpack.c.l.b16 %v5165
    %v6173 = vunpack.c.l.b16 %v5166
    %v6174 = vunpack.c.l.b16 %v5167
    %v6175 = vunpack.c.l.b16 %v5168
    %v6176 = vunpack.c.l.b16 %v5169
    %v6177 = vunpack.c.l.b16 %v5170
    %v6178 = vunpack.c.l.b16 %v5171
    %v6179 = vunpack.c.l.b16 %v5172
    %v6180 = vunpack.c.l.b16 %v5173
    %v6181 = vunpack.c.l.b16 %v5174
    %v6182 = vunpack.c.l.b16 %v5175
    %v6183 = vunpack.c.l.b16 %v5176
    %v6184 = vunpack.c.l.b16 %v5177
    %v6185 = vunpack.c.l.b16 %v5178
    %v6186 = vunpack.c.l.b16 %v5179
    %v6187 = vunpack.c.l.b16 %v5180
    %v6188 = vunpack.c.l.b16 %v5181
    %v6189 = vunpack.c.l.b16 %v5182
    %v6190 = vunpack.c.l.b16 %v5183
    %v6191 = vunpack.c.l.b16 %v5184
    %v6192 = vunpack.c.l.b16 %v5185
    %v6193 = vunpack.c.l.b16 %v5186
    %v6194 = vunpack.c.l.b16 %v5187
    %v6195 = vunpack.c.l.b16 %v5188
    %v6196 = vunpack.c.l.b16 %v5189
    %v6197 = vunpack.c.l.b16 %v5190
    %v6198 = vunpack.c.l.b16 %v5191
    %v6199 = vunpack.c.l.b16 %v5192
    %v6200 = vunpack.c.l.b16 %v5193
    %v6201 = vunpack.c.l.b16 %v5194
    %v6202 = vunpack.c.l.b16 %v5195
    %v6203 = vunpack.c.l.b16 %v5196
    %v6204 = vunpack.c.l.b16 %v5197
    %v6205 = vunpack.c.l.b16 %v5198
    %v6206 = vunpack.c.l.b16 %v5199
    %v6207 = vunpack.c.l.b16 %v5200
    %v6208 = vunpack.c.l.b16 %v5201
    %v6209 = vunpack.c.l.b16 %v5202
    %v6210 = vunpack.c.l.b16 %v5203
    %v6211 = vunpack.c.l.b16 %v5204
    %v6212 = vunpack.c.l.b16 %v5205
    %v6213 = vunpack.c.l.b16 %v5206
    %v6214 = vunpack.c.l.b16 %v5207
    %v6215 = vunpack.c.l.b16 %v5208
    %v6216 = vunpack.c.l.b16 %v5209
    %v6217 = vunpack.c.l.b16 %v5210
    %v6218 = vunpack.c.l.b16 %v5211
    %v6219 = vunpack.c.l.b16 %v5212
    %v6220 = vunpack.c.l.b16 %v5213
    %v6221 = vunpack.c.l.b16 %v5214
    %v6222 = vunpack.c.l.b16 %v5215
    %v6223 = vunpack.c.l.b16 %v5216
    %v6224 = vunpack.c.l.b16 %v5217
    %v6225 = vunpack.c.l.b16 %v5218
    %v6226 = vunpack.c.l.b16 %v5219
    %v6227 = vunpack.c.l.b16 %v5220
    %v6228 = vunpack.c.l.b16 %v5221
    %v6229 = vunpack.c.l.b16 %v5222
    %v6230 = vunpack.c.l.b16 %v5223
    %v6231 = vunpack.c.l.b16 %v5224
    %v6232 = vunpack.c.l.b16 %v5225
    %v6233 = vunpack.c.l.b16 %v5226
    %v6234 = vunpack.c.l.b16 %v5227
    %v6235 = vunpack.c.l.b16 %v5228
    %v6236 = vunpack.c.l.b16 %v5229
    %v6237 = vunpack.c.l.b16 %v5230
    %v6238 = vunpack.c.l.b16 %v5231
    %v6239 = vunpack.c.l.b16 %v5232
    %v6240 = vunpack.c.l.b16 %v5233
    %v6241 = vunpack.c.l.b16 %v5234
    %v6242 = vunpack.c.l.b16 %v5235
    %v6243 = vunpack.c.l.b16 %v5236
    %v6244 = vunpack.c.l.b16 %v5237
    %v6245 = vunpack.c.l.b16 %v5238
    %v6246 = vunpack.c.l.b16 %v5239
    %v6247 = vunpack.c.l.b16 %v5240
    %v6248 = vunpack.c.l.b16 %v5241
    %v6249 = vunpack.c.l.b16 %v5242
    %v6250 = vunpack.c.l.b16 %v5243
    %v6251 = vunpack.c.l.b16 %v5244
    %v6252 = vunpack.c.l.b16 %v5245
    %v6253 = vunpack.c.l.b16 %v5246
    %v6254 = vunpack.c.l.b16 %v5247
    %v6255 = vunpack.c.l.b16 %v5248
    %v6256 = vunpack.c.l.b16 %v5249
    %v6257 = vunpack.c.l.b16 %v5250
    %v6258 = vunpack.c.l.b16 %v5251
    %v6259 = vunpack.c.l.b16 %v5252
    %v6260 = vunpack.c.l.b16 %v5253
    %v6261 = vunpack.c.l.b16 %v5254
    %v6262 = vunpack.c.l.b16 %v5255
    %v6263 = vunpack.c.l.b16 %v5256
    %v6264 = vunpack.c.l.b16 %v5257
    %v6265 = vunpack.c.l.b16 %v5258
    %v6266 = vunpack.c.l.b16 %v5259
    %v6267 = vunpack.c.l.b16 %v5260
    %v6268 = vunpack.c.l.b16 %v5261
    %v6269 = vunpack.c.l.b16 %v5262
    %v6270 = vunpack.c.l.b16 %v5263
    %v6271 = vunpack.c.l.b16 %v5264
    %v6272 = vunpack.c.l.b16 %v5265
    %v6273 = vunpack.c.l.b16 %v5266
    %v6274 = vunpack.c.l.b16 %v5267
    %v6275 = vunpack.c.l.b16 %v5268
    %v6276 = vunpack.c.l.b16 %v5269
    %v6277 = vunpack.c.l.b16 %v5270
    %v6278 = vunpack.c.l.b16 %v5271
    %v6279 = vunpack.c.l.b16 %v5272
    %v6280 = vunpack.c.l.b16 %v5273
    %v6281 = vunpack.c.l.b16 %v5274
    %v6282 = vunpack.c.l.b16 %v5275
    %v6283 = vunpack.c.l.b16 %v5276
    %v6284 = vunpack.c.l.b16 %v5277
    %v6285 = vunpack.c.l.b16 %v5278
    %v6286 = vunpack.c.l.b16 %v5279
    %v6287 = vunpack.c.l.b16 %v5280
    %v6288 = vunpack.c.l.b16 %v5281
    %v6289 = vunpack.c.l.b16 %v5282
    %v6290 = vunpack.c.l.b16 %v5283
    %v6291 = vunpack.c.l.b16 %v5284
    %v6292 = vunpack.c.l.b16 %v5285
    %v6293 = vunpack.c.l.b16 %v5286
    %v6294 = vunpack.c.l.b16 %v5287
    %v6295 = vunpack.c.l.b16 %v5288
    %v6296 = vunpack.c.l.b16 %v5289
    %v6297 = vunpack.c.l.b16 %v5290
    %v6298 = vunpack.c.l.b16 %v5291
    %v6299 = vunpack.c.l.b16 %v5292
    %v6300 = vunpack.c.l.b16 %v5293
    %v6301 = vunpack.c.l.b16 %v5294
    %v6302 = vunpack.c.l.b16 %v5295
    %v6303 = vunpack.c.l.b16 %v5296
    %v6304 = vunpack.c.l.b16 %v5297
    %v6305 = vunpack.c.l.b16 %v5298
    %v6306 = vunpack.c.l.b16 %v5299
    %v6307 = vunpack.c.l.b16 %v5300
    %v6308 = vunpack.c.l.b16 %v5301
    %v6309 = vpack.c.b16 %v6022, %v6021
    %v6310 = vpack.c.b16 %v6024, %v6023
    %v6311 = vpack.c.b16 %v6026, %v6025
    %v6312 = vpack.c.b16 %v6028, %v6027
    %v6313 = vpack.c.b16 %v6030, %v6029
    %v6314 = vpack.c.b16 %v6032, %v6031
    %v6315 = vpack.c.b16 %v6034, %v6033
    %v6316 = vpack.c.b16 %v6036, %v6035
    %v6317 = vpack.c.b16 %v6038, %v6037
    %v6318 = vpack.c.b16 %v6040, %v6039
    %v6319 = vpack.c.b16 %v6042, %v6041
    %v6320 = vpack.c.b16 %v6044, %v6043
    %v6321 = vpack.c.b16 %v6046, %v6045
    %v6322 = vpack.c.b16 %v6048, %v6047
    %v6323 = vpack.c.b16 %v6050, %v6049
    %v6324 = vpack.c.b16 %v6052, %v6051
    %v6325 = vpack.c.b16 %v6054, %v6053
    %v6326 = vpack.c.b16 %v6056, %v6055
    %v6327 = vpack.c.b16 %v6058, %v6057
    %v6328 = vpack.c.b16 %v6060, %v6059
    %v6329 = vpack.c.b16 %v6062, %v6061
    %v6330 = vpack.c.b16 %v6064, %v6063
    %v6331 = vpack.c.b16 %v6066, %v6065
    %v6332 = vpack.c.b16 %v6068, %v6067
    %v6333 = vpack.c.b16 %v6070, %v6069
    %v6334 = vpack.c.b16 %v6072, %v6071
    %v6335 = vpack.c.b16 %v6074, %v6073
    %v6336 = vpack.c.b16 %v6076, %v6075
    %v6337 = vpack.c.b16 %v6078, %v6077
    %v6338 = vpack.c.b16 %v6080, %v6079
    %v6339 = vpack.c.b16 %v6082, %v6081
    %v6340 = vpack.c.b16 %v6084, %v6083
    %v6341 = vpack.c.b16 %v6086, %v6085
    %v6342 = vpack.c.b16 %v6088, %v6087
    %v6343 = vpack.c.b16 %v6090, %v6089
    %v6344 = vpack.c.b16 %v6092, %v6091
    %v6345 = vpack.c.b16 %v6094, %v6093
    %v6346 = vpack.c.b16 %v6096, %v6095
    %v6347 = vpack.c.b16 %v6098, %v6097
    %v6348 = vpack.c.b16 %v6100, %v6099
    %v6349 = vpack.c.b16 %v6102, %v6101
    %v6350 = vpack.c.b16 %v6104, %v6103
    %v6351 = vpack.c.b16 %v6106, %v6105
    %v6352 = vpack.c.b16 %v6108, %v6107
    %v6353 = vpack.c.b16 %v6110, %v6109
    %v6354 = vpack.c.b16 %v6112, %v6111
    %v6355 = vpack.c.b16 %v6114, %v6113
    %v6356 = vpack.c.b16 %v6116, %v6115
    %v6357 = vpack.c.b16 %v6118, %v6117
    %v6358 = vpack.c.b16 %v6120, %v6119
    %v6359 = vpack.c.b16 %v6122, %v6121
    %v6360 = vpack.c.b16 %v6124, %v6123
    %v6361 = vpack.c.b16 %v6126, %v6125
    %v6362 = vpack.c.b16 %v6128, %v6127
    %v6363 = vpack.c.b16 %v6130, %v6129
    %v6364 = vpack.c.b16 %v6132, %v6131
    %v6365 = vpack.c.b16 %v6134, %v6133
    %v6366 = vpack.c.b16 %v6136, %v6135
    %v6367 = vpack.c.b16 %v6138, %v6137
    %v6368 = vpack.c.b16 %v6140, %v6139
    %v6369 = vpack.c.b16 %v6142, %v6141
    %v6370 = vpack.c.b16 %v6144, %v6143
    %v6371 = vpack.c.b16 %v6146, %v6145
    %v6372 = vpack.c.b16 %v6148, %v6147
    %v6373 = vpack.c.b16 %v6150, %v6149
    %v6374 = vpack.c.b16 %v6152, %v6151
    %v6375 = vpack.c.b16 %v6154, %v6153
    %v6376 = vpack.c.b16 %v6156, %v6155
    %v6377 = vpack.c.b16 %v6158, %v6157
    %v6378 = vpack.c.b16 %v6160, %v6159
    %v6379 = vpack.c.b16 %v6162, %v6161
    %v6380 = vpack.c.b16 %v6164, %v6163
    %v6381 = vpack.c.b16 %v6166, %v6165
    %v6382 = vpack.c.b16 %v6168, %v6167
    %v6383 = vpack.c.b16 %v6170, %v6169
    %v6384 = vpack.c.b16 %v6172, %v6171
    %v6385 = vpack.c.b16 %v6174, %v6173
    %v6386 = vpack.c.b16 %v6176, %v6175
    %v6387 = vpack.c.b16 %v6178, %v6177
    %v6388 = vpack.c.b16 %v6180, %v6179
    %v6389 = vpack.c.b16 %v6182, %v6181
    %v6390 = vpack.c.b16 %v6184, %v6183
    %v6391 = vpack.c.b16 %v6186, %v6185
    %v6392 = vpack.c.b16 %v6188, %v6187
    %v6393 = vpack.c.b16 %v6190, %v6189
    %v6394 = vpack.c.b16 %v6192, %v6191
    %v6395 = vpack.c.b16 %v6194, %v6193
    %v6396 = vpack.c.b16 %v6196, %v6195
    %v6397 = vpack.c.b16 %v6198, %v6197
    %v6398 = vpack.c.b16 %v6200, %v6199
    %v6399 = vpack.c.b16 %v6202, %v6201
    %v6400 = vpack.c.b16 %v6204, %v6203
    %v6401 = vpack.c.b16 %v6206, %v6205
    %v6402 = vpack.c.b16 %v6208, %v6207
    %v6403 = vpack.c.b16 %v6210, %v6209
    %v6404 = vpack.c.b16 %v6212, %v6211
    %v6405 = vpack.c.b16 %v6214, %v6213
    %v6406 = vpack.c.b16 %v6216, %v6215
    %v6407 = vpack.c.b16 %v6218, %v6217
    %v6408 = vpack.c.b16 %v6220, %v6219
    %v6409 = vpack.c.b16 %v6222, %v6221
    %v6410 = vpack.c.b16 %v6224, %v6223
    %v6411 = vpack.c.b16 %v6226, %v6225
    %v6412 = vpack.c.b16 %v6228, %v6227
    %v6413 = vpack.c.b16 %v6230, %v6229
    %v6414 = vpack.c.b16 %v6232, %v6231
    %v6415 = vpack.c.b16 %v6234, %v6233
    %v6416 = vpack.c.b16 %v6236, %v6235
    %v6417 = vpack.c.b16 %v6238, %v6237
    %v6418 = vpack.c.b16 %v6240, %v6239
    %v6419 = vpack.c.b16 %v6242, %v6241
    %v6420 = vpack.c.b16 %v6244, %v6243
    %v6421 = vpack.c.b16 %v6246, %v6245
    %v6422 = vpack.c.b16 %v6248, %v6247
    %v6423 = vpack.c.b16 %v6250, %v6249
    %v6424 = vpack.c.b16 %v6252, %v6251
    %v6425 = vpack.c.b16 %v6254, %v6253
    %v6426 = vpack.c.b16 %v6256, %v6255
    %v6427 = vpack.c.b16 %v6258, %v6257
    %v6428 = vpack.c.b16 %v6260, %v6259
    %v6429 = vpack.c.b16 %v6262, %v6261
    %v6430 = vpack.c.b16 %v6264, %v6263
    %v6431 = vpack.c.b16 %v6266, %v6265
    %v6432 = vpack.c.b16 %v6268, %v6267
    %v6433 = vpack.c.b16 %v6270, %v6269
    %v6434 = vpack.c.b16 %v6272, %v6271
    %v6435 = vpack.c.b16 %v6274, %v6273
    %v6436 = vpack.c.b16 %v6276, %v6275
    %v6437 = vpack.c.b16 %v6278, %v6277
    %v6438 = vpack.c.b16 %v6280, %v6279
    %v6439 = vpack.c.b16 %v6282, %v6281
    %v6440 = vpack.c.b16 %v6284, %v6283
    %v6441 = vpack.c.b16 %v6286, %v6285
    %v6442 = vpack.c.b16 %v6288, %v6287
    %v6443 = vpack.c.b16 %v6290, %v6289
    %v6444 = vpack.c.b16 %v6292, %v6291
    %v6445 = vpack.c.b16 %v6294, %v6293
    %v6446 = vpack.c.b16 %v6296, %v6295
    %v6447 = vpack.c.b16 %v6298, %v6297
    %v6448 = vpack.c.b16 %v6300, %v6299
    %v6449 = vpack.c.b16 %v6302, %v6301
    %v6450 = vpack.c.b16 %v6304, %v6303
    %v6451 = vpack.c.b16 %v6306, %v6305
    %v6452 = vpack.c.b16 %v6308, %v6307
    %6597 = vmatprep.subr.bf16.mxu0 0
    %6598 = vmatpush1.bf16.msra.mxu0 %v6316
    %6599 = vmatprep.subr.bf16.mxu0 0
    %6600 = vmatpush1.bf16.msra.mxu0 %v6315
    %6601 = vmatprep.subr.bf16.mxu0 0
    %6602 = vmatpush1.bf16.msra.mxu0 %v6314
    %6603 = vmatprep.subr.bf16.mxu0 0
    %6604 = vmatpush1.bf16.msra.mxu0 %v6313
    %6605 = vmatprep.subr.bf16.mxu0 0
    %6606 = vmatpush1.bf16.msra.mxu0 %v6312
    %6607 = vmatprep.subr.bf16.mxu0 0
    %6608 = vmatpush1.bf16.msra.mxu0 %v6311
    %6609 = vmatprep.subr.bf16.mxu0 0
    %6610 = vmatpush1.bf16.msra.mxu0 %v6310
    %6611 = vmatprep.subr.bf16.mxu0 0
    %6612 = vmatpush1.bf16.msra.mxu0 %v6309
    %6613 = vmatprep.subr.bf16.mxu0 0
    %6614 = vmatpush2.bf16.msra.mxu0 %v6324
    %6615 = vmatprep.subr.bf16.mxu0 0
    %6616 = vmatpush2.bf16.msra.mxu0 %v6323
    %6617 = vmatprep.subr.bf16.mxu0 0
    %6618 = vmatpush2.bf16.msra.mxu0 %v6322
    %6619 = vmatprep.subr.bf16.mxu0 0
    %6620 = vmatpush2.bf16.msra.mxu0 %v6321
    %6621 = vmatprep.subr.bf16.mxu0 0
    %6622 = vmatpush2.bf16.msra.mxu0 %v6320
    %6623 = vmatprep.subr.bf16.mxu0 0
    %6624 = vmatpush2.bf16.msra.mxu0 %v6319
    %6625 = vmatprep.subr.bf16.mxu0 0
    %6626 = vmatpush2.bf16.msra.mxu0 %v6318
    %6627 = vmatprep.subr.bf16.mxu0 0
    %6628 = vmatpush2.bf16.msra.mxu0 %v6317
    %6629 = vmatprep.mubr.bf16.mxu0 %v5356
    %6630 = vmatmul.mubr.bf16.gmra.mxu0 %v5355
    %v6631 = vpop.f32.mrf.mxu0
    %v6632 = vadd.f32 0.0, %v6631
    %v6633 = vpop.f32.mrf.mxu0
    %v6634 = vpop.f32.mrf.mxu0
    %v6635 = vpop.f32.mrf.mxu0
    %6636 = vdwg.mxu0
    %6637 = vmatprep.subr.bf16.mxu0 0
    %6638 = vmatpush1.bf16.msra.mxu0 %v6332
    %6639 = vmatprep.subr.bf16.mxu0 0
    %6640 = vmatpush1.bf16.msra.mxu0 %v6331
    %6641 = vmatprep.subr.bf16.mxu0 0
    %6642 = vmatpush1.bf16.msra.mxu0 %v6330
    %6643 = vmatprep.subr.bf16.mxu0 0
    %6644 = vmatpush1.bf16.msra.mxu0 %v6329
    %6645 = vmatprep.subr.bf16.mxu0 0
    %6646 = vmatpush1.bf16.msra.mxu0 %v6328
    %6647 = vmatprep.subr.bf16.mxu0 0
    %6648 = vmatpush1.bf16.msra.mxu0 %v6327
    %6649 = vmatprep.subr.bf16.mxu0 0
    %6650 = vmatpush1.bf16.msra.mxu0 %v6326
    %6651 = vmatprep.subr.bf16.mxu0 0
    %6652 = vmatpush1.bf16.msra.mxu0 %v6325
    %6653 = vmatprep.subr.bf16.mxu0 0
    %6654 = vmatpush2.bf16.msra.mxu0 %v6340
    %6655 = vmatprep.subr.bf16.mxu0 0
    %6656 = vmatpush2.bf16.msra.mxu0 %v6339
    %6657 = vmatprep.subr.bf16.mxu0 0
    %6658 = vmatpush2.bf16.msra.mxu0 %v6338
    %6659 = vmatprep.subr.bf16.mxu0 0
    %6660 = vmatpush2.bf16.msra.mxu0 %v6337
    %6661 = vmatprep.subr.bf16.mxu0 0
    %6662 = vmatpush2.bf16.msra.mxu0 %v6336
    %6663 = vmatprep.subr.bf16.mxu0 0
    %6664 = vmatpush2.bf16.msra.mxu0 %v6335
    %6665 = vmatprep.subr.bf16.mxu0 0
    %6666 = vmatpush2.bf16.msra.mxu0 %v6334
    %6667 = vmatprep.subr.bf16.mxu0 0
    %6668 = vmatpush2.bf16.msra.mxu0 %v6333
    %6669 = vmatprep.mubr.bf16.mxu0 %v5403
    %6670 = vmatmul.mubr.bf16.gmra.mxu0 %v5402
    %v6671 = vpop.f32.mrf.mxu0
    %v6672 = vadd.f32 %v6632, %v6671
    %v6673 = vpop.f32.mrf.mxu0
    %v6674 = vpop.f32.mrf.mxu0
    %v6675 = vpop.f32.mrf.mxu0
    %6676 = vdwg.mxu0
    %6677 = vmatprep.subr.bf16.mxu0 0
    %6678 = vmatpush1.bf16.msra.mxu0 %v6348
    %6679 = vmatprep.subr.bf16.mxu0 0
    %6680 = vmatpush1.bf16.msra.mxu0 %v6347
    %6681 = vmatprep.subr.bf16.mxu0 0
    %6682 = vmatpush1.bf16.msra.mxu0 %v6346
    %6683 = vmatprep.subr.bf16.mxu0 0
    %6684 = vmatpush1.bf16.msra.mxu0 %v6345
    %6685 = vmatprep.subr.bf16.mxu0 0
    %6686 = vmatpush1.bf16.msra.mxu0 %v6344
    %6687 = vmatprep.subr.bf16.mxu0 0
    %6688 = vmatpush1.bf16.msra.mxu0 %v6343
    %6689 = vmatprep.subr.bf16.mxu0 0
    %6690 = vmatpush1.bf16.msra.mxu0 %v6342
    %6691 = vmatprep.subr.bf16.mxu0 0
    %6692 = vmatpush1.bf16.msra.mxu0 %v6341
    %6693 = vmatprep.subr.bf16.mxu0 0
    %6694 = vmatpush2.bf16.msra.mxu0 %v6356
    %6695 = vmatprep.subr.bf16.mxu0 0
    %6696 = vmatpush2.bf16.msra.mxu0 %v6355
    %6697 = vmatprep.subr.bf16.mxu0 0
    %6698 = vmatpush2.bf16.msra.mxu0 %v6354
    %6699 = vmatprep.subr.bf16.mxu0 0
    %6700 = vmatpush2.bf16.msra.mxu0 %v6353
    %6701 = vmatprep.subr.bf16.mxu0 0
    %6702 = vmatpush2.bf16.msra.mxu0 %v6352
    %6703 = vmatprep.subr.bf16.mxu0 0
    %6704 = vmatpush2.bf16.msra.mxu0 %v6351
    %6705 = vmatprep.subr.bf16.mxu0 0
    %6706 = vmatpush2.bf16.msra.mxu0 %v6350
    %6707 = vmatprep.subr.bf16.mxu0 0
    %6708 = vmatpush2.bf16.msra.mxu0 %v6349
    %6709 = vmatprep.mubr.bf16.mxu0 %v5450
    %6710 = vmatmul.mubr.bf16.gmra.mxu0 %v5449
    %v6711 = vpop.f32.mrf.mxu0
    %v6712 = vadd.f32 %v6672, %v6711
    %v6713 = vpop.f32.mrf.mxu0
    %v6714 = vpop.f32.mrf.mxu0
    %v6715 = vpop.f32.mrf.mxu0
    %6716 = vdwg.mxu0
    %6717 = vmatprep.subr.bf16.mxu0 0
    %6718 = vmatpush1.bf16.msra.mxu0 %v6364
    %6719 = vmatprep.subr.bf16.mxu0 0
    %6720 = vmatpush1.bf16.msra.mxu0 %v6363
    %6721 = vmatprep.subr.bf16.mxu0 0
    %6722 = vmatpush1.bf16.msra.mxu0 %v6362
    %6723 = vmatprep.subr.bf16.mxu0 0
    %6724 = vmatpush1.bf16.msra.mxu0 %v6361
    %6725 = vmatprep.subr.bf16.mxu0 0
    %6726 = vmatpush1.bf16.msra.mxu0 %v6360
    %6727 = vmatprep.subr.bf16.mxu0 0
    %6728 = vmatpush1.bf16.msra.mxu0 %v6359
    %6729 = vmatprep.subr.bf16.mxu0 0
    %6730 = vmatpush1.bf16.msra.mxu0 %v6358
    %6731 = vmatprep.subr.bf16.mxu0 0
    %6732 = vmatpush1.bf16.msra.mxu0 %v6357
    %6733 = vmatprep.subr.bf16.mxu0 0
    %6734 = vmatpush2.bf16.msra.mxu0 %v6372
    %6735 = vmatprep.subr.bf16.mxu0 0
    %6736 = vmatpush2.bf16.msra.mxu0 %v6371
    %6737 = vmatprep.subr.bf16.mxu0 0
    %6738 = vmatpush2.bf16.msra.mxu0 %v6370
    %6739 = vmatprep.subr.bf16.mxu0 0
    %6740 = vmatpush2.bf16.msra.mxu0 %v6369
    %6741 = vmatprep.subr.bf16.mxu0 0
    %6742 = vmatpush2.bf16.msra.mxu0 %v6368
    %6743 = vmatprep.subr.bf16.mxu0 0
    %6744 = vmatpush2.bf16.msra.mxu0 %v6367
    %6745 = vmatprep.subr.bf16.mxu0 0
    %6746 = vmatpush2.bf16.msra.mxu0 %v6366
    %6747 = vmatprep.subr.bf16.mxu0 0
    %6748 = vmatpush2.bf16.msra.mxu0 %v6365
    %6749 = vmatprep.mubr.bf16.mxu0 %v5497
    %6750 = vmatmul.mubr.bf16.gmra.mxu0 %v5496
    %v6751 = vpop.f32.mrf.mxu0
    %v6752 = vadd.f32 %v6712, %v6751
    %v6753 = vpop.f32.mrf.mxu0
    %v6754 = vpop.f32.mrf.mxu0
    %v6755 = vpop.f32.mrf.mxu0
    %6756 = vdwg.mxu0
    %6757 = vmatprep.subr.bf16.mxu0 0
    %6758 = vmatpush1.bf16.msra.mxu0 %v6380
    %6759 = vmatprep.subr.bf16.mxu0 0
    %6760 = vmatpush1.bf16.msra.mxu0 %v6379
    %6761 = vmatprep.subr.bf16.mxu0 0
    %6762 = vmatpush1.bf16.msra.mxu0 %v6378
    %6763 = vmatprep.subr.bf16.mxu0 0
    %6764 = vmatpush1.bf16.msra.mxu0 %v6377
    %6765 = vmatprep.subr.bf16.mxu0 0
    %6766 = vmatpush1.bf16.msra.mxu0 %v6376
    %6767 = vmatprep.subr.bf16.mxu0 0
    %6768 = vmatpush1.bf16.msra.mxu0 %v6375
    %6769 = vmatprep.subr.bf16.mxu0 0
    %6770 = vmatpush1.bf16.msra.mxu0 %v6374
    %6771 = vmatprep.subr.bf16.mxu0 0
    %6772 = vmatpush1.bf16.msra.mxu0 %v6373
    %6773 = vmatprep.subr.bf16.mxu0 0
    %6774 = vmatpush2.bf16.msra.mxu0 %v6388
    %6775 = vmatprep.subr.bf16.mxu0 0
    %6776 = vmatpush2.bf16.msra.mxu0 %v6387
    %6777 = vmatprep.subr.bf16.mxu0 0
    %6778 = vmatpush2.bf16.msra.mxu0 %v6386
    %6779 = vmatprep.subr.bf16.mxu0 0
    %6780 = vmatpush2.bf16.msra.mxu0 %v6385
    %6781 = vmatprep.subr.bf16.mxu0 0
    %6782 = vmatpush2.bf16.msra.mxu0 %v6384
    %6783 = vmatprep.subr.bf16.mxu0 0
    %6784 = vmatpush2.bf16.msra.mxu0 %v6383
    %6785 = vmatprep.subr.bf16.mxu0 0
    %6786 = vmatpush2.bf16.msra.mxu0 %v6382
    %6787 = vmatprep.subr.bf16.mxu0 0
    %6788 = vmatpush2.bf16.msra.mxu0 %v6381
    %6789 = vmatprep.mubr.bf16.mxu0 %v5544
    %6790 = vmatmul.mubr.bf16.gmra.mxu0 %v5543
    %v6791 = vpop.f32.mrf.mxu0
    %v6792 = vadd.f32 %v6752, %v6791
    %v6793 = vpop.f32.mrf.mxu0
    %v6794 = vpop.f32.mrf.mxu0
    %v6795 = vpop.f32.mrf.mxu0
    %6796 = vdwg.mxu0
    %6797 = vmatprep.subr.bf16.mxu0 0
    %6798 = vmatpush1.bf16.msra.mxu0 %v6396
    %6799 = vmatprep.subr.bf16.mxu0 0
    %6800 = vmatpush1.bf16.msra.mxu0 %v6395
    %6801 = vmatprep.subr.bf16.mxu0 0
    %6802 = vmatpush1.bf16.msra.mxu0 %v6394
    %6803 = vmatprep.subr.bf16.mxu0 0
    %6804 = vmatpush1.bf16.msra.mxu0 %v6393
    %6805 = vmatprep.subr.bf16.mxu0 0
    %6806 = vmatpush1.bf16.msra.mxu0 %v6392
    %6807 = vmatprep.subr.bf16.mxu0 0
    %6808 = vmatpush1.bf16.msra.mxu0 %v6391
    %6809 = vmatprep.subr.bf16.mxu0 0
    %6810 = vmatpush1.bf16.msra.mxu0 %v6390
    %6811 = vmatprep.subr.bf16.mxu0 0
    %6812 = vmatpush1.bf16.msra.mxu0 %v6389
    %6813 = vmatprep.subr.bf16.mxu0 0
    %6814 = vmatpush2.bf16.msra.mxu0 %v6404
    %6815 = vmatprep.subr.bf16.mxu0 0
    %6816 = vmatpush2.bf16.msra.mxu0 %v6403
    %6817 = vmatprep.subr.bf16.mxu0 0
    %6818 = vmatpush2.bf16.msra.mxu0 %v6402
    %6819 = vmatprep.subr.bf16.mxu0 0
    %6820 = vmatpush2.bf16.msra.mxu0 %v6401
    %6821 = vmatprep.subr.bf16.mxu0 0
    %6822 = vmatpush2.bf16.msra.mxu0 %v6400
    %6823 = vmatprep.subr.bf16.mxu0 0
    %6824 = vmatpush2.bf16.msra.mxu0 %v6399
    %6825 = vmatprep.subr.bf16.mxu0 0
    %6826 = vmatpush2.bf16.msra.mxu0 %v6398
    %6827 = vmatprep.subr.bf16.mxu0 0
    %6828 = vmatpush2.bf16.msra.mxu0 %v6397
    %6829 = vmatprep.mubr.bf16.mxu0 %v5591
    %6830 = vmatmul.mubr.bf16.gmra.mxu0 %v5590
    %v6831 = vpop.f32.mrf.mxu0
    %v6832 = vadd.f32 %v6792, %v6831
    %v6833 = vpop.f32.mrf.mxu0
    %v6834 = vpop.f32.mrf.mxu0
    %v6835 = vpop.f32.mrf.mxu0
    %6836 = vdwg.mxu0
    %6837 = vmatprep.subr.bf16.mxu0 0
    %6838 = vmatpush1.bf16.msra.mxu0 %v6412
    %6839 = vmatprep.subr.bf16.mxu0 0
    %6840 = vmatpush1.bf16.msra.mxu0 %v6411
    %6841 = vmatprep.subr.bf16.mxu0 0
    %6842 = vmatpush1.bf16.msra.mxu0 %v6410
    %6843 = vmatprep.subr.bf16.mxu0 0
    %6844 = vmatpush1.bf16.msra.mxu0 %v6409
    %6845 = vmatprep.subr.bf16.mxu0 0
    %6846 = vmatpush1.bf16.msra.mxu0 %v6408
    %6847 = vmatprep.subr.bf16.mxu0 0
    %6848 = vmatpush1.bf16.msra.mxu0 %v6407
    %6849 = vmatprep.subr.bf16.mxu0 0
    %6850 = vmatpush1.bf16.msra.mxu0 %v6406
    %6851 = vmatprep.subr.bf16.mxu0 0
    %6852 = vmatpush1.bf16.msra.mxu0 %v6405
    %6853 = vmatprep.subr.bf16.mxu0 0
    %6854 = vmatpush2.bf16.msra.mxu0 %v6420
    %6855 = vmatprep.subr.bf16.mxu0 0
    %6856 = vmatpush2.bf16.msra.mxu0 %v6419
    %6857 = vmatprep.subr.bf16.mxu0 0
    %6858 = vmatpush2.bf16.msra.mxu0 %v6418
    %6859 = vmatprep.subr.bf16.mxu0 0
    %6860 = vmatpush2.bf16.msra.mxu0 %v6417
    %6861 = vmatprep.subr.bf16.mxu0 0
    %6862 = vmatpush2.bf16.msra.mxu0 %v6416
    %6863 = vmatprep.subr.bf16.mxu0 0
    %6864 = vmatpush2.bf16.msra.mxu0 %v6415
    %6865 = vmatprep.subr.bf16.mxu0 0
    %6866 = vmatpush2.bf16.msra.mxu0 %v6414
    %6867 = vmatprep.subr.bf16.mxu0 0
    %6868 = vmatpush2.bf16.msra.mxu0 %v6413
    %6869 = vmatprep.mubr.bf16.mxu0 %v5638
    %6870 = vmatmul.mubr.bf16.gmra.mxu0 %v5637
    %v6871 = vpop.f32.mrf.mxu0
    %v6872 = vadd.f32 %v6832, %v6871
    %v6873 = vpop.f32.mrf.mxu0
    %v6874 = vpop.f32.mrf.mxu0
    %v6875 = vpop.f32.mrf.mxu0
    %6876 = vdwg.mxu0
    %6877 = vmatprep.subr.bf16.mxu0 0
    %6878 = vmatpush1.bf16.msra.mxu0 %v6428
    %6879 = vmatprep.subr.bf16.mxu0 0
    %6880 = vmatpush1.bf16.msra.mxu0 %v6427
    %6881 = vmatprep.subr.bf16.mxu0 0
    %6882 = vmatpush1.bf16.msra.mxu0 %v6426
    %6883 = vmatprep.subr.bf16.mxu0 0
    %6884 = vmatpush1.bf16.msra.mxu0 %v6425
    %6885 = vmatprep.subr.bf16.mxu0 0
    %6886 = vmatpush1.bf16.msra.mxu0 %v6424
    %6887 = vmatprep.subr.bf16.mxu0 0
    %6888 = vmatpush1.bf16.msra.mxu0 %v6423
    %6889 = vmatprep.subr.bf16.mxu0 0
    %6890 = vmatpush1.bf16.msra.mxu0 %v6422
    %6891 = vmatprep.subr.bf16.mxu0 0
    %6892 = vmatpush1.bf16.msra.mxu0 %v6421
    %6893 = vmatprep.subr.bf16.mxu0 0
    %6894 = vmatpush2.bf16.msra.mxu0 %v6436
    %6895 = vmatprep.subr.bf16.mxu0 0
    %6896 = vmatpush2.bf16.msra.mxu0 %v6435
    %6897 = vmatprep.subr.bf16.mxu0 0
    %6898 = vmatpush2.bf16.msra.mxu0 %v6434
    %6899 = vmatprep.subr.bf16.mxu0 0
    %6900 = vmatpush2.bf16.msra.mxu0 %v6433
    %6901 = vmatprep.subr.bf16.mxu0 0
    %6902 = vmatpush2.bf16.msra.mxu0 %v6432
    %6903 = vmatprep.subr.bf16.mxu0 0
    %6904 = vmatpush2.bf16.msra.mxu0 %v6431
    %6905 = vmatprep.subr.bf16.mxu0 0
    %6906 = vmatpush2.bf16.msra.mxu0 %v6430
    %6907 = vmatprep.subr.bf16.mxu0 0
    %6908 = vmatpush2.bf16.msra.mxu0 %v6429
    %6909 = vmatprep.mubr.bf16.mxu0 %v5685
    %6910 = vmatmul.mubr.bf16.gmra.mxu0 %v5684
    %v6911 = vpop.f32.mrf.mxu0
    %v6912 = vadd.f32 %v6872, %v6911
    %v6913 = vpop.f32.mrf.mxu0
    %v6914 = vpop.f32.mrf.mxu0
    %v6915 = vpop.f32.mrf.mxu0
    %6916 = vdwg.mxu0
    %6917 = vmatprep.subr.bf16.mxu0 0
    %6918 = vmatpush1.bf16.msra.mxu0 %v6444
    %6919 = vmatprep.subr.bf16.mxu0 0
    %6920 = vmatpush1.bf16.msra.mxu0 %v6443
    %6921 = vmatprep.subr.bf16.mxu0 0
    %6922 = vmatpush1.bf16.msra.mxu0 %v6442
    %6923 = vmatprep.subr.bf16.mxu0 0
    %6924 = vmatpush1.bf16.msra.mxu0 %v6441
    %6925 = vmatprep.subr.bf16.mxu0 0
    %6926 = vmatpush1.bf16.msra.mxu0 %v6440
    %6927 = vmatprep.subr.bf16.mxu0 0
    %6928 = vmatpush1.bf16.msra.mxu0 %v6439
    %6929 = vmatprep.subr.bf16.mxu0 0
    %6930 = vmatpush1.bf16.msra.mxu0 %v6438
    %6931 = vmatprep.subr.bf16.mxu0 0
    %6932 = vmatpush1.bf16.msra.mxu0 %v6437
    %6933 = vmatprep.subr.bf16.mxu0 0
    %6934 = vmatpush2.bf16.msra.mxu0 %v6452
    %6935 = vmatprep.subr.bf16.mxu0 0
    %6936 = vmatpush2.bf16.msra.mxu0 %v6451
    %6937 = vmatprep.subr.bf16.mxu0 0
    %6938 = vmatpush2.bf16.msra.mxu0 %v6450
    %6939 = vmatprep.subr.bf16.mxu0 0
    %6940 = vmatpush2.bf16.msra.mxu0 %v6449
    %6941 = vmatprep.subr.bf16.mxu0 0
    %6942 = vmatpush2.bf16.msra.mxu0 %v6448
    %6943 = vmatprep.subr.bf16.mxu0 0
    %6944 = vmatpush2.bf16.msra.mxu0 %v6447
    %6945 = vmatprep.subr.bf16.mxu0 0
    %6946 = vmatpush2.bf16.msra.mxu0 %v6446
    %6947 = vmatprep.subr.bf16.mxu0 0
    %6948 = vmatpush2.bf16.msra.mxu0 %v6445
    %6949 = vmatprep.mubr.bf16.mxu0 %v5732
    %6950 = vmatmul.mubr.bf16.gmra.mxu0 %v5731
    %v6951 = vpop.f32.mrf.mxu0
    %v6952 = vadd.f32 %v6912, %v6951
    %v6953 = vpop.f32.mrf.mxu0
    %v6954 = vpop.f32.mrf.mxu0
    %v6955 = vpop.f32.mrf.mxu0
    %6956 = vdwg.mxu0
    %v6957 = vadd.f32 %v6952, 0.0
    %s6958 = scalar_lea.vmem %s11, 1
    %v6959 = vld [vmem:[%s6958] ss:$4 sm:$0x3]
    %s6960 = scalar_lea.vmem %s12, 1
    %v6961 = vld [vmem:[%s6960] ss:$4 sm:$0x3]
    %v6962 = vrot.slane %v6957, 4
    %v6963 = vadd.f32 %v6957, %v6962
    %v6964 = vrot.slane %v6963, 2
    %v6965 = vadd.f32 %v6963, %v6964
    %v6966 = vrot.slane %v6965, 1
    %v6967 = vadd.f32 %v6965, %v6966
    %v6968 = vmul.f32 %v6967, %v4949
    %v6969 = vsub.f32 %v6957, %v6968
    %v6970 = vmul.f32 %v6969, %v6969
    %v6971 = vrot.slane %v6970, 4
    %v6972 = vadd.f32 %v6970, %v6971
    %v6973 = vrot.slane %v6972, 2
    %v6974 = vadd.f32 %v6972, %v6973
    %v6975 = vrot.slane %v6974, 1
    %v6976 = vadd.f32 %v6974, %v6975
    %v6977 = vmul.f32 %v6976, %v4949
    %v6978 = vadd.f32 %v6977, 1e-05
    %v6979 = vrsqrt.pop %v6978
    %v6981 = vlaneseq
    %v6982 = vshrl.u32 %v6981, 7
    %v6983 = vsub.s32 0, %v6982
    %v6984 = vrot.slane %v6959, %v6983
    %v6985 = vlaneseq
    %v6986 = vshrl.u32 %v6985, 7
    %v6987 = vsub.s32 1, %v6986
    %v6988 = vrot.slane %v6959, %v6987
    %v6991 = vmul.f32 %v4972, %v6984
    %v6992 = vmul.f32 %v6979, %v6988
    %v6993 = vlaneseq
    %v6994 = vshrl.u32 %v6993, 7
    %v6995 = vsub.s32 0, %v6994
    %v6996 = vrot.slane %v6991, %v6995
    %v6997 = vlaneseq
    %v6998 = vshrl.u32 %v6997, 7
    %v6999 = vsub.s32 0, %v6998
    %v7000 = vrot.slane %v6992, %v6999
    %v7001 = vmul.f32 %v4952, %v6996
    %v7002 = vmul.f32 %v6969, %v7000
    %v7004 = vlaneseq
    %v7005 = vshrl.u32 %v7004, 7
    %v7006 = vsub.s32 0, %v7005
    %v7007 = vrot.slane %v6961, %v7006
    %v7008 = vlaneseq
    %v7009 = vshrl.u32 %v7008, 7
    %v7010 = vsub.s32 1, %v7009
    %v7011 = vrot.slane %v6961, %v7010
    %v7014 = vadd.f32 %v7001, %v7007
    %v7015 = vadd.f32 %v7002, %v7011
    %v7016 = vmax.f32 %v7014, 0.0
    %v7017 = vmax.f32 %v7015, 0.0
    %v7018 = vpack.c.bf16 %v7016, %v7016
    %v7019 = vpack.c.bf16 %v7017, %v7017
    %s7020 = scalar_lea.vmem %s13, 1152
    %v7021 = vld [vmem:[%s7020] sm:$0xf]
    %v7022 = vld [vmem:[%s7020 + $0x4] sm:$0xf]
    %v7023 = vld [vmem:[%s7020 + $0x8] sm:$0xf]
    %v7024 = vld [vmem:[%s7020 + $0xc] sm:$0xf]
    %v7025 = vld [vmem:[%s7020 + $0x10] sm:$0xf]
    %v7026 = vld [vmem:[%s7020 + $0x14] sm:$0xf]
    %v7027 = vld [vmem:[%s7020 + $0x18] sm:$0xf]
    %v7028 = vld [vmem:[%s7020 + $0x1c] sm:$0xf]
    %v7029 = vld [vmem:[%s7020 + $0x20] sm:$0xf]
    %v7030 = vld [vmem:[%s7020 + $0x24] sm:$0xf]
    %v7031 = vld [vmem:[%s7020 + $0x28] sm:$0xf]
    %v7032 = vld [vmem:[%s7020 + $0x2c] sm:$0xf]
    %v7033 = vld [vmem:[%s7020 + $0x30] sm:$0xf]
    %v7034 = vld [vmem:[%s7020 + $0x34] sm:$0xf]
    %v7035 = vld [vmem:[%s7020 + $0x38] sm:$0xf]
    %v7036 = vld [vmem:[%s7020 + $0x3c] sm:$0xf]
    %v7037 = vld [vmem:[%s7020 + $0x40] sm:$0xf]
    %v7038 = vld [vmem:[%s7020 + $0x44] sm:$0xf]
    %v7039 = vld [vmem:[%s7020 + $0x48] sm:$0xf]
    %v7040 = vld [vmem:[%s7020 + $0x4c] sm:$0xf]
    %v7041 = vld [vmem:[%s7020 + $0x50] sm:$0xf]
    %v7042 = vld [vmem:[%s7020 + $0x54] sm:$0xf]
    %v7043 = vld [vmem:[%s7020 + $0x58] sm:$0xf]
    %v7044 = vld [vmem:[%s7020 + $0x5c] sm:$0xf]
    %v7045 = vld [vmem:[%s7020 + $0x60] sm:$0xf]
    %v7046 = vld [vmem:[%s7020 + $0x64] sm:$0xf]
    %v7047 = vld [vmem:[%s7020 + $0x68] sm:$0xf]
    %v7048 = vld [vmem:[%s7020 + $0x6c] sm:$0xf]
    %v7049 = vld [vmem:[%s7020 + $0x70] sm:$0xf]
    %v7050 = vld [vmem:[%s7020 + $0x74] sm:$0xf]
    %v7051 = vld [vmem:[%s7020 + $0x78] sm:$0xf]
    %v7052 = vld [vmem:[%s7020 + $0x7c] sm:$0xf]
    %v7053 = vld [vmem:[%s7020 + $0x80] sm:$0xf]
    %v7054 = vld [vmem:[%s7020 + $0x84] sm:$0xf]
    %v7055 = vld [vmem:[%s7020 + $0x88] sm:$0xf]
    %v7056 = vld [vmem:[%s7020 + $0x8c] sm:$0xf]
    %v7057 = vld [vmem:[%s7020 + $0x90] sm:$0xf]
    %v7058 = vld [vmem:[%s7020 + $0x94] sm:$0xf]
    %v7059 = vld [vmem:[%s7020 + $0x98] sm:$0xf]
    %v7060 = vld [vmem:[%s7020 + $0x9c] sm:$0xf]
    %v7061 = vld [vmem:[%s7020 + $0xa0] sm:$0xf]
    %v7062 = vld [vmem:[%s7020 + $0xa4] sm:$0xf]
    %v7063 = vld [vmem:[%s7020 + $0xa8] sm:$0xf]
    %v7064 = vld [vmem:[%s7020 + $0xac] sm:$0xf]
    %v7065 = vld [vmem:[%s7020 + $0xb0] sm:$0xf]
    %v7066 = vld [vmem:[%s7020 + $0xb4] sm:$0xf]
    %v7067 = vld [vmem:[%s7020 + $0xb8] sm:$0xf]
    %v7068 = vld [vmem:[%s7020 + $0xbc] sm:$0xf]
    %v7069 = vld [vmem:[%s7020 + $0xc0] sm:$0xf]
    %v7070 = vld [vmem:[%s7020 + $0xc4] sm:$0xf]
    %v7071 = vld [vmem:[%s7020 + $0xc8] sm:$0xf]
    %v7072 = vld [vmem:[%s7020 + $0xcc] sm:$0xf]
    %v7073 = vld [vmem:[%s7020 + $0xd0] sm:$0xf]
    %v7074 = vld [vmem:[%s7020 + $0xd4] sm:$0xf]
    %v7075 = vld [vmem:[%s7020 + $0xd8] sm:$0xf]
    %v7076 = vld [vmem:[%s7020 + $0xdc] sm:$0xf]
    %v7077 = vld [vmem:[%s7020 + $0xe0] sm:$0xf]
    %v7078 = vld [vmem:[%s7020 + $0xe4] sm:$0xf]
    %v7079 = vld [vmem:[%s7020 + $0xe8] sm:$0xf]
    %v7080 = vld [vmem:[%s7020 + $0xec] sm:$0xf]
    %v7081 = vld [vmem:[%s7020 + $0xf0] sm:$0xf]
    %v7082 = vld [vmem:[%s7020 + $0xf4] sm:$0xf]
    %v7083 = vld [vmem:[%s7020 + $0xf8] sm:$0xf]
    %v7084 = vld [vmem:[%s7020 + $0xfc] sm:$0xf]
    %v7085 = vld [vmem:[%s7020 + $0x100] sm:$0xf]
    %v7086 = vld [vmem:[%s7020 + $0x104] sm:$0xf]
    %v7087 = vld [vmem:[%s7020 + $0x108] sm:$0xf]
    %v7088 = vld [vmem:[%s7020 + $0x10c] sm:$0xf]
    %v7089 = vld [vmem:[%s7020 + $0x110] sm:$0xf]
    %v7090 = vld [vmem:[%s7020 + $0x114] sm:$0xf]
    %v7091 = vld [vmem:[%s7020 + $0x118] sm:$0xf]
    %v7092 = vld [vmem:[%s7020 + $0x11c] sm:$0xf]
    %v7093 = vld [vmem:[%s7020 + $0x120] sm:$0xf]
    %v7094 = vld [vmem:[%s7020 + $0x124] sm:$0xf]
    %v7095 = vld [vmem:[%s7020 + $0x128] sm:$0xf]
    %v7096 = vld [vmem:[%s7020 + $0x12c] sm:$0xf]
    %v7097 = vld [vmem:[%s7020 + $0x130] sm:$0xf]
    %v7098 = vld [vmem:[%s7020 + $0x134] sm:$0xf]
    %v7099 = vld [vmem:[%s7020 + $0x138] sm:$0xf]
    %v7100 = vld [vmem:[%s7020 + $0x13c] sm:$0xf]
    %v7101 = vld [vmem:[%s7020 + $0x140] sm:$0xf]
    %v7102 = vld [vmem:[%s7020 + $0x144] sm:$0xf]
    %v7103 = vld [vmem:[%s7020 + $0x148] sm:$0xf]
    %v7104 = vld [vmem:[%s7020 + $0x14c] sm:$0xf]
    %v7105 = vld [vmem:[%s7020 + $0x150] sm:$0xf]
    %v7106 = vld [vmem:[%s7020 + $0x154] sm:$0xf]
    %v7107 = vld [vmem:[%s7020 + $0x158] sm:$0xf]
    %v7108 = vld [vmem:[%s7020 + $0x15c] sm:$0xf]
    %v7109 = vld [vmem:[%s7020 + $0x160] sm:$0xf]
    %v7110 = vld [vmem:[%s7020 + $0x164] sm:$0xf]
    %v7111 = vld [vmem:[%s7020 + $0x168] sm:$0xf]
    %v7112 = vld [vmem:[%s7020 + $0x16c] sm:$0xf]
    %v7113 = vld [vmem:[%s7020 + $0x170] sm:$0xf]
    %v7114 = vld [vmem:[%s7020 + $0x174] sm:$0xf]
    %v7115 = vld [vmem:[%s7020 + $0x178] sm:$0xf]
    %v7116 = vld [vmem:[%s7020 + $0x17c] sm:$0xf]
    %v7117 = vld [vmem:[%s7020 + $0x180] sm:$0xf]
    %v7118 = vld [vmem:[%s7020 + $0x184] sm:$0xf]
    %v7119 = vld [vmem:[%s7020 + $0x188] sm:$0xf]
    %v7120 = vld [vmem:[%s7020 + $0x18c] sm:$0xf]
    %v7121 = vld [vmem:[%s7020 + $0x190] sm:$0xf]
    %v7122 = vld [vmem:[%s7020 + $0x194] sm:$0xf]
    %v7123 = vld [vmem:[%s7020 + $0x198] sm:$0xf]
    %v7124 = vld [vmem:[%s7020 + $0x19c] sm:$0xf]
    %v7125 = vld [vmem:[%s7020 + $0x1a0] sm:$0xf]
    %v7126 = vld [vmem:[%s7020 + $0x1a4] sm:$0xf]
    %v7127 = vld [vmem:[%s7020 + $0x1a8] sm:$0xf]
    %v7128 = vld [vmem:[%s7020 + $0x1ac] sm:$0xf]
    %v7129 = vld [vmem:[%s7020 + $0x1b0] sm:$0xf]
    %v7130 = vld [vmem:[%s7020 + $0x1b4] sm:$0xf]
    %v7131 = vld [vmem:[%s7020 + $0x1b8] sm:$0xf]
    %v7132 = vld [vmem:[%s7020 + $0x1bc] sm:$0xf]
    %v7133 = vld [vmem:[%s7020 + $0x1c0] sm:$0xf]
    %v7134 = vld [vmem:[%s7020 + $0x1c4] sm:$0xf]
    %v7135 = vld [vmem:[%s7020 + $0x1c8] sm:$0xf]
    %v7136 = vld [vmem:[%s7020 + $0x1cc] sm:$0xf]
    %v7137 = vld [vmem:[%s7020 + $0x1d0] sm:$0xf]
    %v7138 = vld [vmem:[%s7020 + $0x1d4] sm:$0xf]
    %v7139 = vld [vmem:[%s7020 + $0x1d8] sm:$0xf]
    %v7140 = vld [vmem:[%s7020 + $0x1dc] sm:$0xf]
    %v7141 = vld [vmem:[%s7020 + $0x1e0] sm:$0xf]
    %v7142 = vld [vmem:[%s7020 + $0x1e4] sm:$0xf]
    %v7143 = vld [vmem:[%s7020 + $0x1e8] sm:$0xf]
    %v7144 = vld [vmem:[%s7020 + $0x1ec] sm:$0xf]
    %v7145 = vld [vmem:[%s7020 + $0x1f0] sm:$0xf]
    %v7146 = vld [vmem:[%s7020 + $0x1f4] sm:$0xf]
    %v7147 = vld [vmem:[%s7020 + $0x1f8] sm:$0xf]
    %v7148 = vld [vmem:[%s7020 + $0x1fc] sm:$0xf]
    %v7149 = vld [vmem:[%s7020 + $0x200] sm:$0xf]
    %v7150 = vld [vmem:[%s7020 + $0x204] sm:$0xf]
    %v7151 = vld [vmem:[%s7020 + $0x208] sm:$0xf]
    %v7152 = vld [vmem:[%s7020 + $0x20c] sm:$0xf]
    %v7153 = vld [vmem:[%s7020 + $0x210] sm:$0xf]
    %v7154 = vld [vmem:[%s7020 + $0x214] sm:$0xf]
    %v7155 = vld [vmem:[%s7020 + $0x218] sm:$0xf]
    %v7156 = vld [vmem:[%s7020 + $0x21c] sm:$0xf]
    %v7157 = vld [vmem:[%s7020 + $0x220] sm:$0xf]
    %v7158 = vld [vmem:[%s7020 + $0x224] sm:$0xf]
    %v7159 = vld [vmem:[%s7020 + $0x228] sm:$0xf]
    %v7160 = vld [vmem:[%s7020 + $0x22c] sm:$0xf]
    %v7161 = vld [vmem:[%s7020 + $0x230] sm:$0xf]
    %v7162 = vld [vmem:[%s7020 + $0x234] sm:$0xf]
    %v7163 = vld [vmem:[%s7020 + $0x238] sm:$0xf]
    %v7164 = vld [vmem:[%s7020 + $0x23c] sm:$0xf]
    %v7165 = vld [vmem:[%s7020 + $0x240] sm:$0xf]
    %v7166 = vld [vmem:[%s7020 + $0x244] sm:$0xf]
    %v7167 = vld [vmem:[%s7020 + $0x248] sm:$0xf]
    %v7168 = vld [vmem:[%s7020 + $0x24c] sm:$0xf]
    %v7169 = vld [vmem:[%s7020 + $0x250] sm:$0xf]
    %v7170 = vld [vmem:[%s7020 + $0x254] sm:$0xf]
    %v7171 = vld [vmem:[%s7020 + $0x258] sm:$0xf]
    %v7172 = vld [vmem:[%s7020 + $0x25c] sm:$0xf]
    %v7173 = vld [vmem:[%s7020 + $0x260] sm:$0xf]
    %v7174 = vld [vmem:[%s7020 + $0x264] sm:$0xf]
    %v7175 = vld [vmem:[%s7020 + $0x268] sm:$0xf]
    %v7176 = vld [vmem:[%s7020 + $0x26c] sm:$0xf]
    %v7177 = vld [vmem:[%s7020 + $0x270] sm:$0xf]
    %v7178 = vld [vmem:[%s7020 + $0x274] sm:$0xf]
    %v7179 = vld [vmem:[%s7020 + $0x278] sm:$0xf]
    %v7180 = vld [vmem:[%s7020 + $0x27c] sm:$0xf]
    %v7181 = vld [vmem:[%s7020 + $0x280] sm:$0xf]
    %v7182 = vld [vmem:[%s7020 + $0x284] sm:$0xf]
    %v7183 = vld [vmem:[%s7020 + $0x288] sm:$0xf]
    %v7184 = vld [vmem:[%s7020 + $0x28c] sm:$0xf]
    %v7185 = vld [vmem:[%s7020 + $0x290] sm:$0xf]
    %v7186 = vld [vmem:[%s7020 + $0x294] sm:$0xf]
    %v7187 = vld [vmem:[%s7020 + $0x298] sm:$0xf]
    %v7188 = vld [vmem:[%s7020 + $0x29c] sm:$0xf]
    %v7189 = vld [vmem:[%s7020 + $0x2a0] sm:$0xf]
    %v7190 = vld [vmem:[%s7020 + $0x2a4] sm:$0xf]
    %v7191 = vld [vmem:[%s7020 + $0x2a8] sm:$0xf]
    %v7192 = vld [vmem:[%s7020 + $0x2ac] sm:$0xf]
    %v7193 = vld [vmem:[%s7020 + $0x2b0] sm:$0xf]
    %v7194 = vld [vmem:[%s7020 + $0x2b4] sm:$0xf]
    %v7195 = vld [vmem:[%s7020 + $0x2b8] sm:$0xf]
    %v7196 = vld [vmem:[%s7020 + $0x2bc] sm:$0xf]
    %v7197 = vld [vmem:[%s7020 + $0x2c0] sm:$0xf]
    %v7198 = vld [vmem:[%s7020 + $0x2c4] sm:$0xf]
    %v7199 = vld [vmem:[%s7020 + $0x2c8] sm:$0xf]
    %v7200 = vld [vmem:[%s7020 + $0x2cc] sm:$0xf]
    %v7201 = vld [vmem:[%s7020 + $0x2d0] sm:$0xf]
    %v7202 = vld [vmem:[%s7020 + $0x2d4] sm:$0xf]
    %v7203 = vld [vmem:[%s7020 + $0x2d8] sm:$0xf]
    %v7204 = vld [vmem:[%s7020 + $0x2dc] sm:$0xf]
    %v7205 = vld [vmem:[%s7020 + $0x2e0] sm:$0xf]
    %v7206 = vld [vmem:[%s7020 + $0x2e4] sm:$0xf]
    %v7207 = vld [vmem:[%s7020 + $0x2e8] sm:$0xf]
    %v7208 = vld [vmem:[%s7020 + $0x2ec] sm:$0xf]
    %v7209 = vld [vmem:[%s7020 + $0x2f0] sm:$0xf]
    %v7210 = vld [vmem:[%s7020 + $0x2f4] sm:$0xf]
    %v7211 = vld [vmem:[%s7020 + $0x2f8] sm:$0xf]
    %v7212 = vld [vmem:[%s7020 + $0x2fc] sm:$0xf]
    %v7213 = vld [vmem:[%s7020 + $0x300] sm:$0xf]
    %v7214 = vld [vmem:[%s7020 + $0x304] sm:$0xf]
    %v7215 = vld [vmem:[%s7020 + $0x308] sm:$0xf]
    %v7216 = vld [vmem:[%s7020 + $0x30c] sm:$0xf]
    %v7217 = vld [vmem:[%s7020 + $0x310] sm:$0xf]
    %v7218 = vld [vmem:[%s7020 + $0x314] sm:$0xf]
    %v7219 = vld [vmem:[%s7020 + $0x318] sm:$0xf]
    %v7220 = vld [vmem:[%s7020 + $0x31c] sm:$0xf]
    %v7221 = vld [vmem:[%s7020 + $0x320] sm:$0xf]
    %v7222 = vld [vmem:[%s7020 + $0x324] sm:$0xf]
    %v7223 = vld [vmem:[%s7020 + $0x328] sm:$0xf]
    %v7224 = vld [vmem:[%s7020 + $0x32c] sm:$0xf]
    %v7225 = vld [vmem:[%s7020 + $0x330] sm:$0xf]
    %v7226 = vld [vmem:[%s7020 + $0x334] sm:$0xf]
    %v7227 = vld [vmem:[%s7020 + $0x338] sm:$0xf]
    %v7228 = vld [vmem:[%s7020 + $0x33c] sm:$0xf]
    %v7229 = vld [vmem:[%s7020 + $0x340] sm:$0xf]
    %v7230 = vld [vmem:[%s7020 + $0x344] sm:$0xf]
    %v7231 = vld [vmem:[%s7020 + $0x348] sm:$0xf]
    %v7232 = vld [vmem:[%s7020 + $0x34c] sm:$0xf]
    %v7233 = vld [vmem:[%s7020 + $0x350] sm:$0xf]
    %v7234 = vld [vmem:[%s7020 + $0x354] sm:$0xf]
    %v7235 = vld [vmem:[%s7020 + $0x358] sm:$0xf]
    %v7236 = vld [vmem:[%s7020 + $0x35c] sm:$0xf]
    %v7237 = vld [vmem:[%s7020 + $0x360] sm:$0xf]
    %v7238 = vld [vmem:[%s7020 + $0x364] sm:$0xf]
    %v7239 = vld [vmem:[%s7020 + $0x368] sm:$0xf]
    %v7240 = vld [vmem:[%s7020 + $0x36c] sm:$0xf]
    %v7241 = vld [vmem:[%s7020 + $0x370] sm:$0xf]
    %v7242 = vld [vmem:[%s7020 + $0x374] sm:$0xf]
    %v7243 = vld [vmem:[%s7020 + $0x378] sm:$0xf]
    %v7244 = vld [vmem:[%s7020 + $0x37c] sm:$0xf]
    %v7245 = vld [vmem:[%s7020 + $0x380] sm:$0xf]
    %v7246 = vld [vmem:[%s7020 + $0x384] sm:$0xf]
    %v7247 = vld [vmem:[%s7020 + $0x388] sm:$0xf]
    %v7248 = vld [vmem:[%s7020 + $0x38c] sm:$0xf]
    %v7249 = vld [vmem:[%s7020 + $0x390] sm:$0xf]
    %v7250 = vld [vmem:[%s7020 + $0x394] sm:$0xf]
    %v7251 = vld [vmem:[%s7020 + $0x398] sm:$0xf]
    %v7252 = vld [vmem:[%s7020 + $0x39c] sm:$0xf]
    %v7253 = vld [vmem:[%s7020 + $0x3a0] sm:$0xf]
    %v7254 = vld [vmem:[%s7020 + $0x3a4] sm:$0xf]
    %v7255 = vld [vmem:[%s7020 + $0x3a8] sm:$0xf]
    %v7256 = vld [vmem:[%s7020 + $0x3ac] sm:$0xf]
    %v7257 = vld [vmem:[%s7020 + $0x3b0] sm:$0xf]
    %v7258 = vld [vmem:[%s7020 + $0x3b4] sm:$0xf]
    %v7259 = vld [vmem:[%s7020 + $0x3b8] sm:$0xf]
    %v7260 = vld [vmem:[%s7020 + $0x3bc] sm:$0xf]
    %v7261 = vld [vmem:[%s7020 + $0x3c0] sm:$0xf]
    %v7262 = vld [vmem:[%s7020 + $0x3c4] sm:$0xf]
    %v7263 = vld [vmem:[%s7020 + $0x3c8] sm:$0xf]
    %v7264 = vld [vmem:[%s7020 + $0x3cc] sm:$0xf]
    %v7265 = vld [vmem:[%s7020 + $0x3d0] sm:$0xf]
    %v7266 = vld [vmem:[%s7020 + $0x3d4] sm:$0xf]
    %v7267 = vld [vmem:[%s7020 + $0x3d8] sm:$0xf]
    %v7268 = vld [vmem:[%s7020 + $0x3dc] sm:$0xf]
    %v7269 = vld [vmem:[%s7020 + $0x3e0] sm:$0xf]
    %v7270 = vld [vmem:[%s7020 + $0x3e4] sm:$0xf]
    %v7271 = vld [vmem:[%s7020 + $0x3e8] sm:$0xf]
    %v7272 = vld [vmem:[%s7020 + $0x3ec] sm:$0xf]
    %v7273 = vld [vmem:[%s7020 + $0x3f0] sm:$0xf]
    %v7274 = vld [vmem:[%s7020 + $0x3f4] sm:$0xf]
    %v7275 = vld [vmem:[%s7020 + $0x3f8] sm:$0xf]
    %v7276 = vld [vmem:[%s7020 + $0x3fc] sm:$0xf]
    %v7277 = vld [vmem:[%s7020 + $0x400] sm:$0xf]
    %v7278 = vld [vmem:[%s7020 + $0x404] sm:$0xf]
    %v7279 = vld [vmem:[%s7020 + $0x408] sm:$0xf]
    %v7280 = vld [vmem:[%s7020 + $0x40c] sm:$0xf]
    %v7281 = vld [vmem:[%s7020 + $0x410] sm:$0xf]
    %v7282 = vld [vmem:[%s7020 + $0x414] sm:$0xf]
    %v7283 = vld [vmem:[%s7020 + $0x418] sm:$0xf]
    %v7284 = vld [vmem:[%s7020 + $0x41c] sm:$0xf]
    %v7285 = vld [vmem:[%s7020 + $0x420] sm:$0xf]
    %v7286 = vld [vmem:[%s7020 + $0x424] sm:$0xf]
    %v7287 = vld [vmem:[%s7020 + $0x428] sm:$0xf]
    %v7288 = vld [vmem:[%s7020 + $0x42c] sm:$0xf]
    %v7289 = vld [vmem:[%s7020 + $0x430] sm:$0xf]
    %v7290 = vld [vmem:[%s7020 + $0x434] sm:$0xf]
    %v7291 = vld [vmem:[%s7020 + $0x438] sm:$0xf]
    %v7292 = vld [vmem:[%s7020 + $0x43c] sm:$0xf]
    %v7293 = vld [vmem:[%s7020 + $0x440] sm:$0xf]
    %v7294 = vld [vmem:[%s7020 + $0x444] sm:$0xf]
    %v7295 = vld [vmem:[%s7020 + $0x448] sm:$0xf]
    %v7296 = vld [vmem:[%s7020 + $0x44c] sm:$0xf]
    %v7297 = vld [vmem:[%s7020 + $0x450] sm:$0xf]
    %v7298 = vld [vmem:[%s7020 + $0x454] sm:$0xf]
    %v7299 = vld [vmem:[%s7020 + $0x458] sm:$0xf]
    %v7300 = vld [vmem:[%s7020 + $0x45c] sm:$0xf]
    %v7301 = vld [vmem:[%s7020 + $0x460] sm:$0xf]
    %v7302 = vld [vmem:[%s7020 + $0x464] sm:$0xf]
    %v7303 = vld [vmem:[%s7020 + $0x468] sm:$0xf]
    %v7304 = vld [vmem:[%s7020 + $0x46c] sm:$0xf]
    %v7305 = vld [vmem:[%s7020 + $0x470] sm:$0xf]
    %v7306 = vld [vmem:[%s7020 + $0x474] sm:$0xf]
    %v7307 = vld [vmem:[%s7020 + $0x478] sm:$0xf]
    %v7308 = vld [vmem:[%s7020 + $0x47c] sm:$0xf]
    %v7310 = vsel %vm5307, %v7018, 0
    %v7313 = vsel %vm5307, %v7019, 0
    %7315 = vmatprep.subr.bf16.mxu0 0
    %7316 = vmatpush1.bf16.msra.mxu0 0
    %7317 = vmatprep.subr.bf16.mxu0 0
    %7318 = vmatpush1.bf16.msra.mxu0 0
    %7319 = vmatprep.subr.bf16.mxu0 0
    %7320 = vmatpush1.bf16.msra.mxu0 0
    %7321 = vmatprep.subr.bf16.mxu0 0
    %7322 = vmatpush1.bf16.msra.mxu0 0
    %7323 = vmatprep.subr.bf16.mxu0 0
    %7324 = vmatpush1.bf16.msra.mxu0 0
    %7325 = vmatprep.subr.bf16.mxu0 0
    %7326 = vmatpush1.bf16.msra.mxu0 0
    %7327 = vmatprep.subr.bf16.mxu0 0
    %7328 = vmatpush1.bf16.msra.mxu0 0
    %7329 = vmatprep.subr.bf16.mxu0 %v7313
    %7330 = vmatpush1.bf16.msra.mxu0 %v7310
    %7331 = vmatprep.subr.bf16.mxu0 0
    %7332 = vmatpush2.bf16.msra.mxu0 0
    %7333 = vmatprep.subr.bf16.mxu0 0
    %7334 = vmatpush2.bf16.msra.mxu0 0
    %7335 = vmatprep.subr.bf16.mxu0 0
    %7336 = vmatpush2.bf16.msra.mxu0 0
    %7337 = vmatprep.subr.bf16.mxu0 0
    %7338 = vmatpush2.bf16.msra.mxu0 0
    %7339 = vmatprep.subr.bf16.mxu0 0
    %7340 = vmatpush2.bf16.msra.mxu0 0
    %7341 = vmatprep.subr.bf16.mxu0 0
    %7342 = vmatpush2.bf16.msra.mxu0 0
    %7343 = vmatprep.subr.bf16.mxu0 0
    %7344 = vmatpush2.bf16.msra.mxu0 0
    %7345 = vmatprep.subr.bf16.mxu0 0
    %7346 = vmatpush2.bf16.msra.mxu0 0
    %7347 = vmatprep.mubr.bf16.mxu0 0
    %7348 = vmatmul.mubr.bf16.gmra.mxu0 %v5305
    %v7349 = vpop.f32.mrf.mxu0
    %v7350 = vadd.f32 0.0, %v7349
    %v7351 = vpop.f32.mrf.mxu0
    %v7352 = vadd.f32 0.0, %v7351
    %v7353 = vpop.f32.mrf.mxu0
    %v7354 = vpop.f32.mrf.mxu0
    %7355 = vdwg.mxu0
    %v7356 = vpack.c.bf16 %v7350, %v7350
    %v7357 = vpack.c.bf16 %v7352, %v7352
    %7358 = vmatprep.subr.bf16.mxu0 0
    %7359 = vmatpush1.bf16.msra.mxu0 0
    %7360 = vmatprep.subr.bf16.mxu0 0
    %7361 = vmatpush1.bf16.msra.mxu0 0
    %7362 = vmatprep.subr.bf16.mxu0 0
    %7363 = vmatpush1.bf16.msra.mxu0 0
    %7364 = vmatprep.subr.bf16.mxu0 0
    %7365 = vmatpush1.bf16.msra.mxu0 0
    %7366 = vmatprep.subr.bf16.mxu0 0
    %7367 = vmatpush1.bf16.msra.mxu0 0
    %7368 = vmatprep.subr.bf16.mxu0 0
    %7369 = vmatpush1.bf16.msra.mxu0 0
    %7370 = vmatprep.subr.bf16.mxu0 0
    %7371 = vmatpush1.bf16.msra.mxu0 0
    %7372 = vmatprep.subr.bf16.mxu0 %v7313
    %7373 = vmatpush1.bf16.msra.mxu0 %v7310
    %7374 = vmatprep.subr.bf16.mxu0 0
    %7375 = vmatpush2.bf16.msra.mxu0 0
    %7376 = vmatprep.subr.bf16.mxu0 0
    %7377 = vmatpush2.bf16.msra.mxu0 0
    %7378 = vmatprep.subr.bf16.mxu0 0
    %7379 = vmatpush2.bf16.msra.mxu0 0
    %7380 = vmatprep.subr.bf16.mxu0 0
    %7381 = vmatpush2.bf16.msra.mxu0 0
    %7382 = vmatprep.subr.bf16.mxu0 0
    %7383 = vmatpush2.bf16.msra.mxu0 0
    %7384 = vmatprep.subr.bf16.mxu0 0
    %7385 = vmatpush2.bf16.msra.mxu0 0
    %7386 = vmatprep.subr.bf16.mxu0 0
    %7387 = vmatpush2.bf16.msra.mxu0 0
    %7388 = vmatprep.subr.bf16.mxu0 0
    %7389 = vmatpush2.bf16.msra.mxu0 0
    %7390 = vmatprep.mubr.bf16.mxu0 0
    %7391 = vmatmul.mubr.bf16.gmra.mxu0 %v5359
    %v7392 = vpop.f32.mrf.mxu0
    %v7393 = vadd.f32 0.0, %v7392
    %v7394 = vpop.f32.mrf.mxu0
    %v7395 = vadd.f32 0.0, %v7394
    %v7396 = vpop.f32.mrf.mxu0
    %v7397 = vpop.f32.mrf.mxu0
    %7398 = vdwg.mxu0
    %v7399 = vpack.c.bf16 %v7393, %v7393
    %v7400 = vpack.c.bf16 %v7395, %v7395
    %7401 = vmatprep.subr.bf16.mxu0 0
    %7402 = vmatpush1.bf16.msra.mxu0 0
    %7403 = vmatprep.subr.bf16.mxu0 0
    %7404 = vmatpush1.bf16.msra.mxu0 0
    %7405 = vmatprep.subr.bf16.mxu0 0
    %7406 = vmatpush1.bf16.msra.mxu0 0
    %7407 = vmatprep.subr.bf16.mxu0 0
    %7408 = vmatpush1.bf16.msra.mxu0 0
    %7409 = vmatprep.subr.bf16.mxu0 0
    %7410 = vmatpush1.bf16.msra.mxu0 0
    %7411 = vmatprep.subr.bf16.mxu0 0
    %7412 = vmatpush1.bf16.msra.mxu0 0
    %7413 = vmatprep.subr.bf16.mxu0 0
    %7414 = vmatpush1.bf16.msra.mxu0 0
    %7415 = vmatprep.subr.bf16.mxu0 %v7313
    %7416 = vmatpush1.bf16.msra.mxu0 %v7310
    %7417 = vmatprep.subr.bf16.mxu0 0
    %7418 = vmatpush2.bf16.msra.mxu0 0
    %7419 = vmatprep.subr.bf16.mxu0 0
    %7420 = vmatpush2.bf16.msra.mxu0 0
    %7421 = vmatprep.subr.bf16.mxu0 0
    %7422 = vmatpush2.bf16.msra.mxu0 0
    %7423 = vmatprep.subr.bf16.mxu0 0
    %7424 = vmatpush2.bf16.msra.mxu0 0
    %7425 = vmatprep.subr.bf16.mxu0 0
    %7426 = vmatpush2.bf16.msra.mxu0 0
    %7427 = vmatprep.subr.bf16.mxu0 0
    %7428 = vmatpush2.bf16.msra.mxu0 0
    %7429 = vmatprep.subr.bf16.mxu0 0
    %7430 = vmatpush2.bf16.msra.mxu0 0
    %7431 = vmatprep.subr.bf16.mxu0 0
    %7432 = vmatpush2.bf16.msra.mxu0 0
    %7433 = vmatprep.mubr.bf16.mxu0 0
    %7434 = vmatmul.mubr.bf16.gmra.mxu0 %v5406
    %v7435 = vpop.f32.mrf.mxu0
    %v7436 = vadd.f32 0.0, %v7435
    %v7437 = vpop.f32.mrf.mxu0
    %v7438 = vadd.f32 0.0, %v7437
    %v7439 = vpop.f32.mrf.mxu0
    %v7440 = vpop.f32.mrf.mxu0
    %7441 = vdwg.mxu0
    %v7442 = vpack.c.bf16 %v7436, %v7436
    %v7443 = vpack.c.bf16 %v7438, %v7438
    %7444 = vmatprep.subr.bf16.mxu0 0
    %7445 = vmatpush1.bf16.msra.mxu0 0
    %7446 = vmatprep.subr.bf16.mxu0 0
    %7447 = vmatpush1.bf16.msra.mxu0 0
    %7448 = vmatprep.subr.bf16.mxu0 0
    %7449 = vmatpush1.bf16.msra.mxu0 0
    %7450 = vmatprep.subr.bf16.mxu0 0
    %7451 = vmatpush1.bf16.msra.mxu0 0
    %7452 = vmatprep.subr.bf16.mxu0 0
    %7453 = vmatpush1.bf16.msra.mxu0 0
    %7454 = vmatprep.subr.bf16.mxu0 0
    %7455 = vmatpush1.bf16.msra.mxu0 0
    %7456 = vmatprep.subr.bf16.mxu0 0
    %7457 = vmatpush1.bf16.msra.mxu0 0
    %7458 = vmatprep.subr.bf16.mxu0 %v7313
    %7459 = vmatpush1.bf16.msra.mxu0 %v7310
    %7460 = vmatprep.subr.bf16.mxu0 0
    %7461 = vmatpush2.bf16.msra.mxu0 0
    %7462 = vmatprep.subr.bf16.mxu0 0
    %7463 = vmatpush2.bf16.msra.mxu0 0
    %7464 = vmatprep.subr.bf16.mxu0 0
    %7465 = vmatpush2.bf16.msra.mxu0 0
    %7466 = vmatprep.subr.bf16.mxu0 0
    %7467 = vmatpush2.bf16.msra.mxu0 0
    %7468 = vmatprep.subr.bf16.mxu0 0
    %7469 = vmatpush2.bf16.msra.mxu0 0
    %7470 = vmatprep.subr.bf16.mxu0 0
    %7471 = vmatpush2.bf16.msra.mxu0 0
    %7472 = vmatprep.subr.bf16.mxu0 0
    %7473 = vmatpush2.bf16.msra.mxu0 0
    %7474 = vmatprep.subr.bf16.mxu0 0
    %7475 = vmatpush2.bf16.msra.mxu0 0
    %7476 = vmatprep.mubr.bf16.mxu0 0
    %7477 = vmatmul.mubr.bf16.gmra.mxu0 %v5453
    %v7478 = vpop.f32.mrf.mxu0
    %v7479 = vadd.f32 0.0, %v7478
    %v7480 = vpop.f32.mrf.mxu0
    %v7481 = vadd.f32 0.0, %v7480
    %v7482 = vpop.f32.mrf.mxu0
    %v7483 = vpop.f32.mrf.mxu0
    %7484 = vdwg.mxu0
    %v7485 = vpack.c.bf16 %v7479, %v7479
    %v7486 = vpack.c.bf16 %v7481, %v7481
    %7487 = vmatprep.subr.bf16.mxu0 0
    %7488 = vmatpush1.bf16.msra.mxu0 0
    %7489 = vmatprep.subr.bf16.mxu0 0
    %7490 = vmatpush1.bf16.msra.mxu0 0
    %7491 = vmatprep.subr.bf16.mxu0 0
    %7492 = vmatpush1.bf16.msra.mxu0 0
    %7493 = vmatprep.subr.bf16.mxu0 0
    %7494 = vmatpush1.bf16.msra.mxu0 0
    %7495 = vmatprep.subr.bf16.mxu0 0
    %7496 = vmatpush1.bf16.msra.mxu0 0
    %7497 = vmatprep.subr.bf16.mxu0 0
    %7498 = vmatpush1.bf16.msra.mxu0 0
    %7499 = vmatprep.subr.bf16.mxu0 0
    %7500 = vmatpush1.bf16.msra.mxu0 0
    %7501 = vmatprep.subr.bf16.mxu0 %v7313
    %7502 = vmatpush1.bf16.msra.mxu0 %v7310
    %7503 = vmatprep.subr.bf16.mxu0 0
    %7504 = vmatpush2.bf16.msra.mxu0 0
    %7505 = vmatprep.subr.bf16.mxu0 0
    %7506 = vmatpush2.bf16.msra.mxu0 0
    %7507 = vmatprep.subr.bf16.mxu0 0
    %7508 = vmatpush2.bf16.msra.mxu0 0
    %7509 = vmatprep.subr.bf16.mxu0 0
    %7510 = vmatpush2.bf16.msra.mxu0 0
    %7511 = vmatprep.subr.bf16.mxu0 0
    %7512 = vmatpush2.bf16.msra.mxu0 0
    %7513 = vmatprep.subr.bf16.mxu0 0
    %7514 = vmatpush2.bf16.msra.mxu0 0
    %7515 = vmatprep.subr.bf16.mxu0 0
    %7516 = vmatpush2.bf16.msra.mxu0 0
    %7517 = vmatprep.subr.bf16.mxu0 0
    %7518 = vmatpush2.bf16.msra.mxu0 0
    %7519 = vmatprep.mubr.bf16.mxu0 0
    %7520 = vmatmul.mubr.bf16.gmra.mxu0 %v5500
    %v7521 = vpop.f32.mrf.mxu0
    %v7522 = vadd.f32 0.0, %v7521
    %v7523 = vpop.f32.mrf.mxu0
    %v7524 = vadd.f32 0.0, %v7523
    %v7525 = vpop.f32.mrf.mxu0
    %v7526 = vpop.f32.mrf.mxu0
    %7527 = vdwg.mxu0
    %v7528 = vpack.c.bf16 %v7522, %v7522
    %v7529 = vpack.c.bf16 %v7524, %v7524
    %7530 = vmatprep.subr.bf16.mxu0 0
    %7531 = vmatpush1.bf16.msra.mxu0 0
    %7532 = vmatprep.subr.bf16.mxu0 0
    %7533 = vmatpush1.bf16.msra.mxu0 0
    %7534 = vmatprep.subr.bf16.mxu0 0
    %7535 = vmatpush1.bf16.msra.mxu0 0
    %7536 = vmatprep.subr.bf16.mxu0 0
    %7537 = vmatpush1.bf16.msra.mxu0 0
    %7538 = vmatprep.subr.bf16.mxu0 0
    %7539 = vmatpush1.bf16.msra.mxu0 0
    %7540 = vmatprep.subr.bf16.mxu0 0
    %7541 = vmatpush1.bf16.msra.mxu0 0
    %7542 = vmatprep.subr.bf16.mxu0 0
    %7543 = vmatpush1.bf16.msra.mxu0 0
    %7544 = vmatprep.subr.bf16.mxu0 %v7313
    %7545 = vmatpush1.bf16.msra.mxu0 %v7310
    %7546 = vmatprep.subr.bf16.mxu0 0
    %7547 = vmatpush2.bf16.msra.mxu0 0
    %7548 = vmatprep.subr.bf16.mxu0 0
    %7549 = vmatpush2.bf16.msra.mxu0 0
    %7550 = vmatprep.subr.bf16.mxu0 0
    %7551 = vmatpush2.bf16.msra.mxu0 0
    %7552 = vmatprep.subr.bf16.mxu0 0
    %7553 = vmatpush2.bf16.msra.mxu0 0
    %7554 = vmatprep.subr.bf16.mxu0 0
    %7555 = vmatpush2.bf16.msra.mxu0 0
    %7556 = vmatprep.subr.bf16.mxu0 0
    %7557 = vmatpush2.bf16.msra.mxu0 0
    %7558 = vmatprep.subr.bf16.mxu0 0
    %7559 = vmatpush2.bf16.msra.mxu0 0
    %7560 = vmatprep.subr.bf16.mxu0 0
    %7561 = vmatpush2.bf16.msra.mxu0 0
    %7562 = vmatprep.mubr.bf16.mxu0 0
    %7563 = vmatmul.mubr.bf16.gmra.mxu0 %v5547
    %v7564 = vpop.f32.mrf.mxu0
    %v7565 = vadd.f32 0.0, %v7564
    %v7566 = vpop.f32.mrf.mxu0
    %v7567 = vadd.f32 0.0, %v7566
    %v7568 = vpop.f32.mrf.mxu0
    %v7569 = vpop.f32.mrf.mxu0
    %7570 = vdwg.mxu0
    %v7571 = vpack.c.bf16 %v7565, %v7565
    %v7572 = vpack.c.bf16 %v7567, %v7567
    %7573 = vmatprep.subr.bf16.mxu0 0
    %7574 = vmatpush1.bf16.msra.mxu0 0
    %7575 = vmatprep.subr.bf16.mxu0 0
    %7576 = vmatpush1.bf16.msra.mxu0 0
    %7577 = vmatprep.subr.bf16.mxu0 0
    %7578 = vmatpush1.bf16.msra.mxu0 0
    %7579 = vmatprep.subr.bf16.mxu0 0
    %7580 = vmatpush1.bf16.msra.mxu0 0
    %7581 = vmatprep.subr.bf16.mxu0 0
    %7582 = vmatpush1.bf16.msra.mxu0 0
    %7583 = vmatprep.subr.bf16.mxu0 0
    %7584 = vmatpush1.bf16.msra.mxu0 0
    %7585 = vmatprep.subr.bf16.mxu0 0
    %7586 = vmatpush1.bf16.msra.mxu0 0
    %7587 = vmatprep.subr.bf16.mxu0 %v7313
    %7588 = vmatpush1.bf16.msra.mxu0 %v7310
    %7589 = vmatprep.subr.bf16.mxu0 0
    %7590 = vmatpush2.bf16.msra.mxu0 0
    %7591 = vmatprep.subr.bf16.mxu0 0
    %7592 = vmatpush2.bf16.msra.mxu0 0
    %7593 = vmatprep.subr.bf16.mxu0 0
    %7594 = vmatpush2.bf16.msra.mxu0 0
    %7595 = vmatprep.subr.bf16.mxu0 0
    %7596 = vmatpush2.bf16.msra.mxu0 0
    %7597 = vmatprep.subr.bf16.mxu0 0
    %7598 = vmatpush2.bf16.msra.mxu0 0
    %7599 = vmatprep.subr.bf16.mxu0 0
    %7600 = vmatpush2.bf16.msra.mxu0 0
    %7601 = vmatprep.subr.bf16.mxu0 0
    %7602 = vmatpush2.bf16.msra.mxu0 0
    %7603 = vmatprep.subr.bf16.mxu0 0
    %7604 = vmatpush2.bf16.msra.mxu0 0
    %7605 = vmatprep.mubr.bf16.mxu0 0
    %7606 = vmatmul.mubr.bf16.gmra.mxu0 %v5594
    %v7607 = vpop.f32.mrf.mxu0
    %v7608 = vadd.f32 0.0, %v7607
    %v7609 = vpop.f32.mrf.mxu0
    %v7610 = vadd.f32 0.0, %v7609
    %v7611 = vpop.f32.mrf.mxu0
    %v7612 = vpop.f32.mrf.mxu0
    %7613 = vdwg.mxu0
    %v7614 = vpack.c.bf16 %v7608, %v7608
    %v7615 = vpack.c.bf16 %v7610, %v7610
    %7616 = vmatprep.subr.bf16.mxu0 0
    %7617 = vmatpush1.bf16.msra.mxu0 0
    %7618 = vmatprep.subr.bf16.mxu0 0
    %7619 = vmatpush1.bf16.msra.mxu0 0
    %7620 = vmatprep.subr.bf16.mxu0 0
    %7621 = vmatpush1.bf16.msra.mxu0 0
    %7622 = vmatprep.subr.bf16.mxu0 0
    %7623 = vmatpush1.bf16.msra.mxu0 0
    %7624 = vmatprep.subr.bf16.mxu0 0
    %7625 = vmatpush1.bf16.msra.mxu0 0
    %7626 = vmatprep.subr.bf16.mxu0 0
    %7627 = vmatpush1.bf16.msra.mxu0 0
    %7628 = vmatprep.subr.bf16.mxu0 0
    %7629 = vmatpush1.bf16.msra.mxu0 0
    %7630 = vmatprep.subr.bf16.mxu0 %v7313
    %7631 = vmatpush1.bf16.msra.mxu0 %v7310
    %7632 = vmatprep.subr.bf16.mxu0 0
    %7633 = vmatpush2.bf16.msra.mxu0 0
    %7634 = vmatprep.subr.bf16.mxu0 0
    %7635 = vmatpush2.bf16.msra.mxu0 0
    %7636 = vmatprep.subr.bf16.mxu0 0
    %7637 = vmatpush2.bf16.msra.mxu0 0
    %7638 = vmatprep.subr.bf16.mxu0 0
    %7639 = vmatpush2.bf16.msra.mxu0 0
    %7640 = vmatprep.subr.bf16.mxu0 0
    %7641 = vmatpush2.bf16.msra.mxu0 0
    %7642 = vmatprep.subr.bf16.mxu0 0
    %7643 = vmatpush2.bf16.msra.mxu0 0
    %7644 = vmatprep.subr.bf16.mxu0 0
    %7645 = vmatpush2.bf16.msra.mxu0 0
    %7646 = vmatprep.subr.bf16.mxu0 0
    %7647 = vmatpush2.bf16.msra.mxu0 0
    %7648 = vmatprep.mubr.bf16.mxu0 0
    %7649 = vmatmul.mubr.bf16.gmra.mxu0 %v5641
    %v7650 = vpop.f32.mrf.mxu0
    %v7651 = vadd.f32 0.0, %v7650
    %v7652 = vpop.f32.mrf.mxu0
    %v7653 = vadd.f32 0.0, %v7652
    %v7654 = vpop.f32.mrf.mxu0
    %v7655 = vpop.f32.mrf.mxu0
    %7656 = vdwg.mxu0
    %v7657 = vpack.c.bf16 %v7651, %v7651
    %v7658 = vpack.c.bf16 %v7653, %v7653
    %7659 = vmatprep.subr.bf16.mxu0 0
    %7660 = vmatpush1.bf16.msra.mxu0 0
    %7661 = vmatprep.subr.bf16.mxu0 0
    %7662 = vmatpush1.bf16.msra.mxu0 0
    %7663 = vmatprep.subr.bf16.mxu0 0
    %7664 = vmatpush1.bf16.msra.mxu0 0
    %7665 = vmatprep.subr.bf16.mxu0 0
    %7666 = vmatpush1.bf16.msra.mxu0 0
    %7667 = vmatprep.subr.bf16.mxu0 0
    %7668 = vmatpush1.bf16.msra.mxu0 0
    %7669 = vmatprep.subr.bf16.mxu0 0
    %7670 = vmatpush1.bf16.msra.mxu0 0
    %7671 = vmatprep.subr.bf16.mxu0 0
    %7672 = vmatpush1.bf16.msra.mxu0 0
    %7673 = vmatprep.subr.bf16.mxu0 %v7313
    %7674 = vmatpush1.bf16.msra.mxu0 %v7310
    %7675 = vmatprep.subr.bf16.mxu0 0
    %7676 = vmatpush2.bf16.msra.mxu0 0
    %7677 = vmatprep.subr.bf16.mxu0 0
    %7678 = vmatpush2.bf16.msra.mxu0 0
    %7679 = vmatprep.subr.bf16.mxu0 0
    %7680 = vmatpush2.bf16.msra.mxu0 0
    %7681 = vmatprep.subr.bf16.mxu0 0
    %7682 = vmatpush2.bf16.msra.mxu0 0
    %7683 = vmatprep.subr.bf16.mxu0 0
    %7684 = vmatpush2.bf16.msra.mxu0 0
    %7685 = vmatprep.subr.bf16.mxu0 0
    %7686 = vmatpush2.bf16.msra.mxu0 0
    %7687 = vmatprep.subr.bf16.mxu0 0
    %7688 = vmatpush2.bf16.msra.mxu0 0
    %7689 = vmatprep.subr.bf16.mxu0 0
    %7690 = vmatpush2.bf16.msra.mxu0 0
    %7691 = vmatprep.mubr.bf16.mxu0 0
    %7692 = vmatmul.mubr.bf16.gmra.mxu0 %v5688
    %v7693 = vpop.f32.mrf.mxu0
    %v7694 = vadd.f32 0.0, %v7693
    %v7695 = vpop.f32.mrf.mxu0
    %v7696 = vadd.f32 0.0, %v7695
    %v7697 = vpop.f32.mrf.mxu0
    %v7698 = vpop.f32.mrf.mxu0
    %7699 = vdwg.mxu0
    %v7700 = vpack.c.bf16 %v7694, %v7694
    %v7701 = vpack.c.bf16 %v7696, %v7696
    %v7990 = vunpack.c.l.b16 %v7021
    %v7991 = vunpack.c.l.b16 %v7022
    %v7992 = vunpack.c.l.b16 %v7023
    %v7993 = vunpack.c.l.b16 %v7024
    %v7994 = vunpack.c.l.b16 %v7025
    %v7995 = vunpack.c.l.b16 %v7026
    %v7996 = vunpack.c.l.b16 %v7027
    %v7997 = vunpack.c.l.b16 %v7028
    %v7998 = vunpack.c.l.b16 %v7029
    %v7999 = vunpack.c.l.b16 %v7030
    %v8000 = vunpack.c.l.b16 %v7031
    %v8001 = vunpack.c.l.b16 %v7032
    %v8002 = vunpack.c.l.b16 %v7033
    %v8003 = vunpack.c.l.b16 %v7034
    %v8004 = vunpack.c.l.b16 %v7035
    %v8005 = vunpack.c.l.b16 %v7036
    %v8006 = vunpack.c.l.b16 %v7037
    %v8007 = vunpack.c.l.b16 %v7038
    %v8008 = vunpack.c.l.b16 %v7039
    %v8009 = vunpack.c.l.b16 %v7040
    %v8010 = vunpack.c.l.b16 %v7041
    %v8011 = vunpack.c.l.b16 %v7042
    %v8012 = vunpack.c.l.b16 %v7043
    %v8013 = vunpack.c.l.b16 %v7044
    %v8014 = vunpack.c.l.b16 %v7045
    %v8015 = vunpack.c.l.b16 %v7046
    %v8016 = vunpack.c.l.b16 %v7047
    %v8017 = vunpack.c.l.b16 %v7048
    %v8018 = vunpack.c.l.b16 %v7049
    %v8019 = vunpack.c.l.b16 %v7050
    %v8020 = vunpack.c.l.b16 %v7051
    %v8021 = vunpack.c.l.b16 %v7052
    %v8022 = vunpack.c.l.b16 %v7053
    %v8023 = vunpack.c.l.b16 %v7054
    %v8024 = vunpack.c.l.b16 %v7055
    %v8025 = vunpack.c.l.b16 %v7056
    %v8026 = vunpack.c.l.b16 %v7057
    %v8027 = vunpack.c.l.b16 %v7058
    %v8028 = vunpack.c.l.b16 %v7059
    %v8029 = vunpack.c.l.b16 %v7060
    %v8030 = vunpack.c.l.b16 %v7061
    %v8031 = vunpack.c.l.b16 %v7062
    %v8032 = vunpack.c.l.b16 %v7063
    %v8033 = vunpack.c.l.b16 %v7064
    %v8034 = vunpack.c.l.b16 %v7065
    %v8035 = vunpack.c.l.b16 %v7066
    %v8036 = vunpack.c.l.b16 %v7067
    %v8037 = vunpack.c.l.b16 %v7068
    %v8038 = vunpack.c.l.b16 %v7069
    %v8039 = vunpack.c.l.b16 %v7070
    %v8040 = vunpack.c.l.b16 %v7071
    %v8041 = vunpack.c.l.b16 %v7072
    %v8042 = vunpack.c.l.b16 %v7073
    %v8043 = vunpack.c.l.b16 %v7074
    %v8044 = vunpack.c.l.b16 %v7075
    %v8045 = vunpack.c.l.b16 %v7076
    %v8046 = vunpack.c.l.b16 %v7077
    %v8047 = vunpack.c.l.b16 %v7078
    %v8048 = vunpack.c.l.b16 %v7079
    %v8049 = vunpack.c.l.b16 %v7080
    %v8050 = vunpack.c.l.b16 %v7081
    %v8051 = vunpack.c.l.b16 %v7082
    %v8052 = vunpack.c.l.b16 %v7083
    %v8053 = vunpack.c.l.b16 %v7084
    %v8054 = vunpack.c.l.b16 %v7085
    %v8055 = vunpack.c.l.b16 %v7086
    %v8056 = vunpack.c.l.b16 %v7087
    %v8057 = vunpack.c.l.b16 %v7088
    %v8058 = vunpack.c.l.b16 %v7089
    %v8059 = vunpack.c.l.b16 %v7090
    %v8060 = vunpack.c.l.b16 %v7091
    %v8061 = vunpack.c.l.b16 %v7092
    %v8062 = vunpack.c.l.b16 %v7093
    %v8063 = vunpack.c.l.b16 %v7094
    %v8064 = vunpack.c.l.b16 %v7095
    %v8065 = vunpack.c.l.b16 %v7096
    %v8066 = vunpack.c.l.b16 %v7097
    %v8067 = vunpack.c.l.b16 %v7098
    %v8068 = vunpack.c.l.b16 %v7099
    %v8069 = vunpack.c.l.b16 %v7100
    %v8070 = vunpack.c.l.b16 %v7101
    %v8071 = vunpack.c.l.b16 %v7102
    %v8072 = vunpack.c.l.b16 %v7103
    %v8073 = vunpack.c.l.b16 %v7104
    %v8074 = vunpack.c.l.b16 %v7105
    %v8075 = vunpack.c.l.b16 %v7106
    %v8076 = vunpack.c.l.b16 %v7107
    %v8077 = vunpack.c.l.b16 %v7108
    %v8078 = vunpack.c.l.b16 %v7109
    %v8079 = vunpack.c.l.b16 %v7110
    %v8080 = vunpack.c.l.b16 %v7111
    %v8081 = vunpack.c.l.b16 %v7112
    %v8082 = vunpack.c.l.b16 %v7113
    %v8083 = vunpack.c.l.b16 %v7114
    %v8084 = vunpack.c.l.b16 %v7115
    %v8085 = vunpack.c.l.b16 %v7116
    %v8086 = vunpack.c.l.b16 %v7117
    %v8087 = vunpack.c.l.b16 %v7118
    %v8088 = vunpack.c.l.b16 %v7119
    %v8089 = vunpack.c.l.b16 %v7120
    %v8090 = vunpack.c.l.b16 %v7121
    %v8091 = vunpack.c.l.b16 %v7122
    %v8092 = vunpack.c.l.b16 %v7123
    %v8093 = vunpack.c.l.b16 %v7124
    %v8094 = vunpack.c.l.b16 %v7125
    %v8095 = vunpack.c.l.b16 %v7126
    %v8096 = vunpack.c.l.b16 %v7127
    %v8097 = vunpack.c.l.b16 %v7128
    %v8098 = vunpack.c.l.b16 %v7129
    %v8099 = vunpack.c.l.b16 %v7130
    %v8100 = vunpack.c.l.b16 %v7131
    %v8101 = vunpack.c.l.b16 %v7132
    %v8102 = vunpack.c.l.b16 %v7133
    %v8103 = vunpack.c.l.b16 %v7134
    %v8104 = vunpack.c.l.b16 %v7135
    %v8105 = vunpack.c.l.b16 %v7136
    %v8106 = vunpack.c.l.b16 %v7137
    %v8107 = vunpack.c.l.b16 %v7138
    %v8108 = vunpack.c.l.b16 %v7139
    %v8109 = vunpack.c.l.b16 %v7140
    %v8110 = vunpack.c.l.b16 %v7141
    %v8111 = vunpack.c.l.b16 %v7142
    %v8112 = vunpack.c.l.b16 %v7143
    %v8113 = vunpack.c.l.b16 %v7144
    %v8114 = vunpack.c.l.b16 %v7145
    %v8115 = vunpack.c.l.b16 %v7146
    %v8116 = vunpack.c.l.b16 %v7147
    %v8117 = vunpack.c.l.b16 %v7148
    %v8118 = vunpack.c.l.b16 %v7149
    %v8119 = vunpack.c.l.b16 %v7150
    %v8120 = vunpack.c.l.b16 %v7151
    %v8121 = vunpack.c.l.b16 %v7152
    %v8122 = vunpack.c.l.b16 %v7153
    %v8123 = vunpack.c.l.b16 %v7154
    %v8124 = vunpack.c.l.b16 %v7155
    %v8125 = vunpack.c.l.b16 %v7156
    %v8126 = vunpack.c.l.b16 %v7157
    %v8127 = vunpack.c.l.b16 %v7158
    %v8128 = vunpack.c.l.b16 %v7159
    %v8129 = vunpack.c.l.b16 %v7160
    %v8130 = vunpack.c.l.b16 %v7161
    %v8131 = vunpack.c.l.b16 %v7162
    %v8132 = vunpack.c.l.b16 %v7163
    %v8133 = vunpack.c.l.b16 %v7164
    %v8134 = vunpack.c.l.b16 %v7165
    %v8135 = vunpack.c.l.b16 %v7166
    %v8136 = vunpack.c.l.b16 %v7167
    %v8137 = vunpack.c.l.b16 %v7168
    %v8138 = vunpack.c.l.b16 %v7169
    %v8139 = vunpack.c.l.b16 %v7170
    %v8140 = vunpack.c.l.b16 %v7171
    %v8141 = vunpack.c.l.b16 %v7172
    %v8142 = vunpack.c.l.b16 %v7173
    %v8143 = vunpack.c.l.b16 %v7174
    %v8144 = vunpack.c.l.b16 %v7175
    %v8145 = vunpack.c.l.b16 %v7176
    %v8146 = vunpack.c.l.b16 %v7177
    %v8147 = vunpack.c.l.b16 %v7178
    %v8148 = vunpack.c.l.b16 %v7179
    %v8149 = vunpack.c.l.b16 %v7180
    %v8150 = vunpack.c.l.b16 %v7181
    %v8151 = vunpack.c.l.b16 %v7182
    %v8152 = vunpack.c.l.b16 %v7183
    %v8153 = vunpack.c.l.b16 %v7184
    %v8154 = vunpack.c.l.b16 %v7185
    %v8155 = vunpack.c.l.b16 %v7186
    %v8156 = vunpack.c.l.b16 %v7187
    %v8157 = vunpack.c.l.b16 %v7188
    %v8158 = vunpack.c.l.b16 %v7189
    %v8159 = vunpack.c.l.b16 %v7190
    %v8160 = vunpack.c.l.b16 %v7191
    %v8161 = vunpack.c.l.b16 %v7192
    %v8162 = vunpack.c.l.b16 %v7193
    %v8163 = vunpack.c.l.b16 %v7194
    %v8164 = vunpack.c.l.b16 %v7195
    %v8165 = vunpack.c.l.b16 %v7196
    %v8166 = vunpack.c.l.b16 %v7197
    %v8167 = vunpack.c.l.b16 %v7198
    %v8168 = vunpack.c.l.b16 %v7199
    %v8169 = vunpack.c.l.b16 %v7200
    %v8170 = vunpack.c.l.b16 %v7201
    %v8171 = vunpack.c.l.b16 %v7202
    %v8172 = vunpack.c.l.b16 %v7203
    %v8173 = vunpack.c.l.b16 %v7204
    %v8174 = vunpack.c.l.b16 %v7205
    %v8175 = vunpack.c.l.b16 %v7206
    %v8176 = vunpack.c.l.b16 %v7207
    %v8177 = vunpack.c.l.b16 %v7208
    %v8178 = vunpack.c.l.b16 %v7209
    %v8179 = vunpack.c.l.b16 %v7210
    %v8180 = vunpack.c.l.b16 %v7211
    %v8181 = vunpack.c.l.b16 %v7212
    %v8182 = vunpack.c.l.b16 %v7213
    %v8183 = vunpack.c.l.b16 %v7214
    %v8184 = vunpack.c.l.b16 %v7215
    %v8185 = vunpack.c.l.b16 %v7216
    %v8186 = vunpack.c.l.b16 %v7217
    %v8187 = vunpack.c.l.b16 %v7218
    %v8188 = vunpack.c.l.b16 %v7219
    %v8189 = vunpack.c.l.b16 %v7220
    %v8190 = vunpack.c.l.b16 %v7221
    %v8191 = vunpack.c.l.b16 %v7222
    %v8192 = vunpack.c.l.b16 %v7223
    %v8193 = vunpack.c.l.b16 %v7224
    %v8194 = vunpack.c.l.b16 %v7225
    %v8195 = vunpack.c.l.b16 %v7226
    %v8196 = vunpack.c.l.b16 %v7227
    %v8197 = vunpack.c.l.b16 %v7228
    %v8198 = vunpack.c.l.b16 %v7229
    %v8199 = vunpack.c.l.b16 %v7230
    %v8200 = vunpack.c.l.b16 %v7231
    %v8201 = vunpack.c.l.b16 %v7232
    %v8202 = vunpack.c.l.b16 %v7233
    %v8203 = vunpack.c.l.b16 %v7234
    %v8204 = vunpack.c.l.b16 %v7235
    %v8205 = vunpack.c.l.b16 %v7236
    %v8206 = vunpack.c.l.b16 %v7237
    %v8207 = vunpack.c.l.b16 %v7238
    %v8208 = vunpack.c.l.b16 %v7239
    %v8209 = vunpack.c.l.b16 %v7240
    %v8210 = vunpack.c.l.b16 %v7241
    %v8211 = vunpack.c.l.b16 %v7242
    %v8212 = vunpack.c.l.b16 %v7243
    %v8213 = vunpack.c.l.b16 %v7244
    %v8214 = vunpack.c.l.b16 %v7245
    %v8215 = vunpack.c.l.b16 %v7246
    %v8216 = vunpack.c.l.b16 %v7247
    %v8217 = vunpack.c.l.b16 %v7248
    %v8218 = vunpack.c.l.b16 %v7249
    %v8219 = vunpack.c.l.b16 %v7250
    %v8220 = vunpack.c.l.b16 %v7251
    %v8221 = vunpack.c.l.b16 %v7252
    %v8222 = vunpack.c.l.b16 %v7253
    %v8223 = vunpack.c.l.b16 %v7254
    %v8224 = vunpack.c.l.b16 %v7255
    %v8225 = vunpack.c.l.b16 %v7256
    %v8226 = vunpack.c.l.b16 %v7257
    %v8227 = vunpack.c.l.b16 %v7258
    %v8228 = vunpack.c.l.b16 %v7259
    %v8229 = vunpack.c.l.b16 %v7260
    %v8230 = vunpack.c.l.b16 %v7261
    %v8231 = vunpack.c.l.b16 %v7262
    %v8232 = vunpack.c.l.b16 %v7263
    %v8233 = vunpack.c.l.b16 %v7264
    %v8234 = vunpack.c.l.b16 %v7265
    %v8235 = vunpack.c.l.b16 %v7266
    %v8236 = vunpack.c.l.b16 %v7267
    %v8237 = vunpack.c.l.b16 %v7268
    %v8238 = vunpack.c.l.b16 %v7269
    %v8239 = vunpack.c.l.b16 %v7270
    %v8240 = vunpack.c.l.b16 %v7271
    %v8241 = vunpack.c.l.b16 %v7272
    %v8242 = vunpack.c.l.b16 %v7273
    %v8243 = vunpack.c.l.b16 %v7274
    %v8244 = vunpack.c.l.b16 %v7275
    %v8245 = vunpack.c.l.b16 %v7276
    %v8246 = vunpack.c.l.b16 %v7277
    %v8247 = vunpack.c.l.b16 %v7278
    %v8248 = vunpack.c.l.b16 %v7279
    %v8249 = vunpack.c.l.b16 %v7280
    %v8250 = vunpack.c.l.b16 %v7281
    %v8251 = vunpack.c.l.b16 %v7282
    %v8252 = vunpack.c.l.b16 %v7283
    %v8253 = vunpack.c.l.b16 %v7284
    %v8254 = vunpack.c.l.b16 %v7285
    %v8255 = vunpack.c.l.b16 %v7286
    %v8256 = vunpack.c.l.b16 %v7287
    %v8257 = vunpack.c.l.b16 %v7288
    %v8258 = vunpack.c.l.b16 %v7289
    %v8259 = vunpack.c.l.b16 %v7290
    %v8260 = vunpack.c.l.b16 %v7291
    %v8261 = vunpack.c.l.b16 %v7292
    %v8262 = vunpack.c.l.b16 %v7293
    %v8263 = vunpack.c.l.b16 %v7294
    %v8264 = vunpack.c.l.b16 %v7295
    %v8265 = vunpack.c.l.b16 %v7296
    %v8266 = vunpack.c.l.b16 %v7297
    %v8267 = vunpack.c.l.b16 %v7298
    %v8268 = vunpack.c.l.b16 %v7299
    %v8269 = vunpack.c.l.b16 %v7300
    %v8270 = vunpack.c.l.b16 %v7301
    %v8271 = vunpack.c.l.b16 %v7302
    %v8272 = vunpack.c.l.b16 %v7303
    %v8273 = vunpack.c.l.b16 %v7304
    %v8274 = vunpack.c.l.b16 %v7305
    %v8275 = vunpack.c.l.b16 %v7306
    %v8276 = vunpack.c.l.b16 %v7307
    %v8277 = vunpack.c.l.b16 %v7308
    %v8278 = vpack.c.b16 %v7991, %v7990
    %v8279 = vpack.c.b16 %v7993, %v7992
    %v8280 = vpack.c.b16 %v7995, %v7994
    %v8281 = vpack.c.b16 %v7997, %v7996
    %v8282 = vpack.c.b16 %v7999, %v7998
    %v8283 = vpack.c.b16 %v8001, %v8000
    %v8284 = vpack.c.b16 %v8003, %v8002
    %v8285 = vpack.c.b16 %v8005, %v8004
    %v8286 = vpack.c.b16 %v8007, %v8006
    %v8287 = vpack.c.b16 %v8009, %v8008
    %v8288 = vpack.c.b16 %v8011, %v8010
    %v8289 = vpack.c.b16 %v8013, %v8012
    %v8290 = vpack.c.b16 %v8015, %v8014
    %v8291 = vpack.c.b16 %v8017, %v8016
    %v8292 = vpack.c.b16 %v8019, %v8018
    %v8293 = vpack.c.b16 %v8021, %v8020
    %v8294 = vpack.c.b16 %v8023, %v8022
    %v8295 = vpack.c.b16 %v8025, %v8024
    %v8296 = vpack.c.b16 %v8027, %v8026
    %v8297 = vpack.c.b16 %v8029, %v8028
    %v8298 = vpack.c.b16 %v8031, %v8030
    %v8299 = vpack.c.b16 %v8033, %v8032
    %v8300 = vpack.c.b16 %v8035, %v8034
    %v8301 = vpack.c.b16 %v8037, %v8036
    %v8302 = vpack.c.b16 %v8039, %v8038
    %v8303 = vpack.c.b16 %v8041, %v8040
    %v8304 = vpack.c.b16 %v8043, %v8042
    %v8305 = vpack.c.b16 %v8045, %v8044
    %v8306 = vpack.c.b16 %v8047, %v8046
    %v8307 = vpack.c.b16 %v8049, %v8048
    %v8308 = vpack.c.b16 %v8051, %v8050
    %v8309 = vpack.c.b16 %v8053, %v8052
    %v8310 = vpack.c.b16 %v8055, %v8054
    %v8311 = vpack.c.b16 %v8057, %v8056
    %v8312 = vpack.c.b16 %v8059, %v8058
    %v8313 = vpack.c.b16 %v8061, %v8060
    %v8314 = vpack.c.b16 %v8063, %v8062
    %v8315 = vpack.c.b16 %v8065, %v8064
    %v8316 = vpack.c.b16 %v8067, %v8066
    %v8317 = vpack.c.b16 %v8069, %v8068
    %v8318 = vpack.c.b16 %v8071, %v8070
    %v8319 = vpack.c.b16 %v8073, %v8072
    %v8320 = vpack.c.b16 %v8075, %v8074
    %v8321 = vpack.c.b16 %v8077, %v8076
    %v8322 = vpack.c.b16 %v8079, %v8078
    %v8323 = vpack.c.b16 %v8081, %v8080
    %v8324 = vpack.c.b16 %v8083, %v8082
    %v8325 = vpack.c.b16 %v8085, %v8084
    %v8326 = vpack.c.b16 %v8087, %v8086
    %v8327 = vpack.c.b16 %v8089, %v8088
    %v8328 = vpack.c.b16 %v8091, %v8090
    %v8329 = vpack.c.b16 %v8093, %v8092
    %v8330 = vpack.c.b16 %v8095, %v8094
    %v8331 = vpack.c.b16 %v8097, %v8096
    %v8332 = vpack.c.b16 %v8099, %v8098
    %v8333 = vpack.c.b16 %v8101, %v8100
    %v8334 = vpack.c.b16 %v8103, %v8102
    %v8335 = vpack.c.b16 %v8105, %v8104
    %v8336 = vpack.c.b16 %v8107, %v8106
    %v8337 = vpack.c.b16 %v8109, %v8108
    %v8338 = vpack.c.b16 %v8111, %v8110
    %v8339 = vpack.c.b16 %v8113, %v8112
    %v8340 = vpack.c.b16 %v8115, %v8114
    %v8341 = vpack.c.b16 %v8117, %v8116
    %v8342 = vpack.c.b16 %v8119, %v8118
    %v8343 = vpack.c.b16 %v8121, %v8120
    %v8344 = vpack.c.b16 %v8123, %v8122
    %v8345 = vpack.c.b16 %v8125, %v8124
    %v8346 = vpack.c.b16 %v8127, %v8126
    %v8347 = vpack.c.b16 %v8129, %v8128
    %v8348 = vpack.c.b16 %v8131, %v8130
    %v8349 = vpack.c.b16 %v8133, %v8132
    %v8350 = vpack.c.b16 %v8135, %v8134
    %v8351 = vpack.c.b16 %v8137, %v8136
    %v8352 = vpack.c.b16 %v8139, %v8138
    %v8353 = vpack.c.b16 %v8141, %v8140
    %v8354 = vpack.c.b16 %v8143, %v8142
    %v8355 = vpack.c.b16 %v8145, %v8144
    %v8356 = vpack.c.b16 %v8147, %v8146
    %v8357 = vpack.c.b16 %v8149, %v8148
    %v8358 = vpack.c.b16 %v8151, %v8150
    %v8359 = vpack.c.b16 %v8153, %v8152
    %v8360 = vpack.c.b16 %v8155, %v8154
    %v8361 = vpack.c.b16 %v8157, %v8156
    %v8362 = vpack.c.b16 %v8159, %v8158
    %v8363 = vpack.c.b16 %v8161, %v8160
    %v8364 = vpack.c.b16 %v8163, %v8162
    %v8365 = vpack.c.b16 %v8165, %v8164
    %v8366 = vpack.c.b16 %v8167, %v8166
    %v8367 = vpack.c.b16 %v8169, %v8168
    %v8368 = vpack.c.b16 %v8171, %v8170
    %v8369 = vpack.c.b16 %v8173, %v8172
    %v8370 = vpack.c.b16 %v8175, %v8174
    %v8371 = vpack.c.b16 %v8177, %v8176
    %v8372 = vpack.c.b16 %v8179, %v8178
    %v8373 = vpack.c.b16 %v8181, %v8180
    %v8374 = vpack.c.b16 %v8183, %v8182
    %v8375 = vpack.c.b16 %v8185, %v8184
    %v8376 = vpack.c.b16 %v8187, %v8186
    %v8377 = vpack.c.b16 %v8189, %v8188
    %v8378 = vpack.c.b16 %v8191, %v8190
    %v8379 = vpack.c.b16 %v8193, %v8192
    %v8380 = vpack.c.b16 %v8195, %v8194
    %v8381 = vpack.c.b16 %v8197, %v8196
    %v8382 = vpack.c.b16 %v8199, %v8198
    %v8383 = vpack.c.b16 %v8201, %v8200
    %v8384 = vpack.c.b16 %v8203, %v8202
    %v8385 = vpack.c.b16 %v8205, %v8204
    %v8386 = vpack.c.b16 %v8207, %v8206
    %v8387 = vpack.c.b16 %v8209, %v8208
    %v8388 = vpack.c.b16 %v8211, %v8210
    %v8389 = vpack.c.b16 %v8213, %v8212
    %v8390 = vpack.c.b16 %v8215, %v8214
    %v8391 = vpack.c.b16 %v8217, %v8216
    %v8392 = vpack.c.b16 %v8219, %v8218
    %v8393 = vpack.c.b16 %v8221, %v8220
    %v8394 = vpack.c.b16 %v8223, %v8222
    %v8395 = vpack.c.b16 %v8225, %v8224
    %v8396 = vpack.c.b16 %v8227, %v8226
    %v8397 = vpack.c.b16 %v8229, %v8228
    %v8398 = vpack.c.b16 %v8231, %v8230
    %v8399 = vpack.c.b16 %v8233, %v8232
    %v8400 = vpack.c.b16 %v8235, %v8234
    %v8401 = vpack.c.b16 %v8237, %v8236
    %v8402 = vpack.c.b16 %v8239, %v8238
    %v8403 = vpack.c.b16 %v8241, %v8240
    %v8404 = vpack.c.b16 %v8243, %v8242
    %v8405 = vpack.c.b16 %v8245, %v8244
    %v8406 = vpack.c.b16 %v8247, %v8246
    %v8407 = vpack.c.b16 %v8249, %v8248
    %v8408 = vpack.c.b16 %v8251, %v8250
    %v8409 = vpack.c.b16 %v8253, %v8252
    %v8410 = vpack.c.b16 %v8255, %v8254
    %v8411 = vpack.c.b16 %v8257, %v8256
    %v8412 = vpack.c.b16 %v8259, %v8258
    %v8413 = vpack.c.b16 %v8261, %v8260
    %v8414 = vpack.c.b16 %v8263, %v8262
    %v8415 = vpack.c.b16 %v8265, %v8264
    %v8416 = vpack.c.b16 %v8267, %v8266
    %v8417 = vpack.c.b16 %v8269, %v8268
    %v8418 = vpack.c.b16 %v8271, %v8270
    %v8419 = vpack.c.b16 %v8273, %v8272
    %v8420 = vpack.c.b16 %v8275, %v8274
    %v8421 = vpack.c.b16 %v8277, %v8276
    %8566 = vmatprep.subr.bf16.mxu0 0
    %8567 = vmatpush1.bf16.msra.mxu0 %v8285
    %8568 = vmatprep.subr.bf16.mxu0 0
    %8569 = vmatpush1.bf16.msra.mxu0 %v8284
    %8570 = vmatprep.subr.bf16.mxu0 0
    %8571 = vmatpush1.bf16.msra.mxu0 %v8283
    %8572 = vmatprep.subr.bf16.mxu0 0
    %8573 = vmatpush1.bf16.msra.mxu0 %v8282
    %8574 = vmatprep.subr.bf16.mxu0 0
    %8575 = vmatpush1.bf16.msra.mxu0 %v8281
    %8576 = vmatprep.subr.bf16.mxu0 0
    %8577 = vmatpush1.bf16.msra.mxu0 %v8280
    %8578 = vmatprep.subr.bf16.mxu0 0
    %8579 = vmatpush1.bf16.msra.mxu0 %v8279
    %8580 = vmatprep.subr.bf16.mxu0 0
    %8581 = vmatpush1.bf16.msra.mxu0 %v8278
    %8582 = vmatprep.subr.bf16.mxu0 0
    %8583 = vmatpush2.bf16.msra.mxu0 %v8293
    %8584 = vmatprep.subr.bf16.mxu0 0
    %8585 = vmatpush2.bf16.msra.mxu0 %v8292
    %8586 = vmatprep.subr.bf16.mxu0 0
    %8587 = vmatpush2.bf16.msra.mxu0 %v8291
    %8588 = vmatprep.subr.bf16.mxu0 0
    %8589 = vmatpush2.bf16.msra.mxu0 %v8290
    %8590 = vmatprep.subr.bf16.mxu0 0
    %8591 = vmatpush2.bf16.msra.mxu0 %v8289
    %8592 = vmatprep.subr.bf16.mxu0 0
    %8593 = vmatpush2.bf16.msra.mxu0 %v8288
    %8594 = vmatprep.subr.bf16.mxu0 0
    %8595 = vmatpush2.bf16.msra.mxu0 %v8287
    %8596 = vmatprep.subr.bf16.mxu0 0
    %8597 = vmatpush2.bf16.msra.mxu0 %v8286
    %8598 = vmatprep.mubr.bf16.mxu0 %v7357
    %8599 = vmatmul.mubr.bf16.gmra.mxu0 %v7356
    %v8600 = vpop.f32.mrf.mxu0
    %v8601 = vadd.f32 0.0, %v8600
    %v8602 = vpop.f32.mrf.mxu0
    %v8603 = vpop.f32.mrf.mxu0
    %v8604 = vpop.f32.mrf.mxu0
    %8605 = vdwg.mxu0
    %8606 = vmatprep.subr.bf16.mxu0 0
    %8607 = vmatpush1.bf16.msra.mxu0 %v8301
    %8608 = vmatprep.subr.bf16.mxu0 0
    %8609 = vmatpush1.bf16.msra.mxu0 %v8300
    %8610 = vmatprep.subr.bf16.mxu0 0
    %8611 = vmatpush1.bf16.msra.mxu0 %v8299
    %8612 = vmatprep.subr.bf16.mxu0 0
    %8613 = vmatpush1.bf16.msra.mxu0 %v8298
    %8614 = vmatprep.subr.bf16.mxu0 0
    %8615 = vmatpush1.bf16.msra.mxu0 %v8297
    %8616 = vmatprep.subr.bf16.mxu0 0
    %8617 = vmatpush1.bf16.msra.mxu0 %v8296
    %8618 = vmatprep.subr.bf16.mxu0 0
    %8619 = vmatpush1.bf16.msra.mxu0 %v8295
    %8620 = vmatprep.subr.bf16.mxu0 0
    %8621 = vmatpush1.bf16.msra.mxu0 %v8294
    %8622 = vmatprep.subr.bf16.mxu0 0
    %8623 = vmatpush2.bf16.msra.mxu0 %v8309
    %8624 = vmatprep.subr.bf16.mxu0 0
    %8625 = vmatpush2.bf16.msra.mxu0 %v8308
    %8626 = vmatprep.subr.bf16.mxu0 0
    %8627 = vmatpush2.bf16.msra.mxu0 %v8307
    %8628 = vmatprep.subr.bf16.mxu0 0
    %8629 = vmatpush2.bf16.msra.mxu0 %v8306
    %8630 = vmatprep.subr.bf16.mxu0 0
    %8631 = vmatpush2.bf16.msra.mxu0 %v8305
    %8632 = vmatprep.subr.bf16.mxu0 0
    %8633 = vmatpush2.bf16.msra.mxu0 %v8304
    %8634 = vmatprep.subr.bf16.mxu0 0
    %8635 = vmatpush2.bf16.msra.mxu0 %v8303
    %8636 = vmatprep.subr.bf16.mxu0 0
    %8637 = vmatpush2.bf16.msra.mxu0 %v8302
    %8638 = vmatprep.mubr.bf16.mxu0 %v7400
    %8639 = vmatmul.mubr.bf16.gmra.mxu0 %v7399
    %v8640 = vpop.f32.mrf.mxu0
    %v8641 = vadd.f32 %v8601, %v8640
    %v8642 = vpop.f32.mrf.mxu0
    %v8643 = vpop.f32.mrf.mxu0
    %v8644 = vpop.f32.mrf.mxu0
    %8645 = vdwg.mxu0
    %8646 = vmatprep.subr.bf16.mxu0 0
    %8647 = vmatpush1.bf16.msra.mxu0 %v8317
    %8648 = vmatprep.subr.bf16.mxu0 0
    %8649 = vmatpush1.bf16.msra.mxu0 %v8316
    %8650 = vmatprep.subr.bf16.mxu0 0
    %8651 = vmatpush1.bf16.msra.mxu0 %v8315
    %8652 = vmatprep.subr.bf16.mxu0 0
    %8653 = vmatpush1.bf16.msra.mxu0 %v8314
    %8654 = vmatprep.subr.bf16.mxu0 0
    %8655 = vmatpush1.bf16.msra.mxu0 %v8313
    %8656 = vmatprep.subr.bf16.mxu0 0
    %8657 = vmatpush1.bf16.msra.mxu0 %v8312
    %8658 = vmatprep.subr.bf16.mxu0 0
    %8659 = vmatpush1.bf16.msra.mxu0 %v8311
    %8660 = vmatprep.subr.bf16.mxu0 0
    %8661 = vmatpush1.bf16.msra.mxu0 %v8310
    %8662 = vmatprep.subr.bf16.mxu0 0
    %8663 = vmatpush2.bf16.msra.mxu0 %v8325
    %8664 = vmatprep.subr.bf16.mxu0 0
    %8665 = vmatpush2.bf16.msra.mxu0 %v8324
    %8666 = vmatprep.subr.bf16.mxu0 0
    %8667 = vmatpush2.bf16.msra.mxu0 %v8323
    %8668 = vmatprep.subr.bf16.mxu0 0
    %8669 = vmatpush2.bf16.msra.mxu0 %v8322
    %8670 = vmatprep.subr.bf16.mxu0 0
    %8671 = vmatpush2.bf16.msra.mxu0 %v8321
    %8672 = vmatprep.subr.bf16.mxu0 0
    %8673 = vmatpush2.bf16.msra.mxu0 %v8320
    %8674 = vmatprep.subr.bf16.mxu0 0
    %8675 = vmatpush2.bf16.msra.mxu0 %v8319
    %8676 = vmatprep.subr.bf16.mxu0 0
    %8677 = vmatpush2.bf16.msra.mxu0 %v8318
    %8678 = vmatprep.mubr.bf16.mxu0 %v7443
    %8679 = vmatmul.mubr.bf16.gmra.mxu0 %v7442
    %v8680 = vpop.f32.mrf.mxu0
    %v8681 = vadd.f32 %v8641, %v8680
    %v8682 = vpop.f32.mrf.mxu0
    %v8683 = vpop.f32.mrf.mxu0
    %v8684 = vpop.f32.mrf.mxu0
    %8685 = vdwg.mxu0
    %8686 = vmatprep.subr.bf16.mxu0 0
    %8687 = vmatpush1.bf16.msra.mxu0 %v8333
    %8688 = vmatprep.subr.bf16.mxu0 0
    %8689 = vmatpush1.bf16.msra.mxu0 %v8332
    %8690 = vmatprep.subr.bf16.mxu0 0
    %8691 = vmatpush1.bf16.msra.mxu0 %v8331
    %8692 = vmatprep.subr.bf16.mxu0 0
    %8693 = vmatpush1.bf16.msra.mxu0 %v8330
    %8694 = vmatprep.subr.bf16.mxu0 0
    %8695 = vmatpush1.bf16.msra.mxu0 %v8329
    %8696 = vmatprep.subr.bf16.mxu0 0
    %8697 = vmatpush1.bf16.msra.mxu0 %v8328
    %8698 = vmatprep.subr.bf16.mxu0 0
    %8699 = vmatpush1.bf16.msra.mxu0 %v8327
    %8700 = vmatprep.subr.bf16.mxu0 0
    %8701 = vmatpush1.bf16.msra.mxu0 %v8326
    %8702 = vmatprep.subr.bf16.mxu0 0
    %8703 = vmatpush2.bf16.msra.mxu0 %v8341
    %8704 = vmatprep.subr.bf16.mxu0 0
    %8705 = vmatpush2.bf16.msra.mxu0 %v8340
    %8706 = vmatprep.subr.bf16.mxu0 0
    %8707 = vmatpush2.bf16.msra.mxu0 %v8339
    %8708 = vmatprep.subr.bf16.mxu0 0
    %8709 = vmatpush2.bf16.msra.mxu0 %v8338
    %8710 = vmatprep.subr.bf16.mxu0 0
    %8711 = vmatpush2.bf16.msra.mxu0 %v8337
    %8712 = vmatprep.subr.bf16.mxu0 0
    %8713 = vmatpush2.bf16.msra.mxu0 %v8336
    %8714 = vmatprep.subr.bf16.mxu0 0
    %8715 = vmatpush2.bf16.msra.mxu0 %v8335
    %8716 = vmatprep.subr.bf16.mxu0 0
    %8717 = vmatpush2.bf16.msra.mxu0 %v8334
    %8718 = vmatprep.mubr.bf16.mxu0 %v7486
    %8719 = vmatmul.mubr.bf16.gmra.mxu0 %v7485
    %v8720 = vpop.f32.mrf.mxu0
    %v8721 = vadd.f32 %v8681, %v8720
    %v8722 = vpop.f32.mrf.mxu0
    %v8723 = vpop.f32.mrf.mxu0
    %v8724 = vpop.f32.mrf.mxu0
    %8725 = vdwg.mxu0
    %8726 = vmatprep.subr.bf16.mxu0 0
    %8727 = vmatpush1.bf16.msra.mxu0 %v8349
    %8728 = vmatprep.subr.bf16.mxu0 0
    %8729 = vmatpush1.bf16.msra.mxu0 %v8348
    %8730 = vmatprep.subr.bf16.mxu0 0
    %8731 = vmatpush1.bf16.msra.mxu0 %v8347
    %8732 = vmatprep.subr.bf16.mxu0 0
    %8733 = vmatpush1.bf16.msra.mxu0 %v8346
    %8734 = vmatprep.subr.bf16.mxu0 0
    %8735 = vmatpush1.bf16.msra.mxu0 %v8345
    %8736 = vmatprep.subr.bf16.mxu0 0
    %8737 = vmatpush1.bf16.msra.mxu0 %v8344
    %8738 = vmatprep.subr.bf16.mxu0 0
    %8739 = vmatpush1.bf16.msra.mxu0 %v8343
    %8740 = vmatprep.subr.bf16.mxu0 0
    %8741 = vmatpush1.bf16.msra.mxu0 %v8342
    %8742 = vmatprep.subr.bf16.mxu0 0
    %8743 = vmatpush2.bf16.msra.mxu0 %v8357
    %8744 = vmatprep.subr.bf16.mxu0 0
    %8745 = vmatpush2.bf16.msra.mxu0 %v8356
    %8746 = vmatprep.subr.bf16.mxu0 0
    %8747 = vmatpush2.bf16.msra.mxu0 %v8355
    %8748 = vmatprep.subr.bf16.mxu0 0
    %8749 = vmatpush2.bf16.msra.mxu0 %v8354
    %8750 = vmatprep.subr.bf16.mxu0 0
    %8751 = vmatpush2.bf16.msra.mxu0 %v8353
    %8752 = vmatprep.subr.bf16.mxu0 0
    %8753 = vmatpush2.bf16.msra.mxu0 %v8352
    %8754 = vmatprep.subr.bf16.mxu0 0
    %8755 = vmatpush2.bf16.msra.mxu0 %v8351
    %8756 = vmatprep.subr.bf16.mxu0 0
    %8757 = vmatpush2.bf16.msra.mxu0 %v8350
    %8758 = vmatprep.mubr.bf16.mxu0 %v7529
    %8759 = vmatmul.mubr.bf16.gmra.mxu0 %v7528
    %v8760 = vpop.f32.mrf.mxu0
    %v8761 = vadd.f32 %v8721, %v8760
    %v8762 = vpop.f32.mrf.mxu0
    %v8763 = vpop.f32.mrf.mxu0
    %v8764 = vpop.f32.mrf.mxu0
    %8765 = vdwg.mxu0
    %8766 = vmatprep.subr.bf16.mxu0 0
    %8767 = vmatpush1.bf16.msra.mxu0 %v8365
    %8768 = vmatprep.subr.bf16.mxu0 0
    %8769 = vmatpush1.bf16.msra.mxu0 %v8364
    %8770 = vmatprep.subr.bf16.mxu0 0
    %8771 = vmatpush1.bf16.msra.mxu0 %v8363
    %8772 = vmatprep.subr.bf16.mxu0 0
    %8773 = vmatpush1.bf16.msra.mxu0 %v8362
    %8774 = vmatprep.subr.bf16.mxu0 0
    %8775 = vmatpush1.bf16.msra.mxu0 %v8361
    %8776 = vmatprep.subr.bf16.mxu0 0
    %8777 = vmatpush1.bf16.msra.mxu0 %v8360
    %8778 = vmatprep.subr.bf16.mxu0 0
    %8779 = vmatpush1.bf16.msra.mxu0 %v8359
    %8780 = vmatprep.subr.bf16.mxu0 0
    %8781 = vmatpush1.bf16.msra.mxu0 %v8358
    %8782 = vmatprep.subr.bf16.mxu0 0
    %8783 = vmatpush2.bf16.msra.mxu0 %v8373
    %8784 = vmatprep.subr.bf16.mxu0 0
    %8785 = vmatpush2.bf16.msra.mxu0 %v8372
    %8786 = vmatprep.subr.bf16.mxu0 0
    %8787 = vmatpush2.bf16.msra.mxu0 %v8371
    %8788 = vmatprep.subr.bf16.mxu0 0
    %8789 = vmatpush2.bf16.msra.mxu0 %v8370
    %8790 = vmatprep.subr.bf16.mxu0 0
    %8791 = vmatpush2.bf16.msra.mxu0 %v8369
    %8792 = vmatprep.subr.bf16.mxu0 0
    %8793 = vmatpush2.bf16.msra.mxu0 %v8368
    %8794 = vmatprep.subr.bf16.mxu0 0
    %8795 = vmatpush2.bf16.msra.mxu0 %v8367
    %8796 = vmatprep.subr.bf16.mxu0 0
    %8797 = vmatpush2.bf16.msra.mxu0 %v8366
    %8798 = vmatprep.mubr.bf16.mxu0 %v7572
    %8799 = vmatmul.mubr.bf16.gmra.mxu0 %v7571
    %v8800 = vpop.f32.mrf.mxu0
    %v8801 = vadd.f32 %v8761, %v8800
    %v8802 = vpop.f32.mrf.mxu0
    %v8803 = vpop.f32.mrf.mxu0
    %v8804 = vpop.f32.mrf.mxu0
    %8805 = vdwg.mxu0
    %8806 = vmatprep.subr.bf16.mxu0 0
    %8807 = vmatpush1.bf16.msra.mxu0 %v8381
    %8808 = vmatprep.subr.bf16.mxu0 0
    %8809 = vmatpush1.bf16.msra.mxu0 %v8380
    %8810 = vmatprep.subr.bf16.mxu0 0
    %8811 = vmatpush1.bf16.msra.mxu0 %v8379
    %8812 = vmatprep.subr.bf16.mxu0 0
    %8813 = vmatpush1.bf16.msra.mxu0 %v8378
    %8814 = vmatprep.subr.bf16.mxu0 0
    %8815 = vmatpush1.bf16.msra.mxu0 %v8377
    %8816 = vmatprep.subr.bf16.mxu0 0
    %8817 = vmatpush1.bf16.msra.mxu0 %v8376
    %8818 = vmatprep.subr.bf16.mxu0 0
    %8819 = vmatpush1.bf16.msra.mxu0 %v8375
    %8820 = vmatprep.subr.bf16.mxu0 0
    %8821 = vmatpush1.bf16.msra.mxu0 %v8374
    %8822 = vmatprep.subr.bf16.mxu0 0
    %8823 = vmatpush2.bf16.msra.mxu0 %v8389
    %8824 = vmatprep.subr.bf16.mxu0 0
    %8825 = vmatpush2.bf16.msra.mxu0 %v8388
    %8826 = vmatprep.subr.bf16.mxu0 0
    %8827 = vmatpush2.bf16.msra.mxu0 %v8387
    %8828 = vmatprep.subr.bf16.mxu0 0
    %8829 = vmatpush2.bf16.msra.mxu0 %v8386
    %8830 = vmatprep.subr.bf16.mxu0 0
    %8831 = vmatpush2.bf16.msra.mxu0 %v8385
    %8832 = vmatprep.subr.bf16.mxu0 0
    %8833 = vmatpush2.bf16.msra.mxu0 %v8384
    %8834 = vmatprep.subr.bf16.mxu0 0
    %8835 = vmatpush2.bf16.msra.mxu0 %v8383
    %8836 = vmatprep.subr.bf16.mxu0 0
    %8837 = vmatpush2.bf16.msra.mxu0 %v8382
    %8838 = vmatprep.mubr.bf16.mxu0 %v7615
    %8839 = vmatmul.mubr.bf16.gmra.mxu0 %v7614
    %v8840 = vpop.f32.mrf.mxu0
    %v8841 = vadd.f32 %v8801, %v8840
    %v8842 = vpop.f32.mrf.mxu0
    %v8843 = vpop.f32.mrf.mxu0
    %v8844 = vpop.f32.mrf.mxu0
    %8845 = vdwg.mxu0
    %8846 = vmatprep.subr.bf16.mxu0 0
    %8847 = vmatpush1.bf16.msra.mxu0 %v8397
    %8848 = vmatprep.subr.bf16.mxu0 0
    %8849 = vmatpush1.bf16.msra.mxu0 %v8396
    %8850 = vmatprep.subr.bf16.mxu0 0
    %8851 = vmatpush1.bf16.msra.mxu0 %v8395
    %8852 = vmatprep.subr.bf16.mxu0 0
    %8853 = vmatpush1.bf16.msra.mxu0 %v8394
    %8854 = vmatprep.subr.bf16.mxu0 0
    %8855 = vmatpush1.bf16.msra.mxu0 %v8393
    %8856 = vmatprep.subr.bf16.mxu0 0
    %8857 = vmatpush1.bf16.msra.mxu0 %v8392
    %8858 = vmatprep.subr.bf16.mxu0 0
    %8859 = vmatpush1.bf16.msra.mxu0 %v8391
    %8860 = vmatprep.subr.bf16.mxu0 0
    %8861 = vmatpush1.bf16.msra.mxu0 %v8390
    %8862 = vmatprep.subr.bf16.mxu0 0
    %8863 = vmatpush2.bf16.msra.mxu0 %v8405
    %8864 = vmatprep.subr.bf16.mxu0 0
    %8865 = vmatpush2.bf16.msra.mxu0 %v8404
    %8866 = vmatprep.subr.bf16.mxu0 0
    %8867 = vmatpush2.bf16.msra.mxu0 %v8403
    %8868 = vmatprep.subr.bf16.mxu0 0
    %8869 = vmatpush2.bf16.msra.mxu0 %v8402
    %8870 = vmatprep.subr.bf16.mxu0 0
    %8871 = vmatpush2.bf16.msra.mxu0 %v8401
    %8872 = vmatprep.subr.bf16.mxu0 0
    %8873 = vmatpush2.bf16.msra.mxu0 %v8400
    %8874 = vmatprep.subr.bf16.mxu0 0
    %8875 = vmatpush2.bf16.msra.mxu0 %v8399
    %8876 = vmatprep.subr.bf16.mxu0 0
    %8877 = vmatpush2.bf16.msra.mxu0 %v8398
    %8878 = vmatprep.mubr.bf16.mxu0 %v7658
    %8879 = vmatmul.mubr.bf16.gmra.mxu0 %v7657
    %v8880 = vpop.f32.mrf.mxu0
    %v8881 = vadd.f32 %v8841, %v8880
    %v8882 = vpop.f32.mrf.mxu0
    %v8883 = vpop.f32.mrf.mxu0
    %v8884 = vpop.f32.mrf.mxu0
    %8885 = vdwg.mxu0
    %8886 = vmatprep.subr.bf16.mxu0 0
    %8887 = vmatpush1.bf16.msra.mxu0 %v8413
    %8888 = vmatprep.subr.bf16.mxu0 0
    %8889 = vmatpush1.bf16.msra.mxu0 %v8412
    %8890 = vmatprep.subr.bf16.mxu0 0
    %8891 = vmatpush1.bf16.msra.mxu0 %v8411
    %8892 = vmatprep.subr.bf16.mxu0 0
    %8893 = vmatpush1.bf16.msra.mxu0 %v8410
    %8894 = vmatprep.subr.bf16.mxu0 0
    %8895 = vmatpush1.bf16.msra.mxu0 %v8409
    %8896 = vmatprep.subr.bf16.mxu0 0
    %8897 = vmatpush1.bf16.msra.mxu0 %v8408
    %8898 = vmatprep.subr.bf16.mxu0 0
    %8899 = vmatpush1.bf16.msra.mxu0 %v8407
    %8900 = vmatprep.subr.bf16.mxu0 0
    %8901 = vmatpush1.bf16.msra.mxu0 %v8406
    %8902 = vmatprep.subr.bf16.mxu0 0
    %8903 = vmatpush2.bf16.msra.mxu0 %v8421
    %8904 = vmatprep.subr.bf16.mxu0 0
    %8905 = vmatpush2.bf16.msra.mxu0 %v8420
    %8906 = vmatprep.subr.bf16.mxu0 0
    %8907 = vmatpush2.bf16.msra.mxu0 %v8419
    %8908 = vmatprep.subr.bf16.mxu0 0
    %8909 = vmatpush2.bf16.msra.mxu0 %v8418
    %8910 = vmatprep.subr.bf16.mxu0 0
    %8911 = vmatpush2.bf16.msra.mxu0 %v8417
    %8912 = vmatprep.subr.bf16.mxu0 0
    %8913 = vmatpush2.bf16.msra.mxu0 %v8416
    %8914 = vmatprep.subr.bf16.mxu0 0
    %8915 = vmatpush2.bf16.msra.mxu0 %v8415
    %8916 = vmatprep.subr.bf16.mxu0 0
    %8917 = vmatpush2.bf16.msra.mxu0 %v8414
    %8918 = vmatprep.mubr.bf16.mxu0 %v7701
    %8919 = vmatmul.mubr.bf16.gmra.mxu0 %v7700
    %v8920 = vpop.f32.mrf.mxu0
    %v8921 = vadd.f32 %v8881, %v8920
    %v8922 = vpop.f32.mrf.mxu0
    %v8923 = vpop.f32.mrf.mxu0
    %v8924 = vpop.f32.mrf.mxu0
    %8925 = vdwg.mxu0
    %v8926 = vadd.f32 %v6957, %v8921
    %s8927 = scalar_lea.vmem %s11, 2
    %v8928 = vld [vmem:[%s8927] ss:$4 sm:$0x3]
    %s8929 = scalar_lea.vmem %s12, 2
    %v8930 = vld [vmem:[%s8929] ss:$4 sm:$0x3]
    %v8931 = vrot.slane %v8926, 4
    %v8932 = vadd.f32 %v8926, %v8931
    %v8933 = vrot.slane %v8932, 2
    %v8934 = vadd.f32 %v8932, %v8933
    %v8935 = vrot.slane %v8934, 1
    %v8936 = vadd.f32 %v8934, %v8935
    %v8937 = vmul.f32 %v8936, %v4949
    %v8938 = vsub.f32 %v8926, %v8937
    %v8939 = vmul.f32 %v8938, %v8938
    %v8940 = vrot.slane %v8939, 4
    %v8941 = vadd.f32 %v8939, %v8940
    %v8942 = vrot.slane %v8941, 2
    %v8943 = vadd.f32 %v8941, %v8942
    %v8944 = vrot.slane %v8943, 1
    %v8945 = vadd.f32 %v8943, %v8944
    %v8946 = vmul.f32 %v8945, %v4949
    %v8947 = vadd.f32 %v8946, 1e-05
    %v8948 = vrsqrt.pop %v8947
    %v8950 = vlaneseq
    %v8951 = vshrl.u32 %v8950, 7
    %v8952 = vsub.s32 0, %v8951
    %v8953 = vrot.slane %v8928, %v8952
    %v8954 = vlaneseq
    %v8955 = vshrl.u32 %v8954, 7
    %v8956 = vsub.s32 1, %v8955
    %v8957 = vrot.slane %v8928, %v8956
    %v8960 = vmul.f32 %v4972, %v8953
    %v8961 = vmul.f32 %v8948, %v8957
    %v8962 = vlaneseq
    %v8963 = vshrl.u32 %v8962, 7
    %v8964 = vsub.s32 0, %v8963
    %v8965 = vrot.slane %v8960, %v8964
    %v8966 = vlaneseq
    %v8967 = vshrl.u32 %v8966, 7
    %v8968 = vsub.s32 0, %v8967
    %v8969 = vrot.slane %v8961, %v8968
    %v8970 = vmul.f32 %v4952, %v8965
    %v8971 = vmul.f32 %v8938, %v8969
    %v8973 = vlaneseq
    %v8974 = vshrl.u32 %v8973, 7
    %v8975 = vsub.s32 0, %v8974
    %v8976 = vrot.slane %v8930, %v8975
    %v8977 = vlaneseq
    %v8978 = vshrl.u32 %v8977, 7
    %v8979 = vsub.s32 1, %v8978
    %v8980 = vrot.slane %v8930, %v8979
    %v8983 = vadd.f32 %v8970, %v8976
    %v8984 = vadd.f32 %v8971, %v8980
    %v8985 = vmax.f32 %v8983, 0.0
    %v8986 = vmax.f32 %v8984, 0.0
    %v8987 = vpack.c.bf16 %v8985, %v8985
    %v8988 = vpack.c.bf16 %v8986, %v8986
    %s8989 = scalar_lea.vmem %s13, 2304
    %v8990 = vld [vmem:[%s8989] sm:$0xf]
    %v8991 = vld [vmem:[%s8989 + $0x4] sm:$0xf]
    %v8992 = vld [vmem:[%s8989 + $0x8] sm:$0xf]
    %v8993 = vld [vmem:[%s8989 + $0xc] sm:$0xf]
    %v8994 = vld [vmem:[%s8989 + $0x10] sm:$0xf]
    %v8995 = vld [vmem:[%s8989 + $0x14] sm:$0xf]
    %v8996 = vld [vmem:[%s8989 + $0x18] sm:$0xf]
    %v8997 = vld [vmem:[%s8989 + $0x1c] sm:$0xf]
    %v8998 = vld [vmem:[%s8989 + $0x20] sm:$0xf]
    %v8999 = vld [vmem:[%s8989 + $0x24] sm:$0xf]
    %v9000 = vld [vmem:[%s8989 + $0x28] sm:$0xf]
    %v9001 = vld [vmem:[%s8989 + $0x2c] sm:$0xf]
    %v9002 = vld [vmem:[%s8989 + $0x30] sm:$0xf]
    %v9003 = vld [vmem:[%s8989 + $0x34] sm:$0xf]
    %v9004 = vld [vmem:[%s8989 + $0x38] sm:$0xf]
    %v9005 = vld [vmem:[%s8989 + $0x3c] sm:$0xf]
    %v9006 = vld [vmem:[%s8989 + $0x40] sm:$0xf]
    %v9007 = vld [vmem:[%s8989 + $0x44] sm:$0xf]
    %v9008 = vld [vmem:[%s8989 + $0x48] sm:$0xf]
    %v9009 = vld [vmem:[%s8989 + $0x4c] sm:$0xf]
    %v9010 = vld [vmem:[%s8989 + $0x50] sm:$0xf]
    %v9011 = vld [vmem:[%s8989 + $0x54] sm:$0xf]
    %v9012 = vld [vmem:[%s8989 + $0x58] sm:$0xf]
    %v9013 = vld [vmem:[%s8989 + $0x5c] sm:$0xf]
    %v9014 = vld [vmem:[%s8989 + $0x60] sm:$0xf]
    %v9015 = vld [vmem:[%s8989 + $0x64] sm:$0xf]
    %v9016 = vld [vmem:[%s8989 + $0x68] sm:$0xf]
    %v9017 = vld [vmem:[%s8989 + $0x6c] sm:$0xf]
    %v9018 = vld [vmem:[%s8989 + $0x70] sm:$0xf]
    %v9019 = vld [vmem:[%s8989 + $0x74] sm:$0xf]
    %v9020 = vld [vmem:[%s8989 + $0x78] sm:$0xf]
    %v9021 = vld [vmem:[%s8989 + $0x7c] sm:$0xf]
    %v9022 = vld [vmem:[%s8989 + $0x80] sm:$0xf]
    %v9023 = vld [vmem:[%s8989 + $0x84] sm:$0xf]
    %v9024 = vld [vmem:[%s8989 + $0x88] sm:$0xf]
    %v9025 = vld [vmem:[%s8989 + $0x8c] sm:$0xf]
    %v9026 = vld [vmem:[%s8989 + $0x90] sm:$0xf]
    %v9027 = vld [vmem:[%s8989 + $0x94] sm:$0xf]
    %v9028 = vld [vmem:[%s8989 + $0x98] sm:$0xf]
    %v9029 = vld [vmem:[%s8989 + $0x9c] sm:$0xf]
    %v9030 = vld [vmem:[%s8989 + $0xa0] sm:$0xf]
    %v9031 = vld [vmem:[%s8989 + $0xa4] sm:$0xf]
    %v9032 = vld [vmem:[%s8989 + $0xa8] sm:$0xf]
    %v9033 = vld [vmem:[%s8989 + $0xac] sm:$0xf]
    %v9034 = vld [vmem:[%s8989 + $0xb0] sm:$0xf]
    %v9035 = vld [vmem:[%s8989 + $0xb4] sm:$0xf]
    %v9036 = vld [vmem:[%s8989 + $0xb8] sm:$0xf]
    %v9037 = vld [vmem:[%s8989 + $0xbc] sm:$0xf]
    %v9038 = vld [vmem:[%s8989 + $0xc0] sm:$0xf]
    %v9039 = vld [vmem:[%s8989 + $0xc4] sm:$0xf]
    %v9040 = vld [vmem:[%s8989 + $0xc8] sm:$0xf]
    %v9041 = vld [vmem:[%s8989 + $0xcc] sm:$0xf]
    %v9042 = vld [vmem:[%s8989 + $0xd0] sm:$0xf]
    %v9043 = vld [vmem:[%s8989 + $0xd4] sm:$0xf]
    %v9044 = vld [vmem:[%s8989 + $0xd8] sm:$0xf]
    %v9045 = vld [vmem:[%s8989 + $0xdc] sm:$0xf]
    %v9046 = vld [vmem:[%s8989 + $0xe0] sm:$0xf]
    %v9047 = vld [vmem:[%s8989 + $0xe4] sm:$0xf]
    %v9048 = vld [vmem:[%s8989 + $0xe8] sm:$0xf]
    %v9049 = vld [vmem:[%s8989 + $0xec] sm:$0xf]
    %v9050 = vld [vmem:[%s8989 + $0xf0] sm:$0xf]
    %v9051 = vld [vmem:[%s8989 + $0xf4] sm:$0xf]
    %v9052 = vld [vmem:[%s8989 + $0xf8] sm:$0xf]
    %v9053 = vld [vmem:[%s8989 + $0xfc] sm:$0xf]
    %v9054 = vld [vmem:[%s8989 + $0x100] sm:$0xf]
    %v9055 = vld [vmem:[%s8989 + $0x104] sm:$0xf]
    %v9056 = vld [vmem:[%s8989 + $0x108] sm:$0xf]
    %v9057 = vld [vmem:[%s8989 + $0x10c] sm:$0xf]
    %v9058 = vld [vmem:[%s8989 + $0x110] sm:$0xf]
    %v9059 = vld [vmem:[%s8989 + $0x114] sm:$0xf]
    %v9060 = vld [vmem:[%s8989 + $0x118] sm:$0xf]
    %v9061 = vld [vmem:[%s8989 + $0x11c] sm:$0xf]
    %v9062 = vld [vmem:[%s8989 + $0x120] sm:$0xf]
    %v9063 = vld [vmem:[%s8989 + $0x124] sm:$0xf]
    %v9064 = vld [vmem:[%s8989 + $0x128] sm:$0xf]
    %v9065 = vld [vmem:[%s8989 + $0x12c] sm:$0xf]
    %v9066 = vld [vmem:[%s8989 + $0x130] sm:$0xf]
    %v9067 = vld [vmem:[%s8989 + $0x134] sm:$0xf]
    %v9068 = vld [vmem:[%s8989 + $0x138] sm:$0xf]
    %v9069 = vld [vmem:[%s8989 + $0x13c] sm:$0xf]
    %v9070 = vld [vmem:[%s8989 + $0x140] sm:$0xf]
    %v9071 = vld [vmem:[%s8989 + $0x144] sm:$0xf]
    %v9072 = vld [vmem:[%s8989 + $0x148] sm:$0xf]
    %v9073 = vld [vmem:[%s8989 + $0x14c] sm:$0xf]
    %v9074 = vld [vmem:[%s8989 + $0x150] sm:$0xf]
    %v9075 = vld [vmem:[%s8989 + $0x154] sm:$0xf]
    %v9076 = vld [vmem:[%s8989 + $0x158] sm:$0xf]
    %v9077 = vld [vmem:[%s8989 + $0x15c] sm:$0xf]
    %v9078 = vld [vmem:[%s8989 + $0x160] sm:$0xf]
    %v9079 = vld [vmem:[%s8989 + $0x164] sm:$0xf]
    %v9080 = vld [vmem:[%s8989 + $0x168] sm:$0xf]
    %v9081 = vld [vmem:[%s8989 + $0x16c] sm:$0xf]
    %v9082 = vld [vmem:[%s8989 + $0x170] sm:$0xf]
    %v9083 = vld [vmem:[%s8989 + $0x174] sm:$0xf]
    %v9084 = vld [vmem:[%s8989 + $0x178] sm:$0xf]
    %v9085 = vld [vmem:[%s8989 + $0x17c] sm:$0xf]
    %v9086 = vld [vmem:[%s8989 + $0x180] sm:$0xf]
    %v9087 = vld [vmem:[%s8989 + $0x184] sm:$0xf]
    %v9088 = vld [vmem:[%s8989 + $0x188] sm:$0xf]
    %v9089 = vld [vmem:[%s8989 + $0x18c] sm:$0xf]
    %v9090 = vld [vmem:[%s8989 + $0x190] sm:$0xf]
    %v9091 = vld [vmem:[%s8989 + $0x194] sm:$0xf]
    %v9092 = vld [vmem:[%s8989 + $0x198] sm:$0xf]
    %v9093 = vld [vmem:[%s8989 + $0x19c] sm:$0xf]
    %v9094 = vld [vmem:[%s8989 + $0x1a0] sm:$0xf]
    %v9095 = vld [vmem:[%s8989 + $0x1a4] sm:$0xf]
    %v9096 = vld [vmem:[%s8989 + $0x1a8] sm:$0xf]
    %v9097 = vld [vmem:[%s8989 + $0x1ac] sm:$0xf]
    %v9098 = vld [vmem:[%s8989 + $0x1b0] sm:$0xf]
    %v9099 = vld [vmem:[%s8989 + $0x1b4] sm:$0xf]
    %v9100 = vld [vmem:[%s8989 + $0x1b8] sm:$0xf]
    %v9101 = vld [vmem:[%s8989 + $0x1bc] sm:$0xf]
    %v9102 = vld [vmem:[%s8989 + $0x1c0] sm:$0xf]
    %v9103 = vld [vmem:[%s8989 + $0x1c4] sm:$0xf]
    %v9104 = vld [vmem:[%s8989 + $0x1c8] sm:$0xf]
    %v9105 = vld [vmem:[%s8989 + $0x1cc] sm:$0xf]
    %v9106 = vld [vmem:[%s8989 + $0x1d0] sm:$0xf]
    %v9107 = vld [vmem:[%s8989 + $0x1d4] sm:$0xf]
    %v9108 = vld [vmem:[%s8989 + $0x1d8] sm:$0xf]
    %v9109 = vld [vmem:[%s8989 + $0x1dc] sm:$0xf]
    %v9110 = vld [vmem:[%s8989 + $0x1e0] sm:$0xf]
    %v9111 = vld [vmem:[%s8989 + $0x1e4] sm:$0xf]
    %v9112 = vld [vmem:[%s8989 + $0x1e8] sm:$0xf]
    %v9113 = vld [vmem:[%s8989 + $0x1ec] sm:$0xf]
    %v9114 = vld [vmem:[%s8989 + $0x1f0] sm:$0xf]
    %v9115 = vld [vmem:[%s8989 + $0x1f4] sm:$0xf]
    %v9116 = vld [vmem:[%s8989 + $0x1f8] sm:$0xf]
    %v9117 = vld [vmem:[%s8989 + $0x1fc] sm:$0xf]
    %v9118 = vld [vmem:[%s8989 + $0x200] sm:$0xf]
    %v9119 = vld [vmem:[%s8989 + $0x204] sm:$0xf]
    %v9120 = vld [vmem:[%s8989 + $0x208] sm:$0xf]
    %v9121 = vld [vmem:[%s8989 + $0x20c] sm:$0xf]
    %v9122 = vld [vmem:[%s8989 + $0x210] sm:$0xf]
    %v9123 = vld [vmem:[%s8989 + $0x214] sm:$0xf]
    %v9124 = vld [vmem:[%s8989 + $0x218] sm:$0xf]
    %v9125 = vld [vmem:[%s8989 + $0x21c] sm:$0xf]
    %v9126 = vld [vmem:[%s8989 + $0x220] sm:$0xf]
    %v9127 = vld [vmem:[%s8989 + $0x224] sm:$0xf]
    %v9128 = vld [vmem:[%s8989 + $0x228] sm:$0xf]
    %v9129 = vld [vmem:[%s8989 + $0x22c] sm:$0xf]
    %v9130 = vld [vmem:[%s8989 + $0x230] sm:$0xf]
    %v9131 = vld [vmem:[%s8989 + $0x234] sm:$0xf]
    %v9132 = vld [vmem:[%s8989 + $0x238] sm:$0xf]
    %v9133 = vld [vmem:[%s8989 + $0x23c] sm:$0xf]
    %v9134 = vld [vmem:[%s8989 + $0x240] sm:$0xf]
    %v9135 = vld [vmem:[%s8989 + $0x244] sm:$0xf]
    %v9136 = vld [vmem:[%s8989 + $0x248] sm:$0xf]
    %v9137 = vld [vmem:[%s8989 + $0x24c] sm:$0xf]
    %v9138 = vld [vmem:[%s8989 + $0x250] sm:$0xf]
    %v9139 = vld [vmem:[%s8989 + $0x254] sm:$0xf]
    %v9140 = vld [vmem:[%s8989 + $0x258] sm:$0xf]
    %v9141 = vld [vmem:[%s8989 + $0x25c] sm:$0xf]
    %v9142 = vld [vmem:[%s8989 + $0x260] sm:$0xf]
    %v9143 = vld [vmem:[%s8989 + $0x264] sm:$0xf]
    %v9144 = vld [vmem:[%s8989 + $0x268] sm:$0xf]
    %v9145 = vld [vmem:[%s8989 + $0x26c] sm:$0xf]
    %v9146 = vld [vmem:[%s8989 + $0x270] sm:$0xf]
    %v9147 = vld [vmem:[%s8989 + $0x274] sm:$0xf]
    %v9148 = vld [vmem:[%s8989 + $0x278] sm:$0xf]
    %v9149 = vld [vmem:[%s8989 + $0x27c] sm:$0xf]
    %v9150 = vld [vmem:[%s8989 + $0x280] sm:$0xf]
    %v9151 = vld [vmem:[%s8989 + $0x284] sm:$0xf]
    %v9152 = vld [vmem:[%s8989 + $0x288] sm:$0xf]
    %v9153 = vld [vmem:[%s8989 + $0x28c] sm:$0xf]
    %v9154 = vld [vmem:[%s8989 + $0x290] sm:$0xf]
    %v9155 = vld [vmem:[%s8989 + $0x294] sm:$0xf]
    %v9156 = vld [vmem:[%s8989 + $0x298] sm:$0xf]
    %v9157 = vld [vmem:[%s8989 + $0x29c] sm:$0xf]
    %v9158 = vld [vmem:[%s8989 + $0x2a0] sm:$0xf]
    %v9159 = vld [vmem:[%s8989 + $0x2a4] sm:$0xf]
    %v9160 = vld [vmem:[%s8989 + $0x2a8] sm:$0xf]
    %v9161 = vld [vmem:[%s8989 + $0x2ac] sm:$0xf]
    %v9162 = vld [vmem:[%s8989 + $0x2b0] sm:$0xf]
    %v9163 = vld [vmem:[%s8989 + $0x2b4] sm:$0xf]
    %v9164 = vld [vmem:[%s8989 + $0x2b8] sm:$0xf]
    %v9165 = vld [vmem:[%s8989 + $0x2bc] sm:$0xf]
    %v9166 = vld [vmem:[%s8989 + $0x2c0] sm:$0xf]
    %v9167 = vld [vmem:[%s8989 + $0x2c4] sm:$0xf]
    %v9168 = vld [vmem:[%s8989 + $0x2c8] sm:$0xf]
    %v9169 = vld [vmem:[%s8989 + $0x2cc] sm:$0xf]
    %v9170 = vld [vmem:[%s8989 + $0x2d0] sm:$0xf]
    %v9171 = vld [vmem:[%s8989 + $0x2d4] sm:$0xf]
    %v9172 = vld [vmem:[%s8989 + $0x2d8] sm:$0xf]
    %v9173 = vld [vmem:[%s8989 + $0x2dc] sm:$0xf]
    %v9174 = vld [vmem:[%s8989 + $0x2e0] sm:$0xf]
    %v9175 = vld [vmem:[%s8989 + $0x2e4] sm:$0xf]
    %v9176 = vld [vmem:[%s8989 + $0x2e8] sm:$0xf]
    %v9177 = vld [vmem:[%s8989 + $0x2ec] sm:$0xf]
    %v9178 = vld [vmem:[%s8989 + $0x2f0] sm:$0xf]
    %v9179 = vld [vmem:[%s8989 + $0x2f4] sm:$0xf]
    %v9180 = vld [vmem:[%s8989 + $0x2f8] sm:$0xf]
    %v9181 = vld [vmem:[%s8989 + $0x2fc] sm:$0xf]
    %v9182 = vld [vmem:[%s8989 + $0x300] sm:$0xf]
    %v9183 = vld [vmem:[%s8989 + $0x304] sm:$0xf]
    %v9184 = vld [vmem:[%s8989 + $0x308] sm:$0xf]
    %v9185 = vld [vmem:[%s8989 + $0x30c] sm:$0xf]
    %v9186 = vld [vmem:[%s8989 + $0x310] sm:$0xf]
    %v9187 = vld [vmem:[%s8989 + $0x314] sm:$0xf]
    %v9188 = vld [vmem:[%s8989 + $0x318] sm:$0xf]
    %v9189 = vld [vmem:[%s8989 + $0x31c] sm:$0xf]
    %v9190 = vld [vmem:[%s8989 + $0x320] sm:$0xf]
    %v9191 = vld [vmem:[%s8989 + $0x324] sm:$0xf]
    %v9192 = vld [vmem:[%s8989 + $0x328] sm:$0xf]
    %v9193 = vld [vmem:[%s8989 + $0x32c] sm:$0xf]
    %v9194 = vld [vmem:[%s8989 + $0x330] sm:$0xf]
    %v9195 = vld [vmem:[%s8989 + $0x334] sm:$0xf]
    %v9196 = vld [vmem:[%s8989 + $0x338] sm:$0xf]
    %v9197 = vld [vmem:[%s8989 + $0x33c] sm:$0xf]
    %v9198 = vld [vmem:[%s8989 + $0x340] sm:$0xf]
    %v9199 = vld [vmem:[%s8989 + $0x344] sm:$0xf]
    %v9200 = vld [vmem:[%s8989 + $0x348] sm:$0xf]
    %v9201 = vld [vmem:[%s8989 + $0x34c] sm:$0xf]
    %v9202 = vld [vmem:[%s8989 + $0x350] sm:$0xf]
    %v9203 = vld [vmem:[%s8989 + $0x354] sm:$0xf]
    %v9204 = vld [vmem:[%s8989 + $0x358] sm:$0xf]
    %v9205 = vld [vmem:[%s8989 + $0x35c] sm:$0xf]
    %v9206 = vld [vmem:[%s8989 + $0x360] sm:$0xf]
    %v9207 = vld [vmem:[%s8989 + $0x364] sm:$0xf]
    %v9208 = vld [vmem:[%s8989 + $0x368] sm:$0xf]
    %v9209 = vld [vmem:[%s8989 + $0x36c] sm:$0xf]
    %v9210 = vld [vmem:[%s8989 + $0x370] sm:$0xf]
    %v9211 = vld [vmem:[%s8989 + $0x374] sm:$0xf]
    %v9212 = vld [vmem:[%s8989 + $0x378] sm:$0xf]
    %v9213 = vld [vmem:[%s8989 + $0x37c] sm:$0xf]
    %v9214 = vld [vmem:[%s8989 + $0x380] sm:$0xf]
    %v9215 = vld [vmem:[%s8989 + $0x384] sm:$0xf]
    %v9216 = vld [vmem:[%s8989 + $0x388] sm:$0xf]
    %v9217 = vld [vmem:[%s8989 + $0x38c] sm:$0xf]
    %v9218 = vld [vmem:[%s8989 + $0x390] sm:$0xf]
    %v9219 = vld [vmem:[%s8989 + $0x394] sm:$0xf]
    %v9220 = vld [vmem:[%s8989 + $0x398] sm:$0xf]
    %v9221 = vld [vmem:[%s8989 + $0x39c] sm:$0xf]
    %v9222 = vld [vmem:[%s8989 + $0x3a0] sm:$0xf]
    %v9223 = vld [vmem:[%s8989 + $0x3a4] sm:$0xf]
    %v9224 = vld [vmem:[%s8989 + $0x3a8] sm:$0xf]
    %v9225 = vld [vmem:[%s8989 + $0x3ac] sm:$0xf]
    %v9226 = vld [vmem:[%s8989 + $0x3b0] sm:$0xf]
    %v9227 = vld [vmem:[%s8989 + $0x3b4] sm:$0xf]
    %v9228 = vld [vmem:[%s8989 + $0x3b8] sm:$0xf]
    %v9229 = vld [vmem:[%s8989 + $0x3bc] sm:$0xf]
    %v9230 = vld [vmem:[%s8989 + $0x3c0] sm:$0xf]
    %v9231 = vld [vmem:[%s8989 + $0x3c4] sm:$0xf]
    %v9232 = vld [vmem:[%s8989 + $0x3c8] sm:$0xf]
    %v9233 = vld [vmem:[%s8989 + $0x3cc] sm:$0xf]
    %v9234 = vld [vmem:[%s8989 + $0x3d0] sm:$0xf]
    %v9235 = vld [vmem:[%s8989 + $0x3d4] sm:$0xf]
    %v9236 = vld [vmem:[%s8989 + $0x3d8] sm:$0xf]
    %v9237 = vld [vmem:[%s8989 + $0x3dc] sm:$0xf]
    %v9238 = vld [vmem:[%s8989 + $0x3e0] sm:$0xf]
    %v9239 = vld [vmem:[%s8989 + $0x3e4] sm:$0xf]
    %v9240 = vld [vmem:[%s8989 + $0x3e8] sm:$0xf]
    %v9241 = vld [vmem:[%s8989 + $0x3ec] sm:$0xf]
    %v9242 = vld [vmem:[%s8989 + $0x3f0] sm:$0xf]
    %v9243 = vld [vmem:[%s8989 + $0x3f4] sm:$0xf]
    %v9244 = vld [vmem:[%s8989 + $0x3f8] sm:$0xf]
    %v9245 = vld [vmem:[%s8989 + $0x3fc] sm:$0xf]
    %v9246 = vld [vmem:[%s8989 + $0x400] sm:$0xf]
    %v9247 = vld [vmem:[%s8989 + $0x404] sm:$0xf]
    %v9248 = vld [vmem:[%s8989 + $0x408] sm:$0xf]
    %v9249 = vld [vmem:[%s8989 + $0x40c] sm:$0xf]
    %v9250 = vld [vmem:[%s8989 + $0x410] sm:$0xf]
    %v9251 = vld [vmem:[%s8989 + $0x414] sm:$0xf]
    %v9252 = vld [vmem:[%s8989 + $0x418] sm:$0xf]
    %v9253 = vld [vmem:[%s8989 + $0x41c] sm:$0xf]
    %v9254 = vld [vmem:[%s8989 + $0x420] sm:$0xf]
    %v9255 = vld [vmem:[%s8989 + $0x424] sm:$0xf]
    %v9256 = vld [vmem:[%s8989 + $0x428] sm:$0xf]
    %v9257 = vld [vmem:[%s8989 + $0x42c] sm:$0xf]
    %v9258 = vld [vmem:[%s8989 + $0x430] sm:$0xf]
    %v9259 = vld [vmem:[%s8989 + $0x434] sm:$0xf]
    %v9260 = vld [vmem:[%s8989 + $0x438] sm:$0xf]
    %v9261 = vld [vmem:[%s8989 + $0x43c] sm:$0xf]
    %v9262 = vld [vmem:[%s8989 + $0x440] sm:$0xf]
    %v9263 = vld [vmem:[%s8989 + $0x444] sm:$0xf]
    %v9264 = vld [vmem:[%s8989 + $0x448] sm:$0xf]
    %v9265 = vld [vmem:[%s8989 + $0x44c] sm:$0xf]
    %v9266 = vld [vmem:[%s8989 + $0x450] sm:$0xf]
    %v9267 = vld [vmem:[%s8989 + $0x454] sm:$0xf]
    %v9268 = vld [vmem:[%s8989 + $0x458] sm:$0xf]
    %v9269 = vld [vmem:[%s8989 + $0x45c] sm:$0xf]
    %v9270 = vld [vmem:[%s8989 + $0x460] sm:$0xf]
    %v9271 = vld [vmem:[%s8989 + $0x464] sm:$0xf]
    %v9272 = vld [vmem:[%s8989 + $0x468] sm:$0xf]
    %v9273 = vld [vmem:[%s8989 + $0x46c] sm:$0xf]
    %v9274 = vld [vmem:[%s8989 + $0x470] sm:$0xf]
    %v9275 = vld [vmem:[%s8989 + $0x474] sm:$0xf]
    %v9276 = vld [vmem:[%s8989 + $0x478] sm:$0xf]
    %v9277 = vld [vmem:[%s8989 + $0x47c] sm:$0xf]
    %v9279 = vsel %vm5307, %v8987, 0
    %v9282 = vsel %vm5307, %v8988, 0
    %9284 = vmatprep.subr.bf16.mxu0 0
    %9285 = vmatpush1.bf16.msra.mxu0 0
    %9286 = vmatprep.subr.bf16.mxu0 0
    %9287 = vmatpush1.bf16.msra.mxu0 0
    %9288 = vmatprep.subr.bf16.mxu0 0
    %9289 = vmatpush1.bf16.msra.mxu0 0
    %9290 = vmatprep.subr.bf16.mxu0 0
    %9291 = vmatpush1.bf16.msra.mxu0 0
    %9292 = vmatprep.subr.bf16.mxu0 0
    %9293 = vmatpush1.bf16.msra.mxu0 0
    %9294 = vmatprep.subr.bf16.mxu0 0
    %9295 = vmatpush1.bf16.msra.mxu0 0
    %9296 = vmatprep.subr.bf16.mxu0 0
    %9297 = vmatpush1.bf16.msra.mxu0 0
    %9298 = vmatprep.subr.bf16.mxu0 %v9282
    %9299 = vmatpush1.bf16.msra.mxu0 %v9279
    %9300 = vmatprep.subr.bf16.mxu0 0
    %9301 = vmatpush2.bf16.msra.mxu0 0
    %9302 = vmatprep.subr.bf16.mxu0 0
    %9303 = vmatpush2.bf16.msra.mxu0 0
    %9304 = vmatprep.subr.bf16.mxu0 0
    %9305 = vmatpush2.bf16.msra.mxu0 0
    %9306 = vmatprep.subr.bf16.mxu0 0
    %9307 = vmatpush2.bf16.msra.mxu0 0
    %9308 = vmatprep.subr.bf16.mxu0 0
    %9309 = vmatpush2.bf16.msra.mxu0 0
    %9310 = vmatprep.subr.bf16.mxu0 0
    %9311 = vmatpush2.bf16.msra.mxu0 0
    %9312 = vmatprep.subr.bf16.mxu0 0
    %9313 = vmatpush2.bf16.msra.mxu0 0
    %9314 = vmatprep.subr.bf16.mxu0 0
    %9315 = vmatpush2.bf16.msra.mxu0 0
    %9316 = vmatprep.mubr.bf16.mxu0 0
    %9317 = vmatmul.mubr.bf16.gmra.mxu0 %v5305
    %v9318 = vpop.f32.mrf.mxu0
    %v9319 = vadd.f32 0.0, %v9318
    %v9320 = vpop.f32.mrf.mxu0
    %v9321 = vadd.f32 0.0, %v9320
    %v9322 = vpop.f32.mrf.mxu0
    %v9323 = vpop.f32.mrf.mxu0
    %9324 = vdwg.mxu0
    %v9325 = vpack.c.bf16 %v9319, %v9319
    %v9326 = vpack.c.bf16 %v9321, %v9321
    %9327 = vmatprep.subr.bf16.mxu0 0
    %9328 = vmatpush1.bf16.msra.mxu0 0
    %9329 = vmatprep.subr.bf16.mxu0 0
    %9330 = vmatpush1.bf16.msra.mxu0 0
    %9331 = vmatprep.subr.bf16.mxu0 0
    %9332 = vmatpush1.bf16.msra.mxu0 0
    %9333 = vmatprep.subr.bf16.mxu0 0
    %9334 = vmatpush1.bf16.msra.mxu0 0
    %9335 = vmatprep.subr.bf16.mxu0 0
    %9336 = vmatpush1.bf16.msra.mxu0 0
    %9337 = vmatprep.subr.bf16.mxu0 0
    %9338 = vmatpush1.bf16.msra.mxu0 0
    %9339 = vmatprep.subr.bf16.mxu0 0
    %9340 = vmatpush1.bf16.msra.mxu0 0
    %9341 = vmatprep.subr.bf16.mxu0 %v9282
    %9342 = vmatpush1.bf16.msra.mxu0 %v9279
    %9343 = vmatprep.subr.bf16.mxu0 0
    %9344 = vmatpush2.bf16.msra.mxu0 0
    %9345 = vmatprep.subr.bf16.mxu0 0
    %9346 = vmatpush2.bf16.msra.mxu0 0
    %9347 = vmatprep.subr.bf16.mxu0 0
    %9348 = vmatpush2.bf16.msra.mxu0 0
    %9349 = vmatprep.subr.bf16.mxu0 0
    %9350 = vmatpush2.bf16.msra.mxu0 0
    %9351 = vmatprep.subr.bf16.mxu0 0
    %9352 = vmatpush2.bf16.msra.mxu0 0
    %9353 = vmatprep.subr.bf16.mxu0 0
    %9354 = vmatpush2.bf16.msra.mxu0 0
    %9355 = vmatprep.subr.bf16.mxu0 0
    %9356 = vmatpush2.bf16.msra.mxu0 0
    %9357 = vmatprep.subr.bf16.mxu0 0
    %9358 = vmatpush2.bf16.msra.mxu0 0
    %9359 = vmatprep.mubr.bf16.mxu0 0
    %9360 = vmatmul.mubr.bf16.gmra.mxu0 %v5359
    %v9361 = vpop.f32.mrf.mxu0
    %v9362 = vadd.f32 0.0, %v9361
    %v9363 = vpop.f32.mrf.mxu0
    %v9364 = vadd.f32 0.0, %v9363
    %v9365 = vpop.f32.mrf.mxu0
    %v9366 = vpop.f32.mrf.mxu0
    %9367 = vdwg.mxu0
    %v9368 = vpack.c.bf16 %v9362, %v9362
    %v9369 = vpack.c.bf16 %v9364, %v9364
    %9370 = vmatprep.subr.bf16.mxu0 0
    %9371 = vmatpush1.bf16.msra.mxu0 0
    %9372 = vmatprep.subr.bf16.mxu0 0
    %9373 = vmatpush1.bf16.msra.mxu0 0
    %9374 = vmatprep.subr.bf16.mxu0 0
    %9375 = vmatpush1.bf16.msra.mxu0 0
    %9376 = vmatprep.subr.bf16.mxu0 0
    %9377 = vmatpush1.bf16.msra.mxu0 0
    %9378 = vmatprep.subr.bf16.mxu0 0
    %9379 = vmatpush1.bf16.msra.mxu0 0
    %9380 = vmatprep.subr.bf16.mxu0 0
    %9381 = vmatpush1.bf16.msra.mxu0 0
    %9382 = vmatprep.subr.bf16.mxu0 0
    %9383 = vmatpush1.bf16.msra.mxu0 0
    %9384 = vmatprep.subr.bf16.mxu0 %v9282
    %9385 = vmatpush1.bf16.msra.mxu0 %v9279
    %9386 = vmatprep.subr.bf16.mxu0 0
    %9387 = vmatpush2.bf16.msra.mxu0 0
    %9388 = vmatprep.subr.bf16.mxu0 0
    %9389 = vmatpush2.bf16.msra.mxu0 0
    %9390 = vmatprep.subr.bf16.mxu0 0
    %9391 = vmatpush2.bf16.msra.mxu0 0
    %9392 = vmatprep.subr.bf16.mxu0 0
    %9393 = vmatpush2.bf16.msra.mxu0 0
    %9394 = vmatprep.subr.bf16.mxu0 0
    %9395 = vmatpush2.bf16.msra.mxu0 0
    %9396 = vmatprep.subr.bf16.mxu0 0
    %9397 = vmatpush2.bf16.msra.mxu0 0
    %9398 = vmatprep.subr.bf16.mxu0 0
    %9399 = vmatpush2.bf16.msra.mxu0 0
    %9400 = vmatprep.subr.bf16.mxu0 0
    %9401 = vmatpush2.bf16.msra.mxu0 0
    %9402 = vmatprep.mubr.bf16.mxu0 0
    %9403 = vmatmul.mubr.bf16.gmra.mxu0 %v5406
    %v9404 = vpop.f32.mrf.mxu0
    %v9405 = vadd.f32 0.0, %v9404
    %v9406 = vpop.f32.mrf.mxu0
    %v9407 = vadd.f32 0.0, %v9406
    %v9408 = vpop.f32.mrf.mxu0
    %v9409 = vpop.f32.mrf.mxu0
    %9410 = vdwg.mxu0
    %v9411 = vpack.c.bf16 %v9405, %v9405
    %v9412 = vpack.c.bf16 %v9407, %v9407
    %9413 = vmatprep.subr.bf16.mxu0 0
    %9414 = vmatpush1.bf16.msra.mxu0 0
    %9415 = vmatprep.subr.bf16.mxu0 0
    %9416 = vmatpush1.bf16.msra.mxu0 0
    %9417 = vmatprep.subr.bf16.mxu0 0
    %9418 = vmatpush1.bf16.msra.mxu0 0
    %9419 = vmatprep.subr.bf16.mxu0 0
    %9420 = vmatpush1.bf16.msra.mxu0 0
    %9421 = vmatprep.subr.bf16.mxu0 0
    %9422 = vmatpush1.bf16.msra.mxu0 0
    %9423 = vmatprep.subr.bf16.mxu0 0
    %9424 = vmatpush1.bf16.msra.mxu0 0
    %9425 = vmatprep.subr.bf16.mxu0 0
    %9426 = vmatpush1.bf16.msra.mxu0 0
    %9427 = vmatprep.subr.bf16.mxu0 %v9282
    %9428 = vmatpush1.bf16.msra.mxu0 %v9279
    %9429 = vmatprep.subr.bf16.mxu0 0
    %9430 = vmatpush2.bf16.msra.mxu0 0
    %9431 = vmatprep.subr.bf16.mxu0 0
    %9432 = vmatpush2.bf16.msra.mxu0 0
    %9433 = vmatprep.subr.bf16.mxu0 0
    %9434 = vmatpush2.bf16.msra.mxu0 0
    %9435 = vmatprep.subr.bf16.mxu0 0
    %9436 = vmatpush2.bf16.msra.mxu0 0
    %9437 = vmatprep.subr.bf16.mxu0 0
    %9438 = vmatpush2.bf16.msra.mxu0 0
    %9439 = vmatprep.subr.bf16.mxu0 0
    %9440 = vmatpush2.bf16.msra.mxu0 0
    %9441 = vmatprep.subr.bf16.mxu0 0
    %9442 = vmatpush2.bf16.msra.mxu0 0
    %9443 = vmatprep.subr.bf16.mxu0 0
    %9444 = vmatpush2.bf16.msra.mxu0 0
    %9445 = vmatprep.mubr.bf16.mxu0 0
    %9446 = vmatmul.mubr.bf16.gmra.mxu0 %v5453
    %v9447 = vpop.f32.mrf.mxu0
    %v9448 = vadd.f32 0.0, %v9447
    %v9449 = vpop.f32.mrf.mxu0
    %v9450 = vadd.f32 0.0, %v9449
    %v9451 = vpop.f32.mrf.mxu0
    %v9452 = vpop.f32.mrf.mxu0
    %9453 = vdwg.mxu0
    %v9454 = vpack.c.bf16 %v9448, %v9448
    %v9455 = vpack.c.bf16 %v9450, %v9450
    %9456 = vmatprep.subr.bf16.mxu0 0
    %9457 = vmatpush1.bf16.msra.mxu0 0
    %9458 = vmatprep.subr.bf16.mxu0 0
    %9459 = vmatpush1.bf16.msra.mxu0 0
    %9460 = vmatprep.subr.bf16.mxu0 0
    %9461 = vmatpush1.bf16.msra.mxu0 0
    %9462 = vmatprep.subr.bf16.mxu0 0
    %9463 = vmatpush1.bf16.msra.mxu0 0
    %9464 = vmatprep.subr.bf16.mxu0 0
    %9465 = vmatpush1.bf16.msra.mxu0 0
    %9466 = vmatprep.subr.bf16.mxu0 0
    %9467 = vmatpush1.bf16.msra.mxu0 0
    %9468 = vmatprep.subr.bf16.mxu0 0
    %9469 = vmatpush1.bf16.msra.mxu0 0
    %9470 = vmatprep.subr.bf16.mxu0 %v9282
    %9471 = vmatpush1.bf16.msra.mxu0 %v9279
    %9472 = vmatprep.subr.bf16.mxu0 0
    %9473 = vmatpush2.bf16.msra.mxu0 0
    %9474 = vmatprep.subr.bf16.mxu0 0
    %9475 = vmatpush2.bf16.msra.mxu0 0
    %9476 = vmatprep.subr.bf16.mxu0 0
    %9477 = vmatpush2.bf16.msra.mxu0 0
    %9478 = vmatprep.subr.bf16.mxu0 0
    %9479 = vmatpush2.bf16.msra.mxu0 0
    %9480 = vmatprep.subr.bf16.mxu0 0
    %9481 = vmatpush2.bf16.msra.mxu0 0
    %9482 = vmatprep.subr.bf16.mxu0 0
    %9483 = vmatpush2.bf16.msra.mxu0 0
    %9484 = vmatprep.subr.bf16.mxu0 0
    %9485 = vmatpush2.bf16.msra.mxu0 0
    %9486 = vmatprep.subr.bf16.mxu0 0
    %9487 = vmatpush2.bf16.msra.mxu0 0
    %9488 = vmatprep.mubr.bf16.mxu0 0
    %9489 = vmatmul.mubr.bf16.gmra.mxu0 %v5500
    %v9490 = vpop.f32.mrf.mxu0
    %v9491 = vadd.f32 0.0, %v9490
    %v9492 = vpop.f32.mrf.mxu0
    %v9493 = vadd.f32 0.0, %v9492
    %v9494 = vpop.f32.mrf.mxu0
    %v9495 = vpop.f32.mrf.mxu0
    %9496 = vdwg.mxu0
    %v9497 = vpack.c.bf16 %v9491, %v9491
    %v9498 = vpack.c.bf16 %v9493, %v9493
    %9499 = vmatprep.subr.bf16.mxu0 0
    %9500 = vmatpush1.bf16.msra.mxu0 0
    %9501 = vmatprep.subr.bf16.mxu0 0
    %9502 = vmatpush1.bf16.msra.mxu0 0
    %9503 = vmatprep.subr.bf16.mxu0 0
    %9504 = vmatpush1.bf16.msra.mxu0 0
    %9505 = vmatprep.subr.bf16.mxu0 0
    %9506 = vmatpush1.bf16.msra.mxu0 0
    %9507 = vmatprep.subr.bf16.mxu0 0
    %9508 = vmatpush1.bf16.msra.mxu0 0
    %9509 = vmatprep.subr.bf16.mxu0 0
    %9510 = vmatpush1.bf16.msra.mxu0 0
    %9511 = vmatprep.subr.bf16.mxu0 0
    %9512 = vmatpush1.bf16.msra.mxu0 0
    %9513 = vmatprep.subr.bf16.mxu0 %v9282
    %9514 = vmatpush1.bf16.msra.mxu0 %v9279
    %9515 = vmatprep.subr.bf16.mxu0 0
    %9516 = vmatpush2.bf16.msra.mxu0 0
    %9517 = vmatprep.subr.bf16.mxu0 0
    %9518 = vmatpush2.bf16.msra.mxu0 0
    %9519 = vmatprep.subr.bf16.mxu0 0
    %9520 = vmatpush2.bf16.msra.mxu0 0
    %9521 = vmatprep.subr.bf16.mxu0 0
    %9522 = vmatpush2.bf16.msra.mxu0 0
    %9523 = vmatprep.subr.bf16.mxu0 0
    %9524 = vmatpush2.bf16.msra.mxu0 0
    %9525 = vmatprep.subr.bf16.mxu0 0
    %9526 = vmatpush2.bf16.msra.mxu0 0
    %9527 = vmatprep.subr.bf16.mxu0 0
    %9528 = vmatpush2.bf16.msra.mxu0 0
    %9529 = vmatprep.subr.bf16.mxu0 0
    %9530 = vmatpush2.bf16.msra.mxu0 0
    %9531 = vmatprep.mubr.bf16.mxu0 0
    %9532 = vmatmul.mubr.bf16.gmra.mxu0 %v5547
    %v9533 = vpop.f32.mrf.mxu0
    %v9534 = vadd.f32 0.0, %v9533
    %v9535 = vpop.f32.mrf.mxu0
    %v9536 = vadd.f32 0.0, %v9535
    %v9537 = vpop.f32.mrf.mxu0
    %v9538 = vpop.f32.mrf.mxu0
    %9539 = vdwg.mxu0
    %v9540 = vpack.c.bf16 %v9534, %v9534
    %v9541 = vpack.c.bf16 %v9536, %v9536
    %9542 = vmatprep.subr.bf16.mxu0 0
    %9543 = vmatpush1.bf16.msra.mxu0 0
    %9544 = vmatprep.subr.bf16.mxu0 0
    %9545 = vmatpush1.bf16.msra.mxu0 0
    %9546 = vmatprep.subr.bf16.mxu0 0
    %9547 = vmatpush1.bf16.msra.mxu0 0
    %9548 = vmatprep.subr.bf16.mxu0 0
    %9549 = vmatpush1.bf16.msra.mxu0 0
    %9550 = vmatprep.subr.bf16.mxu0 0
    %9551 = vmatpush1.bf16.msra.mxu0 0
    %9552 = vmatprep.subr.bf16.mxu0 0
    %9553 = vmatpush1.bf16.msra.mxu0 0
    %9554 = vmatprep.subr.bf16.mxu0 0
    %9555 = vmatpush1.bf16.msra.mxu0 0
    %9556 = vmatprep.subr.bf16.mxu0 %v9282
    %9557 = vmatpush1.bf16.msra.mxu0 %v9279
    %9558 = vmatprep.subr.bf16.mxu0 0
    %9559 = vmatpush2.bf16.msra.mxu0 0
    %9560 = vmatprep.subr.bf16.mxu0 0
    %9561 = vmatpush2.bf16.msra.mxu0 0
    %9562 = vmatprep.subr.bf16.mxu0 0
    %9563 = vmatpush2.bf16.msra.mxu0 0
    %9564 = vmatprep.subr.bf16.mxu0 0
    %9565 = vmatpush2.bf16.msra.mxu0 0
    %9566 = vmatprep.subr.bf16.mxu0 0
    %9567 = vmatpush2.bf16.msra.mxu0 0
    %9568 = vmatprep.subr.bf16.mxu0 0
    %9569 = vmatpush2.bf16.msra.mxu0 0
    %9570 = vmatprep.subr.bf16.mxu0 0
    %9571 = vmatpush2.bf16.msra.mxu0 0
    %9572 = vmatprep.subr.bf16.mxu0 0
    %9573 = vmatpush2.bf16.msra.mxu0 0
    %9574 = vmatprep.mubr.bf16.mxu0 0
    %9575 = vmatmul.mubr.bf16.gmra.mxu0 %v5594
    %v9576 = vpop.f32.mrf.mxu0
    %v9577 = vadd.f32 0.0, %v9576
    %v9578 = vpop.f32.mrf.mxu0
    %v9579 = vadd.f32 0.0, %v9578
    %v9580 = vpop.f32.mrf.mxu0
    %v9581 = vpop.f32.mrf.mxu0
    %9582 = vdwg.mxu0
    %v9583 = vpack.c.bf16 %v9577, %v9577
    %v9584 = vpack.c.bf16 %v9579, %v9579
    %9585 = vmatprep.subr.bf16.mxu0 0
    %9586 = vmatpush1.bf16.msra.mxu0 0
    %9587 = vmatprep.subr.bf16.mxu0 0
    %9588 = vmatpush1.bf16.msra.mxu0 0
    %9589 = vmatprep.subr.bf16.mxu0 0
    %9590 = vmatpush1.bf16.msra.mxu0 0
    %9591 = vmatprep.subr.bf16.mxu0 0
    %9592 = vmatpush1.bf16.msra.mxu0 0
    %9593 = vmatprep.subr.bf16.mxu0 0
    %9594 = vmatpush1.bf16.msra.mxu0 0
    %9595 = vmatprep.subr.bf16.mxu0 0
    %9596 = vmatpush1.bf16.msra.mxu0 0
    %9597 = vmatprep.subr.bf16.mxu0 0
    %9598 = vmatpush1.bf16.msra.mxu0 0
    %9599 = vmatprep.subr.bf16.mxu0 %v9282
    %9600 = vmatpush1.bf16.msra.mxu0 %v9279
    %9601 = vmatprep.subr.bf16.mxu0 0
    %9602 = vmatpush2.bf16.msra.mxu0 0
    %9603 = vmatprep.subr.bf16.mxu0 0
    %9604 = vmatpush2.bf16.msra.mxu0 0
    %9605 = vmatprep.subr.bf16.mxu0 0
    %9606 = vmatpush2.bf16.msra.mxu0 0
    %9607 = vmatprep.subr.bf16.mxu0 0
    %9608 = vmatpush2.bf16.msra.mxu0 0
    %9609 = vmatprep.subr.bf16.mxu0 0
    %9610 = vmatpush2.bf16.msra.mxu0 0
    %9611 = vmatprep.subr.bf16.mxu0 0
    %9612 = vmatpush2.bf16.msra.mxu0 0
    %9613 = vmatprep.subr.bf16.mxu0 0
    %9614 = vmatpush2.bf16.msra.mxu0 0
    %9615 = vmatprep.subr.bf16.mxu0 0
    %9616 = vmatpush2.bf16.msra.mxu0 0
    %9617 = vmatprep.mubr.bf16.mxu0 0
    %9618 = vmatmul.mubr.bf16.gmra.mxu0 %v5641
    %v9619 = vpop.f32.mrf.mxu0
    %v9620 = vadd.f32 0.0, %v9619
    %v9621 = vpop.f32.mrf.mxu0
    %v9622 = vadd.f32 0.0, %v9621
    %v9623 = vpop.f32.mrf.mxu0
    %v9624 = vpop.f32.mrf.mxu0
    %9625 = vdwg.mxu0
    %v9626 = vpack.c.bf16 %v9620, %v9620
    %v9627 = vpack.c.bf16 %v9622, %v9622
    %9628 = vmatprep.subr.bf16.mxu0 0
    %9629 = vmatpush1.bf16.msra.mxu0 0
    %9630 = vmatprep.subr.bf16.mxu0 0
    %9631 = vmatpush1.bf16.msra.mxu0 0
    %9632 = vmatprep.subr.bf16.mxu0 0
    %9633 = vmatpush1.bf16.msra.mxu0 0
    %9634 = vmatprep.subr.bf16.mxu0 0
    %9635 = vmatpush1.bf16.msra.mxu0 0
    %9636 = vmatprep.subr.bf16.mxu0 0
    %9637 = vmatpush1.bf16.msra.mxu0 0
    %9638 = vmatprep.subr.bf16.mxu0 0
    %9639 = vmatpush1.bf16.msra.mxu0 0
    %9640 = vmatprep.subr.bf16.mxu0 0
    %9641 = vmatpush1.bf16.msra.mxu0 0
    %9642 = vmatprep.subr.bf16.mxu0 %v9282
    %9643 = vmatpush1.bf16.msra.mxu0 %v9279
    %9644 = vmatprep.subr.bf16.mxu0 0
    %9645 = vmatpush2.bf16.msra.mxu0 0
    %9646 = vmatprep.subr.bf16.mxu0 0
    %9647 = vmatpush2.bf16.msra.mxu0 0
    %9648 = vmatprep.subr.bf16.mxu0 0
    %9649 = vmatpush2.bf16.msra.mxu0 0
    %9650 = vmatprep.subr.bf16.mxu0 0
    %9651 = vmatpush2.bf16.msra.mxu0 0
    %9652 = vmatprep.subr.bf16.mxu0 0
    %9653 = vmatpush2.bf16.msra.mxu0 0
    %9654 = vmatprep.subr.bf16.mxu0 0
    %9655 = vmatpush2.bf16.msra.mxu0 0
    %9656 = vmatprep.subr.bf16.mxu0 0
    %9657 = vmatpush2.bf16.msra.mxu0 0
    %9658 = vmatprep.subr.bf16.mxu0 0
    %9659 = vmatpush2.bf16.msra.mxu0 0
    %9660 = vmatprep.mubr.bf16.mxu0 0
    %9661 = vmatmul.mubr.bf16.gmra.mxu0 %v5688
    %v9662 = vpop.f32.mrf.mxu0
    %v9663 = vadd.f32 0.0, %v9662
    %v9664 = vpop.f32.mrf.mxu0
    %v9665 = vadd.f32 0.0, %v9664
    %v9666 = vpop.f32.mrf.mxu0
    %v9667 = vpop.f32.mrf.mxu0
    %9668 = vdwg.mxu0
    %v9669 = vpack.c.bf16 %v9663, %v9663
    %v9670 = vpack.c.bf16 %v9665, %v9665
    %v9959 = vunpack.c.l.b16 %v8990
    %v9960 = vunpack.c.l.b16 %v8991
    %v9961 = vunpack.c.l.b16 %v8992
    %v9962 = vunpack.c.l.b16 %v8993
    %v9963 = vunpack.c.l.b16 %v8994
    %v9964 = vunpack.c.l.b16 %v8995
    %v9965 = vunpack.c.l.b16 %v8996
    %v9966 = vunpack.c.l.b16 %v8997
    %v9967 = vunpack.c.l.b16 %v8998
    %v9968 = vunpack.c.l.b16 %v8999
    %v9969 = vunpack.c.l.b16 %v9000
    %v9970 = vunpack.c.l.b16 %v9001
    %v9971 = vunpack.c.l.b16 %v9002
    %v9972 = vunpack.c.l.b16 %v9003
    %v9973 = vunpack.c.l.b16 %v9004
    %v9974 = vunpack.c.l.b16 %v9005
    %v9975 = vunpack.c.l.b16 %v9006
    %v9976 = vunpack.c.l.b16 %v9007
    %v9977 = vunpack.c.l.b16 %v9008
    %v9978 = vunpack.c.l.b16 %v9009
    %v9979 = vunpack.c.l.b16 %v9010
    %v9980 = vunpack.c.l.b16 %v9011
    %v9981 = vunpack.c.l.b16 %v9012
    %v9982 = vunpack.c.l.b16 %v9013
    %v9983 = vunpack.c.l.b16 %v9014
    %v9984 = vunpack.c.l.b16 %v9015
    %v9985 = vunpack.c.l.b16 %v9016
    %v9986 = vunpack.c.l.b16 %v9017
    %v9987 = vunpack.c.l.b16 %v9018
    %v9988 = vunpack.c.l.b16 %v9019
    %v9989 = vunpack.c.l.b16 %v9020
    %v9990 = vunpack.c.l.b16 %v9021
    %v9991 = vunpack.c.l.b16 %v9022
    %v9992 = vunpack.c.l.b16 %v9023
    %v9993 = vunpack.c.l.b16 %v9024
    %v9994 = vunpack.c.l.b16 %v9025
    %v9995 = vunpack.c.l.b16 %v9026
    %v9996 = vunpack.c.l.b16 %v9027
    %v9997 = vunpack.c.l.b16 %v9028
    %v9998 = vunpack.c.l.b16 %v9029
    %v9999 = vunpack.c.l.b16 %v9030
    %v10000 = vunpack.c.l.b16 %v9031
    %v10001 = vunpack.c.l.b16 %v9032
    %v10002 = vunpack.c.l.b16 %v9033
    %v10003 = vunpack.c.l.b16 %v9034
    %v10004 = vunpack.c.l.b16 %v9035
    %v10005 = vunpack.c.l.b16 %v9036
    %v10006 = vunpack.c.l.b16 %v9037
    %v10007 = vunpack.c.l.b16 %v9038
    %v10008 = vunpack.c.l.b16 %v9039
    %v10009 = vunpack.c.l.b16 %v9040
    %v10010 = vunpack.c.l.b16 %v9041
    %v10011 = vunpack.c.l.b16 %v9042
    %v10012 = vunpack.c.l.b16 %v9043
    %v10013 = vunpack.c.l.b16 %v9044
    %v10014 = vunpack.c.l.b16 %v9045
    %v10015 = vunpack.c.l.b16 %v9046
    %v10016 = vunpack.c.l.b16 %v9047
    %v10017 = vunpack.c.l.b16 %v9048
    %v10018 = vunpack.c.l.b16 %v9049
    %v10019 = vunpack.c.l.b16 %v9050
    %v10020 = vunpack.c.l.b16 %v9051
    %v10021 = vunpack.c.l.b16 %v9052
    %v10022 = vunpack.c.l.b16 %v9053
    %v10023 = vunpack.c.l.b16 %v9054
    %v10024 = vunpack.c.l.b16 %v9055
    %v10025 = vunpack.c.l.b16 %v9056
    %v10026 = vunpack.c.l.b16 %v9057
    %v10027 = vunpack.c.l.b16 %v9058
    %v10028 = vunpack.c.l.b16 %v9059
    %v10029 = vunpack.c.l.b16 %v9060
    %v10030 = vunpack.c.l.b16 %v9061
    %v10031 = vunpack.c.l.b16 %v9062
    %v10032 = vunpack.c.l.b16 %v9063
    %v10033 = vunpack.c.l.b16 %v9064
    %v10034 = vunpack.c.l.b16 %v9065
    %v10035 = vunpack.c.l.b16 %v9066
    %v10036 = vunpack.c.l.b16 %v9067
    %v10037 = vunpack.c.l.b16 %v9068
    %v10038 = vunpack.c.l.b16 %v9069
    %v10039 = vunpack.c.l.b16 %v9070
    %v10040 = vunpack.c.l.b16 %v9071
    %v10041 = vunpack.c.l.b16 %v9072
    %v10042 = vunpack.c.l.b16 %v9073
    %v10043 = vunpack.c.l.b16 %v9074
    %v10044 = vunpack.c.l.b16 %v9075
    %v10045 = vunpack.c.l.b16 %v9076
    %v10046 = vunpack.c.l.b16 %v9077
    %v10047 = vunpack.c.l.b16 %v9078
    %v10048 = vunpack.c.l.b16 %v9079
    %v10049 = vunpack.c.l.b16 %v9080
    %v10050 = vunpack.c.l.b16 %v9081
    %v10051 = vunpack.c.l.b16 %v9082
    %v10052 = vunpack.c.l.b16 %v9083
    %v10053 = vunpack.c.l.b16 %v9084
    %v10054 = vunpack.c.l.b16 %v9085
    %v10055 = vunpack.c.l.b16 %v9086
    %v10056 = vunpack.c.l.b16 %v9087
    %v10057 = vunpack.c.l.b16 %v9088
    %v10058 = vunpack.c.l.b16 %v9089
    %v10059 = vunpack.c.l.b16 %v9090
    %v10060 = vunpack.c.l.b16 %v9091
    %v10061 = vunpack.c.l.b16 %v9092
    %v10062 = vunpack.c.l.b16 %v9093
    %v10063 = vunpack.c.l.b16 %v9094
    %v10064 = vunpack.c.l.b16 %v9095
    %v10065 = vunpack.c.l.b16 %v9096
    %v10066 = vunpack.c.l.b16 %v9097
    %v10067 = vunpack.c.l.b16 %v9098
    %v10068 = vunpack.c.l.b16 %v9099
    %v10069 = vunpack.c.l.b16 %v9100
    %v10070 = vunpack.c.l.b16 %v9101
    %v10071 = vunpack.c.l.b16 %v9102
    %v10072 = vunpack.c.l.b16 %v9103
    %v10073 = vunpack.c.l.b16 %v9104
    %v10074 = vunpack.c.l.b16 %v9105
    %v10075 = vunpack.c.l.b16 %v9106
    %v10076 = vunpack.c.l.b16 %v9107
    %v10077 = vunpack.c.l.b16 %v9108
    %v10078 = vunpack.c.l.b16 %v9109
    %v10079 = vunpack.c.l.b16 %v9110
    %v10080 = vunpack.c.l.b16 %v9111
    %v10081 = vunpack.c.l.b16 %v9112
    %v10082 = vunpack.c.l.b16 %v9113
    %v10083 = vunpack.c.l.b16 %v9114
    %v10084 = vunpack.c.l.b16 %v9115
    %v10085 = vunpack.c.l.b16 %v9116
    %v10086 = vunpack.c.l.b16 %v9117
    %v10087 = vunpack.c.l.b16 %v9118
    %v10088 = vunpack.c.l.b16 %v9119
    %v10089 = vunpack.c.l.b16 %v9120
    %v10090 = vunpack.c.l.b16 %v9121
    %v10091 = vunpack.c.l.b16 %v9122
    %v10092 = vunpack.c.l.b16 %v9123
    %v10093 = vunpack.c.l.b16 %v9124
    %v10094 = vunpack.c.l.b16 %v9125
    %v10095 = vunpack.c.l.b16 %v9126
    %v10096 = vunpack.c.l.b16 %v9127
    %v10097 = vunpack.c.l.b16 %v9128
    %v10098 = vunpack.c.l.b16 %v9129
    %v10099 = vunpack.c.l.b16 %v9130
    %v10100 = vunpack.c.l.b16 %v9131
    %v10101 = vunpack.c.l.b16 %v9132
    %v10102 = vunpack.c.l.b16 %v9133
    %v10103 = vunpack.c.l.b16 %v9134
    %v10104 = vunpack.c.l.b16 %v9135
    %v10105 = vunpack.c.l.b16 %v9136
    %v10106 = vunpack.c.l.b16 %v9137
    %v10107 = vunpack.c.l.b16 %v9138
    %v10108 = vunpack.c.l.b16 %v9139
    %v10109 = vunpack.c.l.b16 %v9140
    %v10110 = vunpack.c.l.b16 %v9141
    %v10111 = vunpack.c.l.b16 %v9142
    %v10112 = vunpack.c.l.b16 %v9143
    %v10113 = vunpack.c.l.b16 %v9144
    %v10114 = vunpack.c.l.b16 %v9145
    %v10115 = vunpack.c.l.b16 %v9146
    %v10116 = vunpack.c.l.b16 %v9147
    %v10117 = vunpack.c.l.b16 %v9148
    %v10118 = vunpack.c.l.b16 %v9149
    %v10119 = vunpack.c.l.b16 %v9150
    %v10120 = vunpack.c.l.b16 %v9151
    %v10121 = vunpack.c.l.b16 %v9152
    %v10122 = vunpack.c.l.b16 %v9153
    %v10123 = vunpack.c.l.b16 %v9154
    %v10124 = vunpack.c.l.b16 %v9155
    %v10125 = vunpack.c.l.b16 %v9156
    %v10126 = vunpack.c.l.b16 %v9157
    %v10127 = vunpack.c.l.b16 %v9158
    %v10128 = vunpack.c.l.b16 %v9159
    %v10129 = vunpack.c.l.b16 %v9160
    %v10130 = vunpack.c.l.b16 %v9161
    %v10131 = vunpack.c.l.b16 %v9162
    %v10132 = vunpack.c.l.b16 %v9163
    %v10133 = vunpack.c.l.b16 %v9164
    %v10134 = vunpack.c.l.b16 %v9165
    %v10135 = vunpack.c.l.b16 %v9166
    %v10136 = vunpack.c.l.b16 %v9167
    %v10137 = vunpack.c.l.b16 %v9168
    %v10138 = vunpack.c.l.b16 %v9169
    %v10139 = vunpack.c.l.b16 %v9170
    %v10140 = vunpack.c.l.b16 %v9171
    %v10141 = vunpack.c.l.b16 %v9172
    %v10142 = vunpack.c.l.b16 %v9173
    %v10143 = vunpack.c.l.b16 %v9174
    %v10144 = vunpack.c.l.b16 %v9175
    %v10145 = vunpack.c.l.b16 %v9176
    %v10146 = vunpack.c.l.b16 %v9177
    %v10147 = vunpack.c.l.b16 %v9178
    %v10148 = vunpack.c.l.b16 %v9179
    %v10149 = vunpack.c.l.b16 %v9180
    %v10150 = vunpack.c.l.b16 %v9181
    %v10151 = vunpack.c.l.b16 %v9182
    %v10152 = vunpack.c.l.b16 %v9183
    %v10153 = vunpack.c.l.b16 %v9184
    %v10154 = vunpack.c.l.b16 %v9185
    %v10155 = vunpack.c.l.b16 %v9186
    %v10156 = vunpack.c.l.b16 %v9187
    %v10157 = vunpack.c.l.b16 %v9188
    %v10158 = vunpack.c.l.b16 %v9189
    %v10159 = vunpack.c.l.b16 %v9190
    %v10160 = vunpack.c.l.b16 %v9191
    %v10161 = vunpack.c.l.b16 %v9192
    %v10162 = vunpack.c.l.b16 %v9193
    %v10163 = vunpack.c.l.b16 %v9194
    %v10164 = vunpack.c.l.b16 %v9195
    %v10165 = vunpack.c.l.b16 %v9196
    %v10166 = vunpack.c.l.b16 %v9197
    %v10167 = vunpack.c.l.b16 %v9198
    %v10168 = vunpack.c.l.b16 %v9199
    %v10169 = vunpack.c.l.b16 %v9200
    %v10170 = vunpack.c.l.b16 %v9201
    %v10171 = vunpack.c.l.b16 %v9202
    %v10172 = vunpack.c.l.b16 %v9203
    %v10173 = vunpack.c.l.b16 %v9204
    %v10174 = vunpack.c.l.b16 %v9205
    %v10175 = vunpack.c.l.b16 %v9206
    %v10176 = vunpack.c.l.b16 %v9207
    %v10177 = vunpack.c.l.b16 %v9208
    %v10178 = vunpack.c.l.b16 %v9209
    %v10179 = vunpack.c.l.b16 %v9210
    %v10180 = vunpack.c.l.b16 %v9211
    %v10181 = vunpack.c.l.b16 %v9212
    %v10182 = vunpack.c.l.b16 %v9213
    %v10183 = vunpack.c.l.b16 %v9214
    %v10184 = vunpack.c.l.b16 %v9215
    %v10185 = vunpack.c.l.b16 %v9216
    %v10186 = vunpack.c.l.b16 %v9217
    %v10187 = vunpack.c.l.b16 %v9218
    %v10188 = vunpack.c.l.b16 %v9219
    %v10189 = vunpack.c.l.b16 %v9220
    %v10190 = vunpack.c.l.b16 %v9221
    %v10191 = vunpack.c.l.b16 %v9222
    %v10192 = vunpack.c.l.b16 %v9223
    %v10193 = vunpack.c.l.b16 %v9224
    %v10194 = vunpack.c.l.b16 %v9225
    %v10195 = vunpack.c.l.b16 %v9226
    %v10196 = vunpack.c.l.b16 %v9227
    %v10197 = vunpack.c.l.b16 %v9228
    %v10198 = vunpack.c.l.b16 %v9229
    %v10199 = vunpack.c.l.b16 %v9230
    %v10200 = vunpack.c.l.b16 %v9231
    %v10201 = vunpack.c.l.b16 %v9232
    %v10202 = vunpack.c.l.b16 %v9233
    %v10203 = vunpack.c.l.b16 %v9234
    %v10204 = vunpack.c.l.b16 %v9235
    %v10205 = vunpack.c.l.b16 %v9236
    %v10206 = vunpack.c.l.b16 %v9237
    %v10207 = vunpack.c.l.b16 %v9238
    %v10208 = vunpack.c.l.b16 %v9239
    %v10209 = vunpack.c.l.b16 %v9240
    %v10210 = vunpack.c.l.b16 %v9241
    %v10211 = vunpack.c.l.b16 %v9242
    %v10212 = vunpack.c.l.b16 %v9243
    %v10213 = vunpack.c.l.b16 %v9244
    %v10214 = vunpack.c.l.b16 %v9245
    %v10215 = vunpack.c.l.b16 %v9246
    %v10216 = vunpack.c.l.b16 %v9247
    %v10217 = vunpack.c.l.b16 %v9248
    %v10218 = vunpack.c.l.b16 %v9249
    %v10219 = vunpack.c.l.b16 %v9250
    %v10220 = vunpack.c.l.b16 %v9251
    %v10221 = vunpack.c.l.b16 %v9252
    %v10222 = vunpack.c.l.b16 %v9253
    %v10223 = vunpack.c.l.b16 %v9254
    %v10224 = vunpack.c.l.b16 %v9255
    %v10225 = vunpack.c.l.b16 %v9256
    %v10226 = vunpack.c.l.b16 %v9257
    %v10227 = vunpack.c.l.b16 %v9258
    %v10228 = vunpack.c.l.b16 %v9259
    %v10229 = vunpack.c.l.b16 %v9260
    %v10230 = vunpack.c.l.b16 %v9261
    %v10231 = vunpack.c.l.b16 %v9262
    %v10232 = vunpack.c.l.b16 %v9263
    %v10233 = vunpack.c.l.b16 %v9264
    %v10234 = vunpack.c.l.b16 %v9265
    %v10235 = vunpack.c.l.b16 %v9266
    %v10236 = vunpack.c.l.b16 %v9267
    %v10237 = vunpack.c.l.b16 %v9268
    %v10238 = vunpack.c.l.b16 %v9269
    %v10239 = vunpack.c.l.b16 %v9270
    %v10240 = vunpack.c.l.b16 %v9271
    %v10241 = vunpack.c.l.b16 %v9272
    %v10242 = vunpack.c.l.b16 %v9273
    %v10243 = vunpack.c.l.b16 %v9274
    %v10244 = vunpack.c.l.b16 %v9275
    %v10245 = vunpack.c.l.b16 %v9276
    %v10246 = vunpack.c.l.b16 %v9277
    %v10247 = vpack.c.b16 %v9960, %v9959
    %v10248 = vpack.c.b16 %v9962, %v9961
    %v10249 = vpack.c.b16 %v9964, %v9963
    %v10250 = vpack.c.b16 %v9966, %v9965
    %v10251 = vpack.c.b16 %v9968, %v9967
    %v10252 = vpack.c.b16 %v9970, %v9969
    %v10253 = vpack.c.b16 %v9972, %v9971
    %v10254 = vpack.c.b16 %v9974, %v9973
    %v10255 = vpack.c.b16 %v9976, %v9975
    %v10256 = vpack.c.b16 %v9978, %v9977
    %v10257 = vpack.c.b16 %v9980, %v9979
    %v10258 = vpack.c.b16 %v9982, %v9981
    %v10259 = vpack.c.b16 %v9984, %v9983
    %v10260 = vpack.c.b16 %v9986, %v9985
    %v10261 = vpack.c.b16 %v9988, %v9987
    %v10262 = vpack.c.b16 %v9990, %v9989
    %v10263 = vpack.c.b16 %v9992, %v9991
    %v10264 = vpack.c.b16 %v9994, %v9993
    %v10265 = vpack.c.b16 %v9996, %v9995
    %v10266 = vpack.c.b16 %v9998, %v9997
    %v10267 = vpack.c.b16 %v10000, %v9999
    %v10268 = vpack.c.b16 %v10002, %v10001
    %v10269 = vpack.c.b16 %v10004, %v10003
    %v10270 = vpack.c.b16 %v10006, %v10005
    %v10271 = vpack.c.b16 %v10008, %v10007
    %v10272 = vpack.c.b16 %v10010, %v10009
    %v10273 = vpack.c.b16 %v10012, %v10011
    %v10274 = vpack.c.b16 %v10014, %v10013
    %v10275 = vpack.c.b16 %v10016, %v10015
    %v10276 = vpack.c.b16 %v10018, %v10017
    %v10277 = vpack.c.b16 %v10020, %v10019
    %v10278 = vpack.c.b16 %v10022, %v10021
    %v10279 = vpack.c.b16 %v10024, %v10023
    %v10280 = vpack.c.b16 %v10026, %v10025
    %v10281 = vpack.c.b16 %v10028, %v10027
    %v10282 = vpack.c.b16 %v10030, %v10029
    %v10283 = vpack.c.b16 %v10032, %v10031
    %v10284 = vpack.c.b16 %v10034, %v10033
    %v10285 = vpack.c.b16 %v10036, %v10035
    %v10286 = vpack.c.b16 %v10038, %v10037
    %v10287 = vpack.c.b16 %v10040, %v10039
    %v10288 = vpack.c.b16 %v10042, %v10041
    %v10289 = vpack.c.b16 %v10044, %v10043
    %v10290 = vpack.c.b16 %v10046, %v10045
    %v10291 = vpack.c.b16 %v10048, %v10047
    %v10292 = vpack.c.b16 %v10050, %v10049
    %v10293 = vpack.c.b16 %v10052, %v10051
    %v10294 = vpack.c.b16 %v10054, %v10053
    %v10295 = vpack.c.b16 %v10056, %v10055
    %v10296 = vpack.c.b16 %v10058, %v10057
    %v10297 = vpack.c.b16 %v10060, %v10059
    %v10298 = vpack.c.b16 %v10062, %v10061
    %v10299 = vpack.c.b16 %v10064, %v10063
    %v10300 = vpack.c.b16 %v10066, %v10065
    %v10301 = vpack.c.b16 %v10068, %v10067
    %v10302 = vpack.c.b16 %v10070, %v10069
    %v10303 = vpack.c.b16 %v10072, %v10071
    %v10304 = vpack.c.b16 %v10074, %v10073
    %v10305 = vpack.c.b16 %v10076, %v10075
    %v10306 = vpack.c.b16 %v10078, %v10077
    %v10307 = vpack.c.b16 %v10080, %v10079
    %v10308 = vpack.c.b16 %v10082, %v10081
    %v10309 = vpack.c.b16 %v10084, %v10083
    %v10310 = vpack.c.b16 %v10086, %v10085
    %v10311 = vpack.c.b16 %v10088, %v10087
    %v10312 = vpack.c.b16 %v10090, %v10089
    %v10313 = vpack.c.b16 %v10092, %v10091
    %v10314 = vpack.c.b16 %v10094, %v10093
    %v10315 = vpack.c.b16 %v10096, %v10095
    %v10316 = vpack.c.b16 %v10098, %v10097
    %v10317 = vpack.c.b16 %v10100, %v10099
    %v10318 = vpack.c.b16 %v10102, %v10101
    %v10319 = vpack.c.b16 %v10104, %v10103
    %v10320 = vpack.c.b16 %v10106, %v10105
    %v10321 = vpack.c.b16 %v10108, %v10107
    %v10322 = vpack.c.b16 %v10110, %v10109
    %v10323 = vpack.c.b16 %v10112, %v10111
    %v10324 = vpack.c.b16 %v10114, %v10113
    %v10325 = vpack.c.b16 %v10116, %v10115
    %v10326 = vpack.c.b16 %v10118, %v10117
    %v10327 = vpack.c.b16 %v10120, %v10119
    %v10328 = vpack.c.b16 %v10122, %v10121
    %v10329 = vpack.c.b16 %v10124, %v10123
    %v10330 = vpack.c.b16 %v10126, %v10125
    %v10331 = vpack.c.b16 %v10128, %v10127
    %v10332 = vpack.c.b16 %v10130, %v10129
    %v10333 = vpack.c.b16 %v10132, %v10131
    %v10334 = vpack.c.b16 %v10134, %v10133
    %v10335 = vpack.c.b16 %v10136, %v10135
    %v10336 = vpack.c.b16 %v10138, %v10137
    %v10337 = vpack.c.b16 %v10140, %v10139
    %v10338 = vpack.c.b16 %v10142, %v10141
    %v10339 = vpack.c.b16 %v10144, %v10143
    %v10340 = vpack.c.b16 %v10146, %v10145
    %v10341 = vpack.c.b16 %v10148, %v10147
    %v10342 = vpack.c.b16 %v10150, %v10149
    %v10343 = vpack.c.b16 %v10152, %v10151
    %v10344 = vpack.c.b16 %v10154, %v10153
    %v10345 = vpack.c.b16 %v10156, %v10155
    %v10346 = vpack.c.b16 %v10158, %v10157
    %v10347 = vpack.c.b16 %v10160, %v10159
    %v10348 = vpack.c.b16 %v10162, %v10161
    %v10349 = vpack.c.b16 %v10164, %v10163
    %v10350 = vpack.c.b16 %v10166, %v10165
    %v10351 = vpack.c.b16 %v10168, %v10167
    %v10352 = vpack.c.b16 %v10170, %v10169
    %v10353 = vpack.c.b16 %v10172, %v10171
    %v10354 = vpack.c.b16 %v10174, %v10173
    %v10355 = vpack.c.b16 %v10176, %v10175
    %v10356 = vpack.c.b16 %v10178, %v10177
    %v10357 = vpack.c.b16 %v10180, %v10179
    %v10358 = vpack.c.b16 %v10182, %v10181
    %v10359 = vpack.c.b16 %v10184, %v10183
    %v10360 = vpack.c.b16 %v10186, %v10185
    %v10361 = vpack.c.b16 %v10188, %v10187
    %v10362 = vpack.c.b16 %v10190, %v10189
    %v10363 = vpack.c.b16 %v10192, %v10191
    %v10364 = vpack.c.b16 %v10194, %v10193
    %v10365 = vpack.c.b16 %v10196, %v10195
    %v10366 = vpack.c.b16 %v10198, %v10197
    %v10367 = vpack.c.b16 %v10200, %v10199
    %v10368 = vpack.c.b16 %v10202, %v10201
    %v10369 = vpack.c.b16 %v10204, %v10203
    %v10370 = vpack.c.b16 %v10206, %v10205
    %v10371 = vpack.c.b16 %v10208, %v10207
    %v10372 = vpack.c.b16 %v10210, %v10209
    %v10373 = vpack.c.b16 %v10212, %v10211
    %v10374 = vpack.c.b16 %v10214, %v10213
    %v10375 = vpack.c.b16 %v10216, %v10215
    %v10376 = vpack.c.b16 %v10218, %v10217
    %v10377 = vpack.c.b16 %v10220, %v10219
    %v10378 = vpack.c.b16 %v10222, %v10221
    %v10379 = vpack.c.b16 %v10224, %v10223
    %v10380 = vpack.c.b16 %v10226, %v10225
    %v10381 = vpack.c.b16 %v10228, %v10227
    %v10382 = vpack.c.b16 %v10230, %v10229
    %v10383 = vpack.c.b16 %v10232, %v10231
    %v10384 = vpack.c.b16 %v10234, %v10233
    %v10385 = vpack.c.b16 %v10236, %v10235
    %v10386 = vpack.c.b16 %v10238, %v10237
    %v10387 = vpack.c.b16 %v10240, %v10239
    %v10388 = vpack.c.b16 %v10242, %v10241
    %v10389 = vpack.c.b16 %v10244, %v10243
    %v10390 = vpack.c.b16 %v10246, %v10245
    %10535 = vmatprep.subr.bf16.mxu0 0
    %10536 = vmatpush1.bf16.msra.mxu0 %v10254
    %10537 = vmatprep.subr.bf16.mxu0 0
    %10538 = vmatpush1.bf16.msra.mxu0 %v10253
    %10539 = vmatprep.subr.bf16.mxu0 0
    %10540 = vmatpush1.bf16.msra.mxu0 %v10252
    %10541 = vmatprep.subr.bf16.mxu0 0
    %10542 = vmatpush1.bf16.msra.mxu0 %v10251
    %10543 = vmatprep.subr.bf16.mxu0 0
    %10544 = vmatpush1.bf16.msra.mxu0 %v10250
    %10545 = vmatprep.subr.bf16.mxu0 0
    %10546 = vmatpush1.bf16.msra.mxu0 %v10249
    %10547 = vmatprep.subr.bf16.mxu0 0
    %10548 = vmatpush1.bf16.msra.mxu0 %v10248
    %10549 = vmatprep.subr.bf16.mxu0 0
    %10550 = vmatpush1.bf16.msra.mxu0 %v10247
    %10551 = vmatprep.subr.bf16.mxu0 0
    %10552 = vmatpush2.bf16.msra.mxu0 %v10262
    %10553 = vmatprep.subr.bf16.mxu0 0
    %10554 = vmatpush2.bf16.msra.mxu0 %v10261
    %10555 = vmatprep.subr.bf16.mxu0 0
    %10556 = vmatpush2.bf16.msra.mxu0 %v10260
    %10557 = vmatprep.subr.bf16.mxu0 0
    %10558 = vmatpush2.bf16.msra.mxu0 %v10259
    %10559 = vmatprep.subr.bf16.mxu0 0
    %10560 = vmatpush2.bf16.msra.mxu0 %v10258
    %10561 = vmatprep.subr.bf16.mxu0 0
    %10562 = vmatpush2.bf16.msra.mxu0 %v10257
    %10563 = vmatprep.subr.bf16.mxu0 0
    %10564 = vmatpush2.bf16.msra.mxu0 %v10256
    %10565 = vmatprep.subr.bf16.mxu0 0
    %10566 = vmatpush2.bf16.msra.mxu0 %v10255
    %10567 = vmatprep.mubr.bf16.mxu0 %v9326
    %10568 = vmatmul.mubr.bf16.gmra.mxu0 %v9325
    %v10569 = vpop.f32.mrf.mxu0
    %v10570 = vadd.f32 0.0, %v10569
    %v10571 = vpop.f32.mrf.mxu0
    %v10572 = vpop.f32.mrf.mxu0
    %v10573 = vpop.f32.mrf.mxu0
    %10574 = vdwg.mxu0
    %10575 = vmatprep.subr.bf16.mxu0 0
    %10576 = vmatpush1.bf16.msra.mxu0 %v10270
    %10577 = vmatprep.subr.bf16.mxu0 0
    %10578 = vmatpush1.bf16.msra.mxu0 %v10269
    %10579 = vmatprep.subr.bf16.mxu0 0
    %10580 = vmatpush1.bf16.msra.mxu0 %v10268
    %10581 = vmatprep.subr.bf16.mxu0 0
    %10582 = vmatpush1.bf16.msra.mxu0 %v10267
    %10583 = vmatprep.subr.bf16.mxu0 0
    %10584 = vmatpush1.bf16.msra.mxu0 %v10266
    %10585 = vmatprep.subr.bf16.mxu0 0
    %10586 = vmatpush1.bf16.msra.mxu0 %v10265
    %10587 = vmatprep.subr.bf16.mxu0 0
    %10588 = vmatpush1.bf16.msra.mxu0 %v10264
    %10589 = vmatprep.subr.bf16.mxu0 0
    %10590 = vmatpush1.bf16.msra.mxu0 %v10263
    %10591 = vmatprep.subr.bf16.mxu0 0
    %10592 = vmatpush2.bf16.msra.mxu0 %v10278
    %10593 = vmatprep.subr.bf16.mxu0 0
    %10594 = vmatpush2.bf16.msra.mxu0 %v10277
    %10595 = vmatprep.subr.bf16.mxu0 0
    %10596 = vmatpush2.bf16.msra.mxu0 %v10276
    %10597 = vmatprep.subr.bf16.mxu0 0
    %10598 = vmatpush2.bf16.msra.mxu0 %v10275
    %10599 = vmatprep.subr.bf16.mxu0 0
    %10600 = vmatpush2.bf16.msra.mxu0 %v10274
    %10601 = vmatprep.subr.bf16.mxu0 0
    %10602 = vmatpush2.bf16.msra.mxu0 %v10273
    %10603 = vmatprep.subr.bf16.mxu0 0
    %10604 = vmatpush2.bf16.msra.mxu0 %v10272
    %10605 = vmatprep.subr.bf16.mxu0 0
    %10606 = vmatpush2.bf16.msra.mxu0 %v10271
    %10607 = vmatprep.mubr.bf16.mxu0 %v9369
    %10608 = vmatmul.mubr.bf16.gmra.mxu0 %v9368
    %v10609 = vpop.f32.mrf.mxu0
    %v10610 = vadd.f32 %v10570, %v10609
    %v10611 = vpop.f32.mrf.mxu0
    %v10612 = vpop.f32.mrf.mxu0
    %v10613 = vpop.f32.mrf.mxu0
    %10614 = vdwg.mxu0
    %10615 = vmatprep.subr.bf16.mxu0 0
    %10616 = vmatpush1.bf16.msra.mxu0 %v10286
    %10617 = vmatprep.subr.bf16.mxu0 0
    %10618 = vmatpush1.bf16.msra.mxu0 %v10285
    %10619 = vmatprep.subr.bf16.mxu0 0
    %10620 = vmatpush1.bf16.msra.mxu0 %v10284
    %10621 = vmatprep.subr.bf16.mxu0 0
    %10622 = vmatpush1.bf16.msra.mxu0 %v10283
    %10623 = vmatprep.subr.bf16.mxu0 0
    %10624 = vmatpush1.bf16.msra.mxu0 %v10282
    %10625 = vmatprep.subr.bf16.mxu0 0
    %10626 = vmatpush1.bf16.msra.mxu0 %v10281
    %10627 = vmatprep.subr.bf16.mxu0 0
    %10628 = vmatpush1.bf16.msra.mxu0 %v10280
    %10629 = vmatprep.subr.bf16.mxu0 0
    %10630 = vmatpush1.bf16.msra.mxu0 %v10279
    %10631 = vmatprep.subr.bf16.mxu0 0
    %10632 = vmatpush2.bf16.msra.mxu0 %v10294
    %10633 = vmatprep.subr.bf16.mxu0 0
    %10634 = vmatpush2.bf16.msra.mxu0 %v10293
    %10635 = vmatprep.subr.bf16.mxu0 0
    %10636 = vmatpush2.bf16.msra.mxu0 %v10292
    %10637 = vmatprep.subr.bf16.mxu0 0
    %10638 = vmatpush2.bf16.msra.mxu0 %v10291
    %10639 = vmatprep.subr.bf16.mxu0 0
    %10640 = vmatpush2.bf16.msra.mxu0 %v10290
    %10641 = vmatprep.subr.bf16.mxu0 0
    %10642 = vmatpush2.bf16.msra.mxu0 %v10289
    %10643 = vmatprep.subr.bf16.mxu0 0
    %10644 = vmatpush2.bf16.msra.mxu0 %v10288
    %10645 = vmatprep.subr.bf16.mxu0 0
    %10646 = vmatpush2.bf16.msra.mxu0 %v10287
    %10647 = vmatprep.mubr.bf16.mxu0 %v9412
    %10648 = vmatmul.mubr.bf16.gmra.mxu0 %v9411
    %v10649 = vpop.f32.mrf.mxu0
    %v10650 = vadd.f32 %v10610, %v10649
    %v10651 = vpop.f32.mrf.mxu0
    %v10652 = vpop.f32.mrf.mxu0
    %v10653 = vpop.f32.mrf.mxu0
    %10654 = vdwg.mxu0
    %10655 = vmatprep.subr.bf16.mxu0 0
    %10656 = vmatpush1.bf16.msra.mxu0 %v10302
    %10657 = vmatprep.subr.bf16.mxu0 0
    %10658 = vmatpush1.bf16.msra.mxu0 %v10301
    %10659 = vmatprep.subr.bf16.mxu0 0
    %10660 = vmatpush1.bf16.msra.mxu0 %v10300
    %10661 = vmatprep.subr.bf16.mxu0 0
    %10662 = vmatpush1.bf16.msra.mxu0 %v10299
    %10663 = vmatprep.subr.bf16.mxu0 0
    %10664 = vmatpush1.bf16.msra.mxu0 %v10298
    %10665 = vmatprep.subr.bf16.mxu0 0
    %10666 = vmatpush1.bf16.msra.mxu0 %v10297
    %10667 = vmatprep.subr.bf16.mxu0 0
    %10668 = vmatpush1.bf16.msra.mxu0 %v10296
    %10669 = vmatprep.subr.bf16.mxu0 0
    %10670 = vmatpush1.bf16.msra.mxu0 %v10295
    %10671 = vmatprep.subr.bf16.mxu0 0
    %10672 = vmatpush2.bf16.msra.mxu0 %v10310
    %10673 = vmatprep.subr.bf16.mxu0 0
    %10674 = vmatpush2.bf16.msra.mxu0 %v10309
    %10675 = vmatprep.subr.bf16.mxu0 0
    %10676 = vmatpush2.bf16.msra.mxu0 %v10308
    %10677 = vmatprep.subr.bf16.mxu0 0
    %10678 = vmatpush2.bf16.msra.mxu0 %v10307
    %10679 = vmatprep.subr.bf16.mxu0 0
    %10680 = vmatpush2.bf16.msra.mxu0 %v10306
    %10681 = vmatprep.subr.bf16.mxu0 0
    %10682 = vmatpush2.bf16.msra.mxu0 %v10305
    %10683 = vmatprep.subr.bf16.mxu0 0
    %10684 = vmatpush2.bf16.msra.mxu0 %v10304
    %10685 = vmatprep.subr.bf16.mxu0 0
    %10686 = vmatpush2.bf16.msra.mxu0 %v10303
    %10687 = vmatprep.mubr.bf16.mxu0 %v9455
    %10688 = vmatmul.mubr.bf16.gmra.mxu0 %v9454
    %v10689 = vpop.f32.mrf.mxu0
    %v10690 = vadd.f32 %v10650, %v10689
    %v10691 = vpop.f32.mrf.mxu0
    %v10692 = vpop.f32.mrf.mxu0
    %v10693 = vpop.f32.mrf.mxu0
    %10694 = vdwg.mxu0
    %10695 = vmatprep.subr.bf16.mxu0 0
    %10696 = vmatpush1.bf16.msra.mxu0 %v10318
    %10697 = vmatprep.subr.bf16.mxu0 0
    %10698 = vmatpush1.bf16.msra.mxu0 %v10317
    %10699 = vmatprep.subr.bf16.mxu0 0
    %10700 = vmatpush1.bf16.msra.mxu0 %v10316
    %10701 = vmatprep.subr.bf16.mxu0 0
    %10702 = vmatpush1.bf16.msra.mxu0 %v10315
    %10703 = vmatprep.subr.bf16.mxu0 0
    %10704 = vmatpush1.bf16.msra.mxu0 %v10314
    %10705 = vmatprep.subr.bf16.mxu0 0
    %10706 = vmatpush1.bf16.msra.mxu0 %v10313
    %10707 = vmatprep.subr.bf16.mxu0 0
    %10708 = vmatpush1.bf16.msra.mxu0 %v10312
    %10709 = vmatprep.subr.bf16.mxu0 0
    %10710 = vmatpush1.bf16.msra.mxu0 %v10311
    %10711 = vmatprep.subr.bf16.mxu0 0
    %10712 = vmatpush2.bf16.msra.mxu0 %v10326
    %10713 = vmatprep.subr.bf16.mxu0 0
    %10714 = vmatpush2.bf16.msra.mxu0 %v10325
    %10715 = vmatprep.subr.bf16.mxu0 0
    %10716 = vmatpush2.bf16.msra.mxu0 %v10324
    %10717 = vmatprep.subr.bf16.mxu0 0
    %10718 = vmatpush2.bf16.msra.mxu0 %v10323
    %10719 = vmatprep.subr.bf16.mxu0 0
    %10720 = vmatpush2.bf16.msra.mxu0 %v10322
    %10721 = vmatprep.subr.bf16.mxu0 0
    %10722 = vmatpush2.bf16.msra.mxu0 %v10321
    %10723 = vmatprep.subr.bf16.mxu0 0
    %10724 = vmatpush2.bf16.msra.mxu0 %v10320
    %10725 = vmatprep.subr.bf16.mxu0 0
    %10726 = vmatpush2.bf16.msra.mxu0 %v10319
    %10727 = vmatprep.mubr.bf16.mxu0 %v9498
    %10728 = vmatmul.mubr.bf16.gmra.mxu0 %v9497
    %v10729 = vpop.f32.mrf.mxu0
    %v10730 = vadd.f32 %v10690, %v10729
    %v10731 = vpop.f32.mrf.mxu0
    %v10732 = vpop.f32.mrf.mxu0
    %v10733 = vpop.f32.mrf.mxu0
    %10734 = vdwg.mxu0
    %10735 = vmatprep.subr.bf16.mxu0 0
    %10736 = vmatpush1.bf16.msra.mxu0 %v10334
    %10737 = vmatprep.subr.bf16.mxu0 0
    %10738 = vmatpush1.bf16.msra.mxu0 %v10333
    %10739 = vmatprep.subr.bf16.mxu0 0
    %10740 = vmatpush1.bf16.msra.mxu0 %v10332
    %10741 = vmatprep.subr.bf16.mxu0 0
    %10742 = vmatpush1.bf16.msra.mxu0 %v10331
    %10743 = vmatprep.subr.bf16.mxu0 0
    %10744 = vmatpush1.bf16.msra.mxu0 %v10330
    %10745 = vmatprep.subr.bf16.mxu0 0
    %10746 = vmatpush1.bf16.msra.mxu0 %v10329
    %10747 = vmatprep.subr.bf16.mxu0 0
    %10748 = vmatpush1.bf16.msra.mxu0 %v10328
    %10749 = vmatprep.subr.bf16.mxu0 0
    %10750 = vmatpush1.bf16.msra.mxu0 %v10327
    %10751 = vmatprep.subr.bf16.mxu0 0
    %10752 = vmatpush2.bf16.msra.mxu0 %v10342
    %10753 = vmatprep.subr.bf16.mxu0 0
    %10754 = vmatpush2.bf16.msra.mxu0 %v10341
    %10755 = vmatprep.subr.bf16.mxu0 0
    %10756 = vmatpush2.bf16.msra.mxu0 %v10340
    %10757 = vmatprep.subr.bf16.mxu0 0
    %10758 = vmatpush2.bf16.msra.mxu0 %v10339
    %10759 = vmatprep.subr.bf16.mxu0 0
    %10760 = vmatpush2.bf16.msra.mxu0 %v10338
    %10761 = vmatprep.subr.bf16.mxu0 0
    %10762 = vmatpush2.bf16.msra.mxu0 %v10337
    %10763 = vmatprep.subr.bf16.mxu0 0
    %10764 = vmatpush2.bf16.msra.mxu0 %v10336
    %10765 = vmatprep.subr.bf16.mxu0 0
    %10766 = vmatpush2.bf16.msra.mxu0 %v10335
    %10767 = vmatprep.mubr.bf16.mxu0 %v9541
    %10768 = vmatmul.mubr.bf16.gmra.mxu0 %v9540
    %v10769 = vpop.f32.mrf.mxu0
    %v10770 = vadd.f32 %v10730, %v10769
    %v10771 = vpop.f32.mrf.mxu0
    %v10772 = vpop.f32.mrf.mxu0
    %v10773 = vpop.f32.mrf.mxu0
    %10774 = vdwg.mxu0
    %10775 = vmatprep.subr.bf16.mxu0 0
    %10776 = vmatpush1.bf16.msra.mxu0 %v10350
    %10777 = vmatprep.subr.bf16.mxu0 0
    %10778 = vmatpush1.bf16.msra.mxu0 %v10349
    %10779 = vmatprep.subr.bf16.mxu0 0
    %10780 = vmatpush1.bf16.msra.mxu0 %v10348
    %10781 = vmatprep.subr.bf16.mxu0 0
    %10782 = vmatpush1.bf16.msra.mxu0 %v10347
    %10783 = vmatprep.subr.bf16.mxu0 0
    %10784 = vmatpush1.bf16.msra.mxu0 %v10346
    %10785 = vmatprep.subr.bf16.mxu0 0
    %10786 = vmatpush1.bf16.msra.mxu0 %v10345
    %10787 = vmatprep.subr.bf16.mxu0 0
    %10788 = vmatpush1.bf16.msra.mxu0 %v10344
    %10789 = vmatprep.subr.bf16.mxu0 0
    %10790 = vmatpush1.bf16.msra.mxu0 %v10343
    %10791 = vmatprep.subr.bf16.mxu0 0
    %10792 = vmatpush2.bf16.msra.mxu0 %v10358
    %10793 = vmatprep.subr.bf16.mxu0 0
    %10794 = vmatpush2.bf16.msra.mxu0 %v10357
    %10795 = vmatprep.subr.bf16.mxu0 0
    %10796 = vmatpush2.bf16.msra.mxu0 %v10356
    %10797 = vmatprep.subr.bf16.mxu0 0
    %10798 = vmatpush2.bf16.msra.mxu0 %v10355
    %10799 = vmatprep.subr.bf16.mxu0 0
    %10800 = vmatpush2.bf16.msra.mxu0 %v10354
    %10801 = vmatprep.subr.bf16.mxu0 0
    %10802 = vmatpush2.bf16.msra.mxu0 %v10353
    %10803 = vmatprep.subr.bf16.mxu0 0
    %10804 = vmatpush2.bf16.msra.mxu0 %v10352
    %10805 = vmatprep.subr.bf16.mxu0 0
    %10806 = vmatpush2.bf16.msra.mxu0 %v10351
    %10807 = vmatprep.mubr.bf16.mxu0 %v9584
    %10808 = vmatmul.mubr.bf16.gmra.mxu0 %v9583
    %v10809 = vpop.f32.mrf.mxu0
    %v10810 = vadd.f32 %v10770, %v10809
    %v10811 = vpop.f32.mrf.mxu0
    %v10812 = vpop.f32.mrf.mxu0
    %v10813 = vpop.f32.mrf.mxu0
    %10814 = vdwg.mxu0
    %10815 = vmatprep.subr.bf16.mxu0 0
    %10816 = vmatpush1.bf16.msra.mxu0 %v10366
    %10817 = vmatprep.subr.bf16.mxu0 0
    %10818 = vmatpush1.bf16.msra.mxu0 %v10365
    %10819 = vmatprep.subr.bf16.mxu0 0
    %10820 = vmatpush1.bf16.msra.mxu0 %v10364
    %10821 = vmatprep.subr.bf16.mxu0 0
    %10822 = vmatpush1.bf16.msra.mxu0 %v10363
    %10823 = vmatprep.subr.bf16.mxu0 0
    %10824 = vmatpush1.bf16.msra.mxu0 %v10362
    %10825 = vmatprep.subr.bf16.mxu0 0
    %10826 = vmatpush1.bf16.msra.mxu0 %v10361
    %10827 = vmatprep.subr.bf16.mxu0 0
    %10828 = vmatpush1.bf16.msra.mxu0 %v10360
    %10829 = vmatprep.subr.bf16.mxu0 0
    %10830 = vmatpush1.bf16.msra.mxu0 %v10359
    %10831 = vmatprep.subr.bf16.mxu0 0
    %10832 = vmatpush2.bf16.msra.mxu0 %v10374
    %10833 = vmatprep.subr.bf16.mxu0 0
    %10834 = vmatpush2.bf16.msra.mxu0 %v10373
    %10835 = vmatprep.subr.bf16.mxu0 0
    %10836 = vmatpush2.bf16.msra.mxu0 %v10372
    %10837 = vmatprep.subr.bf16.mxu0 0
    %10838 = vmatpush2.bf16.msra.mxu0 %v10371
    %10839 = vmatprep.subr.bf16.mxu0 0
    %10840 = vmatpush2.bf16.msra.mxu0 %v10370
    %10841 = vmatprep.subr.bf16.mxu0 0
    %10842 = vmatpush2.bf16.msra.mxu0 %v10369
    %10843 = vmatprep.subr.bf16.mxu0 0
    %10844 = vmatpush2.bf16.msra.mxu0 %v10368
    %10845 = vmatprep.subr.bf16.mxu0 0
    %10846 = vmatpush2.bf16.msra.mxu0 %v10367
    %10847 = vmatprep.mubr.bf16.mxu0 %v9627
    %10848 = vmatmul.mubr.bf16.gmra.mxu0 %v9626
    %v10849 = vpop.f32.mrf.mxu0
    %v10850 = vadd.f32 %v10810, %v10849
    %v10851 = vpop.f32.mrf.mxu0
    %v10852 = vpop.f32.mrf.mxu0
    %v10853 = vpop.f32.mrf.mxu0
    %10854 = vdwg.mxu0
    %10855 = vmatprep.subr.bf16.mxu0 0
    %10856 = vmatpush1.bf16.msra.mxu0 %v10382
    %10857 = vmatprep.subr.bf16.mxu0 0
    %10858 = vmatpush1.bf16.msra.mxu0 %v10381
    %10859 = vmatprep.subr.bf16.mxu0 0
    %10860 = vmatpush1.bf16.msra.mxu0 %v10380
    %10861 = vmatprep.subr.bf16.mxu0 0
    %10862 = vmatpush1.bf16.msra.mxu0 %v10379
    %10863 = vmatprep.subr.bf16.mxu0 0
    %10864 = vmatpush1.bf16.msra.mxu0 %v10378
    %10865 = vmatprep.subr.bf16.mxu0 0
    %10866 = vmatpush1.bf16.msra.mxu0 %v10377
    %10867 = vmatprep.subr.bf16.mxu0 0
    %10868 = vmatpush1.bf16.msra.mxu0 %v10376
    %10869 = vmatprep.subr.bf16.mxu0 0
    %10870 = vmatpush1.bf16.msra.mxu0 %v10375
    %10871 = vmatprep.subr.bf16.mxu0 0
    %10872 = vmatpush2.bf16.msra.mxu0 %v10390
    %10873 = vmatprep.subr.bf16.mxu0 0
    %10874 = vmatpush2.bf16.msra.mxu0 %v10389
    %10875 = vmatprep.subr.bf16.mxu0 0
    %10876 = vmatpush2.bf16.msra.mxu0 %v10388
    %10877 = vmatprep.subr.bf16.mxu0 0
    %10878 = vmatpush2.bf16.msra.mxu0 %v10387
    %10879 = vmatprep.subr.bf16.mxu0 0
    %10880 = vmatpush2.bf16.msra.mxu0 %v10386
    %10881 = vmatprep.subr.bf16.mxu0 0
    %10882 = vmatpush2.bf16.msra.mxu0 %v10385
    %10883 = vmatprep.subr.bf16.mxu0 0
    %10884 = vmatpush2.bf16.msra.mxu0 %v10384
    %10885 = vmatprep.subr.bf16.mxu0 0
    %10886 = vmatpush2.bf16.msra.mxu0 %v10383
    %10887 = vmatprep.mubr.bf16.mxu0 %v9670
    %10888 = vmatmul.mubr.bf16.gmra.mxu0 %v9669
    %v10889 = vpop.f32.mrf.mxu0
    %v10890 = vadd.f32 %v10850, %v10889
    %v10891 = vpop.f32.mrf.mxu0
    %v10892 = vpop.f32.mrf.mxu0
    %v10893 = vpop.f32.mrf.mxu0
    %10894 = vdwg.mxu0
    %v10895 = vadd.f32 %v8926, %v10890
    %v10896 = vld [vmem:[%s14] sm:$0x3]
    %v10897 = vld [vmem:[%s15] sm:$0x3]
    %v10898 = vrot.slane %v10895, 4
    %v10899 = vadd.f32 %v10895, %v10898
    %v10900 = vrot.slane %v10899, 2
    %v10901 = vadd.f32 %v10899, %v10900
    %v10902 = vrot.slane %v10901, 1
    %v10903 = vadd.f32 %v10901, %v10902
    %v10904 = vmul.f32 %v10903, %v4949
    %v10905 = vsub.f32 %v10895, %v10904
    %v10906 = vmul.f32 %v10905, %v10905
    %v10907 = vrot.slane %v10906, 4
    %v10908 = vadd.f32 %v10906, %v10907
    %v10909 = vrot.slane %v10908, 2
    %v10910 = vadd.f32 %v10908, %v10909
    %v10911 = vrot.slane %v10910, 1
    %v10912 = vadd.f32 %v10910, %v10911
    %v10913 = vmul.f32 %v10912, %v4949
    %v10914 = vadd.f32 %v10913, 1e-05
    %v10915 = vrsqrt.pop %v10914
    %v10917 = vlaneseq
    %v10918 = vshrl.u32 %v10917, 7
    %v10919 = vsub.s32 0, %v10918
    %v10920 = vrot.slane %v10896, %v10919
    %v10921 = vlaneseq
    %v10922 = vshrl.u32 %v10921, 7
    %v10923 = vsub.s32 1, %v10922
    %v10924 = vrot.slane %v10896, %v10923
    %v10927 = vmul.f32 %v4972, %v10920
    %v10928 = vmul.f32 %v10915, %v10924
    %v10929 = vlaneseq
    %v10930 = vshrl.u32 %v10929, 7
    %v10931 = vsub.s32 0, %v10930
    %v10932 = vrot.slane %v10927, %v10931
    %v10933 = vlaneseq
    %v10934 = vshrl.u32 %v10933, 7
    %v10935 = vsub.s32 0, %v10934
    %v10936 = vrot.slane %v10928, %v10935
    %v10937 = vmul.f32 %v4952, %v10932
    %v10938 = vmul.f32 %v10905, %v10936
    %v10940 = vlaneseq
    %v10941 = vshrl.u32 %v10940, 7
    %v10942 = vsub.s32 0, %v10941
    %v10943 = vrot.slane %v10897, %v10942
    %v10944 = vlaneseq
    %v10945 = vshrl.u32 %v10944, 7
    %v10946 = vsub.s32 1, %v10945
    %v10947 = vrot.slane %v10897, %v10946
    %v10950 = vadd.f32 %v10937, %v10943
    %v10951 = vadd.f32 %v10938, %v10947
    %v10952 = vmax.f32 %v10950, 0.0
    %v10953 = vmax.f32 %v10951, 0.0
    %v10954 = vpack.c.bf16 %v10952, %v10952
    %v10955 = vpack.c.bf16 %v10953, %v10953
    %v10956 = vld [vmem:[%s17] sm:$0xf]
    %v10957 = vld [vmem:[%s17 + $0x4] sm:$0xf]
    %v10958 = vld [vmem:[%s17 + $0x8] sm:$0xf]
    %v10959 = vld [vmem:[%s17 + $0xc] sm:$0xf]
    %v10960 = vld [vmem:[%s17 + $0x10] sm:$0xf]
    %v10961 = vld [vmem:[%s17 + $0x14] sm:$0xf]
    %v10962 = vld [vmem:[%s17 + $0x18] sm:$0xf]
    %v10963 = vld [vmem:[%s17 + $0x1c] sm:$0xf]
    %v10964 = vld [vmem:[%s17 + $0x20] sm:$0xf]
    %v10965 = vld [vmem:[%s17 + $0x24] sm:$0xf]
    %v10966 = vld [vmem:[%s17 + $0x28] sm:$0xf]
    %v10967 = vld [vmem:[%s17 + $0x2c] sm:$0xf]
    %v10968 = vld [vmem:[%s17 + $0x30] sm:$0xf]
    %v10969 = vld [vmem:[%s17 + $0x34] sm:$0xf]
    %v10970 = vld [vmem:[%s17 + $0x38] sm:$0xf]
    %v10971 = vld [vmem:[%s17 + $0x3c] sm:$0xf]
    %v10972 = vld [vmem:[%s17 + $0x40] sm:$0xf]
    %v10973 = vld [vmem:[%s17 + $0x44] sm:$0xf]
    %v10974 = vld [vmem:[%s17 + $0x48] sm:$0xf]
    %v10975 = vld [vmem:[%s17 + $0x4c] sm:$0xf]
    %v10976 = vld [vmem:[%s17 + $0x50] sm:$0xf]
    %v10977 = vld [vmem:[%s17 + $0x54] sm:$0xf]
    %v10978 = vld [vmem:[%s17 + $0x58] sm:$0xf]
    %v10979 = vld [vmem:[%s17 + $0x5c] sm:$0xf]
    %v10980 = vld [vmem:[%s17 + $0x60] sm:$0xf]
    %v10981 = vld [vmem:[%s17 + $0x64] sm:$0xf]
    %v10982 = vld [vmem:[%s17 + $0x68] sm:$0xf]
    %v10983 = vld [vmem:[%s17 + $0x6c] sm:$0xf]
    %v10984 = vld [vmem:[%s17 + $0x70] sm:$0xf]
    %v10985 = vld [vmem:[%s17 + $0x74] sm:$0xf]
    %v10986 = vld [vmem:[%s17 + $0x78] sm:$0xf]
    %v10987 = vld [vmem:[%s17 + $0x7c] sm:$0xf]
    %v11020 = vunpack.c.l.b16 %v10956
    %v11021 = vunpack.c.l.b16 %v10957
    %v11022 = vunpack.c.l.b16 %v10958
    %v11023 = vunpack.c.l.b16 %v10959
    %v11024 = vunpack.c.l.b16 %v10960
    %v11025 = vunpack.c.l.b16 %v10961
    %v11026 = vunpack.c.l.b16 %v10962
    %v11027 = vunpack.c.l.b16 %v10963
    %v11028 = vunpack.c.l.b16 %v10964
    %v11029 = vunpack.c.l.b16 %v10965
    %v11030 = vunpack.c.l.b16 %v10966
    %v11031 = vunpack.c.l.b16 %v10967
    %v11032 = vunpack.c.l.b16 %v10968
    %v11033 = vunpack.c.l.b16 %v10969
    %v11034 = vunpack.c.l.b16 %v10970
    %v11035 = vunpack.c.l.b16 %v10971
    %v11036 = vunpack.c.l.b16 %v10972
    %v11037 = vunpack.c.l.b16 %v10973
    %v11038 = vunpack.c.l.b16 %v10974
    %v11039 = vunpack.c.l.b16 %v10975
    %v11040 = vunpack.c.l.b16 %v10976
    %v11041 = vunpack.c.l.b16 %v10977
    %v11042 = vunpack.c.l.b16 %v10978
    %v11043 = vunpack.c.l.b16 %v10979
    %v11044 = vunpack.c.l.b16 %v10980
    %v11045 = vunpack.c.l.b16 %v10981
    %v11046 = vunpack.c.l.b16 %v10982
    %v11047 = vunpack.c.l.b16 %v10983
    %v11048 = vunpack.c.l.b16 %v10984
    %v11049 = vunpack.c.l.b16 %v10985
    %v11050 = vunpack.c.l.b16 %v10986
    %v11051 = vunpack.c.l.b16 %v10987
    %v11052 = vpack.c.b16 %v11021, %v11020
    %v11053 = vpack.c.b16 %v11023, %v11022
    %v11054 = vpack.c.b16 %v11025, %v11024
    %v11055 = vpack.c.b16 %v11027, %v11026
    %v11056 = vpack.c.b16 %v11029, %v11028
    %v11057 = vpack.c.b16 %v11031, %v11030
    %v11058 = vpack.c.b16 %v11033, %v11032
    %v11059 = vpack.c.b16 %v11035, %v11034
    %v11060 = vpack.c.b16 %v11037, %v11036
    %v11061 = vpack.c.b16 %v11039, %v11038
    %v11062 = vpack.c.b16 %v11041, %v11040
    %v11063 = vpack.c.b16 %v11043, %v11042
    %v11064 = vpack.c.b16 %v11045, %v11044
    %v11065 = vpack.c.b16 %v11047, %v11046
    %v11066 = vpack.c.b16 %v11049, %v11048
    %v11067 = vpack.c.b16 %v11051, %v11050
    %11084 = vmatprep.subr.bf16.mxu0 0
    %11085 = vmatpush1.bf16.msra.mxu0 %v11059
    %11086 = vmatprep.subr.bf16.mxu0 0
    %11087 = vmatpush1.bf16.msra.mxu0 %v11058
    %11088 = vmatprep.subr.bf16.mxu0 0
    %11089 = vmatpush1.bf16.msra.mxu0 %v11057
    %11090 = vmatprep.subr.bf16.mxu0 0
    %11091 = vmatpush1.bf16.msra.mxu0 %v11056
    %11092 = vmatprep.subr.bf16.mxu0 0
    %11093 = vmatpush1.bf16.msra.mxu0 %v11055
    %11094 = vmatprep.subr.bf16.mxu0 0
    %11095 = vmatpush1.bf16.msra.mxu0 %v11054
    %11096 = vmatprep.subr.bf16.mxu0 0
    %11097 = vmatpush1.bf16.msra.mxu0 %v11053
    %11098 = vmatprep.subr.bf16.mxu0 0
    %11099 = vmatpush1.bf16.msra.mxu0 %v11052
    %11100 = vmatprep.subr.bf16.mxu0 0
    %11101 = vmatpush2.bf16.msra.mxu0 %v11067
    %11102 = vmatprep.subr.bf16.mxu0 0
    %11103 = vmatpush2.bf16.msra.mxu0 %v11066
    %11104 = vmatprep.subr.bf16.mxu0 0
    %11105 = vmatpush2.bf16.msra.mxu0 %v11065
    %11106 = vmatprep.subr.bf16.mxu0 0
    %11107 = vmatpush2.bf16.msra.mxu0 %v11064
    %11108 = vmatprep.subr.bf16.mxu0 0
    %11109 = vmatpush2.bf16.msra.mxu0 %v11063
    %11110 = vmatprep.subr.bf16.mxu0 0
    %11111 = vmatpush2.bf16.msra.mxu0 %v11062
    %11112 = vmatprep.subr.bf16.mxu0 0
    %11113 = vmatpush2.bf16.msra.mxu0 %v11061
    %11114 = vmatprep.subr.bf16.mxu0 0
    %11115 = vmatpush2.bf16.msra.mxu0 %v11060
    %11116 = vmatprep.mubr.bf16.mxu0 %v10955
    %11117 = vmatmul.mubr.bf16.gmra.mxu0 %v10954
    %v11118 = vpop.f32.mrf.mxu0
    %v11119 = vadd.f32 0.0, %v11118
    %v11120 = vpop.f32.mrf.mxu0
    %v11121 = vpop.f32.mrf.mxu0
    %v11122 = vpop.f32.mrf.mxu0
    %11123 = vdwg.mxu0
    %v11124 = vld [vmem:[%s16] sm:$0x1]
    %v11125 = vpack.c.bf16 %v11119, %v11119
    %v11127 = vsel %vm5303, %v11124, 0
    %v11130 = vsel %vm5307, %v11125, 0
    %11132 = vmatprep.subr.bf16.mxu0 0
    %11133 = vmatpush1.bf16.msra.mxu0 0
    %11134 = vmatprep.subr.bf16.mxu0 0
    %11135 = vmatpush1.bf16.msra.mxu0 0
    %11136 = vmatprep.subr.bf16.mxu0 0
    %11137 = vmatpush1.bf16.msra.mxu0 0
    %11138 = vmatprep.subr.bf16.mxu0 0
    %11139 = vmatpush1.bf16.msra.mxu0 0
    %11140 = vmatprep.subr.bf16.mxu0 0
    %11141 = vmatpush1.bf16.msra.mxu0 0
    %11142 = vmatprep.subr.bf16.mxu0 0
    %11143 = vmatpush1.bf16.msra.mxu0 0
    %11144 = vmatprep.subr.bf16.mxu0 0
    %11145 = vmatpush1.bf16.msra.mxu0 0
    %11146 = vmatprep.subr.bf16.mxu0 0
    %11147 = vmatpush1.bf16.msra.mxu0 %v11130
    %11148 = vmatprep.subr.bf16.mxu0 0
    %11149 = vmatpush2.bf16.msra.mxu0 0
    %11150 = vmatprep.subr.bf16.mxu0 0
    %11151 = vmatpush2.bf16.msra.mxu0 0
    %11152 = vmatprep.subr.bf16.mxu0 0
    %11153 = vmatpush2.bf16.msra.mxu0 0
    %11154 = vmatprep.subr.bf16.mxu0 0
    %11155 = vmatpush2.bf16.msra.mxu0 0
    %11156 = vmatprep.subr.bf16.mxu0 0
    %11157 = vmatpush2.bf16.msra.mxu0 0
    %11158 = vmatprep.subr.bf16.mxu0 0
    %11159 = vmatpush2.bf16.msra.mxu0 0
    %11160 = vmatprep.subr.bf16.mxu0 0
    %11161 = vmatpush2.bf16.msra.mxu0 0
    %11162 = vmatprep.subr.bf16.mxu0 0
    %11163 = vmatpush2.bf16.msra.mxu0 0
    %11164 = vmatprep.mubr.bf16.mxu0 0
    %11165 = vmatmul.mubr.bf16.gmra.mxu0 %v11127
    %v11166 = vpop.f32.mrf.mxu0
    %v11167 = vadd.f32 0.0, %v11166
    %v11168 = vpop.f32.mrf.mxu0
    %v11169 = vpop.f32.mrf.mxu0
    %v11170 = vpop.f32.mrf.mxu0
    %11171 = vdwg.mxu0
    %v11172 = vld [vmem:[%s18] sm:$0x1]
    %v11173 = vld [vmem:[%s19] sm:$0x1]
    %vm11174 = vcmask 1041408
    %v11175 = vsel %vm11174, %v11167, 0.0
    %v11176 = vrot.slane %v11175, 4
    %v11177 = vadd.f32 %v11175, %v11176
    %v11178 = vrot.slane %v11177, 2
    %v11179 = vadd.f32 %v11177, %v11178
    %v11180 = vrot.slane %v11179, 1
    %v11181 = vadd.f32 %v11179, %v11180
    %v11182 = vrcp.pop 2.0
    %v11183 = vmul.f32 %v11181, %v11182
    %v11184 = vsub.f32 %v11167, %v11183
    %v11185 = vmul.f32 %v11184, %v11184
    %v11186 = vsel %vm11174, %v11185, 0.0
    %v11187 = vrot.slane %v11186, 4
    %v11188 = vadd.f32 %v11186, %v11187
    %v11189 = vrot.slane %v11188, 2
    %v11190 = vadd.f32 %v11188, %v11189
    %v11191 = vrot.slane %v11190, 1
    %v11192 = vadd.f32 %v11190, %v11191
    %v11193 = vmul.f32 %v11192, %v11182
    %v11194 = vadd.f32 %v11193, 1e-05
    %v11195 = vrsqrt.pop %v11194
    %v11196 = vmul.f32 %v11195, %v11172
    %v11197 = vlaneseq
    %v11198 = vshrl.u32 %v11197, 7
    %v11199 = vsub.s32 0, %v11198
    %v11200 = vrot.slane %v11196, %v11199
    %v11201 = vmul.f32 %v11184, %v11200
    %v11202 = vlaneseq
    %v11203 = vshrl.u32 %v11202, 7
    %v11204 = vsub.s32 0, %v11203
    %v11205 = vrot.slane %v11173, %v11204
    %v11206 = vadd.f32 %v11201, %v11205
    %v11207 = vmax.f32 %v11206, 0.0
    %v11208 = vpack.c.bf16 %v11207, %v11207
    %v11209 = vld [vmem:[%s20] sm:$0xf]
    %v11210 = vld [vmem:[%s20 + $0x4] sm:$0xf]
    %v11211 = vld [vmem:[%s20 + $0x8] sm:$0xf]
    %v11212 = vld [vmem:[%s20 + $0xc] sm:$0xf]
    %v11213 = vld [vmem:[%s20 + $0x10] sm:$0xf]
    %v11214 = vld [vmem:[%s20 + $0x14] sm:$0xf]
    %v11215 = vld [vmem:[%s20 + $0x18] sm:$0xf]
    %v11216 = vld [vmem:[%s20 + $0x1c] sm:$0xf]
    %v11217 = vld [vmem:[%s20 + $0x20] sm:$0xf]
    %v11218 = vld [vmem:[%s20 + $0x24] sm:$0xf]
    %v11219 = vld [vmem:[%s20 + $0x28] sm:$0xf]
    %v11220 = vld [vmem:[%s20 + $0x2c] sm:$0xf]
    %v11221 = vld [vmem:[%s20 + $0x30] sm:$0xf]
    %v11222 = vld [vmem:[%s20 + $0x34] sm:$0xf]
    %v11223 = vld [vmem:[%s20 + $0x38] sm:$0xf]
    %v11224 = vld [vmem:[%s20 + $0x3c] sm:$0xf]
    %v11241 = vunpack.c.l.b16 %v11209
    %v11242 = vunpack.c.l.b16 %v11210
    %v11243 = vunpack.c.l.b16 %v11211
    %v11244 = vunpack.c.l.b16 %v11212
    %v11245 = vunpack.c.l.b16 %v11213
    %v11246 = vunpack.c.l.b16 %v11214
    %v11247 = vunpack.c.l.b16 %v11215
    %v11248 = vunpack.c.l.b16 %v11216
    %v11249 = vunpack.c.l.b16 %v11217
    %v11250 = vunpack.c.l.b16 %v11218
    %v11251 = vunpack.c.l.b16 %v11219
    %v11252 = vunpack.c.l.b16 %v11220
    %v11253 = vunpack.c.l.b16 %v11221
    %v11254 = vunpack.c.l.b16 %v11222
    %v11255 = vunpack.c.l.b16 %v11223
    %v11256 = vunpack.c.l.b16 %v11224
    %v11257 = vpack.c.b16 %v11242, %v11241
    %v11258 = vpack.c.b16 %v11244, %v11243
    %v11259 = vpack.c.b16 %v11246, %v11245
    %v11260 = vpack.c.b16 %v11248, %v11247
    %v11261 = vpack.c.b16 %v11250, %v11249
    %v11262 = vpack.c.b16 %v11252, %v11251
    %v11263 = vpack.c.b16 %v11254, %v11253
    %v11264 = vpack.c.b16 %v11256, %v11255
    %11273 = vmatprep.subr.bf16.mxu0 0
    %11274 = vmatpush1.bf16.msra.mxu0 %v11264
    %11275 = vmatprep.subr.bf16.mxu0 0
    %11276 = vmatpush1.bf16.msra.mxu0 %v11263
    %11277 = vmatprep.subr.bf16.mxu0 0
    %11278 = vmatpush1.bf16.msra.mxu0 %v11262
    %11279 = vmatprep.subr.bf16.mxu0 0
    %11280 = vmatpush1.bf16.msra.mxu0 %v11261
    %11281 = vmatprep.subr.bf16.mxu0 0
    %11282 = vmatpush1.bf16.msra.mxu0 %v11260
    %11283 = vmatprep.subr.bf16.mxu0 0
    %11284 = vmatpush1.bf16.msra.mxu0 %v11259
    %11285 = vmatprep.subr.bf16.mxu0 0
    %11286 = vmatpush1.bf16.msra.mxu0 %v11258
    %11287 = vmatprep.subr.bf16.mxu0 0
    %11288 = vmatpush1.bf16.msra.mxu0 %v11257
    %11289 = vmatprep.subr.bf16.mxu0 0
    %11290 = vmatpush2.bf16.msra.mxu0 0
    %11291 = vmatprep.subr.bf16.mxu0 0
    %11292 = vmatpush2.bf16.msra.mxu0 0
    %11293 = vmatprep.subr.bf16.mxu0 0
    %11294 = vmatpush2.bf16.msra.mxu0 0
    %11295 = vmatprep.subr.bf16.mxu0 0
    %11296 = vmatpush2.bf16.msra.mxu0 0
    %11297 = vmatprep.subr.bf16.mxu0 0
    %11298 = vmatpush2.bf16.msra.mxu0 0
    %11299 = vmatprep.subr.bf16.mxu0 0
    %11300 = vmatpush2.bf16.msra.mxu0 0
    %11301 = vmatprep.subr.bf16.mxu0 0
    %11302 = vmatpush2.bf16.msra.mxu0 0
    %11303 = vmatprep.subr.bf16.mxu0 0
    %11304 = vmatpush2.bf16.msra.mxu0 0
    %11305 = vmatprep.mubr.bf16.mxu0 0
    %11306 = vmatmul.mubr.bf16.gmra.mxu0 %v11208
    %v11307 = vpop.f32.mrf.mxu0
    %v11308 = vadd.f32 0.0, %v11307
    %v11309 = vpop.f32.mrf.mxu0
    %v11310 = vpop.f32.mrf.mxu0
    %v11311 = vpop.f32.mrf.mxu0
    %11312 = vdwg.mxu0
    %v11313 = vadd.f32 %v11167, %v11308
    %v11314 = vld [vmem:[%s18 + $0x1] sm:$0x1]
    %v11315 = vld [vmem:[%s19 + $0x1] sm:$0x1]
    %v11316 = vsel %vm11174, %v11313, 0.0
    %v11317 = vrot.slane %v11316, 4
    %v11318 = vadd.f32 %v11316, %v11317
    %v11319 = vrot.slane %v11318, 2
    %v11320 = vadd.f32 %v11318, %v11319
    %v11321 = vrot.slane %v11320, 1
    %v11322 = vadd.f32 %v11320, %v11321
    %v11323 = vmul.f32 %v11322, %v11182
    %v11324 = vsub.f32 %v11313, %v11323
    %v11325 = vmul.f32 %v11324, %v11324
    %v11326 = vsel %vm11174, %v11325, 0.0
    %v11327 = vrot.slane %v11326, 4
    %v11328 = vadd.f32 %v11326, %v11327
    %v11329 = vrot.slane %v11328, 2
    %v11330 = vadd.f32 %v11328, %v11329
    %v11331 = vrot.slane %v11330, 1
    %v11332 = vadd.f32 %v11330, %v11331
    %v11333 = vmul.f32 %v11332, %v11182
    %v11334 = vadd.f32 %v11333, 1e-05
    %v11335 = vrsqrt.pop %v11334
    %v11336 = vmul.f32 %v11335, %v11314
    %v11337 = vlaneseq
    %v11338 = vshrl.u32 %v11337, 7
    %v11339 = vsub.s32 0, %v11338
    %v11340 = vrot.slane %v11336, %v11339
    %v11341 = vmul.f32 %v11324, %v11340
    %v11342 = vlaneseq
    %v11343 = vshrl.u32 %v11342, 7
    %v11344 = vsub.s32 0, %v11343
    %v11345 = vrot.slane %v11315, %v11344
    %v11346 = vadd.f32 %v11341, %v11345
    %v11347 = vmax.f32 %v11346, 0.0
    %v11348 = vpack.c.bf16 %v11347, %v11347
    %s11349 = scalar_lea.vmem %s20, 64
    %v11350 = vld [vmem:[%s11349] sm:$0xf]
    %v11351 = vld [vmem:[%s11349 + $0x4] sm:$0xf]
    %v11352 = vld [vmem:[%s11349 + $0x8] sm:$0xf]
    %v11353 = vld [vmem:[%s11349 + $0xc] sm:$0xf]
    %v11354 = vld [vmem:[%s11349 + $0x10] sm:$0xf]
    %v11355 = vld [vmem:[%s11349 + $0x14] sm:$0xf]
    %v11356 = vld [vmem:[%s11349 + $0x18] sm:$0xf]
    %v11357 = vld [vmem:[%s11349 + $0x1c] sm:$0xf]
    %v11358 = vld [vmem:[%s11349 + $0x20] sm:$0xf]
    %v11359 = vld [vmem:[%s11349 + $0x24] sm:$0xf]
    %v11360 = vld [vmem:[%s11349 + $0x28] sm:$0xf]
    %v11361 = vld [vmem:[%s11349 + $0x2c] sm:$0xf]
    %v11362 = vld [vmem:[%s11349 + $0x30] sm:$0xf]
    %v11363 = vld [vmem:[%s11349 + $0x34] sm:$0xf]
    %v11364 = vld [vmem:[%s11349 + $0x38] sm:$0xf]
    %v11365 = vld [vmem:[%s11349 + $0x3c] sm:$0xf]
    %v11382 = vunpack.c.l.b16 %v11350
    %v11383 = vunpack.c.l.b16 %v11351
    %v11384 = vunpack.c.l.b16 %v11352
    %v11385 = vunpack.c.l.b16 %v11353
    %v11386 = vunpack.c.l.b16 %v11354
    %v11387 = vunpack.c.l.b16 %v11355
    %v11388 = vunpack.c.l.b16 %v11356
    %v11389 = vunpack.c.l.b16 %v11357
    %v11390 = vunpack.c.l.b16 %v11358
    %v11391 = vunpack.c.l.b16 %v11359
    %v11392 = vunpack.c.l.b16 %v11360
    %v11393 = vunpack.c.l.b16 %v11361
    %v11394 = vunpack.c.l.b16 %v11362
    %v11395 = vunpack.c.l.b16 %v11363
    %v11396 = vunpack.c.l.b16 %v11364
    %v11397 = vunpack.c.l.b16 %v11365
    %v11398 = vpack.c.b16 %v11383, %v11382
    %v11399 = vpack.c.b16 %v11385, %v11384
    %v11400 = vpack.c.b16 %v11387, %v11386
    %v11401 = vpack.c.b16 %v11389, %v11388
    %v11402 = vpack.c.b16 %v11391, %v11390
    %v11403 = vpack.c.b16 %v11393, %v11392
    %v11404 = vpack.c.b16 %v11395, %v11394
    %v11405 = vpack.c.b16 %v11397, %v11396
    %11414 = vmatprep.subr.bf16.mxu0 0
    %11415 = vmatpush1.bf16.msra.mxu0 %v11405
    %11416 = vmatprep.subr.bf16.mxu0 0
    %11417 = vmatpush1.bf16.msra.mxu0 %v11404
    %11418 = vmatprep.subr.bf16.mxu0 0
    %11419 = vmatpush1.bf16.msra.mxu0 %v11403
    %11420 = vmatprep.subr.bf16.mxu0 0
    %11421 = vmatpush1.bf16.msra.mxu0 %v11402
    %11422 = vmatprep.subr.bf16.mxu0 0
    %11423 = vmatpush1.bf16.msra.mxu0 %v11401
    %11424 = vmatprep.subr.bf16.mxu0 0
    %11425 = vmatpush1.bf16.msra.mxu0 %v11400
    %11426 = vmatprep.subr.bf16.mxu0 0
    %11427 = vmatpush1.bf16.msra.mxu0 %v11399
    %11428 = vmatprep.subr.bf16.mxu0 0
    %11429 = vmatpush1.bf16.msra.mxu0 %v11398
    %11430 = vmatprep.subr.bf16.mxu0 0
    %11431 = vmatpush2.bf16.msra.mxu0 0
    %11432 = vmatprep.subr.bf16.mxu0 0
    %11433 = vmatpush2.bf16.msra.mxu0 0
    %11434 = vmatprep.subr.bf16.mxu0 0
    %11435 = vmatpush2.bf16.msra.mxu0 0
    %11436 = vmatprep.subr.bf16.mxu0 0
    %11437 = vmatpush2.bf16.msra.mxu0 0
    %11438 = vmatprep.subr.bf16.mxu0 0
    %11439 = vmatpush2.bf16.msra.mxu0 0
    %11440 = vmatprep.subr.bf16.mxu0 0
    %11441 = vmatpush2.bf16.msra.mxu0 0
    %11442 = vmatprep.subr.bf16.mxu0 0
    %11443 = vmatpush2.bf16.msra.mxu0 0
    %11444 = vmatprep.subr.bf16.mxu0 0
    %11445 = vmatpush2.bf16.msra.mxu0 0
    %11446 = vmatprep.mubr.bf16.mxu0 0
    %11447 = vmatmul.mubr.bf16.gmra.mxu0 %v11348
    %v11448 = vpop.f32.mrf.mxu0
    %v11449 = vadd.f32 0.0, %v11448
    %v11450 = vpop.f32.mrf.mxu0
    %v11451 = vpop.f32.mrf.mxu0
    %v11452 = vpop.f32.mrf.mxu0
    %11453 = vdwg.mxu0
    %v11454 = vadd.f32 %v11313, %v11449
    %v11455 = vld [vmem:[%s18 + $0x2] sm:$0x1]
    %v11456 = vld [vmem:[%s19 + $0x2] sm:$0x1]
    %v11457 = vsel %vm11174, %v11454, 0.0
    %v11458 = vrot.slane %v11457, 4
    %v11459 = vadd.f32 %v11457, %v11458
    %v11460 = vrot.slane %v11459, 2
    %v11461 = vadd.f32 %v11459, %v11460
    %v11462 = vrot.slane %v11461, 1
    %v11463 = vadd.f32 %v11461, %v11462
    %v11464 = vmul.f32 %v11463, %v11182
    %v11465 = vsub.f32 %v11454, %v11464
    %v11466 = vmul.f32 %v11465, %v11465
    %v11467 = vsel %vm11174, %v11466, 0.0
    %v11468 = vrot.slane %v11467, 4
    %v11469 = vadd.f32 %v11467, %v11468
    %v11470 = vrot.slane %v11469, 2
    %v11471 = vadd.f32 %v11469, %v11470
    %v11472 = vrot.slane %v11471, 1
    %v11473 = vadd.f32 %v11471, %v11472
    %v11474 = vmul.f32 %v11473, %v11182
    %v11475 = vadd.f32 %v11474, 1e-05
    %v11476 = vrsqrt.pop %v11475
    %v11477 = vmul.f32 %v11476, %v11455
    %v11478 = vlaneseq
    %v11479 = vshrl.u32 %v11478, 7
    %v11480 = vsub.s32 0, %v11479
    %v11481 = vrot.slane %v11477, %v11480
    %v11482 = vmul.f32 %v11465, %v11481
    %v11483 = vlaneseq
    %v11484 = vshrl.u32 %v11483, 7
    %v11485 = vsub.s32 0, %v11484
    %v11486 = vrot.slane %v11456, %v11485
    %v11487 = vadd.f32 %v11482, %v11486
    %v11488 = vmax.f32 %v11487, 0.0
    %v11489 = vpack.c.bf16 %v11488, %v11488
    %s11490 = scalar_lea.vmem %s20, 128
    %v11491 = vld [vmem:[%s11490] sm:$0xf]
    %v11492 = vld [vmem:[%s11490 + $0x4] sm:$0xf]
    %v11493 = vld [vmem:[%s11490 + $0x8] sm:$0xf]
    %v11494 = vld [vmem:[%s11490 + $0xc] sm:$0xf]
    %v11495 = vld [vmem:[%s11490 + $0x10] sm:$0xf]
    %v11496 = vld [vmem:[%s11490 + $0x14] sm:$0xf]
    %v11497 = vld [vmem:[%s11490 + $0x18] sm:$0xf]
    %v11498 = vld [vmem:[%s11490 + $0x1c] sm:$0xf]
    %v11499 = vld [vmem:[%s11490 + $0x20] sm:$0xf]
    %v11500 = vld [vmem:[%s11490 + $0x24] sm:$0xf]
    %v11501 = vld [vmem:[%s11490 + $0x28] sm:$0xf]
    %v11502 = vld [vmem:[%s11490 + $0x2c] sm:$0xf]
    %v11503 = vld [vmem:[%s11490 + $0x30] sm:$0xf]
    %v11504 = vld [vmem:[%s11490 + $0x34] sm:$0xf]
    %v11505 = vld [vmem:[%s11490 + $0x38] sm:$0xf]
    %v11506 = vld [vmem:[%s11490 + $0x3c] sm:$0xf]
    %v11523 = vunpack.c.l.b16 %v11491
    %v11524 = vunpack.c.l.b16 %v11492
    %v11525 = vunpack.c.l.b16 %v11493
    %v11526 = vunpack.c.l.b16 %v11494
    %v11527 = vunpack.c.l.b16 %v11495
    %v11528 = vunpack.c.l.b16 %v11496
    %v11529 = vunpack.c.l.b16 %v11497
    %v11530 = vunpack.c.l.b16 %v11498
    %v11531 = vunpack.c.l.b16 %v11499
    %v11532 = vunpack.c.l.b16 %v11500
    %v11533 = vunpack.c.l.b16 %v11501
    %v11534 = vunpack.c.l.b16 %v11502
    %v11535 = vunpack.c.l.b16 %v11503
    %v11536 = vunpack.c.l.b16 %v11504
    %v11537 = vunpack.c.l.b16 %v11505
    %v11538 = vunpack.c.l.b16 %v11506
    %v11539 = vpack.c.b16 %v11524, %v11523
    %v11540 = vpack.c.b16 %v11526, %v11525
    %v11541 = vpack.c.b16 %v11528, %v11527
    %v11542 = vpack.c.b16 %v11530, %v11529
    %v11543 = vpack.c.b16 %v11532, %v11531
    %v11544 = vpack.c.b16 %v11534, %v11533
    %v11545 = vpack.c.b16 %v11536, %v11535
    %v11546 = vpack.c.b16 %v11538, %v11537
    %11555 = vmatprep.subr.bf16.mxu0 0
    %11556 = vmatpush1.bf16.msra.mxu0 %v11546
    %11557 = vmatprep.subr.bf16.mxu0 0
    %11558 = vmatpush1.bf16.msra.mxu0 %v11545
    %11559 = vmatprep.subr.bf16.mxu0 0
    %11560 = vmatpush1.bf16.msra.mxu0 %v11544
    %11561 = vmatprep.subr.bf16.mxu0 0
    %11562 = vmatpush1.bf16.msra.mxu0 %v11543
    %11563 = vmatprep.subr.bf16.mxu0 0
    %11564 = vmatpush1.bf16.msra.mxu0 %v11542
    %11565 = vmatprep.subr.bf16.mxu0 0
    %11566 = vmatpush1.bf16.msra.mxu0 %v11541
    %11567 = vmatprep.subr.bf16.mxu0 0
    %11568 = vmatpush1.bf16.msra.mxu0 %v11540
    %11569 = vmatprep.subr.bf16.mxu0 0
    %11570 = vmatpush1.bf16.msra.mxu0 %v11539
    %11571 = vmatprep.subr.bf16.mxu0 0
    %11572 = vmatpush2.bf16.msra.mxu0 0
    %11573 = vmatprep.subr.bf16.mxu0 0
    %11574 = vmatpush2.bf16.msra.mxu0 0
    %11575 = vmatprep.subr.bf16.mxu0 0
    %11576 = vmatpush2.bf16.msra.mxu0 0
    %11577 = vmatprep.subr.bf16.mxu0 0
    %11578 = vmatpush2.bf16.msra.mxu0 0
    %11579 = vmatprep.subr.bf16.mxu0 0
    %11580 = vmatpush2.bf16.msra.mxu0 0
    %11581 = vmatprep.subr.bf16.mxu0 0
    %11582 = vmatpush2.bf16.msra.mxu0 0
    %11583 = vmatprep.subr.bf16.mxu0 0
    %11584 = vmatpush2.bf16.msra.mxu0 0
    %11585 = vmatprep.subr.bf16.mxu0 0
    %11586 = vmatpush2.bf16.msra.mxu0 0
    %11587 = vmatprep.mubr.bf16.mxu0 0
    %11588 = vmatmul.mubr.bf16.gmra.mxu0 %v11489
    %v11589 = vpop.f32.mrf.mxu0
    %v11590 = vadd.f32 0.0, %v11589
    %v11591 = vpop.f32.mrf.mxu0
    %v11592 = vpop.f32.mrf.mxu0
    %v11593 = vpop.f32.mrf.mxu0
    %11594 = vdwg.mxu0
    %v11595 = vadd.f32 %v11454, %v11590
    %v11596 = vld [vmem:[%s21] sm:$0x1]
    %v11597 = vpack.c.bf16 %v11595, %v11595
    %vm11598 = vcmask 15360
    %v11600 = vsel %vm11598, %v11596, 0
    %vm11602 = vcmask 1040384
    %v11604 = vsel %vm11602, %v11597, 0
    %11606 = vmatprep.subr.bf16.mxu0 0
    %11607 = vmatpush1.bf16.msra.mxu0 0
    %11608 = vmatprep.subr.bf16.mxu0 0
    %11609 = vmatpush1.bf16.msra.mxu0 0
    %11610 = vmatprep.subr.bf16.mxu0 0
    %11611 = vmatpush1.bf16.msra.mxu0 0
    %11612 = vmatprep.subr.bf16.mxu0 0
    %11613 = vmatpush1.bf16.msra.mxu0 0
    %11614 = vmatprep.subr.bf16.mxu0 0
    %11615 = vmatpush1.bf16.msra.mxu0 0
    %11616 = vmatprep.subr.bf16.mxu0 0
    %11617 = vmatpush1.bf16.msra.mxu0 0
    %11618 = vmatprep.subr.bf16.mxu0 0
    %11619 = vmatpush1.bf16.msra.mxu0 0
    %11620 = vmatprep.subr.bf16.mxu0 0
    %11621 = vmatpush1.bf16.msra.mxu0 %v11604
    %11622 = vmatprep.subr.bf16.mxu0 0
    %11623 = vmatpush2.bf16.msra.mxu0 0
    %11624 = vmatprep.subr.bf16.mxu0 0
    %11625 = vmatpush2.bf16.msra.mxu0 0
    %11626 = vmatprep.subr.bf16.mxu0 0
    %11627 = vmatpush2.bf16.msra.mxu0 0
    %11628 = vmatprep.subr.bf16.mxu0 0
    %11629 = vmatpush2.bf16.msra.mxu0 0
    %11630 = vmatprep.subr.bf16.mxu0 0
    %11631 = vmatpush2.bf16.msra.mxu0 0
    %11632 = vmatprep.subr.bf16.mxu0 0
    %11633 = vmatpush2.bf16.msra.mxu0 0
    %11634 = vmatprep.subr.bf16.mxu0 0
    %11635 = vmatpush2.bf16.msra.mxu0 0
    %11636 = vmatprep.subr.bf16.mxu0 0
    %11637 = vmatpush2.bf16.msra.mxu0 0
    %11638 = vmatprep.mubr.bf16.mxu0 0
    %11639 = vmatmul.mubr.bf16.gmra.mxu0 %v11600
    %v11640 = vpop.f32.mrf.mxu0
    %v11641 = vadd.f32 0.0, %v11640
    %v11642 = vpop.f32.mrf.mxu0
    %v11643 = vpop.f32.mrf.mxu0
    %v11644 = vpop.f32.mrf.mxu0
    %11645 = vdwg.mxu0
    %v11646 = vpack.c.bf16 %v11641, %v11641
    %v11647 = vld [vmem:[%s22] sm:$0xf]
    %v11648 = vld [vmem:[%s22 + $0x4] sm:$0xf]
    %v11649 = vld [vmem:[%s22 + $0x8] sm:$0xf]
    %v11650 = vld [vmem:[%s22 + $0xc] sm:$0xf]
    %v11651 = vld [vmem:[%s22 + $0x10] sm:$0xf]
    %v11652 = vld [vmem:[%s22 + $0x14] sm:$0xf]
    %v11653 = vld [vmem:[%s22 + $0x18] sm:$0xf]
    %v11654 = vld [vmem:[%s22 + $0x1c] sm:$0xf]
    %v11655 = vld [vmem:[%s22 + $0x20] sm:$0xf]
    %v11656 = vld [vmem:[%s22 + $0x24] sm:$0xf]
    %v11657 = vld [vmem:[%s22 + $0x28] sm:$0xf]
    %v11658 = vld [vmem:[%s22 + $0x2c] sm:$0xf]
    %v11659 = vld [vmem:[%s22 + $0x30] sm:$0xf]
    %v11660 = vld [vmem:[%s22 + $0x34] sm:$0xf]
    %v11661 = vld [vmem:[%s22 + $0x38] sm:$0xf]
    %v11662 = vld [vmem:[%s22 + $0x3c] sm:$0xf]
    %v11663 = vld [vmem:[%s23] sm:$0x1]
    %v11665 = vlaneseq
    %v11666 = vshrl.u32 %v11665, 7
    %v11667 = vsub.s32 0, %v11666
    %v11668 = vrot.slane %v11663, %v11667
    %v11686 = vunpack.c.l.b16 %v11647
    %v11687 = vunpack.c.l.b16 %v11648
    %v11688 = vunpack.c.l.b16 %v11649
    %v11689 = vunpack.c.l.b16 %v11650
    %v11690 = vunpack.c.l.b16 %v11651
    %v11691 = vunpack.c.l.b16 %v11652
    %v11692 = vunpack.c.l.b16 %v11653
    %v11693 = vunpack.c.l.b16 %v11654
    %v11694 = vunpack.c.l.b16 %v11655
    %v11695 = vunpack.c.l.b16 %v11656
    %v11696 = vunpack.c.l.b16 %v11657
    %v11697 = vunpack.c.l.b16 %v11658
    %v11698 = vunpack.c.l.b16 %v11659
    %v11699 = vunpack.c.l.b16 %v11660
    %v11700 = vunpack.c.l.b16 %v11661
    %v11701 = vunpack.c.l.b16 %v11662
    %v11702 = vpack.c.b16 %v11687, %v11686
    %v11703 = vpack.c.b16 %v11689, %v11688
    %v11704 = vpack.c.b16 %v11691, %v11690
    %v11705 = vpack.c.b16 %v11693, %v11692
    %v11706 = vpack.c.b16 %v11695, %v11694
    %v11707 = vpack.c.b16 %v11697, %v11696
    %v11708 = vpack.c.b16 %v11699, %v11698
    %v11709 = vpack.c.b16 %v11701, %v11700
    %11718 = vmatprep.subr.bf16.mxu0 0
    %11719 = vmatpush1.bf16.msra.mxu0 %v11709
    %11720 = vmatprep.subr.bf16.mxu0 0
    %11721 = vmatpush1.bf16.msra.mxu0 %v11708
    %11722 = vmatprep.subr.bf16.mxu0 0
    %11723 = vmatpush1.bf16.msra.mxu0 %v11707
    %11724 = vmatprep.subr.bf16.mxu0 0
    %11725 = vmatpush1.bf16.msra.mxu0 %v11706
    %11726 = vmatprep.subr.bf16.mxu0 0
    %11727 = vmatpush1.bf16.msra.mxu0 %v11705
    %11728 = vmatprep.subr.bf16.mxu0 0
    %11729 = vmatpush1.bf16.msra.mxu0 %v11704
    %11730 = vmatprep.subr.bf16.mxu0 0
    %11731 = vmatpush1.bf16.msra.mxu0 %v11703
    %11732 = vmatprep.subr.bf16.mxu0 0
    %11733 = vmatpush1.bf16.msra.mxu0 %v11702
    %11734 = vmatprep.subr.bf16.mxu0 0
    %11735 = vmatpush2.bf16.msra.mxu0 0
    %11736 = vmatprep.subr.bf16.mxu0 0
    %11737 = vmatpush2.bf16.msra.mxu0 0
    %11738 = vmatprep.subr.bf16.mxu0 0
    %11739 = vmatpush2.bf16.msra.mxu0 0
    %11740 = vmatprep.subr.bf16.mxu0 0
    %11741 = vmatpush2.bf16.msra.mxu0 0
    %11742 = vmatprep.subr.bf16.mxu0 0
    %11743 = vmatpush2.bf16.msra.mxu0 0
    %11744 = vmatprep.subr.bf16.mxu0 0
    %11745 = vmatpush2.bf16.msra.mxu0 0
    %11746 = vmatprep.subr.bf16.mxu0 0
    %11747 = vmatpush2.bf16.msra.mxu0 0
    %11748 = vmatprep.subr.bf16.mxu0 0
    %11749 = vmatpush2.bf16.msra.mxu0 0
    %11750 = vmatprep.mubr.bf16.mxu0 0
    %11751 = vmatmul.mubr.bf16.gmra.mxu0 %v11646
    %v11752 = vpop.f32.mrf.mxu0
    %v11753 = vadd.f32 %v11668, %v11752
    %v11754 = vpop.f32.mrf.mxu0
    %v11755 = vpop.f32.mrf.mxu0
    %v11756 = vpop.f32.mrf.mxu0
    %11757 = vdwg.mxu0
    %11758 = vst [vmem:[#allocation2] sm:$0x3] %v11753
    // Predicated region
    $region98: #{simple_densenet_forward.1} parent=1 // pred_check
      _
    $region99: #{simple_densenet_forward.1} parent=1 // pred_check_branch
      %11760 = sbr.rel (0) target = $region101
    $region100: #{simple_densenet_forward.1} parent=1 // pred_region
      %s11762 = ssub.s32 32, 32
      %11763 = vsyncadd [#allocation3], %s11762
      %s11765 = sshll.u32 [#allocation2], 4
      %s11766 = int_to_ptr.vmem [resolvable:$true] %s11765
      %11768 = dma.vmem_to_hbm [thread:$0]  %s11766, 32, %s24, [#allocation3]
    $region101: #{simple_densenet_forward.1} parent=1 // pred_fallthru
      _
    // Predicated region
    $region102: #{simple_densenet_forward.1} parent=1 // pred_check
      _
    $region103: #{simple_densenet_forward.1} parent=1 // pred_check_branch
      %11770 = sbr.rel (0) target = $region105
    $region104: #{simple_densenet_forward.1} parent=1 // pred_region
      %11771 = dma.done [#allocation3], 32
    $region105: #{simple_densenet_forward.1} parent=1 // pred_fallthru
      _
    %11772 = vsyncpa [#allocation3], 1

</llo_original>
